<compile_context>
chip_gen: v7x
topology: tpu7x:2x2x1
jax: 0.10.0
libtpu: 0.0.40
codegen_flags: <defaults>
</compile_context>

<pallas_src>
import functools

import jax
import jax.numpy as jnp
from jax.experimental import pallas as pl
from jax.experimental.pallas import tpu as pltpu


def _round_up(n, m):
    return ((n + m - 1) // m) * m


_TM = 256   # M tile (rows of the patch matrix)
_TK = 512   # K tile (multiple of 256 -> full v6e/v7x MXU)


# ------------------------------ Pallas kernels ------------------------------ #
def _matmul_act_kernel(x_ref, w_ref, o_ref, acc_ref, *, negative_slope):
    """Tiled matmul with f32 accumulator and fused LeakyReLU epilogue.

    Grid = (M/tm, K/tk); K is the last ('arbitrary') reduction axis, so the output
    block stays resident while acc_ref accumulates partial sums across K tiles.
    """
    @pl.when(pl.program_id(1) == 0)
    def _init():
        acc_ref[...] = jnp.zeros_like(acc_ref)

    acc_ref[...] += jnp.dot(x_ref[...], w_ref[...],
                            preferred_element_type=jnp.float32)

    @pl.when(pl.program_id(1) == pl.num_programs(1) - 1)
    def _finalize():
        acc = acc_ref[...]
        if negative_slope is not None:
            acc = jnp.where(acc >= 0, acc, negative_slope * acc)
        o_ref[...] = acc.astype(o_ref.dtype)


def _rowdot_kernel(x_ref, w_ref, o_ref):
    """out[m, 0] = sum_k x[m, k] * w[0, k]  (VPU multiply + XLU reduce; no MXU padding)."""
    x = x_ref[...].astype(jnp.float32)
    w = w_ref[...].astype(jnp.float32)
    o_ref[...] = jnp.sum(x * w, axis=-1, keepdims=True)


# ----------------------------- Kernel wrappers ------------------------------ #
def _m_tiling(M, tm=_TM):
    Mp = _round_up(M, 16)
    if Mp <= tm:
        return Mp, Mp
    return _round_up(M, tm), tm


def _k_padded(K, tk=_TK):
    Kp = _round_up(K, 128)
    if Kp <= tk:
        return Kp
    return _round_up(K, tk)


def pallas_matmul_act(x, wp, *, negative_slope=None, out_dtype=jnp.bfloat16):
    """leaky_relu(x @ wp)[:M].  x: (M, K); wp: (Kp, N) bf16, K pre-padded at prep time."""
    M, K = x.shape
    Kp, N = wp.shape
    Mp, tm = _m_tiling(M)
    tk = min(_TK, Kp)
    assert Kp % tk == 0 and Kp >= K

    xb = x.astype(jnp.bfloat16)
    if (Mp, Kp) != (M, K):
        xb = jnp.pad(xb, ((0, Mp - M), (0, Kp - K)))

    out = pl.pallas_call(
        functools.partial(_matmul_act_kernel, negative_slope=negative_slope),
        out_shape=jax.ShapeDtypeStruct((Mp, N), out_dtype),
        grid=(Mp // tm, Kp // tk),
        in_specs=[
            pl.BlockSpec((tm, tk), lambda i, k: (i, k)),
            pl.BlockSpec((tk, N), lambda i, k: (k, 0)),
        ],
        out_specs=pl.BlockSpec((tm, N), lambda i, k: (i, 0)),
        scratch_shapes=[pltpu.VMEM((tm, N), jnp.float32)],
        compiler_params=pltpu.CompilerParams(
            dimension_semantics=("parallel", "arbitrary")),
    )(xb, wp)
    return out[:M] if Mp != M else out


def pallas_rowdot(x, wrow):
    """(M, K) . (1, K) -> (M, 1) f32   (final Cout=1 conv)."""
    M, K = x.shape
    return pl.pallas_call(
        _rowdot_kernel,
        out_shape=jax.ShapeDtypeStruct((M, 1), jnp.float32),
        grid=(1,),
        in_specs=[
            pl.BlockSpec((M, K), lambda i: (0, 0)),
            pl.BlockSpec((1, K), lambda i: (0, 0)),
        ],
        out_specs=pl.BlockSpec((M, 1), lambda i: (0, 0)),
    )(x.astype(jnp.bfloat16), wrow)


# ------------------------------ Conv via im2col ----------------------------- #
def conv2d_pallas(x_nhwc, wmat, kh, kw, stride, pad, cout, *, negative_slope=None):
    """Conv2d (bias=False) + optional LeakyReLU.  x: NHWC, wmat: pre-padded (Kp, Cout) bf16."""
    B, H, W, Cin = x_nhwc.shape
    x = x_nhwc.astype(jnp.bfloat16)
    if pad:
        x = jnp.pad(x, ((0, 0), (pad, pad), (pad, pad), (0, 0)))
    Hp, Wp = H + 2 * pad, W + 2 * pad
    Ho = (Hp - kh) // stride + 1
    Wo = (Wp - kw) // stride + 1

    # im2col taps ordered (Cin, kh, kw) to match PyTorch's weight.reshape(Cout, -1).
    cols = []
    for i in range(kh):
        for j in range(kw):
            cols.append(x[:, i:i + stride * Ho:stride, j:j + stride * Wo:stride, :])
    col = jnp.stack(cols, axis=-1)                    # (B, Ho, Wo, Cin, kh*kw)
    col = col.reshape(B * Ho * Wo, Cin * kh * kw)     # (M, K)

    out = pallas_matmul_act(col, wmat, negative_slope=negative_slope)
    return out.reshape(B, Ho, Wo, cout)


# -------------------------------- Parameters -------------------------------- #
def init_critic_params(key, num_classes=10, img_channels=1):
    """Deterministic synthetic parameters (DCGAN-style N(0, 0.02) init)."""
    ks = jax.random.split(key, 6)
    input_dim = img_channels + num_classes

    def w(k, shape):
        return (0.02 * jax.random.normal(k, shape)).astype(jnp.float32)

    return {
        "label_emb": jax.random.normal(ks[0], (num_classes, num_classes)).astype(jnp.float32),
        "w1": w(ks[1], (64, input_dim, 4, 4)),    # Conv2d(input_dim, 64, 4, 2, 1)
        "w2": w(ks[2], (128, 64, 4, 4)),          # Conv2d(64, 128, 4, 2, 1)
        "w3": w(ks[3], (256, 128, 4, 4)),         # Conv2d(128, 256, 4, 2, 1)
        "w4": w(ks[4], (512, 256, 4, 4)),         # Conv2d(256, 512, 4, 2, 1)
        "w5": w(ks[5], (1, 512, 4, 4)),           # Conv2d(512, 1, 4, 1, 0)
    }


def prepare_critic_params(params):
    """One-time weight relayout: OIHW -> (Kp, Cout) bf16 matmul operands (no per-call copies)."""
    def prep(w):
        cout, cin, kh, kw = w.shape
        K = cin * kh * kw
        wm = w.reshape(cout, K).T.astype(jnp.bfloat16)    # (K, Cout), (Cin, kh, kw) row order
        Kp = _k_padded(K)
        if Kp != K:
            wm = jnp.pad(wm, ((0, Kp - K), (0, 0)))
        return wm

    return {
        "label_emb": params["label_emb"],
        "w1": prep(params["w1"]),
        "w2": prep(params["w2"]),
        "w3": prep(params["w3"]),
        "w4": prep(params["w4"]),
        "w5_row": params["w5"].reshape(1, -1).astype(jnp.bfloat16),   # (1, 512*4*4)
    }


# ------------------------------- Forward pass -------------------------------- #
@jax.jit
def critic_forward(prepared, img_nchw, labels):
    """img: (B, img_channels, 64, 64) NCHW, labels: (B,) int -> (B, 1, 1, 1) f32."""
    B, C, H, W = img_nchw.shape
    x = jnp.transpose(img_nchw, (0, 2, 3, 1)).astype(jnp.float32)    # -> NHWC
    emb = prepared["label_emb"][labels]                              # (B, num_classes)
    emb = jnp.broadcast_to(emb[:, None, None, :], (B, H, W, emb.shape[-1]))
    x = jnp.concatenate([x, emb], axis=-1)                           # channels: [img, label_emb]

    slope = 0.2  # LeakyReLU(0.2); norm_layer='none' -> identity
    x = conv2d_pallas(x, prepared["w1"], 4, 4, 2, 1, 64, negative_slope=slope)   # (B,32,32,64)
    x = conv2d_pallas(x, prepared["w2"], 4, 4, 2, 1, 128, negative_slope=slope)  # (B,16,16,128)
    x = conv2d_pallas(x, prepared["w3"], 4, 4, 2, 1, 256, negative_slope=slope)  # (B,8,8,256)
    x = conv2d_pallas(x, prepared["w4"], 4, 4, 2, 1, 512, negative_slope=slope)  # (B,4,4,512)

    # Final Conv2d(512, 1, 4, 1, 0): 1x1 output, Cout=1 -> VPU row-dot (no MXU N-padding).
    col5 = jnp.transpose(x, (0, 3, 1, 2)).reshape(B, -1)   # (B, 512*16) in (Cin, kh, kw) order
    out = pallas_rowdot(col5, prepared["w5_row"])          # (B, 1) f32
    return out.reshape(B, 1, 1, 1)


# ---------------------------- Pure-JAX references ---------------------------- #
def _conv_ref(x, w, stride, pad, *, bf16):
    if bf16:
        x = x.astype(jnp.bfloat16)
        w = w.astype(jnp.bfloat16)
    return jax.lax.conv_general_dilated(
        x, w, window_strides=(stride, stride),
        padding=((pad, pad), (pad, pad)),
        dimension_numbers=("NCHW", "OIHW", "NCHW"),
        preferred_element_type=jnp.float32)


def critic_reference(params, img_nchw, labels, *, bf16=True):
    """bf16=True matches the kernel's numerics (bf16 MXU inputs, f32 accumulation)."""
    B, C, H, W = img_nchw.shape
    x = img_nchw.astype(jnp.float32)
    emb = params["label_emb"][labels]
    emb = jnp.broadcast_to(emb[:, :, None, None], (B, emb.shape[-1], H, W))
    x = jnp.concatenate([x, emb], axis=1)

    def lrelu(v):
        return jnp.where(v >= 0, v, 0.2 * v)

    x = lrelu(_conv_ref(x, params["w1"], 2, 1, bf16=bf16))
    x = lrelu(_conv_ref(x, params["w2"], 2, 1, bf16=bf16))
    x = lrelu(_conv_ref(x, params["w3"], 2, 1, bf16=bf16))
    x = lrelu(_conv_ref(x, params["w4"], 2, 1, bf16=bf16))
    x = _conv_ref(x, params["w5"], 1, 0, bf16=bf16)
    return x


# ----------------------------------- Main ------------------------------------ #
if __name__ == "__main__":
    key = jax.random.PRNGKey(0)
    k_params, k_img, k_lbl = jax.random.split(key, 3)

    num_classes, img_channels, B = 10, 1, 2
    params = init_critic_params(k_params, num_classes, img_channels)
    prepared = prepare_critic_params(params)

    img = jax.random.normal(k_img, (B, img_channels, 64, 64), dtype=jnp.float32)
    labels = jax.random.randint(k_lbl, (B,), 0, num_classes, dtype=jnp.int32)

    out = jax.block_until_ready(critic_forward(prepared, img, labels))
    assert out.shape == (B, 1, 1, 1), out.shape

    # Same-numerics reference (bf16 operands, f32 accumulation) -> tight check.
    ref_bf16 = jax.block_until_ready(critic_reference(params, img, labels, bf16=True))
    assert jnp.allclose(out, ref_bf16, rtol=1e-2, atol=1e-3), (out, ref_bf16)

    # Loose check against the original full-f32 semantics (only bf16 rounding differs).
    ref_f32 = jax.block_until_ready(critic_reference(params, img, labels, bf16=False))
    assert jnp.allclose(out, ref_f32, rtol=1e-1, atol=5e-2), (out, ref_f32)

    print("KERNEL_OK")
</pallas_src>

<mosaic_0001>
module attributes {stable_mosaic.version = 11 : i64} {
  func.func @_matmul_act_kernel(%arg0: i32, %arg1: i32, %arg2: memref<256x256xbf16, #tpu.memory_space<vmem>>, %arg3: memref<256x64xbf16, #tpu.memory_space<vmem>>, %arg4: memref<256x64xbf16, #tpu.memory_space<vmem>>, %arg5: memref<256x64xf32, #tpu.memory_space<vmem>>) attributes {dimension_semantics = [#tpu.dimension_semantics<parallel>, #tpu.dimension_semantics<arbitrary>], iteration_bounds = array<i64: 8, 1>, scalar_prefetch = 0 : i64, scratch_operands = 1 : i64, tpu.core_type = #tpu.core_type<tc>, window_params = [{transform_indices = @transform_0, window_bounds = array<i64: 256, 256>}, {transform_indices = @transform_1, window_bounds = array<i64: 256, 64>}, {transform_indices = @transform_2, window_bounds = array<i64: 256, 64>}]} {
    %c0_i32 = arith.constant 0 : i32
    %0 = arith.cmpi eq, %arg1, %c0_i32 : i32
    %1 = arith.extui %0 : i1 to i32
    %c0_i32_0 = arith.constant 0 : i32
    %2 = arith.cmpi ne, %1, %c0_i32_0 : i32
    scf.if %2 {
      %cst_10 = arith.constant 0.000000e+00 : f32
      %12 = vector.broadcast %cst_10 : f32 to vector<256x64xf32>
      %c0_11 = arith.constant 0 : index
      %c0_12 = arith.constant 0 : index
      %13 = vector.load %arg5[%c0_11, %c0_12] : memref<256x64xf32, #tpu.memory_space<vmem>>, vector<256x64xf32>
      tpu.vector_store %arg5[%c0_11, %c0_12], %12 {strides = array<i32>} : memref<256x64xf32, #tpu.memory_space<vmem>>, vector<256x64xf32>,
    } else {
    }
    %c0 = arith.constant 0 : index
    %c0_1 = arith.constant 0 : index
    %3 = vector.load %arg5[%c0, %c0_1] : memref<256x64xf32, #tpu.memory_space<vmem>>, vector<256x64xf32>
    %c0_2 = arith.constant 0 : index
    %c0_3 = arith.constant 0 : index
    %4 = vector.load %arg2[%c0_2, %c0_3] : memref<256x256xbf16, #tpu.memory_space<vmem>>, vector<256x256xbf16>
    %c0_4 = arith.constant 0 : index
    %c0_5 = arith.constant 0 : index
    %5 = vector.load %arg3[%c0_4, %c0_5] : memref<256x64xbf16, #tpu.memory_space<vmem>>, vector<256x64xbf16>
    %cst = arith.constant dense<0.000000e+00> : vector<256x64xf32>
    %6 = tpu.matmul %4, %5, %cst {dimension_numbers = #tpu.dot_dimension_numbers<[1], [0], [0], [1], [0, 0, 1, 1], [], []>} : vector<256x256xbf16>, vector<256x64xbf16>, vector<256x64xf32> -> vector<256x64xf32>
    %7 = arith.addf %3, %6 : vector<256x64xf32>
    %c0_6 = arith.constant 0 : index
    %c0_7 = arith.constant 0 : index
    %8 = vector.load %arg5[%c0_6, %c0_7] : memref<256x64xf32, #tpu.memory_space<vmem>>, vector<256x64xf32>
    tpu.vector_store %arg5[%c0_6, %c0_7], %7 {strides = array<i32>} : memref<256x64xf32, #tpu.memory_space<vmem>>, vector<256x64xf32>,
    %c0_i32_8 = arith.constant 0 : i32
    %9 = arith.cmpi eq, %arg1, %c0_i32_8 : i32
    %10 = arith.extui %9 : i1 to i32
    %c0_i32_9 = arith.constant 0 : i32
    %11 = arith.cmpi ne, %10, %c0_i32_9 : i32
    scf.if %11 {
      %c0_10 = arith.constant 0 : index
      %c0_11 = arith.constant 0 : index
      %12 = vector.load %arg5[%c0_10, %c0_11] : memref<256x64xf32, #tpu.memory_space<vmem>>, vector<256x64xf32>
      %cst_12 = arith.constant 0.000000e+00 : f32
      %13 = vector.broadcast %cst_12 : f32 to vector<256x64xf32>
      %14 = arith.cmpf oge, %12, %13 : vector<256x64xf32>
      %cst_13 = arith.constant 2.000000e-01 : f32
      %15 = vector.broadcast %cst_13 : f32 to vector<256x64xf32>
      %16 = arith.mulf %15, %12 : vector<256x64xf32>
      %17 = arith.select %14, %12, %16 : vector<256x64xi1>, vector<256x64xf32>
      %18 = arith.truncf %17 : vector<256x64xf32> to vector<256x64xbf16>
      %c0_14 = arith.constant 0 : index
      %c0_15 = arith.constant 0 : index
      %19 = vector.load %arg4[%c0_14, %c0_15] : memref<256x64xbf16, #tpu.memory_space<vmem>>, vector<256x64xbf16>
      tpu.vector_store %arg4[%c0_14, %c0_15], %18 {strides = array<i32>} : memref<256x64xbf16, #tpu.memory_space<vmem>>, vector<256x64xbf16>,
    } else {
    }
    return
  }
  func.func @transform_0(%arg0: i32, %arg1: i32) -> (i32, i32) {
    %c0_i32 = arith.constant 0 : i32
    return %arg0, %arg1 : i32, i32
  }
  func.func @transform_1(%arg0: i32, %arg1: i32) -> (i32, i32) {
    %c0_i32 = arith.constant 0 : i32
    %c0_i32_0 = arith.constant 0 : i32
    return %arg1, %c0_i32 : i32, i32
  }
  func.func @transform_2(%arg0: i32, %arg1: i32) -> (i32, i32) {
    %c0_i32 = arith.constant 0 : i32
    %c0_i32_0 = arith.constant 0 : i32
    return %arg0, %c0_i32 : i32, i32
  }
}

module attributes {stable_mosaic.version = 11 : i64} {
  func.func @_matmul_act_kernel(%arg0: i32, %arg1: i32, %arg2: memref<256x512xbf16, #tpu.memory_space<vmem>>, %arg3: memref<512x128xbf16, #tpu.memory_space<vmem>>, %arg4: memref<256x128xbf16, #tpu.memory_space<vmem>>, %arg5: memref<256x128xf32, #tpu.memory_space<vmem>>) attributes {dimension_semantics = [#tpu.dimension_semantics<parallel>, #tpu.dimension_semantics<arbitrary>], iteration_bounds = array<i64: 2, 2>, scalar_prefetch = 0 : i64, scratch_operands = 1 : i64, tpu.core_type = #tpu.core_type<tc>, window_params = [{transform_indices = @transform_0, window_bounds = array<i64: 256, 512>}, {transform_indices = @transform_1, window_bounds = array<i64: 512, 128>}, {transform_indices = @transform_2, window_bounds = array<i64: 256, 128>}]} {
    %c0_i32 = arith.constant 0 : i32
    %0 = arith.cmpi eq, %arg1, %c0_i32 : i32
    %1 = arith.extui %0 : i1 to i32
    %c0_i32_0 = arith.constant 0 : i32
    %2 = arith.cmpi ne, %1, %c0_i32_0 : i32
    scf.if %2 {
      %cst_9 = arith.constant 0.000000e+00 : f32
      %12 = vector.broadcast %cst_9 : f32 to vector<256x128xf32>
      %c0_10 = arith.constant 0 : index
      %c0_11 = arith.constant 0 : index
      %13 = vector.load %arg5[%c0_10, %c0_11] : memref<256x128xf32, #tpu.memory_space<vmem>>, vector<256x128xf32>
      tpu.vector_store %arg5[%c0_10, %c0_11], %12 {strides = array<i32>} : memref<256x128xf32, #tpu.memory_space<vmem>>, vector<256x128xf32>,
    } else {
    }
    %c0 = arith.constant 0 : index
    %c0_1 = arith.constant 0 : index
    %3 = vector.load %arg5[%c0, %c0_1] : memref<256x128xf32, #tpu.memory_space<vmem>>, vector<256x128xf32>
    %c0_2 = arith.constant 0 : index
    %c0_3 = arith.constant 0 : index
    %4 = vector.load %arg2[%c0_2, %c0_3] : memref<256x512xbf16, #tpu.memory_space<vmem>>, vector<256x512xbf16>
    %c0_4 = arith.constant 0 : index
    %c0_5 = arith.constant 0 : index
    %5 = vector.load %arg3[%c0_4, %c0_5] : memref<512x128xbf16, #tpu.memory_space<vmem>>, vector<512x128xbf16>
    %cst = arith.constant dense<0.000000e+00> : vector<256x128xf32>
    %6 = tpu.matmul %4, %5, %cst {dimension_numbers = #tpu.dot_dimension_numbers<[1], [0], [0], [1], [0, 0, 1, 1], [], []>} : vector<256x512xbf16>, vector<512x128xbf16>, vector<256x128xf32> -> vector<256x128xf32>
    %7 = arith.addf %3, %6 : vector<256x128xf32>
    %c0_6 = arith.constant 0 : index
    %c0_7 = arith.constant 0 : index
    %8 = vector.load %arg5[%c0_6, %c0_7] : memref<256x128xf32, #tpu.memory_space<vmem>>, vector<256x128xf32>
    tpu.vector_store %arg5[%c0_6, %c0_7], %7 {strides = array<i32>} : memref<256x128xf32, #tpu.memory_space<vmem>>, vector<256x128xf32>,
    %c1_i32 = arith.constant 1 : i32
    %9 = arith.cmpi eq, %arg1, %c1_i32 : i32
    %10 = arith.extui %9 : i1 to i32
    %c0_i32_8 = arith.constant 0 : i32
    %11 = arith.cmpi ne, %10, %c0_i32_8 : i32
    scf.if %11 {
      %c0_9 = arith.constant 0 : index
      %c0_10 = arith.constant 0 : index
      %12 = vector.load %arg5[%c0_9, %c0_10] : memref<256x128xf32, #tpu.memory_space<vmem>>, vector<256x128xf32>
      %cst_11 = arith.constant 0.000000e+00 : f32
      %13 = vector.broadcast %cst_11 : f32 to vector<256x128xf32>
      %14 = arith.cmpf oge, %12, %13 : vector<256x128xf32>
      %cst_12 = arith.constant 2.000000e-01 : f32
      %15 = vector.broadcast %cst_12 : f32 to vector<256x128xf32>
      %16 = arith.mulf %15, %12 : vector<256x128xf32>
      %17 = arith.select %14, %12, %16 : vector<256x128xi1>, vector<256x128xf32>
      %18 = arith.truncf %17 : vector<256x128xf32> to vector<256x128xbf16>
      %c0_13 = arith.constant 0 : index
      %c0_14 = arith.constant 0 : index
      %19 = vector.load %arg4[%c0_13, %c0_14] : memref<256x128xbf16, #tpu.memory_space<vmem>>, vector<256x128xbf16>
      tpu.vector_store %arg4[%c0_13, %c0_14], %18 {strides = array<i32>} : memref<256x128xbf16, #tpu.memory_space<vmem>>, vector<256x128xbf16>,
    } else {
    }
    return
  }
  func.func @transform_0(%arg0: i32, %arg1: i32) -> (i32, i32) {
    %c0_i32 = arith.constant 0 : i32
    return %arg0, %arg1 : i32, i32
  }
  func.func @transform_1(%arg0: i32, %arg1: i32) -> (i32, i32) {
    %c0_i32 = arith.constant 0 : i32
    %c0_i32_0 = arith.constant 0 : i32
    return %arg1, %c0_i32 : i32, i32
  }
  func.func @transform_2(%arg0: i32, %arg1: i32) -> (i32, i32) {
    %c0_i32 = arith.constant 0 : i32
    %c0_i32_0 = arith.constant 0 : i32
    return %arg0, %c0_i32 : i32, i32
  }
}

module attributes {stable_mosaic.version = 11 : i64} {
  func.func @_matmul_act_kernel(%arg0: i32, %arg1: i32, %arg2: memref<128x512xbf16, #tpu.memory_space<vmem>>, %arg3: memref<512x256xbf16, #tpu.memory_space<vmem>>, %arg4: memref<128x256xbf16, #tpu.memory_space<vmem>>, %arg5: memref<128x256xf32, #tpu.memory_space<vmem>>) attributes {dimension_semantics = [#tpu.dimension_semantics<parallel>, #tpu.dimension_semantics<arbitrary>], iteration_bounds = array<i64: 1, 4>, scalar_prefetch = 0 : i64, scratch_operands = 1 : i64, tpu.core_type = #tpu.core_type<tc>, window_params = [{transform_indices = @transform_0, window_bounds = array<i64: 128, 512>}, {transform_indices = @transform_1, window_bounds = array<i64: 512, 256>}, {transform_indices = @transform_2, window_bounds = array<i64: 128, 256>}]} {
    %c0_i32 = arith.constant 0 : i32
    %0 = arith.cmpi eq, %arg1, %c0_i32 : i32
    %1 = arith.extui %0 : i1 to i32
    %c0_i32_0 = arith.constant 0 : i32
    %2 = arith.cmpi ne, %1, %c0_i32_0 : i32
    scf.if %2 {
      %cst_9 = arith.constant 0.000000e+00 : f32
      %12 = vector.broadcast %cst_9 : f32 to vector<128x256xf32>
      %c0_10 = arith.constant 0 : index
      %c0_11 = arith.constant 0 : index
      %13 = vector.load %arg5[%c0_10, %c0_11] : memref<128x256xf32, #tpu.memory_space<vmem>>, vector<128x256xf32>
      tpu.vector_store %arg5[%c0_10, %c0_11], %12 {strides = array<i32>} : memref<128x256xf32, #tpu.memory_space<vmem>>, vector<128x256xf32>,
    } else {
    }
    %c0 = arith.constant 0 : index
    %c0_1 = arith.constant 0 : index
    %3 = vector.load %arg5[%c0, %c0_1] : memref<128x256xf32, #tpu.memory_space<vmem>>, vector<128x256xf32>
    %c0_2 = arith.constant 0 : index
    %c0_3 = arith.constant 0 : index
    %4 = vector.load %arg2[%c0_2, %c0_3] : memref<128x512xbf16, #tpu.memory_space<vmem>>, vector<128x512xbf16>
    %c0_4 = arith.constant 0 : index
    %c0_5 = arith.constant 0 : index
    %5 = vector.load %arg3[%c0_4, %c0_5] : memref<512x256xbf16, #tpu.memory_space<vmem>>, vector<512x256xbf16>
    %cst = arith.constant dense<0.000000e+00> : vector<128x256xf32>
    %6 = tpu.matmul %4, %5, %cst {dimension_numbers = #tpu.dot_dimension_numbers<[1], [0], [0], [1], [0, 0, 1, 1], [], []>} : vector<128x512xbf16>, vector<512x256xbf16>, vector<128x256xf32> -> vector<128x256xf32>
    %7 = arith.addf %3, %6 : vector<128x256xf32>
    %c0_6 = arith.constant 0 : index
    %c0_7 = arith.constant 0 : index
    %8 = vector.load %arg5[%c0_6, %c0_7] : memref<128x256xf32, #tpu.memory_space<vmem>>, vector<128x256xf32>
    tpu.vector_store %arg5[%c0_6, %c0_7], %7 {strides = array<i32>} : memref<128x256xf32, #tpu.memory_space<vmem>>, vector<128x256xf32>,
    %c3_i32 = arith.constant 3 : i32
    %9 = arith.cmpi eq, %arg1, %c3_i32 : i32
    %10 = arith.extui %9 : i1 to i32
    %c0_i32_8 = arith.constant 0 : i32
    %11 = arith.cmpi ne, %10, %c0_i32_8 : i32
    scf.if %11 {
      %c0_9 = arith.constant 0 : index
      %c0_10 = arith.constant 0 : index
      %12 = vector.load %arg5[%c0_9, %c0_10] : memref<128x256xf32, #tpu.memory_space<vmem>>, vector<128x256xf32>
      %cst_11 = arith.constant 0.000000e+00 : f32
      %13 = vector.broadcast %cst_11 : f32 to vector<128x256xf32>
      %14 = arith.cmpf oge, %12, %13 : vector<128x256xf32>
      %cst_12 = arith.constant 2.000000e-01 : f32
      %15 = vector.broadcast %cst_12 : f32 to vector<128x256xf32>
      %16 = arith.mulf %15, %12 : vector<128x256xf32>
      %17 = arith.select %14, %12, %16 : vector<128x256xi1>, vector<128x256xf32>
      %18 = arith.truncf %17 : vector<128x256xf32> to vector<128x256xbf16>
      %c0_13 = arith.constant 0 : index
      %c0_14 = arith.constant 0 : index
      %19 = vector.load %arg4[%c0_13, %c0_14] : memref<128x256xbf16, #tpu.memory_space<vmem>>, vector<128x256xbf16>
      tpu.vector_store %arg4[%c0_13, %c0_14], %18 {strides = array<i32>} : memref<128x256xbf16, #tpu.memory_space<vmem>>, vector<128x256xbf16>,
    } else {
    }
    return
  }
  func.func @transform_0(%arg0: i32, %arg1: i32) -> (i32, i32) {
    %c0_i32 = arith.constant 0 : i32
    return %arg0, %arg1 : i32, i32
  }
  func.func @transform_1(%arg0: i32, %arg1: i32) -> (i32, i32) {
    %c0_i32 = arith.constant 0 : i32
    %c0_i32_0 = arith.constant 0 : i32
    return %arg1, %c0_i32 : i32, i32
  }
  func.func @transform_2(%arg0: i32, %arg1: i32) -> (i32, i32) {
    %c0_i32 = arith.constant 0 : i32
    %c0_i32_0 = arith.constant 0 : i32
    return %arg0, %c0_i32 : i32, i32
  }
}

module attributes {stable_mosaic.version = 11 : i64} {
  func.func @_matmul_act_kernel(%arg0: i32, %arg1: i32, %arg2: memref<32x512xbf16, #tpu.memory_space<vmem>>, %arg3: memref<512x512xbf16, #tpu.memory_space<vmem>>, %arg4: memref<32x512xbf16, #tpu.memory_space<vmem>>, %arg5: memref<32x512xf32, #tpu.memory_space<vmem>>) attributes {dimension_semantics = [#tpu.dimension_semantics<parallel>, #tpu.dimension_semantics<arbitrary>], iteration_bounds = array<i64: 1, 8>, scalar_prefetch = 0 : i64, scratch_operands = 1 : i64, tpu.core_type = #tpu.core_type<tc>, window_params = [{transform_indices = @transform_0, window_bounds = array<i64: 32, 512>}, {transform_indices = @transform_1, window_bounds = array<i64: 512, 512>}, {transform_indices = @transform_2, window_bounds = array<i64: 32, 512>}]} {
    %c0_i32 = arith.constant 0 : i32
    %0 = arith.cmpi eq, %arg1, %c0_i32 : i32
    %1 = arith.extui %0 : i1 to i32
    %c0_i32_0 = arith.constant 0 : i32
    %2 = arith.cmpi ne, %1, %c0_i32_0 : i32
    scf.if %2 {
      %cst_9 = arith.constant 0.000000e+00 : f32
      %12 = vector.broadcast %cst_9 : f32 to vector<32x512xf32>
      %c0_10 = arith.constant 0 : index
      %c0_11 = arith.constant 0 : index
      %13 = vector.load %arg5[%c0_10, %c0_11] : memref<32x512xf32, #tpu.memory_space<vmem>>, vector<32x512xf32>
      tpu.vector_store %arg5[%c0_10, %c0_11], %12 {strides = array<i32>} : memref<32x512xf32, #tpu.memory_space<vmem>>, vector<32x512xf32>,
    } else {
    }
    %c0 = arith.constant 0 : index
    %c0_1 = arith.constant 0 : index
    %3 = vector.load %arg5[%c0, %c0_1] : memref<32x512xf32, #tpu.memory_space<vmem>>, vector<32x512xf32>
    %c0_2 = arith.constant 0 : index
    %c0_3 = arith.constant 0 : index
    %4 = vector.load %arg2[%c0_2, %c0_3] : memref<32x512xbf16, #tpu.memory_space<vmem>>, vector<32x512xbf16>
    %c0_4 = arith.constant 0 : index
    %c0_5 = arith.constant 0 : index
    %5 = vector.load %arg3[%c0_4, %c0_5] : memref<512x512xbf16, #tpu.memory_space<vmem>>, vector<512x512xbf16>
    %cst = arith.constant dense<0.000000e+00> : vector<32x512xf32>
    %6 = tpu.matmul %4, %5, %cst {dimension_numbers = #tpu.dot_dimension_numbers<[1], [0], [0], [1], [0, 0, 1, 1], [], []>} : vector<32x512xbf16>, vector<512x512xbf16>, vector<32x512xf32> -> vector<32x512xf32>
    %7 = arith.addf %3, %6 : vector<32x512xf32>
    %c0_6 = arith.constant 0 : index
    %c0_7 = arith.constant 0 : index
    %8 = vector.load %arg5[%c0_6, %c0_7] : memref<32x512xf32, #tpu.memory_space<vmem>>, vector<32x512xf32>
    tpu.vector_store %arg5[%c0_6, %c0_7], %7 {strides = array<i32>} : memref<32x512xf32, #tpu.memory_space<vmem>>, vector<32x512xf32>,
    %c7_i32 = arith.constant 7 : i32
    %9 = arith.cmpi eq, %arg1, %c7_i32 : i32
    %10 = arith.extui %9 : i1 to i32
    %c0_i32_8 = arith.constant 0 : i32
    %11 = arith.cmpi ne, %10, %c0_i32_8 : i32
    scf.if %11 {
      %c0_9 = arith.constant 0 : index
      %c0_10 = arith.constant 0 : index
      %12 = vector.load %arg5[%c0_9, %c0_10] : memref<32x512xf32, #tpu.memory_space<vmem>>, vector<32x512xf32>
      %cst_11 = arith.constant 0.000000e+00 : f32
      %13 = vector.broadcast %cst_11 : f32 to vector<32x512xf32>
      %14 = arith.cmpf oge, %12, %13 : vector<32x512xf32>
      %cst_12 = arith.constant 2.000000e-01 : f32
      %15 = vector.broadcast %cst_12 : f32 to vector<32x512xf32>
      %16 = arith.mulf %15, %12 : vector<32x512xf32>
      %17 = arith.select %14, %12, %16 : vector<32x512xi1>, vector<32x512xf32>
      %18 = arith.truncf %17 : vector<32x512xf32> to vector<32x512xbf16>
      %c0_13 = arith.constant 0 : index
      %c0_14 = arith.constant 0 : index
      %19 = vector.load %arg4[%c0_13, %c0_14] : memref<32x512xbf16, #tpu.memory_space<vmem>>, vector<32x512xbf16>
      tpu.vector_store %arg4[%c0_13, %c0_14], %18 {strides = array<i32>} : memref<32x512xbf16, #tpu.memory_space<vmem>>, vector<32x512xbf16>,
    } else {
    }
    return
  }
  func.func @transform_0(%arg0: i32, %arg1: i32) -> (i32, i32) {
    %c0_i32 = arith.constant 0 : i32
    return %arg0, %arg1 : i32, i32
  }
  func.func @transform_1(%arg0: i32, %arg1: i32) -> (i32, i32) {
    %c0_i32 = arith.constant 0 : i32
    %c0_i32_0 = arith.constant 0 : i32
    return %arg1, %c0_i32 : i32, i32
  }
  func.func @transform_2(%arg0: i32, %arg1: i32) -> (i32, i32) {
    %c0_i32 = arith.constant 0 : i32
    %c0_i32_0 = arith.constant 0 : i32
    return %arg0, %c0_i32 : i32, i32
  }
}

module attributes {stable_mosaic.version = 11 : i64} {
  func.func @_rowdot_kernel(%arg0: i32, %arg1: memref<2x8192xbf16, #tpu.memory_space<vmem>>, %arg2: memref<1x8192xbf16, #tpu.memory_space<vmem>>, %arg3: memref<2x1xf32, #tpu.memory_space<vmem>>) attributes {dimension_semantics = [#tpu.dimension_semantics<arbitrary>], iteration_bounds = array<i64: 1>, scalar_prefetch = 0 : i64, scratch_operands = 0 : i64, tpu.core_type = #tpu.core_type<tc>, window_params = [{pipeline_mode = #tpu.pipeline_mode<synchronous>, transform_indices = @transform_0, window_bounds = array<i64: 2, 8192>}, {pipeline_mode = #tpu.pipeline_mode<synchronous>, transform_indices = @transform_1, window_bounds = array<i64: 1, 8192>}, {pipeline_mode = #tpu.pipeline_mode<synchronous>, transform_indices = @transform_2, window_bounds = array<i64: 2, 1>}]} {
    %c0 = arith.constant 0 : index
    %c0_0 = arith.constant 0 : index
    %0 = vector.load %arg1[%c0, %c0_0] : memref<2x8192xbf16, #tpu.memory_space<vmem>>, vector<2x8192xbf16>
    %1 = arith.extf %0 : vector<2x8192xbf16> to vector<2x8192xf32>
    %c0_1 = arith.constant 0 : index
    %c0_2 = arith.constant 0 : index
    %2 = vector.load %arg2[%c0_1, %c0_2] : memref<1x8192xbf16, #tpu.memory_space<vmem>>, vector<1x8192xbf16>
    %3 = arith.extf %2 : vector<1x8192xbf16> to vector<1x8192xf32>
    %4 = vector.broadcast %3 : vector<1x8192xf32> to vector<2x8192xf32>
    %5 = arith.mulf %1, %4 : vector<2x8192xf32>
    %cst = arith.constant dense<0.000000e+00> : vector<2xf32>
    %6 = vector.multi_reduction <add>, %5, %cst [1] : vector<2x8192xf32> to vector<2xf32>
    %7 = vector.shape_cast %6 : vector<2xf32> to vector<2x1xf32>
    %c0_3 = arith.constant 0 : index
    %c0_4 = arith.constant 0 : index
    %8 = vector.load %arg3[%c0_3, %c0_4] : memref<2x1xf32, #tpu.memory_space<vmem>>, vector<2x1xf32>
    tpu.vector_store %arg3[%c0_3, %c0_4], %7 {strides = array<i32>} : memref<2x1xf32, #tpu.memory_space<vmem>>, vector<2x1xf32>,
    return
  }
  func.func @transform_0(%arg0: i32) -> (i32, i32) {
    %c0_i32 = arith.constant 0 : i32
    %c0_i32_0 = arith.constant 0 : i32
    %c0_i32_1 = arith.constant 0 : i32
    return %c0_i32, %c0_i32_0 : i32, i32
  }
  func.func @transform_1(%arg0: i32) -> (i32, i32) {
    %c0_i32 = arith.constant 0 : i32
    %c0_i32_0 = arith.constant 0 : i32
    %c0_i32_1 = arith.constant 0 : i32
    return %c0_i32, %c0_i32_0 : i32, i32
  }
  func.func @transform_2(%arg0: i32) -> (i32, i32) {
    %c0_i32 = arith.constant 0 : i32
    %c0_i32_0 = arith.constant 0 : i32
    %c0_i32_1 = arith.constant 0 : i32
    return %c0_i32, %c0_i32_0 : i32, i32
  }
}

</mosaic_0001>

<llo_original>
// kernel: critic_forward.5
$region0: #{critic_forward.5}
  #allocation0 [shape = 'u32[]', space=smem, size = 0x4, offset = 0x4, fixed_abs, tag = 'smem constant byte address 0x4 - core index']
  #allocation1 [shape = 'u32[144,128]{1,0:T(1,128)}', space=vmem, size = 0x12000, scoped, tag = 'internal scratch']
  #allocation2 [shape = 'f32[256,64]{1,0:T(8,128)}', space=vmem, size = 0x20000, scoped, tag = 'scratch operand']
  %s0 = inlined_call_operand.vmem [shape: bf16[2048,256], index: 0, kind: input, shape index: {}]
  %s1 = inlined_call_operand.vmem [shape: bf16[256,64], index: 1, kind: input, shape index: {}]
  %s2 = inlined_call_operand.vmem [shape: bf16[2048,64], index: 2, kind: output, shape index: {}]
  %s3 = sld [smem:[#allocation0]]
  $region49: #{critic_forward.5} parent=0
    _
  %s5 = ssub.s32 1, %s3
  %s6 = scalar_select 0, %s5, %s3
  loop: start=0, step=1, limit=10
  $region2: #{critic_forward.5} parent=0 // loop_pre_header
    _
  $region3: #{critic_forward.5} parent=0 // loop_header
    %s8 = sphi 0, %s12
    %p9 = scmp.ge.s32.totalorder %s8, 10
    %s15 = sphi 0, %s27
    %s16 = sphi 0, %s23
    %s17 = sphi 0, %s15
    %s18 = sphi 0, %s16
    %s19 = sphi 0, %s17
    %s20 = sphi 0, %s18
    %s32 = sphi 0, %s34
    %s35 = sphi 0, %s32
    %s36 = sphi 0, %s35
    %s52 = sphi 0, %s36
    %s58 = sphi 0, %s60
    %s61 = sphi 0, %s58
    %s62 = sphi 0, %s61
    %s78 = sphi 0, %s62
    %s84 = sphi 0, %s86
    %s87 = sphi 0, %s84
    %s88 = sphi 0, %s87
    %s104 = sphi 0, %s88
  $region4: #{critic_forward.5} parent=0 // loop_header_branch
    %11 = sbr.rel (%p9) target = $region8
  $region5: #{critic_forward.5} parent=0 // loop_body
    %s13 = ssub.s32 %s8, 1
    %s14 = ssub.s32 %s8, 2
    %s21 = sadd.s32 1, %s16
    %p22 = scmp.ge.s32.totalorder %s21, 1
    %s23 = scalar_select %p22, 0, %s21
    %s24 = sadd.s32 1, %s15
    %s25 = scalar_select %p22, %s24, %s15
    %p26 = scmp.ge.s32.totalorder %s25, 8
    %s27 = scalar_select %p26, 0, %s25
    %s28 = ssub.s32 %s15, %s27
    %s29 = ssub.s32 %s16, %s23
    %s30 = sor.u32 %s28, %s29
    %p31 = scmp.eq.s32.totalorder %s30, 0
    %s33 = sadd.s32 %s32, 1
    %s34 = scalar_select %p31, %s32, %s33
    %p37 = pneg %p31
    %p38 = scmp.eq.s32.totalorder %s8, 7
    %p39 = por %p37, %p38
    %p40 = scmp.ne.s32.totalorder %s32, %s35
    %p41 = scmp.eq.s32.totalorder %s8, 0
    %p42 = por %p40, %p41
    %p43 = scmp.ne.s32.totalorder %s32, %s35
    %p44 = scmp.eq.s32.totalorder %s13, 7
    %p45 = por %p43, %p44
    %p46 = scmp.ne.s32.totalorder %s35, %s36
    %p47 = scmp.eq.s32.totalorder %s13, 0
    %p48 = por %p46, %p47
    %p49 = scmp.ne.s32.totalorder %s35, %s36
    %p50 = scmp.eq.s32.totalorder %s14, 7
    %p51 = por %p49, %p50
    %p53 = scmp.ne.s32.totalorder %s36, %s52
    %p54 = scmp.eq.s32.totalorder %s14, 0
    %p55 = por %p53, %p54
    %s56 = ssub.s32 %s16, %s23
    %p57 = scmp.eq.s32.totalorder %s56, 0
    %s59 = sadd.s32 %s58, 1
    %s60 = scalar_select %p57, %s58, %s59
    %p63 = pneg %p57
    %p64 = scmp.eq.s32.totalorder %s8, 7
    %p65 = por %p63, %p64
    %p66 = scmp.ne.s32.totalorder %s58, %s61
    %p67 = scmp.eq.s32.totalorder %s8, 0
    %p68 = por %p66, %p67
    %p69 = scmp.ne.s32.totalorder %s58, %s61
    %p70 = scmp.eq.s32.totalorder %s13, 7
    %p71 = por %p69, %p70
    %p72 = scmp.ne.s32.totalorder %s61, %s62
    %p73 = scmp.eq.s32.totalorder %s13, 0
    %p74 = por %p72, %p73
    %p75 = scmp.ne.s32.totalorder %s61, %s62
    %p76 = scmp.eq.s32.totalorder %s14, 7
    %p77 = por %p75, %p76
    %p79 = scmp.ne.s32.totalorder %s62, %s78
    %p80 = scmp.eq.s32.totalorder %s14, 0
    %p81 = por %p79, %p80
    %s82 = ssub.s32 %s15, %s27
    %p83 = scmp.eq.s32.totalorder %s82, 0
    %s85 = sadd.s32 %s84, 1
    %s86 = scalar_select %p83, %s84, %s85
    %p89 = pneg %p83
    %p90 = scmp.eq.s32.totalorder %s8, 7
    %p91 = por %p89, %p90
    %p92 = scmp.ne.s32.totalorder %s84, %s87
    %p93 = scmp.eq.s32.totalorder %s8, 0
    %p94 = por %p92, %p93
    %p95 = scmp.ne.s32.totalorder %s84, %s87
    %p96 = scmp.eq.s32.totalorder %s13, 7
    %p97 = por %p95, %p96
    %p98 = scmp.ne.s32.totalorder %s87, %s88
    %p99 = scmp.eq.s32.totalorder %s13, 0
    %p100 = por %p98, %p99
    %p101 = scmp.ne.s32.totalorder %s87, %s88
    %p102 = scmp.eq.s32.totalorder %s14, 7
    %p103 = por %p101, %p102
    %p105 = scmp.ne.s32.totalorder %s88, %s104
    %p106 = scmp.eq.s32.totalorder %s14, 0
    %p107 = por %p105, %p106
    %p108 = scmp.le.s32.totalorder 1, %s8
    %p109 = scmp.lt.s32.totalorder %s8, 9
    %p110 = pnand %p108, %p109
    %p111 = pneg %p110
    // Predicated region
    $region9: #{critic_forward.5} parent=5 // pred_check
      _
    $region10: #{critic_forward.5} parent=5 // pred_check_branch
      %113 = sbr.rel (%p110) target = $region12
    $region11: #{critic_forward.5} parent=5 // pred_region
      %s114 = ssub.s32 %s8, 1
      // Predicated region
      $region13: #{critic_forward.5} parent=11 // pred_check
        %p115 = pneg %p74
      $region14: #{critic_forward.5} parent=11 // pred_check_branch
        %117 = sbr.rel (%p115) target = $region16
      $region15: #{critic_forward.5} parent=11 // pred_region
        %s118 = smul.u32 32, %s18
        %p119 = scmp.lt.s32.totalorder %s118, 31
        %s120 = scalar_select %p119, %s118, 31
        %s121 = smul.addr %s120, 4
        %s122 = scalar_lea.vmem %s1, %s121
        %s123 = smul.u32 32, %s18
      $region16: #{critic_forward.5} parent=11 // pred_fallthru
        _
    $region12: #{critic_forward.5} parent=5 // pred_fallthru
      _
    %p124 = scmp.lt.s32.totalorder %s8, 8
    // Predicated region
    $region17: #{critic_forward.5} parent=5 // pred_check
      %p125 = pneg %p124
    $region18: #{critic_forward.5} parent=5 // pred_check_branch
      %127 = sbr.rel (%p125) target = $region20
    $region19: #{critic_forward.5} parent=5 // pred_region
      // Predicated region
      $region21: #{critic_forward.5} parent=19 // pred_check
        %p128 = pneg %p42
      $region22: #{critic_forward.5} parent=19 // pred_check_branch
        %130 = sbr.rel (%p128) target = $region24
      $region23: #{critic_forward.5} parent=19 // pred_region
        %s131 = smul.u32 32, %s15
        %s132 = smul.u32 2, %s16
        %p133 = scmp.lt.s32.totalorder %s131, 255
        %s134 = scalar_select %p133, %s131, 255
        %p135 = scmp.lt.s32.totalorder %s132, 1
        %s136 = scalar_select %p135, %s132, 1
        %s137 = smul.addr %s134, 2
        %s138 = sadd.s32 %s136, %s137
        %s139 = smul.addr %s138, 4
        %s140 = scalar_lea.vmem %s0, %s139
        %s141 = smul.u32 32, %s15
        %s142 = smul.u32 2, %s16
      $region24: #{critic_forward.5} parent=19 // pred_fallthru
        _
    $region20: #{critic_forward.5} parent=5 // pred_fallthru
      _
    %p143 = scmp.le.s32.totalorder 1, %s8
    %p144 = scmp.lt.s32.totalorder %s8, 9
    %p145 = pnand %p143, %p144
    %p146 = pneg %p145
    // Predicated region
    $region25: #{critic_forward.5} parent=5 // pred_check
      _
    $region26: #{critic_forward.5} parent=5 // pred_check_branch
      %148 = sbr.rel (%p145) target = $region28
    $region27: #{critic_forward.5} parent=5 // pred_region
      %s149 = ssub.s32 %s8, 1
      %s150 = smul.u32 32, %s17
      %s151 = smul.u32 2, %s18
      %p152 = scmp.lt.s32.totalorder %s150, 255
      %s153 = scalar_select %p152, %s150, 255
      %p154 = scmp.lt.s32.totalorder %s151, 1
      %s155 = scalar_select %p154, %s151, 1
      %s156 = smul.addr %s153, 2
      %s157 = sadd.s32 %s155, %s156
      %s158 = smul.addr %s157, 4
      %s159 = scalar_lea.vmem %s0, %s158
      %p160 = pneg %p48
      %p161 = pneg %p45
      %s162 = smul.u32 32, %s18
      %p163 = scmp.lt.s32.totalorder %s162, 31
      %s164 = scalar_select %p163, %s162, 31
      %s165 = smul.addr %s164, 4
      %s166 = scalar_lea.vmem %s1, %s165
      %p167 = pneg %p74
      %p168 = pneg %p71
      %p169 = pneg %p100
      %p170 = pneg %p97
      %s171 = smul.u32 32, %s17
      %p172 = scmp.lt.s32.totalorder %s171, 255
      %s173 = scalar_select %p172, %s171, 255
      %s174 = smul.addr %s173, 4
      %s175 = scalar_lea.vmem %s2, %s174
      %s176 = smul.u32 32, %s17
      %s177 = smul.u32 2, %s18
      %p178 = scmp.lt.s32.totalorder %s176, 255
      %s179 = scalar_select %p178, %s176, 255
      %p180 = scmp.lt.s32.totalorder %s177, 1
      %s181 = scalar_select %p180, %s177, 1
      %s182 = smul.addr %s179, 2
      %s183 = sadd.s32 %s181, %s182
      %s184 = smul.addr %s183, 4
      %s185 = scalar_lea.vmem %s0, %s184
      %s186 = smul.u32 32, %s17
      %s187 = smul.u32 2, %s18
      %s188 = smul.u32 32, %s18
      %p189 = scmp.lt.s32.totalorder %s188, 31
      %s190 = scalar_select %p189, %s188, 31
      %s191 = smul.addr %s190, 4
      %s192 = scalar_lea.vmem %s1, %s191
      %s193 = smul.u32 32, %s18
      %s194 = smul.u32 32, %s17
      %p195 = scmp.lt.s32.totalorder %s194, 255
      %s196 = scalar_select %p195, %s194, 255
      %s197 = smul.addr %s196, 4
      %s198 = scalar_lea.vmem %s2, %s197
      %s199 = smul.u32 32, %s17
      %p201 = scmp.eq.s32.totalorder %s18, 0
      // Predicated region
      $region29: #{critic_forward.5} parent=27 // pred_check
        %p202 = pneg %p201
      $region30: #{critic_forward.5} parent=27 // pred_check_branch
        %204 = sbr.rel (%p202) target = $region32
      $region31: #{critic_forward.5} parent=27 // pred_region
        %vm205 = vcmask 523264
        %206 = vst.msk [vmem:[#allocation2] sm:$0xff] %vm205, 0.0
        %207 = vst.msk [vmem:[#allocation2 + $0x8] sm:$0xff] %vm205, 0.0
        %208 = vst.msk [vmem:[#allocation2 + $0x10] sm:$0xff] %vm205, 0.0
        %209 = vst.msk [vmem:[#allocation2 + $0x18] sm:$0xff] %vm205, 0.0
        %210 = vst.msk [vmem:[#allocation2 + $0x20] sm:$0xff] %vm205, 0.0
        %211 = vst.msk [vmem:[#allocation2 + $0x28] sm:$0xff] %vm205, 0.0
        %212 = vst.msk [vmem:[#allocation2 + $0x30] sm:$0xff] %vm205, 0.0
        %213 = vst.msk [vmem:[#allocation2 + $0x38] sm:$0xff] %vm205, 0.0
        %214 = vst.msk [vmem:[#allocation2 + $0x40] sm:$0xff] %vm205, 0.0
        %215 = vst.msk [vmem:[#allocation2 + $0x48] sm:$0xff] %vm205, 0.0
        %216 = vst.msk [vmem:[#allocation2 + $0x50] sm:$0xff] %vm205, 0.0
        %217 = vst.msk [vmem:[#allocation2 + $0x58] sm:$0xff] %vm205, 0.0
        %218 = vst.msk [vmem:[#allocation2 + $0x60] sm:$0xff] %vm205, 0.0
        %219 = vst.msk [vmem:[#allocation2 + $0x68] sm:$0xff] %vm205, 0.0
        %220 = vst.msk [vmem:[#allocation2 + $0x70] sm:$0xff] %vm205, 0.0
        %221 = vst.msk [vmem:[#allocation2 + $0x78] sm:$0xff] %vm205, 0.0
        %222 = vst.msk [vmem:[#allocation2 + $0x80] sm:$0xff] %vm205, 0.0
        %223 = vst.msk [vmem:[#allocation2 + $0x88] sm:$0xff] %vm205, 0.0
        %224 = vst.msk [vmem:[#allocation2 + $0x90] sm:$0xff] %vm205, 0.0
        %225 = vst.msk [vmem:[#allocation2 + $0x98] sm:$0xff] %vm205, 0.0
        %226 = vst.msk [vmem:[#allocation2 + $0xa0] sm:$0xff] %vm205, 0.0
        %227 = vst.msk [vmem:[#allocation2 + $0xa8] sm:$0xff] %vm205, 0.0
        %228 = vst.msk [vmem:[#allocation2 + $0xb0] sm:$0xff] %vm205, 0.0
        %229 = vst.msk [vmem:[#allocation2 + $0xb8] sm:$0xff] %vm205, 0.0
        %230 = vst.msk [vmem:[#allocation2 + $0xc0] sm:$0xff] %vm205, 0.0
        %231 = vst.msk [vmem:[#allocation2 + $0xc8] sm:$0xff] %vm205, 0.0
        %232 = vst.msk [vmem:[#allocation2 + $0xd0] sm:$0xff] %vm205, 0.0
        %233 = vst.msk [vmem:[#allocation2 + $0xd8] sm:$0xff] %vm205, 0.0
        %234 = vst.msk [vmem:[#allocation2 + $0xe0] sm:$0xff] %vm205, 0.0
        %235 = vst.msk [vmem:[#allocation2 + $0xe8] sm:$0xff] %vm205, 0.0
        %236 = vst.msk [vmem:[#allocation2 + $0xf0] sm:$0xff] %vm205, 0.0
        %237 = vst.msk [vmem:[#allocation2 + $0xf8] sm:$0xff] %vm205, 0.0
      $region32: #{critic_forward.5} parent=27 // pred_fallthru
        _
      %v238 = vld [vmem:[#allocation2] sm:$0xff]
      %v239 = vld [vmem:[#allocation2 + $0x8] sm:$0xff]
      %v240 = vld [vmem:[#allocation2 + $0x10] sm:$0xff]
      %v241 = vld [vmem:[#allocation2 + $0x18] sm:$0xff]
      %v242 = vld [vmem:[#allocation2 + $0x20] sm:$0xff]
      %v243 = vld [vmem:[#allocation2 + $0x28] sm:$0xff]
      %v244 = vld [vmem:[#allocation2 + $0x30] sm:$0xff]
      %v245 = vld [vmem:[#allocation2 + $0x38] sm:$0xff]
      %v246 = vld [vmem:[#allocation2 + $0x40] sm:$0xff]
      %v247 = vld [vmem:[#allocation2 + $0x48] sm:$0xff]
      %v248 = vld [vmem:[#allocation2 + $0x50] sm:$0xff]
      %v249 = vld [vmem:[#allocation2 + $0x58] sm:$0xff]
      %v250 = vld [vmem:[#allocation2 + $0x60] sm:$0xff]
      %v251 = vld [vmem:[#allocation2 + $0x68] sm:$0xff]
      %v252 = vld [vmem:[#allocation2 + $0x70] sm:$0xff]
      %v253 = vld [vmem:[#allocation2 + $0x78] sm:$0xff]
      %v254 = vld [vmem:[#allocation2 + $0x80] sm:$0xff]
      %v255 = vld [vmem:[#allocation2 + $0x88] sm:$0xff]
      %v256 = vld [vmem:[#allocation2 + $0x90] sm:$0xff]
      %v257 = vld [vmem:[#allocation2 + $0x98] sm:$0xff]
      %v258 = vld [vmem:[#allocation2 + $0xa0] sm:$0xff]
      %v259 = vld [vmem:[#allocation2 + $0xa8] sm:$0xff]
      %v260 = vld [vmem:[#allocation2 + $0xb0] sm:$0xff]
      %v261 = vld [vmem:[#allocation2 + $0xb8] sm:$0xff]
      %v262 = vld [vmem:[#allocation2 + $0xc0] sm:$0xff]
      %v263 = vld [vmem:[#allocation2 + $0xc8] sm:$0xff]
      %v264 = vld [vmem:[#allocation2 + $0xd0] sm:$0xff]
      %v265 = vld [vmem:[#allocation2 + $0xd8] sm:$0xff]
      %v266 = vld [vmem:[#allocation2 + $0xe0] sm:$0xff]
      %v267 = vld [vmem:[#allocation2 + $0xe8] sm:$0xff]
      %v268 = vld [vmem:[#allocation2 + $0xf0] sm:$0xff]
      %v269 = vld [vmem:[#allocation2 + $0xf8] sm:$0xff]
      %v270 = vld [vmem:[%s185] sm:$0xff]
      %v271 = vld [vmem:[%s185 + $0x8] sm:$0xff]
      %v272 = vld [vmem:[%s185 + $0x10] sm:$0xff]
      %v273 = vld [vmem:[%s185 + $0x18] sm:$0xff]
      %v274 = vld [vmem:[%s185 + $0x20] sm:$0xff]
      %v275 = vld [vmem:[%s185 + $0x28] sm:$0xff]
      %v276 = vld [vmem:[%s185 + $0x30] sm:$0xff]
      %v277 = vld [vmem:[%s185 + $0x38] sm:$0xff]
      %v278 = vld [vmem:[%s185 + $0x40] sm:$0xff]
      %v279 = vld [vmem:[%s185 + $0x48] sm:$0xff]
      %v280 = vld [vmem:[%s185 + $0x50] sm:$0xff]
      %v281 = vld [vmem:[%s185 + $0x58] sm:$0xff]
      %v282 = vld [vmem:[%s185 + $0x60] sm:$0xff]
      %v283 = vld [vmem:[%s185 + $0x68] sm:$0xff]
      %v284 = vld [vmem:[%s185 + $0x70] sm:$0xff]
      %v285 = vld [vmem:[%s185 + $0x78] sm:$0xff]
      %v286 = vld [vmem:[%s185 + $0x80] sm:$0xff]
      %v287 = vld [vmem:[%s185 + $0x88] sm:$0xff]
      %v288 = vld [vmem:[%s185 + $0x90] sm:$0xff]
      %v289 = vld [vmem:[%s185 + $0x98] sm:$0xff]
      %v290 = vld [vmem:[%s185 + $0xa0] sm:$0xff]
      %v291 = vld [vmem:[%s185 + $0xa8] sm:$0xff]
      %v292 = vld [vmem:[%s185 + $0xb0] sm:$0xff]
      %v293 = vld [vmem:[%s185 + $0xb8] sm:$0xff]
      %v294 = vld [vmem:[%s185 + $0xc0] sm:$0xff]
      %v295 = vld [vmem:[%s185 + $0xc8] sm:$0xff]
      %v296 = vld [vmem:[%s185 + $0xd0] sm:$0xff]
      %v297 = vld [vmem:[%s185 + $0xd8] sm:$0xff]
      %v298 = vld [vmem:[%s185 + $0xe0] sm:$0xff]
      %v299 = vld [vmem:[%s185 + $0xe8] sm:$0xff]
      %v300 = vld [vmem:[%s185 + $0xf0] sm:$0xff]
      %v301 = vld [vmem:[%s185 + $0xf8] sm:$0xff]
      %v302 = vld [vmem:[%s192] sm:$0xf]
      %v303 = vld [vmem:[%s192 + $0x4] sm:$0xf]
      %v304 = vld [vmem:[%s192 + $0x8] sm:$0xf]
      %v305 = vld [vmem:[%s192 + $0xc] sm:$0xf]
      %v306 = vld [vmem:[%s192 + $0x10] sm:$0xf]
      %v307 = vld [vmem:[%s192 + $0x14] sm:$0xf]
      %v308 = vld [vmem:[%s192 + $0x18] sm:$0xf]
      %v309 = vld [vmem:[%s192 + $0x1c] sm:$0xf]
      %v310 = vld [vmem:[%s192 + $0x20] sm:$0xf]
      %v311 = vld [vmem:[%s192 + $0x24] sm:$0xf]
      %v312 = vld [vmem:[%s192 + $0x28] sm:$0xf]
      %v313 = vld [vmem:[%s192 + $0x2c] sm:$0xf]
      %v314 = vld [vmem:[%s192 + $0x30] sm:$0xf]
      %v315 = vld [vmem:[%s192 + $0x34] sm:$0xf]
      %v316 = vld [vmem:[%s192 + $0x38] sm:$0xf]
      %v317 = vld [vmem:[%s192 + $0x3c] sm:$0xf]
      %v318 = vld [vmem:[%s192 + $0x40] sm:$0xf]
      %v319 = vld [vmem:[%s192 + $0x44] sm:$0xf]
      %v320 = vld [vmem:[%s192 + $0x48] sm:$0xf]
      %v321 = vld [vmem:[%s192 + $0x4c] sm:$0xf]
      %v322 = vld [vmem:[%s192 + $0x50] sm:$0xf]
      %v323 = vld [vmem:[%s192 + $0x54] sm:$0xf]
      %v324 = vld [vmem:[%s192 + $0x58] sm:$0xf]
      %v325 = vld [vmem:[%s192 + $0x5c] sm:$0xf]
      %v326 = vld [vmem:[%s192 + $0x60] sm:$0xf]
      %v327 = vld [vmem:[%s192 + $0x64] sm:$0xf]
      %v328 = vld [vmem:[%s192 + $0x68] sm:$0xf]
      %v329 = vld [vmem:[%s192 + $0x6c] sm:$0xf]
      %v330 = vld [vmem:[%s192 + $0x70] sm:$0xf]
      %v331 = vld [vmem:[%s192 + $0x74] sm:$0xf]
      %v332 = vld [vmem:[%s192 + $0x78] sm:$0xf]
      %v333 = vld [vmem:[%s192 + $0x7c] sm:$0xf]
      %v366 = vunpack.c.l.b16 %v270
      %v367 = vunpack.c.h.b16 %v270
      %v368 = vunpack.c.l.b16 %v271
      %v369 = vunpack.c.h.b16 %v271
      %v370 = vunpack.c.l.b16 %v272
      %v371 = vunpack.c.h.b16 %v272
      %v372 = vunpack.c.l.b16 %v273
      %v373 = vunpack.c.h.b16 %v273
      %v374 = vunpack.c.l.b16 %v274
      %v375 = vunpack.c.h.b16 %v274
      %v376 = vunpack.c.l.b16 %v275
      %v377 = vunpack.c.h.b16 %v275
      %v378 = vunpack.c.l.b16 %v276
      %v379 = vunpack.c.h.b16 %v276
      %v380 = vunpack.c.l.b16 %v277
      %v381 = vunpack.c.h.b16 %v277
      %v382 = vunpack.c.l.b16 %v278
      %v383 = vunpack.c.h.b16 %v278
      %v384 = vunpack.c.l.b16 %v279
      %v385 = vunpack.c.h.b16 %v279
      %v386 = vunpack.c.l.b16 %v280
      %v387 = vunpack.c.h.b16 %v280
      %v388 = vunpack.c.l.b16 %v281
      %v389 = vunpack.c.h.b16 %v281
      %v390 = vunpack.c.l.b16 %v282
      %v391 = vunpack.c.h.b16 %v282
      %v392 = vunpack.c.l.b16 %v283
      %v393 = vunpack.c.h.b16 %v283
      %v394 = vunpack.c.l.b16 %v284
      %v395 = vunpack.c.h.b16 %v284
      %v396 = vunpack.c.l.b16 %v285
      %v397 = vunpack.c.h.b16 %v285
      %v398 = vunpack.c.l.b16 %v286
      %v399 = vunpack.c.h.b16 %v286
      %v400 = vunpack.c.l.b16 %v287
      %v401 = vunpack.c.h.b16 %v287
      %v402 = vunpack.c.l.b16 %v288
      %v403 = vunpack.c.h.b16 %v288
      %v404 = vunpack.c.l.b16 %v289
      %v405 = vunpack.c.h.b16 %v289
      %v406 = vunpack.c.l.b16 %v290
      %v407 = vunpack.c.h.b16 %v290
      %v408 = vunpack.c.l.b16 %v291
      %v409 = vunpack.c.h.b16 %v291
      %v410 = vunpack.c.l.b16 %v292
      %v411 = vunpack.c.h.b16 %v292
      %v412 = vunpack.c.l.b16 %v293
      %v413 = vunpack.c.h.b16 %v293
      %v414 = vunpack.c.l.b16 %v294
      %v415 = vunpack.c.h.b16 %v294
      %v416 = vunpack.c.l.b16 %v295
      %v417 = vunpack.c.h.b16 %v295
      %v418 = vunpack.c.l.b16 %v296
      %v419 = vunpack.c.h.b16 %v296
      %v420 = vunpack.c.l.b16 %v297
      %v421 = vunpack.c.h.b16 %v297
      %v422 = vunpack.c.l.b16 %v298
      %v423 = vunpack.c.h.b16 %v298
      %v424 = vunpack.c.l.b16 %v299
      %v425 = vunpack.c.h.b16 %v299
      %v426 = vunpack.c.l.b16 %v300
      %v427 = vunpack.c.h.b16 %v300
      %v428 = vunpack.c.l.b16 %v301
      %v429 = vunpack.c.h.b16 %v301
      %v430 = vpack.c.b16 %v368, %v366
      %v431 = vpack.c.b16 %v369, %v367
      %v432 = vpack.c.b16 %v372, %v370
      %v433 = vpack.c.b16 %v373, %v371
      %v434 = vpack.c.b16 %v376, %v374
      %v435 = vpack.c.b16 %v377, %v375
      %v436 = vpack.c.b16 %v380, %v378
      %v437 = vpack.c.b16 %v381, %v379
      %v438 = vpack.c.b16 %v384, %v382
      %v439 = vpack.c.b16 %v385, %v383
      %v440 = vpack.c.b16 %v388, %v386
      %v441 = vpack.c.b16 %v389, %v387
      %v442 = vpack.c.b16 %v392, %v390
      %v443 = vpack.c.b16 %v393, %v391
      %v444 = vpack.c.b16 %v396, %v394
      %v445 = vpack.c.b16 %v397, %v395
      %v446 = vpack.c.b16 %v400, %v398
      %v447 = vpack.c.b16 %v401, %v399
      %v448 = vpack.c.b16 %v404, %v402
      %v449 = vpack.c.b16 %v405, %v403
      %v450 = vpack.c.b16 %v408, %v406
      %v451 = vpack.c.b16 %v409, %v407
      %v452 = vpack.c.b16 %v412, %v410
      %v453 = vpack.c.b16 %v413, %v411
      %v454 = vpack.c.b16 %v416, %v414
      %v455 = vpack.c.b16 %v417, %v415
      %v456 = vpack.c.b16 %v420, %v418
      %v457 = vpack.c.b16 %v421, %v419
      %v458 = vpack.c.b16 %v424, %v422
      %v459 = vpack.c.b16 %v425, %v423
      %v460 = vpack.c.b16 %v428, %v426
      %v461 = vpack.c.b16 %v429, %v427
      %v526 = vunpack.c.l.b16 %v302
      %v527 = vunpack.c.l.b16 %v303
      %v528 = vunpack.c.l.b16 %v304
      %v529 = vunpack.c.l.b16 %v305
      %v530 = vunpack.c.l.b16 %v306
      %v531 = vunpack.c.l.b16 %v307
      %v532 = vunpack.c.l.b16 %v308
      %v533 = vunpack.c.l.b16 %v309
      %v534 = vunpack.c.l.b16 %v310
      %v535 = vunpack.c.l.b16 %v311
      %v536 = vunpack.c.l.b16 %v312
      %v537 = vunpack.c.l.b16 %v313
      %v538 = vunpack.c.l.b16 %v314
      %v539 = vunpack.c.l.b16 %v315
      %v540 = vunpack.c.l.b16 %v316
      %v541 = vunpack.c.l.b16 %v317
      %v542 = vunpack.c.l.b16 %v318
      %v543 = vunpack.c.l.b16 %v319
      %v544 = vunpack.c.l.b16 %v320
      %v545 = vunpack.c.l.b16 %v321
      %v546 = vunpack.c.l.b16 %v322
      %v547 = vunpack.c.l.b16 %v323
      %v548 = vunpack.c.l.b16 %v324
      %v549 = vunpack.c.l.b16 %v325
      %v550 = vunpack.c.l.b16 %v326
      %v551 = vunpack.c.l.b16 %v327
      %v552 = vunpack.c.l.b16 %v328
      %v553 = vunpack.c.l.b16 %v329
      %v554 = vunpack.c.l.b16 %v330
      %v555 = vunpack.c.l.b16 %v331
      %v556 = vunpack.c.l.b16 %v332
      %v557 = vunpack.c.l.b16 %v333
      %v558 = vpack.c.b16 %v527, %v526
      %v559 = vpack.c.b16 %v529, %v528
      %v560 = vpack.c.b16 %v531, %v530
      %v561 = vpack.c.b16 %v533, %v532
      %v562 = vpack.c.b16 %v535, %v534
      %v563 = vpack.c.b16 %v537, %v536
      %v564 = vpack.c.b16 %v539, %v538
      %v565 = vpack.c.b16 %v541, %v540
      %v566 = vpack.c.b16 %v543, %v542
      %v567 = vpack.c.b16 %v545, %v544
      %v568 = vpack.c.b16 %v547, %v546
      %v569 = vpack.c.b16 %v549, %v548
      %v570 = vpack.c.b16 %v551, %v550
      %v571 = vpack.c.b16 %v553, %v552
      %v572 = vpack.c.b16 %v555, %v554
      %v573 = vpack.c.b16 %v557, %v556
      %590 = vmatprep.subr.bf16.mxu0 0
      %591 = vmatpush1.bf16.msra.mxu0 %v558
      %592 = vmatprep.subr.bf16.mxu0 0
      %593 = vmatpush1.bf16.msra.mxu0 %v559
      %594 = vmatprep.subr.bf16.mxu0 0
      %595 = vmatpush1.bf16.msra.mxu0 %v560
      %596 = vmatprep.subr.bf16.mxu0 0
      %597 = vmatpush1.bf16.msra.mxu0 %v561
      %598 = vmatprep.subr.bf16.mxu0 0
      %599 = vmatpush1.bf16.msra.mxu0 %v562
      %600 = vmatprep.subr.bf16.mxu0 0
      %601 = vmatpush1.bf16.msra.mxu0 %v563
      %602 = vmatprep.subr.bf16.mxu0 0
      %603 = vmatpush1.bf16.msra.mxu0 %v564
      %604 = vmatprep.subr.bf16.mxu0 0
      %605 = vmatpush1.bf16.msra.mxu0 %v565
      %606 = vmatprep.subr.bf16.mxu0 0
      %607 = vmatpush1.bf16.msra.mxu0 %v566
      %608 = vmatprep.subr.bf16.mxu0 0
      %609 = vmatpush1.bf16.msra.mxu0 %v567
      %610 = vmatprep.subr.bf16.mxu0 0
      %611 = vmatpush1.bf16.msra.mxu0 %v568
      %612 = vmatprep.subr.bf16.mxu0 0
      %613 = vmatpush1.bf16.msra.mxu0 %v569
      %614 = vmatprep.subr.bf16.mxu0 0
      %615 = vmatpush1.bf16.msra.mxu0 %v570
      %616 = vmatprep.subr.bf16.mxu0 0
      %617 = vmatpush1.bf16.msra.mxu0 %v571
      %618 = vmatprep.subr.bf16.mxu0 0
      %619 = vmatpush1.bf16.msra.mxu0 %v572
      %620 = vmatprep.subr.bf16.mxu0 0
      %621 = vmatpush1.bf16.msra.mxu0 %v573
      %622 = vmatprep.mubr.bf16.mxu0 %v431
      %623 = vmatmul.mubr.bf16.gmra.mrb[0].mxu0 %v430
      %v624 = vpop.f32.mrb[0].mxu0
      %v625 = vadd.f32 0.0, %v624
      %v626 = vpop.f32.mrb[0].mxu0
      %v627 = vpop.f32.mrb[0].mxu0
      %v628 = vadd.f32 0.0, %v627
      %v629 = vpop.f32.mrb[0].mxu0
      %630 = vmatprep.mubr.bf16.mxu0 %v433
      %631 = vmatmul.mubr.bf16.gmra.mrb[0].mxu0 %v432
      %v632 = vpop.f32.mrb[0].mxu0
      %v633 = vadd.f32 0.0, %v632
      %v634 = vpop.f32.mrb[0].mxu0
      %v635 = vpop.f32.mrb[0].mxu0
      %v636 = vadd.f32 0.0, %v635
      %v637 = vpop.f32.mrb[0].mxu0
      %638 = vmatprep.mubr.bf16.mxu0 %v435
      %639 = vmatmul.mubr.bf16.gmra.mrb[0].mxu0 %v434
      %v640 = vpop.f32.mrb[0].mxu0
      %v641 = vadd.f32 0.0, %v640
      %v642 = vpop.f32.mrb[0].mxu0
      %v643 = vpop.f32.mrb[0].mxu0
      %v644 = vadd.f32 0.0, %v643
      %v645 = vpop.f32.mrb[0].mxu0
      %646 = vmatprep.mubr.bf16.mxu0 %v437
      %647 = vmatmul.mubr.bf16.gmra.mrb[0].mxu0 %v436
      %v648 = vpop.f32.mrb[0].mxu0
      %v649 = vadd.f32 0.0, %v648
      %v650 = vpop.f32.mrb[0].mxu0
      %v651 = vpop.f32.mrb[0].mxu0
      %v652 = vadd.f32 0.0, %v651
      %v653 = vpop.f32.mrb[0].mxu0
      %654 = vmatprep.mubr.bf16.mxu0 %v439
      %655 = vmatmul.mubr.bf16.gmra.mrb[0].mxu0 %v438
      %v656 = vpop.f32.mrb[0].mxu0
      %v657 = vadd.f32 0.0, %v656
      %v658 = vpop.f32.mrb[0].mxu0
      %v659 = vpop.f32.mrb[0].mxu0
      %v660 = vadd.f32 0.0, %v659
      %v661 = vpop.f32.mrb[0].mxu0
      %662 = vmatprep.mubr.bf16.mxu0 %v441
      %663 = vmatmul.mubr.bf16.gmra.mrb[0].mxu0 %v440
      %v664 = vpop.f32.mrb[0].mxu0
      %v665 = vadd.f32 0.0, %v664
      %v666 = vpop.f32.mrb[0].mxu0
      %v667 = vpop.f32.mrb[0].mxu0
      %v668 = vadd.f32 0.0, %v667
      %v669 = vpop.f32.mrb[0].mxu0
      %670 = vmatprep.mubr.bf16.mxu0 %v443
      %671 = vmatmul.mubr.bf16.gmra.mrb[0].mxu0 %v442
      %v672 = vpop.f32.mrb[0].mxu0
      %v673 = vadd.f32 0.0, %v672
      %v674 = vpop.f32.mrb[0].mxu0
      %v675 = vpop.f32.mrb[0].mxu0
      %v676 = vadd.f32 0.0, %v675
      %v677 = vpop.f32.mrb[0].mxu0
      %678 = vmatprep.mubr.bf16.mxu0 %v445
      %679 = vmatmul.mubr.bf16.gmra.mrb[0].mxu0 %v444
      %v680 = vpop.f32.mrb[0].mxu0
      %v681 = vadd.f32 0.0, %v680
      %v682 = vpop.f32.mrb[0].mxu0
      %v683 = vpop.f32.mrb[0].mxu0
      %v684 = vadd.f32 0.0, %v683
      %v685 = vpop.f32.mrb[0].mxu0
      %686 = vmatprep.mubr.bf16.mxu0 %v447
      %687 = vmatmul.mubr.bf16.gmra.mrb[0].mxu0 %v446
      %v688 = vpop.f32.mrb[0].mxu0
      %v689 = vadd.f32 0.0, %v688
      %v690 = vpop.f32.mrb[0].mxu0
      %v691 = vpop.f32.mrb[0].mxu0
      %v692 = vadd.f32 0.0, %v691
      %v693 = vpop.f32.mrb[0].mxu0
      %694 = vmatprep.mubr.bf16.mxu0 %v449
      %695 = vmatmul.mubr.bf16.gmra.mrb[0].mxu0 %v448
      %v696 = vpop.f32.mrb[0].mxu0
      %v697 = vadd.f32 0.0, %v696
      %v698 = vpop.f32.mrb[0].mxu0
      %v699 = vpop.f32.mrb[0].mxu0
      %v700 = vadd.f32 0.0, %v699
      %v701 = vpop.f32.mrb[0].mxu0
      %702 = vmatprep.mubr.bf16.mxu0 %v451
      %703 = vmatmul.mubr.bf16.gmra.mrb[0].mxu0 %v450
      %v704 = vpop.f32.mrb[0].mxu0
      %v705 = vadd.f32 0.0, %v704
      %v706 = vpop.f32.mrb[0].mxu0
      %v707 = vpop.f32.mrb[0].mxu0
      %v708 = vadd.f32 0.0, %v707
      %v709 = vpop.f32.mrb[0].mxu0
      %710 = vmatprep.mubr.bf16.mxu0 %v453
      %711 = vmatmul.mubr.bf16.gmra.mrb[0].mxu0 %v452
      %v712 = vpop.f32.mrb[0].mxu0
      %v713 = vadd.f32 0.0, %v712
      %v714 = vpop.f32.mrb[0].mxu0
      %v715 = vpop.f32.mrb[0].mxu0
      %v716 = vadd.f32 0.0, %v715
      %v717 = vpop.f32.mrb[0].mxu0
      %718 = vmatprep.mubr.bf16.mxu0 %v455
      %719 = vmatmul.mubr.bf16.gmra.mrb[0].mxu0 %v454
      %v720 = vpop.f32.mrb[0].mxu0
      %v721 = vadd.f32 0.0, %v720
      %v722 = vpop.f32.mrb[0].mxu0
      %v723 = vpop.f32.mrb[0].mxu0
      %v724 = vadd.f32 0.0, %v723
      %v725 = vpop.f32.mrb[0].mxu0
      %726 = vmatprep.mubr.bf16.mxu0 %v457
      %727 = vmatmul.mubr.bf16.gmra.mrb[0].mxu0 %v456
      %v728 = vpop.f32.mrb[0].mxu0
      %v729 = vadd.f32 0.0, %v728
      %v730 = vpop.f32.mrb[0].mxu0
      %v731 = vpop.f32.mrb[0].mxu0
      %v732 = vadd.f32 0.0, %v731
      %v733 = vpop.f32.mrb[0].mxu0
      %734 = vmatprep.mubr.bf16.mxu0 %v459
      %735 = vmatmul.mubr.bf16.gmra.mrb[0].mxu0 %v458
      %v736 = vpop.f32.mrb[0].mxu0
      %v737 = vadd.f32 0.0, %v736
      %v738 = vpop.f32.mrb[0].mxu0
      %v739 = vpop.f32.mrb[0].mxu0
      %v740 = vadd.f32 0.0, %v739
      %v741 = vpop.f32.mrb[0].mxu0
      %742 = vmatprep.mubr.bf16.mxu0 %v461
      %743 = vmatmul.mubr.bf16.gmra.mrb[0].mxu0 %v460
      %v744 = vpop.f32.mrb[0].mxu0
      %v745 = vadd.f32 0.0, %v744
      %v746 = vpop.f32.mrb[0].mxu0
      %v747 = vpop.f32.mrb[0].mxu0
      %v748 = vadd.f32 0.0, %v747
      %v749 = vpop.f32.mrb[0].mxu0
      %750 = vdwg.mxu0
      %v751 = vadd.f32 %v238, %v625
      %v752 = vadd.f32 %v239, %v628
      %v753 = vadd.f32 %v240, %v633
      %v754 = vadd.f32 %v241, %v636
      %v755 = vadd.f32 %v242, %v641
      %v756 = vadd.f32 %v243, %v644
      %v757 = vadd.f32 %v244, %v649
      %v758 = vadd.f32 %v245, %v652
      %v759 = vadd.f32 %v246, %v657
      %v760 = vadd.f32 %v247, %v660
      %v761 = vadd.f32 %v248, %v665
      %v762 = vadd.f32 %v249, %v668
      %v763 = vadd.f32 %v250, %v673
      %v764 = vadd.f32 %v251, %v676
      %v765 = vadd.f32 %v252, %v681
      %v766 = vadd.f32 %v253, %v684
      %v767 = vadd.f32 %v254, %v689
      %v768 = vadd.f32 %v255, %v692
      %v769 = vadd.f32 %v256, %v697
      %v770 = vadd.f32 %v257, %v700
      %v771 = vadd.f32 %v258, %v705
      %v772 = vadd.f32 %v259, %v708
      %v773 = vadd.f32 %v260, %v713
      %v774 = vadd.f32 %v261, %v716
      %v775 = vadd.f32 %v262, %v721
      %v776 = vadd.f32 %v263, %v724
      %v777 = vadd.f32 %v264, %v729
      %v778 = vadd.f32 %v265, %v732
      %v779 = vadd.f32 %v266, %v737
      %v780 = vadd.f32 %v267, %v740
      %v781 = vadd.f32 %v268, %v745
      %v782 = vadd.f32 %v269, %v748
      %vm783 = vcmask 523264
      %784 = vst.msk [vmem:[#allocation2] sm:$0xff] %vm783, %v751
      %785 = vst.msk [vmem:[#allocation2 + $0x8] sm:$0xff] %vm783, %v752
      %786 = vst.msk [vmem:[#allocation2 + $0x10] sm:$0xff] %vm783, %v753
      %787 = vst.msk [vmem:[#allocation2 + $0x18] sm:$0xff] %vm783, %v754
      %788 = vst.msk [vmem:[#allocation2 + $0x20] sm:$0xff] %vm783, %v755
      %789 = vst.msk [vmem:[#allocation2 + $0x28] sm:$0xff] %vm783, %v756
      %790 = vst.msk [vmem:[#allocation2 + $0x30] sm:$0xff] %vm783, %v757
      %791 = vst.msk [vmem:[#allocation2 + $0x38] sm:$0xff] %vm783, %v758
      %792 = vst.msk [vmem:[#allocation2 + $0x40] sm:$0xff] %vm783, %v759
      %793 = vst.msk [vmem:[#allocation2 + $0x48] sm:$0xff] %vm783, %v760
      %794 = vst.msk [vmem:[#allocation2 + $0x50] sm:$0xff] %vm783, %v761
      %795 = vst.msk [vmem:[#allocation2 + $0x58] sm:$0xff] %vm783, %v762
      %796 = vst.msk [vmem:[#allocation2 + $0x60] sm:$0xff] %vm783, %v763
      %797 = vst.msk [vmem:[#allocation2 + $0x68] sm:$0xff] %vm783, %v764
      %798 = vst.msk [vmem:[#allocation2 + $0x70] sm:$0xff] %vm783, %v765
      %799 = vst.msk [vmem:[#allocation2 + $0x78] sm:$0xff] %vm783, %v766
      %800 = vst.msk [vmem:[#allocation2 + $0x80] sm:$0xff] %vm783, %v767
      %801 = vst.msk [vmem:[#allocation2 + $0x88] sm:$0xff] %vm783, %v768
      %802 = vst.msk [vmem:[#allocation2 + $0x90] sm:$0xff] %vm783, %v769
      %803 = vst.msk [vmem:[#allocation2 + $0x98] sm:$0xff] %vm783, %v770
      %804 = vst.msk [vmem:[#allocation2 + $0xa0] sm:$0xff] %vm783, %v771
      %805 = vst.msk [vmem:[#allocation2 + $0xa8] sm:$0xff] %vm783, %v772
      %806 = vst.msk [vmem:[#allocation2 + $0xb0] sm:$0xff] %vm783, %v773
      %807 = vst.msk [vmem:[#allocation2 + $0xb8] sm:$0xff] %vm783, %v774
      %808 = vst.msk [vmem:[#allocation2 + $0xc0] sm:$0xff] %vm783, %v775
      %809 = vst.msk [vmem:[#allocation2 + $0xc8] sm:$0xff] %vm783, %v776
      %810 = vst.msk [vmem:[#allocation2 + $0xd0] sm:$0xff] %vm783, %v777
      %811 = vst.msk [vmem:[#allocation2 + $0xd8] sm:$0xff] %vm783, %v778
      %812 = vst.msk [vmem:[#allocation2 + $0xe0] sm:$0xff] %vm783, %v779
      %813 = vst.msk [vmem:[#allocation2 + $0xe8] sm:$0xff] %vm783, %v780
      %814 = vst.msk [vmem:[#allocation2 + $0xf0] sm:$0xff] %vm783, %v781
      %815 = vst.msk [vmem:[#allocation2 + $0xf8] sm:$0xff] %vm783, %v782
      // Predicated region
      $region33: #{critic_forward.5} parent=27 // pred_check
        %p816 = pneg %p201
      $region34: #{critic_forward.5} parent=27 // pred_check_branch
        %818 = sbr.rel (%p816) target = $region36
      $region35: #{critic_forward.5} parent=27 // pred_region
        %v819 = vld [vmem:[#allocation2] sm:$0xff]
        %v820 = vld [vmem:[#allocation2 + $0x8] sm:$0xff]
        %v821 = vld [vmem:[#allocation2 + $0x10] sm:$0xff]
        %v822 = vld [vmem:[#allocation2 + $0x18] sm:$0xff]
        %v823 = vld [vmem:[#allocation2 + $0x20] sm:$0xff]
        %v824 = vld [vmem:[#allocation2 + $0x28] sm:$0xff]
        %v825 = vld [vmem:[#allocation2 + $0x30] sm:$0xff]
        %v826 = vld [vmem:[#allocation2 + $0x38] sm:$0xff]
        %v827 = vld [vmem:[#allocation2 + $0x40] sm:$0xff]
        %v828 = vld [vmem:[#allocation2 + $0x48] sm:$0xff]
        %v829 = vld [vmem:[#allocation2 + $0x50] sm:$0xff]
        %v830 = vld [vmem:[#allocation2 + $0x58] sm:$0xff]
        %v831 = vld [vmem:[#allocation2 + $0x60] sm:$0xff]
        %v832 = vld [vmem:[#allocation2 + $0x68] sm:$0xff]
        %v833 = vld [vmem:[#allocation2 + $0x70] sm:$0xff]
        %v834 = vld [vmem:[#allocation2 + $0x78] sm:$0xff]
        %v835 = vld [vmem:[#allocation2 + $0x80] sm:$0xff]
        %v836 = vld [vmem:[#allocation2 + $0x88] sm:$0xff]
        %v837 = vld [vmem:[#allocation2 + $0x90] sm:$0xff]
        %v838 = vld [vmem:[#allocation2 + $0x98] sm:$0xff]
        %v839 = vld [vmem:[#allocation2 + $0xa0] sm:$0xff]
        %v840 = vld [vmem:[#allocation2 + $0xa8] sm:$0xff]
        %v841 = vld [vmem:[#allocation2 + $0xb0] sm:$0xff]
        %v842 = vld [vmem:[#allocation2 + $0xb8] sm:$0xff]
        %v843 = vld [vmem:[#allocation2 + $0xc0] sm:$0xff]
        %v844 = vld [vmem:[#allocation2 + $0xc8] sm:$0xff]
        %v845 = vld [vmem:[#allocation2 + $0xd0] sm:$0xff]
        %v846 = vld [vmem:[#allocation2 + $0xd8] sm:$0xff]
        %v847 = vld [vmem:[#allocation2 + $0xe0] sm:$0xff]
        %v848 = vld [vmem:[#allocation2 + $0xe8] sm:$0xff]
        %v849 = vld [vmem:[#allocation2 + $0xf0] sm:$0xff]
        %v850 = vld [vmem:[#allocation2 + $0xf8] sm:$0xff]
        %vm851 = vcmp.ge.f32.partialorder %v819, 0.0
        %vm852 = vcmp.ge.f32.partialorder %v820, 0.0
        %vm853 = vcmp.ge.f32.partialorder %v821, 0.0
        %vm854 = vcmp.ge.f32.partialorder %v822, 0.0
        %vm855 = vcmp.ge.f32.partialorder %v823, 0.0
        %vm856 = vcmp.ge.f32.partialorder %v824, 0.0
        %vm857 = vcmp.ge.f32.partialorder %v825, 0.0
        %vm858 = vcmp.ge.f32.partialorder %v826, 0.0
        %vm859 = vcmp.ge.f32.partialorder %v827, 0.0
        %vm860 = vcmp.ge.f32.partialorder %v828, 0.0
        %vm861 = vcmp.ge.f32.partialorder %v829, 0.0
        %vm862 = vcmp.ge.f32.partialorder %v830, 0.0
        %vm863 = vcmp.ge.f32.partialorder %v831, 0.0
        %vm864 = vcmp.ge.f32.partialorder %v832, 0.0
        %vm865 = vcmp.ge.f32.partialorder %v833, 0.0
        %vm866 = vcmp.ge.f32.partialorder %v834, 0.0
        %vm867 = vcmp.ge.f32.partialorder %v835, 0.0
        %vm868 = vcmp.ge.f32.partialorder %v836, 0.0
        %vm869 = vcmp.ge.f32.partialorder %v837, 0.0
        %vm870 = vcmp.ge.f32.partialorder %v838, 0.0
        %vm871 = vcmp.ge.f32.partialorder %v839, 0.0
        %vm872 = vcmp.ge.f32.partialorder %v840, 0.0
        %vm873 = vcmp.ge.f32.partialorder %v841, 0.0
        %vm874 = vcmp.ge.f32.partialorder %v842, 0.0
        %vm875 = vcmp.ge.f32.partialorder %v843, 0.0
        %vm876 = vcmp.ge.f32.partialorder %v844, 0.0
        %vm877 = vcmp.ge.f32.partialorder %v845, 0.0
        %vm878 = vcmp.ge.f32.partialorder %v846, 0.0
        %vm879 = vcmp.ge.f32.partialorder %v847, 0.0
        %vm880 = vcmp.ge.f32.partialorder %v848, 0.0
        %vm881 = vcmp.ge.f32.partialorder %v849, 0.0
        %vm882 = vcmp.ge.f32.partialorder %v850, 0.0
        %v883 = vmul.f32 %v819, 0.2
        %v884 = vmul.f32 %v820, 0.2
        %v885 = vmul.f32 %v821, 0.2
        %v886 = vmul.f32 %v822, 0.2
        %v887 = vmul.f32 %v823, 0.2
        %v888 = vmul.f32 %v824, 0.2
        %v889 = vmul.f32 %v825, 0.2
        %v890 = vmul.f32 %v826, 0.2
        %v891 = vmul.f32 %v827, 0.2
        %v892 = vmul.f32 %v828, 0.2
        %v893 = vmul.f32 %v829, 0.2
        %v894 = vmul.f32 %v830, 0.2
        %v895 = vmul.f32 %v831, 0.2
        %v896 = vmul.f32 %v832, 0.2
        %v897 = vmul.f32 %v833, 0.2
        %v898 = vmul.f32 %v834, 0.2
        %v899 = vmul.f32 %v835, 0.2
        %v900 = vmul.f32 %v836, 0.2
        %v901 = vmul.f32 %v837, 0.2
        %v902 = vmul.f32 %v838, 0.2
        %v903 = vmul.f32 %v839, 0.2
        %v904 = vmul.f32 %v840, 0.2
        %v905 = vmul.f32 %v841, 0.2
        %v906 = vmul.f32 %v842, 0.2
        %v907 = vmul.f32 %v843, 0.2
        %v908 = vmul.f32 %v844, 0.2
        %v909 = vmul.f32 %v845, 0.2
        %v910 = vmul.f32 %v846, 0.2
        %v911 = vmul.f32 %v847, 0.2
        %v912 = vmul.f32 %v848, 0.2
        %v913 = vmul.f32 %v849, 0.2
        %v914 = vmul.f32 %v850, 0.2
        %v915 = vsel %vm851, %v819, %v883
        %v916 = vsel %vm852, %v820, %v884
        %v917 = vsel %vm853, %v821, %v885
        %v918 = vsel %vm854, %v822, %v886
        %v919 = vsel %vm855, %v823, %v887
        %v920 = vsel %vm856, %v824, %v888
        %v921 = vsel %vm857, %v825, %v889
        %v922 = vsel %vm858, %v826, %v890
        %v923 = vsel %vm859, %v827, %v891
        %v924 = vsel %vm860, %v828, %v892
        %v925 = vsel %vm861, %v829, %v893
        %v926 = vsel %vm862, %v830, %v894
        %v927 = vsel %vm863, %v831, %v895
        %v928 = vsel %vm864, %v832, %v896
        %v929 = vsel %vm865, %v833, %v897
        %v930 = vsel %vm866, %v834, %v898
        %v931 = vsel %vm867, %v835, %v899
        %v932 = vsel %vm868, %v836, %v900
        %v933 = vsel %vm869, %v837, %v901
        %v934 = vsel %vm870, %v838, %v902
        %v935 = vsel %vm871, %v839, %v903
        %v936 = vsel %vm872, %v840, %v904
        %v937 = vsel %vm873, %v841, %v905
        %v938 = vsel %vm874, %v842, %v906
        %v939 = vsel %vm875, %v843, %v907
        %v940 = vsel %vm876, %v844, %v908
        %v941 = vsel %vm877, %v845, %v909
        %v942 = vsel %vm878, %v846, %v910
        %v943 = vsel %vm879, %v847, %v911
        %v944 = vsel %vm880, %v848, %v912
        %v945 = vsel %vm881, %v849, %v913
        %v946 = vsel %vm882, %v850, %v914
        %v947 = vpack.c.bf16 %v916, %v915
        %v948 = vpack.c.bf16 %v918, %v917
        %v949 = vpack.c.bf16 %v920, %v919
        %v950 = vpack.c.bf16 %v922, %v921
        %v951 = vpack.c.bf16 %v924, %v923
        %v952 = vpack.c.bf16 %v926, %v925
        %v953 = vpack.c.bf16 %v928, %v927
        %v954 = vpack.c.bf16 %v930, %v929
        %v955 = vpack.c.bf16 %v932, %v931
        %v956 = vpack.c.bf16 %v934, %v933
        %v957 = vpack.c.bf16 %v936, %v935
        %v958 = vpack.c.bf16 %v938, %v937
        %v959 = vpack.c.bf16 %v940, %v939
        %v960 = vpack.c.bf16 %v942, %v941
        %v961 = vpack.c.bf16 %v944, %v943
        %v962 = vpack.c.bf16 %v946, %v945
        %v979 = vunpack.c.l.b16 %v947
        %v980 = vunpack.c.h.b16 %v947
        %v981 = vunpack.c.l.b16 %v948
        %v982 = vunpack.c.h.b16 %v948
        %v983 = vunpack.c.l.b16 %v949
        %v984 = vunpack.c.h.b16 %v949
        %v985 = vunpack.c.l.b16 %v950
        %v986 = vunpack.c.h.b16 %v950
        %v987 = vunpack.c.l.b16 %v951
        %v988 = vunpack.c.h.b16 %v951
        %v989 = vunpack.c.l.b16 %v952
        %v990 = vunpack.c.h.b16 %v952
        %v991 = vunpack.c.l.b16 %v953
        %v992 = vunpack.c.h.b16 %v953
        %v993 = vunpack.c.l.b16 %v954
        %v994 = vunpack.c.h.b16 %v954
        %v995 = vunpack.c.l.b16 %v955
        %v996 = vunpack.c.h.b16 %v955
        %v997 = vunpack.c.l.b16 %v956
        %v998 = vunpack.c.h.b16 %v956
        %v999 = vunpack.c.l.b16 %v957
        %v1000 = vunpack.c.h.b16 %v957
        %v1001 = vunpack.c.l.b16 %v958
        %v1002 = vunpack.c.h.b16 %v958
        %v1003 = vunpack.c.l.b16 %v959
        %v1004 = vunpack.c.h.b16 %v959
        %v1005 = vunpack.c.l.b16 %v960
        %v1006 = vunpack.c.h.b16 %v960
        %v1007 = vunpack.c.l.b16 %v961
        %v1008 = vunpack.c.h.b16 %v961
        %v1009 = vunpack.c.l.b16 %v962
        %v1010 = vunpack.c.h.b16 %v962
        %v1011 = vpack.c.b16 %v979, %v979
        %v1012 = vpack.c.b16 %v980, %v980
        %v1013 = vpack.c.b16 %v981, %v981
        %v1014 = vpack.c.b16 %v982, %v982
        %v1015 = vpack.c.b16 %v983, %v983
        %v1016 = vpack.c.b16 %v984, %v984
        %v1017 = vpack.c.b16 %v985, %v985
        %v1018 = vpack.c.b16 %v986, %v986
        %v1019 = vpack.c.b16 %v987, %v987
        %v1020 = vpack.c.b16 %v988, %v988
        %v1021 = vpack.c.b16 %v989, %v989
        %v1022 = vpack.c.b16 %v990, %v990
        %v1023 = vpack.c.b16 %v991, %v991
        %v1024 = vpack.c.b16 %v992, %v992
        %v1025 = vpack.c.b16 %v993, %v993
        %v1026 = vpack.c.b16 %v994, %v994
        %v1027 = vpack.c.b16 %v995, %v995
        %v1028 = vpack.c.b16 %v996, %v996
        %v1029 = vpack.c.b16 %v997, %v997
        %v1030 = vpack.c.b16 %v998, %v998
        %v1031 = vpack.c.b16 %v999, %v999
        %v1032 = vpack.c.b16 %v1000, %v1000
        %v1033 = vpack.c.b16 %v1001, %v1001
        %v1034 = vpack.c.b16 %v1002, %v1002
        %v1035 = vpack.c.b16 %v1003, %v1003
        %v1036 = vpack.c.b16 %v1004, %v1004
        %v1037 = vpack.c.b16 %v1005, %v1005
        %v1038 = vpack.c.b16 %v1006, %v1006
        %v1039 = vpack.c.b16 %v1007, %v1007
        %v1040 = vpack.c.b16 %v1008, %v1008
        %v1041 = vpack.c.b16 %v1009, %v1009
        %v1042 = vpack.c.b16 %v1010, %v1010
        %vm1075 = vcmask 519168
        %1076 = vst.msk [vmem:[%s198] sm:$0xf] %vm1075, %v1011
        %1077 = vst.msk [vmem:[%s198 + $0x4] sm:$0xf] %vm1075, %v1012
        %1078 = vst.msk [vmem:[%s198 + $0x8] sm:$0xf] %vm1075, %v1013
        %1079 = vst.msk [vmem:[%s198 + $0xc] sm:$0xf] %vm1075, %v1014
        %1080 = vst.msk [vmem:[%s198 + $0x10] sm:$0xf] %vm1075, %v1015
        %1081 = vst.msk [vmem:[%s198 + $0x14] sm:$0xf] %vm1075, %v1016
        %1082 = vst.msk [vmem:[%s198 + $0x18] sm:$0xf] %vm1075, %v1017
        %1083 = vst.msk [vmem:[%s198 + $0x1c] sm:$0xf] %vm1075, %v1018
        %1084 = vst.msk [vmem:[%s198 + $0x20] sm:$0xf] %vm1075, %v1019
        %1085 = vst.msk [vmem:[%s198 + $0x24] sm:$0xf] %vm1075, %v1020
        %1086 = vst.msk [vmem:[%s198 + $0x28] sm:$0xf] %vm1075, %v1021
        %1087 = vst.msk [vmem:[%s198 + $0x2c] sm:$0xf] %vm1075, %v1022
        %1088 = vst.msk [vmem:[%s198 + $0x30] sm:$0xf] %vm1075, %v1023
        %1089 = vst.msk [vmem:[%s198 + $0x34] sm:$0xf] %vm1075, %v1024
        %1090 = vst.msk [vmem:[%s198 + $0x38] sm:$0xf] %vm1075, %v1025
        %1091 = vst.msk [vmem:[%s198 + $0x3c] sm:$0xf] %vm1075, %v1026
        %1092 = vst.msk [vmem:[%s198 + $0x40] sm:$0xf] %vm1075, %v1027
        %1093 = vst.msk [vmem:[%s198 + $0x44] sm:$0xf] %vm1075, %v1028
        %1094 = vst.msk [vmem:[%s198 + $0x48] sm:$0xf] %vm1075, %v1029
        %1095 = vst.msk [vmem:[%s198 + $0x4c] sm:$0xf] %vm1075, %v1030
        %1096 = vst.msk [vmem:[%s198 + $0x50] sm:$0xf] %vm1075, %v1031
        %1097 = vst.msk [vmem:[%s198 + $0x54] sm:$0xf] %vm1075, %v1032
        %1098 = vst.msk [vmem:[%s198 + $0x58] sm:$0xf] %vm1075, %v1033
        %1099 = vst.msk [vmem:[%s198 + $0x5c] sm:$0xf] %vm1075, %v1034
        %1100 = vst.msk [vmem:[%s198 + $0x60] sm:$0xf] %vm1075, %v1035
        %1101 = vst.msk [vmem:[%s198 + $0x64] sm:$0xf] %vm1075, %v1036
        %1102 = vst.msk [vmem:[%s198 + $0x68] sm:$0xf] %vm1075, %v1037
        %1103 = vst.msk [vmem:[%s198 + $0x6c] sm:$0xf] %vm1075, %v1038
        %1104 = vst.msk [vmem:[%s198 + $0x70] sm:$0xf] %vm1075, %v1039
        %1105 = vst.msk [vmem:[%s198 + $0x74] sm:$0xf] %vm1075, %v1040
        %1106 = vst.msk [vmem:[%s198 + $0x78] sm:$0xf] %vm1075, %v1041
        %1107 = vst.msk [vmem:[%s198 + $0x7c] sm:$0xf] %vm1075, %v1042
      $region36: #{critic_forward.5} parent=27 // pred_fallthru
        _
      %s1108 = smul.u32 32, %s17
      %p1109 = scmp.lt.s32.totalorder %s1108, 255
      %s1110 = scalar_select %p1109, %s1108, 255
      %s1111 = smul.addr %s1110, 4
      %s1112 = scalar_lea.vmem %s2, %s1111
      // Predicated region
      $region37: #{critic_forward.5} parent=27 // pred_check
        %p1113 = pneg %p97
      $region38: #{critic_forward.5} parent=27 // pred_check_branch
        %1115 = sbr.rel (%p1113) target = $region40
      $region39: #{critic_forward.5} parent=27 // pred_region
        %s1116 = smul.u32 32, %s17
      $region40: #{critic_forward.5} parent=27 // pred_fallthru
        _
    $region28: #{critic_forward.5} parent=5 // pred_fallthru
      _
    %p1117 = scmp.le.s32.totalorder 2, %s8
    // Predicated region
    $region41: #{critic_forward.5} parent=5 // pred_check
      %p1118 = pneg %p1117
    $region42: #{critic_forward.5} parent=5 // pred_check_branch
      %1120 = sbr.rel (%p1118) target = $region44
    $region43: #{critic_forward.5} parent=5 // pred_region
      %s1121 = ssub.s32 %s8, 2
      // Predicated region
      $region45: #{critic_forward.5} parent=43 // pred_check
        %p1122 = pneg %p103
      $region46: #{critic_forward.5} parent=43 // pred_check_branch
        %1124 = sbr.rel (%p1122) target = $region48
      $region47: #{critic_forward.5} parent=43 // pred_region
        %s1125 = smul.u32 32, %s19
        %p1126 = scmp.lt.s32.totalorder %s1125, 255
        %s1127 = scalar_select %p1126, %s1125, 255
        %s1128 = smul.addr %s1127, 4
        %s1129 = scalar_lea.vmem %s2, %s1128
      $region48: #{critic_forward.5} parent=43 // pred_fallthru
        _
    $region44: #{critic_forward.5} parent=5 // pred_fallthru
      _
  $region6: #{critic_forward.5} parent=0 // loop_footer
    %s12 = sadd.s32 1, %s8
  $region7: #{critic_forward.5} parent=0 // loop_footer_branch
    %7 = sbr.rel target = $region3
  $region8: #{critic_forward.5} parent=0 // loop_exit
    _

// kernel: critic_forward.6
$region0: #{critic_forward.6}
  #allocation0 [shape = 'u32[]', space=smem, size = 0x4, offset = 0x4, fixed_abs, tag = 'smem constant byte address 0x4 - core index']
  #allocation1 [shape = 'u32[144,128]{1,0:T(1,128)}', space=vmem, size = 0x12000, scoped, tag = 'internal scratch']
  #allocation2 [shape = 'f32[256,128]{1,0:T(8,128)}', space=vmem, size = 0x20000, scoped, tag = 'scratch operand']
  %s0 = inlined_call_operand.vmem [shape: bf16[512,1024], index: 0, kind: input, shape index: {}]
  %s1 = inlined_call_operand.vmem [shape: bf16[1024,128], index: 1, kind: input, shape index: {}]
  %s2 = inlined_call_operand.vmem [shape: bf16[512,128], index: 2, kind: output, shape index: {}]
  %s3 = sld [smem:[#allocation0]]
  $region72: #{critic_forward.6} parent=0
    _
  %s5 = ssub.s32 1, %s3
  %s6 = scalar_select 0, %s5, %s3
  $region1: #{critic_forward.6} parent=0
    #allocation3 [shape = 'u8[524288]{0}', space=vmem, size = 0x80000, scoped, tag = 'input window, operand 0']
    loop: start=0, step=1, limit=6
    $region2: #{critic_forward.6} parent=1 // loop_pre_header
      _
    $region3: #{critic_forward.6} parent=1 // loop_header
      %s8 = sphi 0, %s12
      %p9 = scmp.ge.s32.totalorder %s8, 6
      %s15 = sphi 0, %s27
      %s16 = sphi 0, %s23
      %s17 = sphi 0, %s15
      %s18 = sphi 0, %s16
      %s19 = sphi 0, %s17
      %s20 = sphi 0, %s18
      %s32 = sphi 0, %s34
      %s35 = sphi 0, %s32
      %s36 = sphi 0, %s35
      %s52 = sphi 0, %s36
      %s58 = sphi 0, %s60
      %s61 = sphi 0, %s58
      %s62 = sphi 0, %s61
      %s78 = sphi 0, %s62
      %s84 = sphi 0, %s86
      %s87 = sphi 0, %s84
      %s88 = sphi 0, %s87
      %s104 = sphi 0, %s88
    $region4: #{critic_forward.6} parent=1 // loop_header_branch
      %11 = sbr.rel (%p9) target = $region8
    $region5: #{critic_forward.6} parent=1 // loop_body
      %s13 = ssub.s32 %s8, 1
      %s14 = ssub.s32 %s8, 2
      %s21 = sadd.s32 1, %s16
      %p22 = scmp.ge.s32.totalorder %s21, 2
      %s23 = scalar_select %p22, 0, %s21
      %s24 = sadd.s32 1, %s15
      %s25 = scalar_select %p22, %s24, %s15
      %p26 = scmp.ge.s32.totalorder %s25, 2
      %s27 = scalar_select %p26, 0, %s25
      %s28 = ssub.s32 %s15, %s27
      %s29 = ssub.s32 %s16, %s23
      %s30 = sor.u32 %s28, %s29
      %p31 = scmp.eq.s32.totalorder %s30, 0
      %s33 = sadd.s32 %s32, 1
      %s34 = scalar_select %p31, %s32, %s33
      %p37 = pneg %p31
      %p38 = scmp.eq.s32.totalorder %s8, 3
      %p39 = por %p37, %p38
      %p40 = scmp.ne.s32.totalorder %s32, %s35
      %p41 = scmp.eq.s32.totalorder %s8, 0
      %p42 = por %p40, %p41
      %p43 = scmp.ne.s32.totalorder %s32, %s35
      %p44 = scmp.eq.s32.totalorder %s13, 3
      %p45 = por %p43, %p44
      %p46 = scmp.ne.s32.totalorder %s35, %s36
      %p47 = scmp.eq.s32.totalorder %s13, 0
      %p48 = por %p46, %p47
      %p49 = scmp.ne.s32.totalorder %s35, %s36
      %p50 = scmp.eq.s32.totalorder %s14, 3
      %p51 = por %p49, %p50
      %p53 = scmp.ne.s32.totalorder %s36, %s52
      %p54 = scmp.eq.s32.totalorder %s14, 0
      %p55 = por %p53, %p54
      %s56 = ssub.s32 %s16, %s23
      %p57 = scmp.eq.s32.totalorder %s56, 0
      %s59 = sadd.s32 %s58, 1
      %s60 = scalar_select %p57, %s58, %s59
      %p63 = pneg %p57
      %p64 = scmp.eq.s32.totalorder %s8, 3
      %p65 = por %p63, %p64
      %p66 = scmp.ne.s32.totalorder %s58, %s61
      %p67 = scmp.eq.s32.totalorder %s8, 0
      %p68 = por %p66, %p67
      %p69 = scmp.ne.s32.totalorder %s58, %s61
      %p70 = scmp.eq.s32.totalorder %s13, 3
      %p71 = por %p69, %p70
      %p72 = scmp.ne.s32.totalorder %s61, %s62
      %p73 = scmp.eq.s32.totalorder %s13, 0
      %p74 = por %p72, %p73
      %p75 = scmp.ne.s32.totalorder %s61, %s62
      %p76 = scmp.eq.s32.totalorder %s14, 3
      %p77 = por %p75, %p76
      %p79 = scmp.ne.s32.totalorder %s62, %s78
      %p80 = scmp.eq.s32.totalorder %s14, 0
      %p81 = por %p79, %p80
      %s82 = ssub.s32 %s15, %s27
      %p83 = scmp.eq.s32.totalorder %s82, 0
      %s85 = sadd.s32 %s84, 1
      %s86 = scalar_select %p83, %s84, %s85
      %p89 = pneg %p83
      %p90 = scmp.eq.s32.totalorder %s8, 3
      %p91 = por %p89, %p90
      %p92 = scmp.ne.s32.totalorder %s84, %s87
      %p93 = scmp.eq.s32.totalorder %s8, 0
      %p94 = por %p92, %p93
      %p95 = scmp.ne.s32.totalorder %s84, %s87
      %p96 = scmp.eq.s32.totalorder %s13, 3
      %p97 = por %p95, %p96
      %p98 = scmp.ne.s32.totalorder %s87, %s88
      %p99 = scmp.eq.s32.totalorder %s13, 0
      %p100 = por %p98, %p99
      %p101 = scmp.ne.s32.totalorder %s87, %s88
      %p102 = scmp.eq.s32.totalorder %s14, 3
      %p103 = por %p101, %p102
      %p105 = scmp.ne.s32.totalorder %s88, %s104
      %p106 = scmp.eq.s32.totalorder %s14, 0
      %p107 = por %p105, %p106
      %p108 = scmp.le.s32.totalorder 1, %s8
      %p109 = scmp.lt.s32.totalorder %s8, 5
      %p110 = pnand %p108, %p109
      %p111 = pneg %p110
      // Predicated region
      $region9: #{critic_forward.6} parent=5 // pred_check
        _
      $region10: #{critic_forward.6} parent=5 // pred_check_branch
        %113 = sbr.rel (%p110) target = $region12
      $region11: #{critic_forward.6} parent=5 // pred_region
        %s114 = ssub.s32 %s8, 1
      $region12: #{critic_forward.6} parent=5 // pred_fallthru
        _
      %p115 = scmp.lt.s32.totalorder %s8, 4
      // Predicated region
      $region13: #{critic_forward.6} parent=5 // pred_check
        %p116 = pneg %p115
      $region14: #{critic_forward.6} parent=5 // pred_check_branch
        %118 = sbr.rel (%p116) target = $region16
      $region15: #{critic_forward.6} parent=5 // pred_region
        // Predicated region
        $region17: #{critic_forward.6} parent=15 // pred_check
          %p119 = pneg %p42
        $region18: #{critic_forward.6} parent=15 // pred_check_branch
          %121 = sbr.rel (%p119) target = $region20
        $region19: #{critic_forward.6} parent=15 // pred_region
          %s122 = sand.u32 %s32, 1
          %s123 = sand.u32 %s32, 1
          %s124 = smul.addr %s123, 512
          %s125 = scalar_lea.vmem [#allocation3], %s124
          %s126 = smul.u32 32, %s15
          %s127 = smul.u32 4, %s16
          %s128 = smul.addr %s126, 8
          %s129 = sadd.s32 %s127, %s128
          %s130 = smul.addr %s129, 4
          %s131 = scalar_lea.vmem %s0, %s130
          // Predicated region
          $region21: #{critic_forward.6} parent=19 // pred_check
            _
          $region22: #{critic_forward.6} parent=19 // pred_check_branch
            %133 = sbr.rel (0) target = $region24
          $region23: #{critic_forward.6} parent=19 // pred_region
            // Predicated region
            $region25: #{critic_forward.6} parent=23 // pred_check
              _
            $region26: #{critic_forward.6} parent=23 // pred_check_branch
              %135 = sbr.rel (0) target = $region28
            $region27: #{critic_forward.6} parent=23 // pred_region
              loop: start=0, step=1, limit=1
              $region29: #{critic_forward.6} parent=27 // loop_pre_header
                _
              $region30: #{critic_forward.6} parent=27 // loop_header
                %s137 = sphi 0, %s141
                %p138 = scmp.ge.s32.totalorder %s137, 1
                %s142 = sphi %s131, %s131
                %s143 = sphi %s125, %s125
              $region31: #{critic_forward.6} parent=27 // loop_header_branch
                %140 = sbr.rel (%p138) target = $region35
              $region32: #{critic_forward.6} parent=27 // loop_body
                %v144 = vld [vmem:[%s142] sm:$0xff]
                %145 = vst [vmem:[%s143] sm:$0xff] %v144
                %v146 = vld [vmem:[%s142 + $0x8] sm:$0xff]
                %147 = vst [vmem:[%s143 + $0x8] sm:$0xff] %v146
                %v148 = vld [vmem:[%s142 + $0x20] sm:$0xff]
                %149 = vst [vmem:[%s143 + $0x10] sm:$0xff] %v148
                %v150 = vld [vmem:[%s142 + $0x28] sm:$0xff]
                %151 = vst [vmem:[%s143 + $0x18] sm:$0xff] %v150
                %v152 = vld [vmem:[%s142 + $0x40] sm:$0xff]
                %153 = vst [vmem:[%s143 + $0x20] sm:$0xff] %v152
                %v154 = vld [vmem:[%s142 + $0x48] sm:$0xff]
                %155 = vst [vmem:[%s143 + $0x28] sm:$0xff] %v154
                %v156 = vld [vmem:[%s142 + $0x60] sm:$0xff]
                %157 = vst [vmem:[%s143 + $0x30] sm:$0xff] %v156
                %v158 = vld [vmem:[%s142 + $0x68] sm:$0xff]
                %159 = vst [vmem:[%s143 + $0x38] sm:$0xff] %v158
                %v160 = vld [vmem:[%s142 + $0x80] sm:$0xff]
                %161 = vst [vmem:[%s143 + $0x40] sm:$0xff] %v160
                %v162 = vld [vmem:[%s142 + $0x88] sm:$0xff]
                %163 = vst [vmem:[%s143 + $0x48] sm:$0xff] %v162
                %v164 = vld [vmem:[%s142 + $0xa0] sm:$0xff]
                %165 = vst [vmem:[%s143 + $0x50] sm:$0xff] %v164
                %v166 = vld [vmem:[%s142 + $0xa8] sm:$0xff]
                %167 = vst [vmem:[%s143 + $0x58] sm:$0xff] %v166
                %v168 = vld [vmem:[%s142 + $0xc0] sm:$0xff]
                %169 = vst [vmem:[%s143 + $0x60] sm:$0xff] %v168
                %v170 = vld [vmem:[%s142 + $0xc8] sm:$0xff]
                %171 = vst [vmem:[%s143 + $0x68] sm:$0xff] %v170
                %v172 = vld [vmem:[%s142 + $0xe0] sm:$0xff]
                %173 = vst [vmem:[%s143 + $0x70] sm:$0xff] %v172
                %v174 = vld [vmem:[%s142 + $0xe8] sm:$0xff]
                %175 = vst [vmem:[%s143 + $0x78] sm:$0xff] %v174
                %v176 = vld [vmem:[%s142 + $0x100] sm:$0xff]
                %177 = vst [vmem:[%s143 + $0x80] sm:$0xff] %v176
                %v178 = vld [vmem:[%s142 + $0x108] sm:$0xff]
                %179 = vst [vmem:[%s143 + $0x88] sm:$0xff] %v178
                %v180 = vld [vmem:[%s142 + $0x120] sm:$0xff]
                %181 = vst [vmem:[%s143 + $0x90] sm:$0xff] %v180
                %v182 = vld [vmem:[%s142 + $0x128] sm:$0xff]
                %183 = vst [vmem:[%s143 + $0x98] sm:$0xff] %v182
                %v184 = vld [vmem:[%s142 + $0x140] sm:$0xff]
                %185 = vst [vmem:[%s143 + $0xa0] sm:$0xff] %v184
                %v186 = vld [vmem:[%s142 + $0x148] sm:$0xff]
                %187 = vst [vmem:[%s143 + $0xa8] sm:$0xff] %v186
                %v188 = vld [vmem:[%s142 + $0x160] sm:$0xff]
                %189 = vst [vmem:[%s143 + $0xb0] sm:$0xff] %v188
                %v190 = vld [vmem:[%s142 + $0x168] sm:$0xff]
                %191 = vst [vmem:[%s143 + $0xb8] sm:$0xff] %v190
                %v192 = vld [vmem:[%s142 + $0x180] sm:$0xff]
                %193 = vst [vmem:[%s143 + $0xc0] sm:$0xff] %v192
                %v194 = vld [vmem:[%s142 + $0x188] sm:$0xff]
                %195 = vst [vmem:[%s143 + $0xc8] sm:$0xff] %v194
                %v196 = vld [vmem:[%s142 + $0x1a0] sm:$0xff]
                %197 = vst [vmem:[%s143 + $0xd0] sm:$0xff] %v196
                %v198 = vld [vmem:[%s142 + $0x1a8] sm:$0xff]
                %199 = vst [vmem:[%s143 + $0xd8] sm:$0xff] %v198
                %v200 = vld [vmem:[%s142 + $0x1c0] sm:$0xff]
                %201 = vst [vmem:[%s143 + $0xe0] sm:$0xff] %v200
                %v202 = vld [vmem:[%s142 + $0x1c8] sm:$0xff]
                %203 = vst [vmem:[%s143 + $0xe8] sm:$0xff] %v202
                %v204 = vld [vmem:[%s142 + $0x1e0] sm:$0xff]
                %205 = vst [vmem:[%s143 + $0xf0] sm:$0xff] %v204
                %v206 = vld [vmem:[%s142 + $0x1e8] sm:$0xff]
                %207 = vst [vmem:[%s143 + $0xf8] sm:$0xff] %v206
                %v208 = vld [vmem:[%s142 + $0x200] sm:$0xff]
                %209 = vst [vmem:[%s143 + $0x100] sm:$0xff] %v208
                %v210 = vld [vmem:[%s142 + $0x208] sm:$0xff]
                %211 = vst [vmem:[%s143 + $0x108] sm:$0xff] %v210
                %v212 = vld [vmem:[%s142 + $0x220] sm:$0xff]
                %213 = vst [vmem:[%s143 + $0x110] sm:$0xff] %v212
                %v214 = vld [vmem:[%s142 + $0x228] sm:$0xff]
                %215 = vst [vmem:[%s143 + $0x118] sm:$0xff] %v214
                %v216 = vld [vmem:[%s142 + $0x240] sm:$0xff]
                %217 = vst [vmem:[%s143 + $0x120] sm:$0xff] %v216
                %v218 = vld [vmem:[%s142 + $0x248] sm:$0xff]
                %219 = vst [vmem:[%s143 + $0x128] sm:$0xff] %v218
                %v220 = vld [vmem:[%s142 + $0x260] sm:$0xff]
                %221 = vst [vmem:[%s143 + $0x130] sm:$0xff] %v220
                %v222 = vld [vmem:[%s142 + $0x268] sm:$0xff]
                %223 = vst [vmem:[%s143 + $0x138] sm:$0xff] %v222
                %v224 = vld [vmem:[%s142 + $0x280] sm:$0xff]
                %225 = vst [vmem:[%s143 + $0x140] sm:$0xff] %v224
                %v226 = vld [vmem:[%s142 + $0x288] sm:$0xff]
                %227 = vst [vmem:[%s143 + $0x148] sm:$0xff] %v226
                %v228 = vld [vmem:[%s142 + $0x2a0] sm:$0xff]
                %229 = vst [vmem:[%s143 + $0x150] sm:$0xff] %v228
                %v230 = vld [vmem:[%s142 + $0x2a8] sm:$0xff]
                %231 = vst [vmem:[%s143 + $0x158] sm:$0xff] %v230
                %v232 = vld [vmem:[%s142 + $0x2c0] sm:$0xff]
                %233 = vst [vmem:[%s143 + $0x160] sm:$0xff] %v232
                %v234 = vld [vmem:[%s142 + $0x2c8] sm:$0xff]
                %235 = vst [vmem:[%s143 + $0x168] sm:$0xff] %v234
                %v236 = vld [vmem:[%s142 + $0x2e0] sm:$0xff]
                %237 = vst [vmem:[%s143 + $0x170] sm:$0xff] %v236
                %v238 = vld [vmem:[%s142 + $0x2e8] sm:$0xff]
                %239 = vst [vmem:[%s143 + $0x178] sm:$0xff] %v238
                %v240 = vld [vmem:[%s142 + $0x300] sm:$0xff]
                %241 = vst [vmem:[%s143 + $0x180] sm:$0xff] %v240
                %v242 = vld [vmem:[%s142 + $0x308] sm:$0xff]
                %243 = vst [vmem:[%s143 + $0x188] sm:$0xff] %v242
                %v244 = vld [vmem:[%s142 + $0x320] sm:$0xff]
                %245 = vst [vmem:[%s143 + $0x190] sm:$0xff] %v244
                %v246 = vld [vmem:[%s142 + $0x328] sm:$0xff]
                %247 = vst [vmem:[%s143 + $0x198] sm:$0xff] %v246
                %v248 = vld [vmem:[%s142 + $0x340] sm:$0xff]
                %249 = vst [vmem:[%s143 + $0x1a0] sm:$0xff] %v248
                %v250 = vld [vmem:[%s142 + $0x348] sm:$0xff]
                %251 = vst [vmem:[%s143 + $0x1a8] sm:$0xff] %v250
                %v252 = vld [vmem:[%s142 + $0x360] sm:$0xff]
                %253 = vst [vmem:[%s143 + $0x1b0] sm:$0xff] %v252
                %v254 = vld [vmem:[%s142 + $0x368] sm:$0xff]
                %255 = vst [vmem:[%s143 + $0x1b8] sm:$0xff] %v254
                %v256 = vld [vmem:[%s142 + $0x380] sm:$0xff]
                %257 = vst [vmem:[%s143 + $0x1c0] sm:$0xff] %v256
                %v258 = vld [vmem:[%s142 + $0x388] sm:$0xff]
                %259 = vst [vmem:[%s143 + $0x1c8] sm:$0xff] %v258
                %v260 = vld [vmem:[%s142 + $0x3a0] sm:$0xff]
                %261 = vst [vmem:[%s143 + $0x1d0] sm:$0xff] %v260
                %v262 = vld [vmem:[%s142 + $0x3a8] sm:$0xff]
                %263 = vst [vmem:[%s143 + $0x1d8] sm:$0xff] %v262
                %v264 = vld [vmem:[%s142 + $0x3c0] sm:$0xff]
                %265 = vst [vmem:[%s143 + $0x1e0] sm:$0xff] %v264
                %v266 = vld [vmem:[%s142 + $0x3c8] sm:$0xff]
                %267 = vst [vmem:[%s143 + $0x1e8] sm:$0xff] %v266
                %v268 = vld [vmem:[%s142 + $0x3e0] sm:$0xff]
                %269 = vst [vmem:[%s143 + $0x1f0] sm:$0xff] %v268
                %v270 = vld [vmem:[%s142 + $0x3e8] sm:$0xff]
                %271 = vst [vmem:[%s143 + $0x1f8] sm:$0xff] %v270
              $region33: #{critic_forward.6} parent=27 // loop_footer
                %s141 = sadd.s32 1, %s137
              $region34: #{critic_forward.6} parent=27 // loop_footer_branch
                %136 = sbr.rel target = $region30
              $region35: #{critic_forward.6} parent=27 // loop_exit
                _
            $region28: #{critic_forward.6} parent=23 // pred_fallthru
              _
            // Predicated region
            $region36: #{critic_forward.6} parent=23 // pred_check
              _
            $region37: #{critic_forward.6} parent=23 // pred_check_branch
              %273 = sbr.rel target = $region39
            $region38: #{critic_forward.6} parent=23 // pred_region
              _
            $region39: #{critic_forward.6} parent=23 // pred_fallthru
              _
          $region24: #{critic_forward.6} parent=19 // pred_fallthru
            _
          %274 = vnop
        $region20: #{critic_forward.6} parent=15 // pred_fallthru
          _
        // Predicated region
        $region40: #{critic_forward.6} parent=15 // pred_check
          %p275 = pneg %p68
        $region41: #{critic_forward.6} parent=15 // pred_check_branch
          %277 = sbr.rel (%p275) target = $region43
        $region42: #{critic_forward.6} parent=15 // pred_region
          %s278 = smul.u32 64, %s16
          %p279 = scmp.lt.s32.totalorder %s278, 127
          %s280 = scalar_select %p279, %s278, 127
          %s281 = smul.addr %s280, 4
          %s282 = scalar_lea.vmem %s1, %s281
          %s283 = smul.u32 64, %s16
        $region43: #{critic_forward.6} parent=15 // pred_fallthru
          _
      $region16: #{critic_forward.6} parent=5 // pred_fallthru
        _
      %p284 = scmp.le.s32.totalorder 1, %s8
      %p285 = scmp.lt.s32.totalorder %s8, 5
      %p286 = pnand %p284, %p285
      %p287 = pneg %p286
      // Predicated region
      $region44: #{critic_forward.6} parent=5 // pred_check
        _
      $region45: #{critic_forward.6} parent=5 // pred_check_branch
        %289 = sbr.rel (%p286) target = $region47
      $region46: #{critic_forward.6} parent=5 // pred_region
        %s290 = ssub.s32 %s8, 1
        %s291 = sand.u32 %s35, 1
        %s292 = sand.u32 %s35, 1
        %s293 = smul.addr %s292, 512
        %s294 = scalar_lea.vmem [#allocation3], %s293
        // Predicated region
        $region48: #{critic_forward.6} parent=46 // pred_check
          %p295 = pneg %p48
        $region49: #{critic_forward.6} parent=46 // pred_check_branch
          %297 = sbr.rel (%p295) target = $region51
        $region50: #{critic_forward.6} parent=46 // pred_region
          _
        $region51: #{critic_forward.6} parent=46 // pred_fallthru
          _
        %s298 = sand.u32 %s35, 1
        %s299 = sand.u32 %s35, 1
        %s300 = smul.addr %s299, 512
        %s301 = scalar_lea.vmem [#allocation3], %s300
        %p302 = pneg %p48
        %p303 = pneg %p45
        %s304 = smul.u32 64, %s18
        %p305 = scmp.lt.s32.totalorder %s304, 127
        %s306 = scalar_select %p305, %s304, 127
        %s307 = smul.addr %s306, 4
        %s308 = scalar_lea.vmem %s1, %s307
        %p309 = pneg %p74
        %p310 = pneg %p71
        %p311 = pneg %p100
        %p312 = pneg %p97
        %s313 = smul.u32 32, %s17
        %p314 = scmp.lt.s32.totalorder %s313, 63
        %s315 = scalar_select %p314, %s313, 63
        %s316 = smul.addr %s315, 4
        %s317 = scalar_lea.vmem %s2, %s316
        %s318 = smul.u32 32, %s17
        %s319 = smul.u32 4, %s18
        %s320 = smul.u32 64, %s18
        %p321 = scmp.lt.s32.totalorder %s320, 127
        %s322 = scalar_select %p321, %s320, 127
        %s323 = smul.addr %s322, 4
        %s324 = scalar_lea.vmem %s1, %s323
        %s325 = smul.u32 64, %s18
        %s326 = smul.u32 32, %s17
        %p327 = scmp.lt.s32.totalorder %s326, 63
        %s328 = scalar_select %p327, %s326, 63
        %s329 = smul.addr %s328, 4
        %s330 = scalar_lea.vmem %s2, %s329
        %s331 = smul.u32 32, %s17
        %p333 = scmp.eq.s32.totalorder %s18, 0
        // Predicated region
        $region52: #{critic_forward.6} parent=46 // pred_check
          %p334 = pneg %p333
        $region53: #{critic_forward.6} parent=46 // pred_check_branch
          %336 = sbr.rel (%p334) target = $region55
        $region54: #{critic_forward.6} parent=46 // pred_region
          %337 = vst [vmem:[#allocation2] sm:$0xff] 0.0
          %338 = vst [vmem:[#allocation2 + $0x8] sm:$0xff] 0.0
          %339 = vst [vmem:[#allocation2 + $0x10] sm:$0xff] 0.0
          %340 = vst [vmem:[#allocation2 + $0x18] sm:$0xff] 0.0
          %341 = vst [vmem:[#allocation2 + $0x20] sm:$0xff] 0.0
          %342 = vst [vmem:[#allocation2 + $0x28] sm:$0xff] 0.0
          %343 = vst [vmem:[#allocation2 + $0x30] sm:$0xff] 0.0
          %344 = vst [vmem:[#allocation2 + $0x38] sm:$0xff] 0.0
          %345 = vst [vmem:[#allocation2 + $0x40] sm:$0xff] 0.0
          %346 = vst [vmem:[#allocation2 + $0x48] sm:$0xff] 0.0
          %347 = vst [vmem:[#allocation2 + $0x50] sm:$0xff] 0.0
          %348 = vst [vmem:[#allocation2 + $0x58] sm:$0xff] 0.0
          %349 = vst [vmem:[#allocation2 + $0x60] sm:$0xff] 0.0
          %350 = vst [vmem:[#allocation2 + $0x68] sm:$0xff] 0.0
          %351 = vst [vmem:[#allocation2 + $0x70] sm:$0xff] 0.0
          %352 = vst [vmem:[#allocation2 + $0x78] sm:$0xff] 0.0
          %353 = vst [vmem:[#allocation2 + $0x80] sm:$0xff] 0.0
          %354 = vst [vmem:[#allocation2 + $0x88] sm:$0xff] 0.0
          %355 = vst [vmem:[#allocation2 + $0x90] sm:$0xff] 0.0
          %356 = vst [vmem:[#allocation2 + $0x98] sm:$0xff] 0.0
          %357 = vst [vmem:[#allocation2 + $0xa0] sm:$0xff] 0.0
          %358 = vst [vmem:[#allocation2 + $0xa8] sm:$0xff] 0.0
          %359 = vst [vmem:[#allocation2 + $0xb0] sm:$0xff] 0.0
          %360 = vst [vmem:[#allocation2 + $0xb8] sm:$0xff] 0.0
          %361 = vst [vmem:[#allocation2 + $0xc0] sm:$0xff] 0.0
          %362 = vst [vmem:[#allocation2 + $0xc8] sm:$0xff] 0.0
          %363 = vst [vmem:[#allocation2 + $0xd0] sm:$0xff] 0.0
          %364 = vst [vmem:[#allocation2 + $0xd8] sm:$0xff] 0.0
          %365 = vst [vmem:[#allocation2 + $0xe0] sm:$0xff] 0.0
          %366 = vst [vmem:[#allocation2 + $0xe8] sm:$0xff] 0.0
          %367 = vst [vmem:[#allocation2 + $0xf0] sm:$0xff] 0.0
          %368 = vst [vmem:[#allocation2 + $0xf8] sm:$0xff] 0.0
        $region55: #{critic_forward.6} parent=46 // pred_fallthru
          _
        %v369 = vld [vmem:[#allocation2] sm:$0xff]
        %v370 = vld [vmem:[#allocation2 + $0x8] sm:$0xff]
        %v371 = vld [vmem:[#allocation2 + $0x10] sm:$0xff]
        %v372 = vld [vmem:[#allocation2 + $0x18] sm:$0xff]
        %v373 = vld [vmem:[#allocation2 + $0x20] sm:$0xff]
        %v374 = vld [vmem:[#allocation2 + $0x28] sm:$0xff]
        %v375 = vld [vmem:[#allocation2 + $0x30] sm:$0xff]
        %v376 = vld [vmem:[#allocation2 + $0x38] sm:$0xff]
        %v377 = vld [vmem:[#allocation2 + $0x40] sm:$0xff]
        %v378 = vld [vmem:[#allocation2 + $0x48] sm:$0xff]
        %v379 = vld [vmem:[#allocation2 + $0x50] sm:$0xff]
        %v380 = vld [vmem:[#allocation2 + $0x58] sm:$0xff]
        %v381 = vld [vmem:[#allocation2 + $0x60] sm:$0xff]
        %v382 = vld [vmem:[#allocation2 + $0x68] sm:$0xff]
        %v383 = vld [vmem:[#allocation2 + $0x70] sm:$0xff]
        %v384 = vld [vmem:[#allocation2 + $0x78] sm:$0xff]
        %v385 = vld [vmem:[#allocation2 + $0x80] sm:$0xff]
        %v386 = vld [vmem:[#allocation2 + $0x88] sm:$0xff]
        %v387 = vld [vmem:[#allocation2 + $0x90] sm:$0xff]
        %v388 = vld [vmem:[#allocation2 + $0x98] sm:$0xff]
        %v389 = vld [vmem:[#allocation2 + $0xa0] sm:$0xff]
        %v390 = vld [vmem:[#allocation2 + $0xa8] sm:$0xff]
        %v391 = vld [vmem:[#allocation2 + $0xb0] sm:$0xff]
        %v392 = vld [vmem:[#allocation2 + $0xb8] sm:$0xff]
        %v393 = vld [vmem:[#allocation2 + $0xc0] sm:$0xff]
        %v394 = vld [vmem:[#allocation2 + $0xc8] sm:$0xff]
        %v395 = vld [vmem:[#allocation2 + $0xd0] sm:$0xff]
        %v396 = vld [vmem:[#allocation2 + $0xd8] sm:$0xff]
        %v397 = vld [vmem:[#allocation2 + $0xe0] sm:$0xff]
        %v398 = vld [vmem:[#allocation2 + $0xe8] sm:$0xff]
        %v399 = vld [vmem:[#allocation2 + $0xf0] sm:$0xff]
        %v400 = vld [vmem:[#allocation2 + $0xf8] sm:$0xff]
        %v401 = vld [vmem:[%s294] sm:$0xff]
        %v402 = vld [vmem:[%s294 + $0x8] sm:$0xff]
        %v403 = vld [vmem:[%s294 + $0x10] sm:$0xff]
        %v404 = vld [vmem:[%s294 + $0x18] sm:$0xff]
        %v405 = vld [vmem:[%s294 + $0x20] sm:$0xff]
        %v406 = vld [vmem:[%s294 + $0x28] sm:$0xff]
        %v407 = vld [vmem:[%s294 + $0x30] sm:$0xff]
        %v408 = vld [vmem:[%s294 + $0x38] sm:$0xff]
        %v409 = vld [vmem:[%s294 + $0x40] sm:$0xff]
        %v410 = vld [vmem:[%s294 + $0x48] sm:$0xff]
        %v411 = vld [vmem:[%s294 + $0x50] sm:$0xff]
        %v412 = vld [vmem:[%s294 + $0x58] sm:$0xff]
        %v413 = vld [vmem:[%s294 + $0x60] sm:$0xff]
        %v414 = vld [vmem:[%s294 + $0x68] sm:$0xff]
        %v415 = vld [vmem:[%s294 + $0x70] sm:$0xff]
        %v416 = vld [vmem:[%s294 + $0x78] sm:$0xff]
        %v417 = vld [vmem:[%s294 + $0x80] sm:$0xff]
        %v418 = vld [vmem:[%s294 + $0x88] sm:$0xff]
        %v419 = vld [vmem:[%s294 + $0x90] sm:$0xff]
        %v420 = vld [vmem:[%s294 + $0x98] sm:$0xff]
        %v421 = vld [vmem:[%s294 + $0xa0] sm:$0xff]
        %v422 = vld [vmem:[%s294 + $0xa8] sm:$0xff]
        %v423 = vld [vmem:[%s294 + $0xb0] sm:$0xff]
        %v424 = vld [vmem:[%s294 + $0xb8] sm:$0xff]
        %v425 = vld [vmem:[%s294 + $0xc0] sm:$0xff]
        %v426 = vld [vmem:[%s294 + $0xc8] sm:$0xff]
        %v427 = vld [vmem:[%s294 + $0xd0] sm:$0xff]
        %v428 = vld [vmem:[%s294 + $0xd8] sm:$0xff]
        %v429 = vld [vmem:[%s294 + $0xe0] sm:$0xff]
        %v430 = vld [vmem:[%s294 + $0xe8] sm:$0xff]
        %v431 = vld [vmem:[%s294 + $0xf0] sm:$0xff]
        %v432 = vld [vmem:[%s294 + $0xf8] sm:$0xff]
        %v433 = vld [vmem:[%s294 + $0x100] sm:$0xff]
        %v434 = vld [vmem:[%s294 + $0x108] sm:$0xff]
        %v435 = vld [vmem:[%s294 + $0x110] sm:$0xff]
        %v436 = vld [vmem:[%s294 + $0x118] sm:$0xff]
        %v437 = vld [vmem:[%s294 + $0x120] sm:$0xff]
        %v438 = vld [vmem:[%s294 + $0x128] sm:$0xff]
        %v439 = vld [vmem:[%s294 + $0x130] sm:$0xff]
        %v440 = vld [vmem:[%s294 + $0x138] sm:$0xff]
        %v441 = vld [vmem:[%s294 + $0x140] sm:$0xff]
        %v442 = vld [vmem:[%s294 + $0x148] sm:$0xff]
        %v443 = vld [vmem:[%s294 + $0x150] sm:$0xff]
        %v444 = vld [vmem:[%s294 + $0x158] sm:$0xff]
        %v445 = vld [vmem:[%s294 + $0x160] sm:$0xff]
        %v446 = vld [vmem:[%s294 + $0x168] sm:$0xff]
        %v447 = vld [vmem:[%s294 + $0x170] sm:$0xff]
        %v448 = vld [vmem:[%s294 + $0x178] sm:$0xff]
        %v449 = vld [vmem:[%s294 + $0x180] sm:$0xff]
        %v450 = vld [vmem:[%s294 + $0x188] sm:$0xff]
        %v451 = vld [vmem:[%s294 + $0x190] sm:$0xff]
        %v452 = vld [vmem:[%s294 + $0x198] sm:$0xff]
        %v453 = vld [vmem:[%s294 + $0x1a0] sm:$0xff]
        %v454 = vld [vmem:[%s294 + $0x1a8] sm:$0xff]
        %v455 = vld [vmem:[%s294 + $0x1b0] sm:$0xff]
        %v456 = vld [vmem:[%s294 + $0x1b8] sm:$0xff]
        %v457 = vld [vmem:[%s294 + $0x1c0] sm:$0xff]
        %v458 = vld [vmem:[%s294 + $0x1c8] sm:$0xff]
        %v459 = vld [vmem:[%s294 + $0x1d0] sm:$0xff]
        %v460 = vld [vmem:[%s294 + $0x1d8] sm:$0xff]
        %v461 = vld [vmem:[%s294 + $0x1e0] sm:$0xff]
        %v462 = vld [vmem:[%s294 + $0x1e8] sm:$0xff]
        %v463 = vld [vmem:[%s294 + $0x1f0] sm:$0xff]
        %v464 = vld [vmem:[%s294 + $0x1f8] sm:$0xff]
        %v465 = vld [vmem:[%s324] sm:$0xf]
        %v466 = vld [vmem:[%s324 + $0x4] sm:$0xf]
        %v467 = vld [vmem:[%s324 + $0x8] sm:$0xf]
        %v468 = vld [vmem:[%s324 + $0xc] sm:$0xf]
        %v469 = vld [vmem:[%s324 + $0x10] sm:$0xf]
        %v470 = vld [vmem:[%s324 + $0x14] sm:$0xf]
        %v471 = vld [vmem:[%s324 + $0x18] sm:$0xf]
        %v472 = vld [vmem:[%s324 + $0x1c] sm:$0xf]
        %v473 = vld [vmem:[%s324 + $0x20] sm:$0xf]
        %v474 = vld [vmem:[%s324 + $0x24] sm:$0xf]
        %v475 = vld [vmem:[%s324 + $0x28] sm:$0xf]
        %v476 = vld [vmem:[%s324 + $0x2c] sm:$0xf]
        %v477 = vld [vmem:[%s324 + $0x30] sm:$0xf]
        %v478 = vld [vmem:[%s324 + $0x34] sm:$0xf]
        %v479 = vld [vmem:[%s324 + $0x38] sm:$0xf]
        %v480 = vld [vmem:[%s324 + $0x3c] sm:$0xf]
        %v481 = vld [vmem:[%s324 + $0x40] sm:$0xf]
        %v482 = vld [vmem:[%s324 + $0x44] sm:$0xf]
        %v483 = vld [vmem:[%s324 + $0x48] sm:$0xf]
        %v484 = vld [vmem:[%s324 + $0x4c] sm:$0xf]
        %v485 = vld [vmem:[%s324 + $0x50] sm:$0xf]
        %v486 = vld [vmem:[%s324 + $0x54] sm:$0xf]
        %v487 = vld [vmem:[%s324 + $0x58] sm:$0xf]
        %v488 = vld [vmem:[%s324 + $0x5c] sm:$0xf]
        %v489 = vld [vmem:[%s324 + $0x60] sm:$0xf]
        %v490 = vld [vmem:[%s324 + $0x64] sm:$0xf]
        %v491 = vld [vmem:[%s324 + $0x68] sm:$0xf]
        %v492 = vld [vmem:[%s324 + $0x6c] sm:$0xf]
        %v493 = vld [vmem:[%s324 + $0x70] sm:$0xf]
        %v494 = vld [vmem:[%s324 + $0x74] sm:$0xf]
        %v495 = vld [vmem:[%s324 + $0x78] sm:$0xf]
        %v496 = vld [vmem:[%s324 + $0x7c] sm:$0xf]
        %v497 = vld [vmem:[%s324 + $0x80] sm:$0xf]
        %v498 = vld [vmem:[%s324 + $0x84] sm:$0xf]
        %v499 = vld [vmem:[%s324 + $0x88] sm:$0xf]
        %v500 = vld [vmem:[%s324 + $0x8c] sm:$0xf]
        %v501 = vld [vmem:[%s324 + $0x90] sm:$0xf]
        %v502 = vld [vmem:[%s324 + $0x94] sm:$0xf]
        %v503 = vld [vmem:[%s324 + $0x98] sm:$0xf]
        %v504 = vld [vmem:[%s324 + $0x9c] sm:$0xf]
        %v505 = vld [vmem:[%s324 + $0xa0] sm:$0xf]
        %v506 = vld [vmem:[%s324 + $0xa4] sm:$0xf]
        %v507 = vld [vmem:[%s324 + $0xa8] sm:$0xf]
        %v508 = vld [vmem:[%s324 + $0xac] sm:$0xf]
        %v509 = vld [vmem:[%s324 + $0xb0] sm:$0xf]
        %v510 = vld [vmem:[%s324 + $0xb4] sm:$0xf]
        %v511 = vld [vmem:[%s324 + $0xb8] sm:$0xf]
        %v512 = vld [vmem:[%s324 + $0xbc] sm:$0xf]
        %v513 = vld [vmem:[%s324 + $0xc0] sm:$0xf]
        %v514 = vld [vmem:[%s324 + $0xc4] sm:$0xf]
        %v515 = vld [vmem:[%s324 + $0xc8] sm:$0xf]
        %v516 = vld [vmem:[%s324 + $0xcc] sm:$0xf]
        %v517 = vld [vmem:[%s324 + $0xd0] sm:$0xf]
        %v518 = vld [vmem:[%s324 + $0xd4] sm:$0xf]
        %v519 = vld [vmem:[%s324 + $0xd8] sm:$0xf]
        %v520 = vld [vmem:[%s324 + $0xdc] sm:$0xf]
        %v521 = vld [vmem:[%s324 + $0xe0] sm:$0xf]
        %v522 = vld [vmem:[%s324 + $0xe4] sm:$0xf]
        %v523 = vld [vmem:[%s324 + $0xe8] sm:$0xf]
        %v524 = vld [vmem:[%s324 + $0xec] sm:$0xf]
        %v525 = vld [vmem:[%s324 + $0xf0] sm:$0xf]
        %v526 = vld [vmem:[%s324 + $0xf4] sm:$0xf]
        %v527 = vld [vmem:[%s324 + $0xf8] sm:$0xf]
        %v528 = vld [vmem:[%s324 + $0xfc] sm:$0xf]
        %v593 = vunpack.c.l.b16 %v401
        %v594 = vunpack.c.h.b16 %v401
        %v595 = vunpack.c.l.b16 %v402
        %v596 = vunpack.c.h.b16 %v402
        %v597 = vunpack.c.l.b16 %v403
        %v598 = vunpack.c.h.b16 %v403
        %v599 = vunpack.c.l.b16 %v404
        %v600 = vunpack.c.h.b16 %v404
        %v601 = vunpack.c.l.b16 %v405
        %v602 = vunpack.c.h.b16 %v405
        %v603 = vunpack.c.l.b16 %v406
        %v604 = vunpack.c.h.b16 %v406
        %v605 = vunpack.c.l.b16 %v407
        %v606 = vunpack.c.h.b16 %v407
        %v607 = vunpack.c.l.b16 %v408
        %v608 = vunpack.c.h.b16 %v408
        %v609 = vunpack.c.l.b16 %v409
        %v610 = vunpack.c.h.b16 %v409
        %v611 = vunpack.c.l.b16 %v410
        %v612 = vunpack.c.h.b16 %v410
        %v613 = vunpack.c.l.b16 %v411
        %v614 = vunpack.c.h.b16 %v411
        %v615 = vunpack.c.l.b16 %v412
        %v616 = vunpack.c.h.b16 %v412
        %v617 = vunpack.c.l.b16 %v413
        %v618 = vunpack.c.h.b16 %v413
        %v619 = vunpack.c.l.b16 %v414
        %v620 = vunpack.c.h.b16 %v414
        %v621 = vunpack.c.l.b16 %v415
        %v622 = vunpack.c.h.b16 %v415
        %v623 = vunpack.c.l.b16 %v416
        %v624 = vunpack.c.h.b16 %v416
        %v625 = vunpack.c.l.b16 %v417
        %v626 = vunpack.c.h.b16 %v417
        %v627 = vunpack.c.l.b16 %v418
        %v628 = vunpack.c.h.b16 %v418
        %v629 = vunpack.c.l.b16 %v419
        %v630 = vunpack.c.h.b16 %v419
        %v631 = vunpack.c.l.b16 %v420
        %v632 = vunpack.c.h.b16 %v420
        %v633 = vunpack.c.l.b16 %v421
        %v634 = vunpack.c.h.b16 %v421
        %v635 = vunpack.c.l.b16 %v422
        %v636 = vunpack.c.h.b16 %v422
        %v637 = vunpack.c.l.b16 %v423
        %v638 = vunpack.c.h.b16 %v423
        %v639 = vunpack.c.l.b16 %v424
        %v640 = vunpack.c.h.b16 %v424
        %v641 = vunpack.c.l.b16 %v425
        %v642 = vunpack.c.h.b16 %v425
        %v643 = vunpack.c.l.b16 %v426
        %v644 = vunpack.c.h.b16 %v426
        %v645 = vunpack.c.l.b16 %v427
        %v646 = vunpack.c.h.b16 %v427
        %v647 = vunpack.c.l.b16 %v428
        %v648 = vunpack.c.h.b16 %v428
        %v649 = vunpack.c.l.b16 %v429
        %v650 = vunpack.c.h.b16 %v429
        %v651 = vunpack.c.l.b16 %v430
        %v652 = vunpack.c.h.b16 %v430
        %v653 = vunpack.c.l.b16 %v431
        %v654 = vunpack.c.h.b16 %v431
        %v655 = vunpack.c.l.b16 %v432
        %v656 = vunpack.c.h.b16 %v432
        %v657 = vunpack.c.l.b16 %v433
        %v658 = vunpack.c.h.b16 %v433
        %v659 = vunpack.c.l.b16 %v434
        %v660 = vunpack.c.h.b16 %v434
        %v661 = vunpack.c.l.b16 %v435
        %v662 = vunpack.c.h.b16 %v435
        %v663 = vunpack.c.l.b16 %v436
        %v664 = vunpack.c.h.b16 %v436
        %v665 = vunpack.c.l.b16 %v437
        %v666 = vunpack.c.h.b16 %v437
        %v667 = vunpack.c.l.b16 %v438
        %v668 = vunpack.c.h.b16 %v438
        %v669 = vunpack.c.l.b16 %v439
        %v670 = vunpack.c.h.b16 %v439
        %v671 = vunpack.c.l.b16 %v440
        %v672 = vunpack.c.h.b16 %v440
        %v673 = vunpack.c.l.b16 %v441
        %v674 = vunpack.c.h.b16 %v441
        %v675 = vunpack.c.l.b16 %v442
        %v676 = vunpack.c.h.b16 %v442
        %v677 = vunpack.c.l.b16 %v443
        %v678 = vunpack.c.h.b16 %v443
        %v679 = vunpack.c.l.b16 %v444
        %v680 = vunpack.c.h.b16 %v444
        %v681 = vunpack.c.l.b16 %v445
        %v682 = vunpack.c.h.b16 %v445
        %v683 = vunpack.c.l.b16 %v446
        %v684 = vunpack.c.h.b16 %v446
        %v685 = vunpack.c.l.b16 %v447
        %v686 = vunpack.c.h.b16 %v447
        %v687 = vunpack.c.l.b16 %v448
        %v688 = vunpack.c.h.b16 %v448
        %v689 = vunpack.c.l.b16 %v449
        %v690 = vunpack.c.h.b16 %v449
        %v691 = vunpack.c.l.b16 %v450
        %v692 = vunpack.c.h.b16 %v450
        %v693 = vunpack.c.l.b16 %v451
        %v694 = vunpack.c.h.b16 %v451
        %v695 = vunpack.c.l.b16 %v452
        %v696 = vunpack.c.h.b16 %v452
        %v697 = vunpack.c.l.b16 %v453
        %v698 = vunpack.c.h.b16 %v453
        %v699 = vunpack.c.l.b16 %v454
        %v700 = vunpack.c.h.b16 %v454
        %v701 = vunpack.c.l.b16 %v455
        %v702 = vunpack.c.h.b16 %v455
        %v703 = vunpack.c.l.b16 %v456
        %v704 = vunpack.c.h.b16 %v456
        %v705 = vunpack.c.l.b16 %v457
        %v706 = vunpack.c.h.b16 %v457
        %v707 = vunpack.c.l.b16 %v458
        %v708 = vunpack.c.h.b16 %v458
        %v709 = vunpack.c.l.b16 %v459
        %v710 = vunpack.c.h.b16 %v459
        %v711 = vunpack.c.l.b16 %v460
        %v712 = vunpack.c.h.b16 %v460
        %v713 = vunpack.c.l.b16 %v461
        %v714 = vunpack.c.h.b16 %v461
        %v715 = vunpack.c.l.b16 %v462
        %v716 = vunpack.c.h.b16 %v462
        %v717 = vunpack.c.l.b16 %v463
        %v718 = vunpack.c.h.b16 %v463
        %v719 = vunpack.c.l.b16 %v464
        %v720 = vunpack.c.h.b16 %v464
        %v721 = vpack.c.b16 %v597, %v593
        %v722 = vpack.c.b16 %v598, %v594
        %v723 = vpack.c.b16 %v599, %v595
        %v724 = vpack.c.b16 %v600, %v596
        %v725 = vpack.c.b16 %v605, %v601
        %v726 = vpack.c.b16 %v606, %v602
        %v727 = vpack.c.b16 %v607, %v603
        %v728 = vpack.c.b16 %v608, %v604
        %v729 = vpack.c.b16 %v613, %v609
        %v730 = vpack.c.b16 %v614, %v610
        %v731 = vpack.c.b16 %v615, %v611
        %v732 = vpack.c.b16 %v616, %v612
        %v733 = vpack.c.b16 %v621, %v617
        %v734 = vpack.c.b16 %v622, %v618
        %v735 = vpack.c.b16 %v623, %v619
        %v736 = vpack.c.b16 %v624, %v620
        %v737 = vpack.c.b16 %v629, %v625
        %v738 = vpack.c.b16 %v630, %v626
        %v739 = vpack.c.b16 %v631, %v627
        %v740 = vpack.c.b16 %v632, %v628
        %v741 = vpack.c.b16 %v637, %v633
        %v742 = vpack.c.b16 %v638, %v634
        %v743 = vpack.c.b16 %v639, %v635
        %v744 = vpack.c.b16 %v640, %v636
        %v745 = vpack.c.b16 %v645, %v641
        %v746 = vpack.c.b16 %v646, %v642
        %v747 = vpack.c.b16 %v647, %v643
        %v748 = vpack.c.b16 %v648, %v644
        %v749 = vpack.c.b16 %v653, %v649
        %v750 = vpack.c.b16 %v654, %v650
        %v751 = vpack.c.b16 %v655, %v651
        %v752 = vpack.c.b16 %v656, %v652
        %v753 = vpack.c.b16 %v661, %v657
        %v754 = vpack.c.b16 %v662, %v658
        %v755 = vpack.c.b16 %v663, %v659
        %v756 = vpack.c.b16 %v664, %v660
        %v757 = vpack.c.b16 %v669, %v665
        %v758 = vpack.c.b16 %v670, %v666
        %v759 = vpack.c.b16 %v671, %v667
        %v760 = vpack.c.b16 %v672, %v668
        %v761 = vpack.c.b16 %v677, %v673
        %v762 = vpack.c.b16 %v678, %v674
        %v763 = vpack.c.b16 %v679, %v675
        %v764 = vpack.c.b16 %v680, %v676
        %v765 = vpack.c.b16 %v685, %v681
        %v766 = vpack.c.b16 %v686, %v682
        %v767 = vpack.c.b16 %v687, %v683
        %v768 = vpack.c.b16 %v688, %v684
        %v769 = vpack.c.b16 %v693, %v689
        %v770 = vpack.c.b16 %v694, %v690
        %v771 = vpack.c.b16 %v695, %v691
        %v772 = vpack.c.b16 %v696, %v692
        %v773 = vpack.c.b16 %v701, %v697
        %v774 = vpack.c.b16 %v702, %v698
        %v775 = vpack.c.b16 %v703, %v699
        %v776 = vpack.c.b16 %v704, %v700
        %v777 = vpack.c.b16 %v709, %v705
        %v778 = vpack.c.b16 %v710, %v706
        %v779 = vpack.c.b16 %v711, %v707
        %v780 = vpack.c.b16 %v712, %v708
        %v781 = vpack.c.b16 %v717, %v713
        %v782 = vpack.c.b16 %v718, %v714
        %v783 = vpack.c.b16 %v719, %v715
        %v784 = vpack.c.b16 %v720, %v716
        %v913 = vunpack.c.l.b16 %v465
        %v914 = vunpack.c.l.b16 %v466
        %v915 = vunpack.c.l.b16 %v467
        %v916 = vunpack.c.l.b16 %v468
        %v917 = vunpack.c.l.b16 %v469
        %v918 = vunpack.c.l.b16 %v470
        %v919 = vunpack.c.l.b16 %v471
        %v920 = vunpack.c.l.b16 %v472
        %v921 = vunpack.c.l.b16 %v473
        %v922 = vunpack.c.l.b16 %v474
        %v923 = vunpack.c.l.b16 %v475
        %v924 = vunpack.c.l.b16 %v476
        %v925 = vunpack.c.l.b16 %v477
        %v926 = vunpack.c.l.b16 %v478
        %v927 = vunpack.c.l.b16 %v479
        %v928 = vunpack.c.l.b16 %v480
        %v929 = vunpack.c.l.b16 %v481
        %v930 = vunpack.c.l.b16 %v482
        %v931 = vunpack.c.l.b16 %v483
        %v932 = vunpack.c.l.b16 %v484
        %v933 = vunpack.c.l.b16 %v485
        %v934 = vunpack.c.l.b16 %v486
        %v935 = vunpack.c.l.b16 %v487
        %v936 = vunpack.c.l.b16 %v488
        %v937 = vunpack.c.l.b16 %v489
        %v938 = vunpack.c.l.b16 %v490
        %v939 = vunpack.c.l.b16 %v491
        %v940 = vunpack.c.l.b16 %v492
        %v941 = vunpack.c.l.b16 %v493
        %v942 = vunpack.c.l.b16 %v494
        %v943 = vunpack.c.l.b16 %v495
        %v944 = vunpack.c.l.b16 %v496
        %v945 = vunpack.c.l.b16 %v497
        %v946 = vunpack.c.l.b16 %v498
        %v947 = vunpack.c.l.b16 %v499
        %v948 = vunpack.c.l.b16 %v500
        %v949 = vunpack.c.l.b16 %v501
        %v950 = vunpack.c.l.b16 %v502
        %v951 = vunpack.c.l.b16 %v503
        %v952 = vunpack.c.l.b16 %v504
        %v953 = vunpack.c.l.b16 %v505
        %v954 = vunpack.c.l.b16 %v506
        %v955 = vunpack.c.l.b16 %v507
        %v956 = vunpack.c.l.b16 %v508
        %v957 = vunpack.c.l.b16 %v509
        %v958 = vunpack.c.l.b16 %v510
        %v959 = vunpack.c.l.b16 %v511
        %v960 = vunpack.c.l.b16 %v512
        %v961 = vunpack.c.l.b16 %v513
        %v962 = vunpack.c.l.b16 %v514
        %v963 = vunpack.c.l.b16 %v515
        %v964 = vunpack.c.l.b16 %v516
        %v965 = vunpack.c.l.b16 %v517
        %v966 = vunpack.c.l.b16 %v518
        %v967 = vunpack.c.l.b16 %v519
        %v968 = vunpack.c.l.b16 %v520
        %v969 = vunpack.c.l.b16 %v521
        %v970 = vunpack.c.l.b16 %v522
        %v971 = vunpack.c.l.b16 %v523
        %v972 = vunpack.c.l.b16 %v524
        %v973 = vunpack.c.l.b16 %v525
        %v974 = vunpack.c.l.b16 %v526
        %v975 = vunpack.c.l.b16 %v527
        %v976 = vunpack.c.l.b16 %v528
        %v977 = vpack.c.b16 %v914, %v913
        %v978 = vpack.c.b16 %v916, %v915
        %v979 = vpack.c.b16 %v918, %v917
        %v980 = vpack.c.b16 %v920, %v919
        %v981 = vpack.c.b16 %v922, %v921
        %v982 = vpack.c.b16 %v924, %v923
        %v983 = vpack.c.b16 %v926, %v925
        %v984 = vpack.c.b16 %v928, %v927
        %v985 = vpack.c.b16 %v930, %v929
        %v986 = vpack.c.b16 %v932, %v931
        %v987 = vpack.c.b16 %v934, %v933
        %v988 = vpack.c.b16 %v936, %v935
        %v989 = vpack.c.b16 %v938, %v937
        %v990 = vpack.c.b16 %v940, %v939
        %v991 = vpack.c.b16 %v942, %v941
        %v992 = vpack.c.b16 %v944, %v943
        %v993 = vpack.c.b16 %v946, %v945
        %v994 = vpack.c.b16 %v948, %v947
        %v995 = vpack.c.b16 %v950, %v949
        %v996 = vpack.c.b16 %v952, %v951
        %v997 = vpack.c.b16 %v954, %v953
        %v998 = vpack.c.b16 %v956, %v955
        %v999 = vpack.c.b16 %v958, %v957
        %v1000 = vpack.c.b16 %v960, %v959
        %v1001 = vpack.c.b16 %v962, %v961
        %v1002 = vpack.c.b16 %v964, %v963
        %v1003 = vpack.c.b16 %v966, %v965
        %v1004 = vpack.c.b16 %v968, %v967
        %v1005 = vpack.c.b16 %v970, %v969
        %v1006 = vpack.c.b16 %v972, %v971
        %v1007 = vpack.c.b16 %v974, %v973
        %v1008 = vpack.c.b16 %v976, %v975
        %1041 = vmatprep.subr.bf16.mxu0 0
        %1042 = vmatpush1.bf16.msra.mxu0 %v977
        %1043 = vmatprep.subr.bf16.mxu0 0
        %1044 = vmatpush1.bf16.msra.mxu0 %v978
        %1045 = vmatprep.subr.bf16.mxu0 0
        %1046 = vmatpush1.bf16.msra.mxu0 %v979
        %1047 = vmatprep.subr.bf16.mxu0 0
        %1048 = vmatpush1.bf16.msra.mxu0 %v980
        %1049 = vmatprep.subr.bf16.mxu0 0
        %1050 = vmatpush1.bf16.msra.mxu0 %v981
        %1051 = vmatprep.subr.bf16.mxu0 0
        %1052 = vmatpush1.bf16.msra.mxu0 %v982
        %1053 = vmatprep.subr.bf16.mxu0 0
        %1054 = vmatpush1.bf16.msra.mxu0 %v983
        %1055 = vmatprep.subr.bf16.mxu0 0
        %1056 = vmatpush1.bf16.msra.mxu0 %v984
        %1057 = vmatprep.subr.bf16.mxu0 0
        %1058 = vmatpush1.bf16.msra.mxu0 %v985
        %1059 = vmatprep.subr.bf16.mxu0 0
        %1060 = vmatpush1.bf16.msra.mxu0 %v986
        %1061 = vmatprep.subr.bf16.mxu0 0
        %1062 = vmatpush1.bf16.msra.mxu0 %v987
        %1063 = vmatprep.subr.bf16.mxu0 0
        %1064 = vmatpush1.bf16.msra.mxu0 %v988
        %1065 = vmatprep.subr.bf16.mxu0 0
        %1066 = vmatpush1.bf16.msra.mxu0 %v989
        %1067 = vmatprep.subr.bf16.mxu0 0
        %1068 = vmatpush1.bf16.msra.mxu0 %v990
        %1069 = vmatprep.subr.bf16.mxu0 0
        %1070 = vmatpush1.bf16.msra.mxu0 %v991
        %1071 = vmatprep.subr.bf16.mxu0 0
        %1072 = vmatpush1.bf16.msra.mxu0 %v992
        %1073 = vmatprep.mubr.bf16.mxu0 %v722
        %1074 = vmatmul.mubr.bf16.gmra.mrb[0].mxu0 %v721
        %v1075 = vpop.f32.mrb[0].mxu0
        %v1076 = vadd.f32 0.0, %v1075
        %v1077 = vpop.f32.mrb[0].mxu0
        %v1078 = vpop.f32.mrb[0].mxu0
        %v1079 = vadd.f32 0.0, %v1078
        %v1080 = vpop.f32.mrb[0].mxu0
        %1081 = vmatprep.mubr.bf16.mxu0 %v726
        %1082 = vmatmul.mubr.bf16.gmra.mrb[0].mxu0 %v725
        %v1083 = vpop.f32.mrb[0].mxu0
        %v1084 = vadd.f32 0.0, %v1083
        %v1085 = vpop.f32.mrb[0].mxu0
        %v1086 = vpop.f32.mrb[0].mxu0
        %v1087 = vadd.f32 0.0, %v1086
        %v1088 = vpop.f32.mrb[0].mxu0
        %1089 = vmatprep.mubr.bf16.mxu0 %v730
        %1090 = vmatmul.mubr.bf16.gmra.mrb[0].mxu0 %v729
        %v1091 = vpop.f32.mrb[0].mxu0
        %v1092 = vadd.f32 0.0, %v1091
        %v1093 = vpop.f32.mrb[0].mxu0
        %v1094 = vpop.f32.mrb[0].mxu0
        %v1095 = vadd.f32 0.0, %v1094
        %v1096 = vpop.f32.mrb[0].mxu0
        %1097 = vmatprep.mubr.bf16.mxu0 %v734
        %1098 = vmatmul.mubr.bf16.gmra.mrb[0].mxu0 %v733
        %v1099 = vpop.f32.mrb[0].mxu0
        %v1100 = vadd.f32 0.0, %v1099
        %v1101 = vpop.f32.mrb[0].mxu0
        %v1102 = vpop.f32.mrb[0].mxu0
        %v1103 = vadd.f32 0.0, %v1102
        %v1104 = vpop.f32.mrb[0].mxu0
        %1105 = vmatprep.mubr.bf16.mxu0 %v738
        %1106 = vmatmul.mubr.bf16.gmra.mrb[0].mxu0 %v737
        %v1107 = vpop.f32.mrb[0].mxu0
        %v1108 = vadd.f32 0.0, %v1107
        %v1109 = vpop.f32.mrb[0].mxu0
        %v1110 = vpop.f32.mrb[0].mxu0
        %v1111 = vadd.f32 0.0, %v1110
        %v1112 = vpop.f32.mrb[0].mxu0
        %1113 = vmatprep.mubr.bf16.mxu0 %v742
        %1114 = vmatmul.mubr.bf16.gmra.mrb[0].mxu0 %v741
        %v1115 = vpop.f32.mrb[0].mxu0
        %v1116 = vadd.f32 0.0, %v1115
        %v1117 = vpop.f32.mrb[0].mxu0
        %v1118 = vpop.f32.mrb[0].mxu0
        %v1119 = vadd.f32 0.0, %v1118
        %v1120 = vpop.f32.mrb[0].mxu0
        %1121 = vmatprep.mubr.bf16.mxu0 %v746
        %1122 = vmatmul.mubr.bf16.gmra.mrb[0].mxu0 %v745
        %v1123 = vpop.f32.mrb[0].mxu0
        %v1124 = vadd.f32 0.0, %v1123
        %v1125 = vpop.f32.mrb[0].mxu0
        %v1126 = vpop.f32.mrb[0].mxu0
        %v1127 = vadd.f32 0.0, %v1126
        %v1128 = vpop.f32.mrb[0].mxu0
        %1129 = vmatprep.mubr.bf16.mxu0 %v750
        %1130 = vmatmul.mubr.bf16.gmra.mrb[0].mxu0 %v749
        %v1131 = vpop.f32.mrb[0].mxu0
        %v1132 = vadd.f32 0.0, %v1131
        %v1133 = vpop.f32.mrb[0].mxu0
        %v1134 = vpop.f32.mrb[0].mxu0
        %v1135 = vadd.f32 0.0, %v1134
        %v1136 = vpop.f32.mrb[0].mxu0
        %1137 = vmatprep.mubr.bf16.mxu0 %v754
        %1138 = vmatmul.mubr.bf16.gmra.mrb[0].mxu0 %v753
        %v1139 = vpop.f32.mrb[0].mxu0
        %v1140 = vadd.f32 0.0, %v1139
        %v1141 = vpop.f32.mrb[0].mxu0
        %v1142 = vpop.f32.mrb[0].mxu0
        %v1143 = vadd.f32 0.0, %v1142
        %v1144 = vpop.f32.mrb[0].mxu0
        %1145 = vmatprep.mubr.bf16.mxu0 %v758
        %1146 = vmatmul.mubr.bf16.gmra.mrb[0].mxu0 %v757
        %v1147 = vpop.f32.mrb[0].mxu0
        %v1148 = vadd.f32 0.0, %v1147
        %v1149 = vpop.f32.mrb[0].mxu0
        %v1150 = vpop.f32.mrb[0].mxu0
        %v1151 = vadd.f32 0.0, %v1150
        %v1152 = vpop.f32.mrb[0].mxu0
        %1153 = vmatprep.mubr.bf16.mxu0 %v762
        %1154 = vmatmul.mubr.bf16.gmra.mrb[0].mxu0 %v761
        %v1155 = vpop.f32.mrb[0].mxu0
        %v1156 = vadd.f32 0.0, %v1155
        %v1157 = vpop.f32.mrb[0].mxu0
        %v1158 = vpop.f32.mrb[0].mxu0
        %v1159 = vadd.f32 0.0, %v1158
        %v1160 = vpop.f32.mrb[0].mxu0
        %1161 = vmatprep.mubr.bf16.mxu0 %v766
        %1162 = vmatmul.mubr.bf16.gmra.mrb[0].mxu0 %v765
        %v1163 = vpop.f32.mrb[0].mxu0
        %v1164 = vadd.f32 0.0, %v1163
        %v1165 = vpop.f32.mrb[0].mxu0
        %v1166 = vpop.f32.mrb[0].mxu0
        %v1167 = vadd.f32 0.0, %v1166
        %v1168 = vpop.f32.mrb[0].mxu0
        %1169 = vmatprep.mubr.bf16.mxu0 %v770
        %1170 = vmatmul.mubr.bf16.gmra.mrb[0].mxu0 %v769
        %v1171 = vpop.f32.mrb[0].mxu0
        %v1172 = vadd.f32 0.0, %v1171
        %v1173 = vpop.f32.mrb[0].mxu0
        %v1174 = vpop.f32.mrb[0].mxu0
        %v1175 = vadd.f32 0.0, %v1174
        %v1176 = vpop.f32.mrb[0].mxu0
        %1177 = vmatprep.mubr.bf16.mxu0 %v774
        %1178 = vmatmul.mubr.bf16.gmra.mrb[0].mxu0 %v773
        %v1179 = vpop.f32.mrb[0].mxu0
        %v1180 = vadd.f32 0.0, %v1179
        %v1181 = vpop.f32.mrb[0].mxu0
        %v1182 = vpop.f32.mrb[0].mxu0
        %v1183 = vadd.f32 0.0, %v1182
        %v1184 = vpop.f32.mrb[0].mxu0
        %1185 = vmatprep.mubr.bf16.mxu0 %v778
        %1186 = vmatmul.mubr.bf16.gmra.mrb[0].mxu0 %v777
        %v1187 = vpop.f32.mrb[0].mxu0
        %v1188 = vadd.f32 0.0, %v1187
        %v1189 = vpop.f32.mrb[0].mxu0
        %v1190 = vpop.f32.mrb[0].mxu0
        %v1191 = vadd.f32 0.0, %v1190
        %v1192 = vpop.f32.mrb[0].mxu0
        %1193 = vmatprep.mubr.bf16.mxu0 %v782
        %1194 = vmatmul.mubr.bf16.gmra.mrb[0].mxu0 %v781
        %v1195 = vpop.f32.mrb[0].mxu0
        %v1196 = vadd.f32 0.0, %v1195
        %v1197 = vpop.f32.mrb[0].mxu0
        %v1198 = vpop.f32.mrb[0].mxu0
        %v1199 = vadd.f32 0.0, %v1198
        %v1200 = vpop.f32.mrb[0].mxu0
        %1201 = vdwg.mxu0
        %1202 = vmatprep.subr.bf16.mxu0 0
        %1203 = vmatpush1.bf16.msra.mxu0 %v993
        %1204 = vmatprep.subr.bf16.mxu0 0
        %1205 = vmatpush1.bf16.msra.mxu0 %v994
        %1206 = vmatprep.subr.bf16.mxu0 0
        %1207 = vmatpush1.bf16.msra.mxu0 %v995
        %1208 = vmatprep.subr.bf16.mxu0 0
        %1209 = vmatpush1.bf16.msra.mxu0 %v996
        %1210 = vmatprep.subr.bf16.mxu0 0
        %1211 = vmatpush1.bf16.msra.mxu0 %v997
        %1212 = vmatprep.subr.bf16.mxu0 0
        %1213 = vmatpush1.bf16.msra.mxu0 %v998
        %1214 = vmatprep.subr.bf16.mxu0 0
        %1215 = vmatpush1.bf16.msra.mxu0 %v999
        %1216 = vmatprep.subr.bf16.mxu0 0
        %1217 = vmatpush1.bf16.msra.mxu0 %v1000
        %1218 = vmatprep.subr.bf16.mxu0 0
        %1219 = vmatpush1.bf16.msra.mxu0 %v1001
        %1220 = vmatprep.subr.bf16.mxu0 0
        %1221 = vmatpush1.bf16.msra.mxu0 %v1002
        %1222 = vmatprep.subr.bf16.mxu0 0
        %1223 = vmatpush1.bf16.msra.mxu0 %v1003
        %1224 = vmatprep.subr.bf16.mxu0 0
        %1225 = vmatpush1.bf16.msra.mxu0 %v1004
        %1226 = vmatprep.subr.bf16.mxu0 0
        %1227 = vmatpush1.bf16.msra.mxu0 %v1005
        %1228 = vmatprep.subr.bf16.mxu0 0
        %1229 = vmatpush1.bf16.msra.mxu0 %v1006
        %1230 = vmatprep.subr.bf16.mxu0 0
        %1231 = vmatpush1.bf16.msra.mxu0 %v1007
        %1232 = vmatprep.subr.bf16.mxu0 0
        %1233 = vmatpush1.bf16.msra.mxu0 %v1008
        %1234 = vmatprep.mubr.bf16.mxu0 %v724
        %1235 = vmatmul.mubr.bf16.gmra.mrb[0].mxu0 %v723
        %v1236 = vpop.f32.mrb[0].mxu0
        %v1237 = vadd.f32 %v1076, %v1236
        %v1238 = vpop.f32.mrb[0].mxu0
        %v1239 = vpop.f32.mrb[0].mxu0
        %v1240 = vadd.f32 %v1079, %v1239
        %v1241 = vpop.f32.mrb[0].mxu0
        %1242 = vmatprep.mubr.bf16.mxu0 %v728
        %1243 = vmatmul.mubr.bf16.gmra.mrb[0].mxu0 %v727
        %v1244 = vpop.f32.mrb[0].mxu0
        %v1245 = vadd.f32 %v1084, %v1244
        %v1246 = vpop.f32.mrb[0].mxu0
        %v1247 = vpop.f32.mrb[0].mxu0
        %v1248 = vadd.f32 %v1087, %v1247
        %v1249 = vpop.f32.mrb[0].mxu0
        %1250 = vmatprep.mubr.bf16.mxu0 %v732
        %1251 = vmatmul.mubr.bf16.gmra.mrb[0].mxu0 %v731
        %v1252 = vpop.f32.mrb[0].mxu0
        %v1253 = vadd.f32 %v1092, %v1252
        %v1254 = vpop.f32.mrb[0].mxu0
        %v1255 = vpop.f32.mrb[0].mxu0
        %v1256 = vadd.f32 %v1095, %v1255
        %v1257 = vpop.f32.mrb[0].mxu0
        %1258 = vmatprep.mubr.bf16.mxu0 %v736
        %1259 = vmatmul.mubr.bf16.gmra.mrb[0].mxu0 %v735
        %v1260 = vpop.f32.mrb[0].mxu0
        %v1261 = vadd.f32 %v1100, %v1260
        %v1262 = vpop.f32.mrb[0].mxu0
        %v1263 = vpop.f32.mrb[0].mxu0
        %v1264 = vadd.f32 %v1103, %v1263
        %v1265 = vpop.f32.mrb[0].mxu0
        %1266 = vmatprep.mubr.bf16.mxu0 %v740
        %1267 = vmatmul.mubr.bf16.gmra.mrb[0].mxu0 %v739
        %v1268 = vpop.f32.mrb[0].mxu0
        %v1269 = vadd.f32 %v1108, %v1268
        %v1270 = vpop.f32.mrb[0].mxu0
        %v1271 = vpop.f32.mrb[0].mxu0
        %v1272 = vadd.f32 %v1111, %v1271
        %v1273 = vpop.f32.mrb[0].mxu0
        %1274 = vmatprep.mubr.bf16.mxu0 %v744
        %1275 = vmatmul.mubr.bf16.gmra.mrb[0].mxu0 %v743
        %v1276 = vpop.f32.mrb[0].mxu0
        %v1277 = vadd.f32 %v1116, %v1276
        %v1278 = vpop.f32.mrb[0].mxu0
        %v1279 = vpop.f32.mrb[0].mxu0
        %v1280 = vadd.f32 %v1119, %v1279
        %v1281 = vpop.f32.mrb[0].mxu0
        %1282 = vmatprep.mubr.bf16.mxu0 %v748
        %1283 = vmatmul.mubr.bf16.gmra.mrb[0].mxu0 %v747
        %v1284 = vpop.f32.mrb[0].mxu0
        %v1285 = vadd.f32 %v1124, %v1284
        %v1286 = vpop.f32.mrb[0].mxu0
        %v1287 = vpop.f32.mrb[0].mxu0
        %v1288 = vadd.f32 %v1127, %v1287
        %v1289 = vpop.f32.mrb[0].mxu0
        %1290 = vmatprep.mubr.bf16.mxu0 %v752
        %1291 = vmatmul.mubr.bf16.gmra.mrb[0].mxu0 %v751
        %v1292 = vpop.f32.mrb[0].mxu0
        %v1293 = vadd.f32 %v1132, %v1292
        %v1294 = vpop.f32.mrb[0].mxu0
        %v1295 = vpop.f32.mrb[0].mxu0
        %v1296 = vadd.f32 %v1135, %v1295
        %v1297 = vpop.f32.mrb[0].mxu0
        %1298 = vmatprep.mubr.bf16.mxu0 %v756
        %1299 = vmatmul.mubr.bf16.gmra.mrb[0].mxu0 %v755
        %v1300 = vpop.f32.mrb[0].mxu0
        %v1301 = vadd.f32 %v1140, %v1300
        %v1302 = vpop.f32.mrb[0].mxu0
        %v1303 = vpop.f32.mrb[0].mxu0
        %v1304 = vadd.f32 %v1143, %v1303
        %v1305 = vpop.f32.mrb[0].mxu0
        %1306 = vmatprep.mubr.bf16.mxu0 %v760
        %1307 = vmatmul.mubr.bf16.gmra.mrb[0].mxu0 %v759
        %v1308 = vpop.f32.mrb[0].mxu0
        %v1309 = vadd.f32 %v1148, %v1308
        %v1310 = vpop.f32.mrb[0].mxu0
        %v1311 = vpop.f32.mrb[0].mxu0
        %v1312 = vadd.f32 %v1151, %v1311
        %v1313 = vpop.f32.mrb[0].mxu0
        %1314 = vmatprep.mubr.bf16.mxu0 %v764
        %1315 = vmatmul.mubr.bf16.gmra.mrb[0].mxu0 %v763
        %v1316 = vpop.f32.mrb[0].mxu0
        %v1317 = vadd.f32 %v1156, %v1316
        %v1318 = vpop.f32.mrb[0].mxu0
        %v1319 = vpop.f32.mrb[0].mxu0
        %v1320 = vadd.f32 %v1159, %v1319
        %v1321 = vpop.f32.mrb[0].mxu0
        %1322 = vmatprep.mubr.bf16.mxu0 %v768
        %1323 = vmatmul.mubr.bf16.gmra.mrb[0].mxu0 %v767
        %v1324 = vpop.f32.mrb[0].mxu0
        %v1325 = vadd.f32 %v1164, %v1324
        %v1326 = vpop.f32.mrb[0].mxu0
        %v1327 = vpop.f32.mrb[0].mxu0
        %v1328 = vadd.f32 %v1167, %v1327
        %v1329 = vpop.f32.mrb[0].mxu0
        %1330 = vmatprep.mubr.bf16.mxu0 %v772
        %1331 = vmatmul.mubr.bf16.gmra.mrb[0].mxu0 %v771
        %v1332 = vpop.f32.mrb[0].mxu0
        %v1333 = vadd.f32 %v1172, %v1332
        %v1334 = vpop.f32.mrb[0].mxu0
        %v1335 = vpop.f32.mrb[0].mxu0
        %v1336 = vadd.f32 %v1175, %v1335
        %v1337 = vpop.f32.mrb[0].mxu0
        %1338 = vmatprep.mubr.bf16.mxu0 %v776
        %1339 = vmatmul.mubr.bf16.gmra.mrb[0].mxu0 %v775
        %v1340 = vpop.f32.mrb[0].mxu0
        %v1341 = vadd.f32 %v1180, %v1340
        %v1342 = vpop.f32.mrb[0].mxu0
        %v1343 = vpop.f32.mrb[0].mxu0
        %v1344 = vadd.f32 %v1183, %v1343
        %v1345 = vpop.f32.mrb[0].mxu0
        %1346 = vmatprep.mubr.bf16.mxu0 %v780
        %1347 = vmatmul.mubr.bf16.gmra.mrb[0].mxu0 %v779
        %v1348 = vpop.f32.mrb[0].mxu0
        %v1349 = vadd.f32 %v1188, %v1348
        %v1350 = vpop.f32.mrb[0].mxu0
        %v1351 = vpop.f32.mrb[0].mxu0
        %v1352 = vadd.f32 %v1191, %v1351
        %v1353 = vpop.f32.mrb[0].mxu0
        %1354 = vmatprep.mubr.bf16.mxu0 %v784
        %1355 = vmatmul.mubr.bf16.gmra.mrb[0].mxu0 %v783
        %v1356 = vpop.f32.mrb[0].mxu0
        %v1357 = vadd.f32 %v1196, %v1356
        %v1358 = vpop.f32.mrb[0].mxu0
        %v1359 = vpop.f32.mrb[0].mxu0
        %v1360 = vadd.f32 %v1199, %v1359
        %v1361 = vpop.f32.mrb[0].mxu0
        %1362 = vdwg.mxu0
        %v1363 = vadd.f32 %v369, %v1237
        %v1364 = vadd.f32 %v370, %v1240
        %v1365 = vadd.f32 %v371, %v1245
        %v1366 = vadd.f32 %v372, %v1248
        %v1367 = vadd.f32 %v373, %v1253
        %v1368 = vadd.f32 %v374, %v1256
        %v1369 = vadd.f32 %v375, %v1261
        %v1370 = vadd.f32 %v376, %v1264
        %v1371 = vadd.f32 %v377, %v1269
        %v1372 = vadd.f32 %v378, %v1272
        %v1373 = vadd.f32 %v379, %v1277
        %v1374 = vadd.f32 %v380, %v1280
        %v1375 = vadd.f32 %v381, %v1285
        %v1376 = vadd.f32 %v382, %v1288
        %v1377 = vadd.f32 %v383, %v1293
        %v1378 = vadd.f32 %v384, %v1296
        %v1379 = vadd.f32 %v385, %v1301
        %v1380 = vadd.f32 %v386, %v1304
        %v1381 = vadd.f32 %v387, %v1309
        %v1382 = vadd.f32 %v388, %v1312
        %v1383 = vadd.f32 %v389, %v1317
        %v1384 = vadd.f32 %v390, %v1320
        %v1385 = vadd.f32 %v391, %v1325
        %v1386 = vadd.f32 %v392, %v1328
        %v1387 = vadd.f32 %v393, %v1333
        %v1388 = vadd.f32 %v394, %v1336
        %v1389 = vadd.f32 %v395, %v1341
        %v1390 = vadd.f32 %v396, %v1344
        %v1391 = vadd.f32 %v397, %v1349
        %v1392 = vadd.f32 %v398, %v1352
        %v1393 = vadd.f32 %v399, %v1357
        %v1394 = vadd.f32 %v400, %v1360
        %1395 = vst [vmem:[#allocation2] sm:$0xff] %v1363
        %1396 = vst [vmem:[#allocation2 + $0x8] sm:$0xff] %v1364
        %1397 = vst [vmem:[#allocation2 + $0x10] sm:$0xff] %v1365
        %1398 = vst [vmem:[#allocation2 + $0x18] sm:$0xff] %v1366
        %1399 = vst [vmem:[#allocation2 + $0x20] sm:$0xff] %v1367
        %1400 = vst [vmem:[#allocation2 + $0x28] sm:$0xff] %v1368
        %1401 = vst [vmem:[#allocation2 + $0x30] sm:$0xff] %v1369
        %1402 = vst [vmem:[#allocation2 + $0x38] sm:$0xff] %v1370
        %1403 = vst [vmem:[#allocation2 + $0x40] sm:$0xff] %v1371
        %1404 = vst [vmem:[#allocation2 + $0x48] sm:$0xff] %v1372
        %1405 = vst [vmem:[#allocation2 + $0x50] sm:$0xff] %v1373
        %1406 = vst [vmem:[#allocation2 + $0x58] sm:$0xff] %v1374
        %1407 = vst [vmem:[#allocation2 + $0x60] sm:$0xff] %v1375
        %1408 = vst [vmem:[#allocation2 + $0x68] sm:$0xff] %v1376
        %1409 = vst [vmem:[#allocation2 + $0x70] sm:$0xff] %v1377
        %1410 = vst [vmem:[#allocation2 + $0x78] sm:$0xff] %v1378
        %1411 = vst [vmem:[#allocation2 + $0x80] sm:$0xff] %v1379
        %1412 = vst [vmem:[#allocation2 + $0x88] sm:$0xff] %v1380
        %1413 = vst [vmem:[#allocation2 + $0x90] sm:$0xff] %v1381
        %1414 = vst [vmem:[#allocation2 + $0x98] sm:$0xff] %v1382
        %1415 = vst [vmem:[#allocation2 + $0xa0] sm:$0xff] %v1383
        %1416 = vst [vmem:[#allocation2 + $0xa8] sm:$0xff] %v1384
        %1417 = vst [vmem:[#allocation2 + $0xb0] sm:$0xff] %v1385
        %1418 = vst [vmem:[#allocation2 + $0xb8] sm:$0xff] %v1386
        %1419 = vst [vmem:[#allocation2 + $0xc0] sm:$0xff] %v1387
        %1420 = vst [vmem:[#allocation2 + $0xc8] sm:$0xff] %v1388
        %1421 = vst [vmem:[#allocation2 + $0xd0] sm:$0xff] %v1389
        %1422 = vst [vmem:[#allocation2 + $0xd8] sm:$0xff] %v1390
        %1423 = vst [vmem:[#allocation2 + $0xe0] sm:$0xff] %v1391
        %1424 = vst [vmem:[#allocation2 + $0xe8] sm:$0xff] %v1392
        %1425 = vst [vmem:[#allocation2 + $0xf0] sm:$0xff] %v1393
        %1426 = vst [vmem:[#allocation2 + $0xf8] sm:$0xff] %v1394
        %p1427 = scmp.eq.s32.totalorder %s18, 1
        // Predicated region
        $region56: #{critic_forward.6} parent=46 // pred_check
          %p1428 = pneg %p1427
        $region57: #{critic_forward.6} parent=46 // pred_check_branch
          %1430 = sbr.rel (%p1428) target = $region59
        $region58: #{critic_forward.6} parent=46 // pred_region
          %v1431 = vld [vmem:[#allocation2] sm:$0xff]
          %v1432 = vld [vmem:[#allocation2 + $0x8] sm:$0xff]
          %v1433 = vld [vmem:[#allocation2 + $0x10] sm:$0xff]
          %v1434 = vld [vmem:[#allocation2 + $0x18] sm:$0xff]
          %v1435 = vld [vmem:[#allocation2 + $0x20] sm:$0xff]
          %v1436 = vld [vmem:[#allocation2 + $0x28] sm:$0xff]
          %v1437 = vld [vmem:[#allocation2 + $0x30] sm:$0xff]
          %v1438 = vld [vmem:[#allocation2 + $0x38] sm:$0xff]
          %v1439 = vld [vmem:[#allocation2 + $0x40] sm:$0xff]
          %v1440 = vld [vmem:[#allocation2 + $0x48] sm:$0xff]
          %v1441 = vld [vmem:[#allocation2 + $0x50] sm:$0xff]
          %v1442 = vld [vmem:[#allocation2 + $0x58] sm:$0xff]
          %v1443 = vld [vmem:[#allocation2 + $0x60] sm:$0xff]
          %v1444 = vld [vmem:[#allocation2 + $0x68] sm:$0xff]
          %v1445 = vld [vmem:[#allocation2 + $0x70] sm:$0xff]
          %v1446 = vld [vmem:[#allocation2 + $0x78] sm:$0xff]
          %v1447 = vld [vmem:[#allocation2 + $0x80] sm:$0xff]
          %v1448 = vld [vmem:[#allocation2 + $0x88] sm:$0xff]
          %v1449 = vld [vmem:[#allocation2 + $0x90] sm:$0xff]
          %v1450 = vld [vmem:[#allocation2 + $0x98] sm:$0xff]
          %v1451 = vld [vmem:[#allocation2 + $0xa0] sm:$0xff]
          %v1452 = vld [vmem:[#allocation2 + $0xa8] sm:$0xff]
          %v1453 = vld [vmem:[#allocation2 + $0xb0] sm:$0xff]
          %v1454 = vld [vmem:[#allocation2 + $0xb8] sm:$0xff]
          %v1455 = vld [vmem:[#allocation2 + $0xc0] sm:$0xff]
          %v1456 = vld [vmem:[#allocation2 + $0xc8] sm:$0xff]
          %v1457 = vld [vmem:[#allocation2 + $0xd0] sm:$0xff]
          %v1458 = vld [vmem:[#allocation2 + $0xd8] sm:$0xff]
          %v1459 = vld [vmem:[#allocation2 + $0xe0] sm:$0xff]
          %v1460 = vld [vmem:[#allocation2 + $0xe8] sm:$0xff]
          %v1461 = vld [vmem:[#allocation2 + $0xf0] sm:$0xff]
          %v1462 = vld [vmem:[#allocation2 + $0xf8] sm:$0xff]
          %vm1463 = vcmp.ge.f32.partialorder %v1431, 0.0
          %vm1464 = vcmp.ge.f32.partialorder %v1432, 0.0
          %vm1465 = vcmp.ge.f32.partialorder %v1433, 0.0
          %vm1466 = vcmp.ge.f32.partialorder %v1434, 0.0
          %vm1467 = vcmp.ge.f32.partialorder %v1435, 0.0
          %vm1468 = vcmp.ge.f32.partialorder %v1436, 0.0
          %vm1469 = vcmp.ge.f32.partialorder %v1437, 0.0
          %vm1470 = vcmp.ge.f32.partialorder %v1438, 0.0
          %vm1471 = vcmp.ge.f32.partialorder %v1439, 0.0
          %vm1472 = vcmp.ge.f32.partialorder %v1440, 0.0
          %vm1473 = vcmp.ge.f32.partialorder %v1441, 0.0
          %vm1474 = vcmp.ge.f32.partialorder %v1442, 0.0
          %vm1475 = vcmp.ge.f32.partialorder %v1443, 0.0
          %vm1476 = vcmp.ge.f32.partialorder %v1444, 0.0
          %vm1477 = vcmp.ge.f32.partialorder %v1445, 0.0
          %vm1478 = vcmp.ge.f32.partialorder %v1446, 0.0
          %vm1479 = vcmp.ge.f32.partialorder %v1447, 0.0
          %vm1480 = vcmp.ge.f32.partialorder %v1448, 0.0
          %vm1481 = vcmp.ge.f32.partialorder %v1449, 0.0
          %vm1482 = vcmp.ge.f32.partialorder %v1450, 0.0
          %vm1483 = vcmp.ge.f32.partialorder %v1451, 0.0
          %vm1484 = vcmp.ge.f32.partialorder %v1452, 0.0
          %vm1485 = vcmp.ge.f32.partialorder %v1453, 0.0
          %vm1486 = vcmp.ge.f32.partialorder %v1454, 0.0
          %vm1487 = vcmp.ge.f32.partialorder %v1455, 0.0
          %vm1488 = vcmp.ge.f32.partialorder %v1456, 0.0
          %vm1489 = vcmp.ge.f32.partialorder %v1457, 0.0
          %vm1490 = vcmp.ge.f32.partialorder %v1458, 0.0
          %vm1491 = vcmp.ge.f32.partialorder %v1459, 0.0
          %vm1492 = vcmp.ge.f32.partialorder %v1460, 0.0
          %vm1493 = vcmp.ge.f32.partialorder %v1461, 0.0
          %vm1494 = vcmp.ge.f32.partialorder %v1462, 0.0
          %v1495 = vmul.f32 %v1431, 0.2
          %v1496 = vmul.f32 %v1432, 0.2
          %v1497 = vmul.f32 %v1433, 0.2
          %v1498 = vmul.f32 %v1434, 0.2
          %v1499 = vmul.f32 %v1435, 0.2
          %v1500 = vmul.f32 %v1436, 0.2
          %v1501 = vmul.f32 %v1437, 0.2
          %v1502 = vmul.f32 %v1438, 0.2
          %v1503 = vmul.f32 %v1439, 0.2
          %v1504 = vmul.f32 %v1440, 0.2
          %v1505 = vmul.f32 %v1441, 0.2
          %v1506 = vmul.f32 %v1442, 0.2
          %v1507 = vmul.f32 %v1443, 0.2
          %v1508 = vmul.f32 %v1444, 0.2
          %v1509 = vmul.f32 %v1445, 0.2
          %v1510 = vmul.f32 %v1446, 0.2
          %v1511 = vmul.f32 %v1447, 0.2
          %v1512 = vmul.f32 %v1448, 0.2
          %v1513 = vmul.f32 %v1449, 0.2
          %v1514 = vmul.f32 %v1450, 0.2
          %v1515 = vmul.f32 %v1451, 0.2
          %v1516 = vmul.f32 %v1452, 0.2
          %v1517 = vmul.f32 %v1453, 0.2
          %v1518 = vmul.f32 %v1454, 0.2
          %v1519 = vmul.f32 %v1455, 0.2
          %v1520 = vmul.f32 %v1456, 0.2
          %v1521 = vmul.f32 %v1457, 0.2
          %v1522 = vmul.f32 %v1458, 0.2
          %v1523 = vmul.f32 %v1459, 0.2
          %v1524 = vmul.f32 %v1460, 0.2
          %v1525 = vmul.f32 %v1461, 0.2
          %v1526 = vmul.f32 %v1462, 0.2
          %v1527 = vsel %vm1463, %v1431, %v1495
          %v1528 = vsel %vm1464, %v1432, %v1496
          %v1529 = vsel %vm1465, %v1433, %v1497
          %v1530 = vsel %vm1466, %v1434, %v1498
          %v1531 = vsel %vm1467, %v1435, %v1499
          %v1532 = vsel %vm1468, %v1436, %v1500
          %v1533 = vsel %vm1469, %v1437, %v1501
          %v1534 = vsel %vm1470, %v1438, %v1502
          %v1535 = vsel %vm1471, %v1439, %v1503
          %v1536 = vsel %vm1472, %v1440, %v1504
          %v1537 = vsel %vm1473, %v1441, %v1505
          %v1538 = vsel %vm1474, %v1442, %v1506
          %v1539 = vsel %vm1475, %v1443, %v1507
          %v1540 = vsel %vm1476, %v1444, %v1508
          %v1541 = vsel %vm1477, %v1445, %v1509
          %v1542 = vsel %vm1478, %v1446, %v1510
          %v1543 = vsel %vm1479, %v1447, %v1511
          %v1544 = vsel %vm1480, %v1448, %v1512
          %v1545 = vsel %vm1481, %v1449, %v1513
          %v1546 = vsel %vm1482, %v1450, %v1514
          %v1547 = vsel %vm1483, %v1451, %v1515
          %v1548 = vsel %vm1484, %v1452, %v1516
          %v1549 = vsel %vm1485, %v1453, %v1517
          %v1550 = vsel %vm1486, %v1454, %v1518
          %v1551 = vsel %vm1487, %v1455, %v1519
          %v1552 = vsel %vm1488, %v1456, %v1520
          %v1553 = vsel %vm1489, %v1457, %v1521
          %v1554 = vsel %vm1490, %v1458, %v1522
          %v1555 = vsel %vm1491, %v1459, %v1523
          %v1556 = vsel %vm1492, %v1460, %v1524
          %v1557 = vsel %vm1493, %v1461, %v1525
          %v1558 = vsel %vm1494, %v1462, %v1526
          %v1559 = vpack.c.bf16 %v1528, %v1527
          %v1560 = vpack.c.bf16 %v1530, %v1529
          %v1561 = vpack.c.bf16 %v1532, %v1531
          %v1562 = vpack.c.bf16 %v1534, %v1533
          %v1563 = vpack.c.bf16 %v1536, %v1535
          %v1564 = vpack.c.bf16 %v1538, %v1537
          %v1565 = vpack.c.bf16 %v1540, %v1539
          %v1566 = vpack.c.bf16 %v1542, %v1541
          %v1567 = vpack.c.bf16 %v1544, %v1543
          %v1568 = vpack.c.bf16 %v1546, %v1545
          %v1569 = vpack.c.bf16 %v1548, %v1547
          %v1570 = vpack.c.bf16 %v1550, %v1549
          %v1571 = vpack.c.bf16 %v1552, %v1551
          %v1572 = vpack.c.bf16 %v1554, %v1553
          %v1573 = vpack.c.bf16 %v1556, %v1555
          %v1574 = vpack.c.bf16 %v1558, %v1557
          %v1591 = vunpack.c.l.b16 %v1559
          %v1592 = vunpack.c.h.b16 %v1559
          %v1593 = vunpack.c.l.b16 %v1560
          %v1594 = vunpack.c.h.b16 %v1560
          %v1595 = vunpack.c.l.b16 %v1561
          %v1596 = vunpack.c.h.b16 %v1561
          %v1597 = vunpack.c.l.b16 %v1562
          %v1598 = vunpack.c.h.b16 %v1562
          %v1599 = vunpack.c.l.b16 %v1563
          %v1600 = vunpack.c.h.b16 %v1563
          %v1601 = vunpack.c.l.b16 %v1564
          %v1602 = vunpack.c.h.b16 %v1564
          %v1603 = vunpack.c.l.b16 %v1565
          %v1604 = vunpack.c.h.b16 %v1565
          %v1605 = vunpack.c.l.b16 %v1566
          %v1606 = vunpack.c.h.b16 %v1566
          %v1607 = vunpack.c.l.b16 %v1567
          %v1608 = vunpack.c.h.b16 %v1567
          %v1609 = vunpack.c.l.b16 %v1568
          %v1610 = vunpack.c.h.b16 %v1568
          %v1611 = vunpack.c.l.b16 %v1569
          %v1612 = vunpack.c.h.b16 %v1569
          %v1613 = vunpack.c.l.b16 %v1570
          %v1614 = vunpack.c.h.b16 %v1570
          %v1615 = vunpack.c.l.b16 %v1571
          %v1616 = vunpack.c.h.b16 %v1571
          %v1617 = vunpack.c.l.b16 %v1572
          %v1618 = vunpack.c.h.b16 %v1572
          %v1619 = vunpack.c.l.b16 %v1573
          %v1620 = vunpack.c.h.b16 %v1573
          %v1621 = vunpack.c.l.b16 %v1574
          %v1622 = vunpack.c.h.b16 %v1574
          %v1623 = vpack.c.b16 %v1591, %v1591
          %v1624 = vpack.c.b16 %v1592, %v1592
          %v1625 = vpack.c.b16 %v1593, %v1593
          %v1626 = vpack.c.b16 %v1594, %v1594
          %v1627 = vpack.c.b16 %v1595, %v1595
          %v1628 = vpack.c.b16 %v1596, %v1596
          %v1629 = vpack.c.b16 %v1597, %v1597
          %v1630 = vpack.c.b16 %v1598, %v1598
          %v1631 = vpack.c.b16 %v1599, %v1599
          %v1632 = vpack.c.b16 %v1600, %v1600
          %v1633 = vpack.c.b16 %v1601, %v1601
          %v1634 = vpack.c.b16 %v1602, %v1602
          %v1635 = vpack.c.b16 %v1603, %v1603
          %v1636 = vpack.c.b16 %v1604, %v1604
          %v1637 = vpack.c.b16 %v1605, %v1605
          %v1638 = vpack.c.b16 %v1606, %v1606
          %v1639 = vpack.c.b16 %v1607, %v1607
          %v1640 = vpack.c.b16 %v1608, %v1608
          %v1641 = vpack.c.b16 %v1609, %v1609
          %v1642 = vpack.c.b16 %v1610, %v1610
          %v1643 = vpack.c.b16 %v1611, %v1611
          %v1644 = vpack.c.b16 %v1612, %v1612
          %v1645 = vpack.c.b16 %v1613, %v1613
          %v1646 = vpack.c.b16 %v1614, %v1614
          %v1647 = vpack.c.b16 %v1615, %v1615
          %v1648 = vpack.c.b16 %v1616, %v1616
          %v1649 = vpack.c.b16 %v1617, %v1617
          %v1650 = vpack.c.b16 %v1618, %v1618
          %v1651 = vpack.c.b16 %v1619, %v1619
          %v1652 = vpack.c.b16 %v1620, %v1620
          %v1653 = vpack.c.b16 %v1621, %v1621
          %v1654 = vpack.c.b16 %v1622, %v1622
          %1687 = vst [vmem:[%s330] sm:$0xf] %v1623
          %1688 = vst [vmem:[%s330 + $0x4] sm:$0xf] %v1624
          %1689 = vst [vmem:[%s330 + $0x8] sm:$0xf] %v1625
          %1690 = vst [vmem:[%s330 + $0xc] sm:$0xf] %v1626
          %1691 = vst [vmem:[%s330 + $0x10] sm:$0xf] %v1627
          %1692 = vst [vmem:[%s330 + $0x14] sm:$0xf] %v1628
          %1693 = vst [vmem:[%s330 + $0x18] sm:$0xf] %v1629
          %1694 = vst [vmem:[%s330 + $0x1c] sm:$0xf] %v1630
          %1695 = vst [vmem:[%s330 + $0x20] sm:$0xf] %v1631
          %1696 = vst [vmem:[%s330 + $0x24] sm:$0xf] %v1632
          %1697 = vst [vmem:[%s330 + $0x28] sm:$0xf] %v1633
          %1698 = vst [vmem:[%s330 + $0x2c] sm:$0xf] %v1634
          %1699 = vst [vmem:[%s330 + $0x30] sm:$0xf] %v1635
          %1700 = vst [vmem:[%s330 + $0x34] sm:$0xf] %v1636
          %1701 = vst [vmem:[%s330 + $0x38] sm:$0xf] %v1637
          %1702 = vst [vmem:[%s330 + $0x3c] sm:$0xf] %v1638
          %1703 = vst [vmem:[%s330 + $0x40] sm:$0xf] %v1639
          %1704 = vst [vmem:[%s330 + $0x44] sm:$0xf] %v1640
          %1705 = vst [vmem:[%s330 + $0x48] sm:$0xf] %v1641
          %1706 = vst [vmem:[%s330 + $0x4c] sm:$0xf] %v1642
          %1707 = vst [vmem:[%s330 + $0x50] sm:$0xf] %v1643
          %1708 = vst [vmem:[%s330 + $0x54] sm:$0xf] %v1644
          %1709 = vst [vmem:[%s330 + $0x58] sm:$0xf] %v1645
          %1710 = vst [vmem:[%s330 + $0x5c] sm:$0xf] %v1646
          %1711 = vst [vmem:[%s330 + $0x60] sm:$0xf] %v1647
          %1712 = vst [vmem:[%s330 + $0x64] sm:$0xf] %v1648
          %1713 = vst [vmem:[%s330 + $0x68] sm:$0xf] %v1649
          %1714 = vst [vmem:[%s330 + $0x6c] sm:$0xf] %v1650
          %1715 = vst [vmem:[%s330 + $0x70] sm:$0xf] %v1651
          %1716 = vst [vmem:[%s330 + $0x74] sm:$0xf] %v1652
          %1717 = vst [vmem:[%s330 + $0x78] sm:$0xf] %v1653
          %1718 = vst [vmem:[%s330 + $0x7c] sm:$0xf] %v1654
        $region59: #{critic_forward.6} parent=46 // pred_fallthru
          _
        %s1719 = smul.u32 32, %s17
        %p1720 = scmp.lt.s32.totalorder %s1719, 63
        %s1721 = scalar_select %p1720, %s1719, 63
        %s1722 = smul.addr %s1721, 4
        %s1723 = scalar_lea.vmem %s2, %s1722
        // Predicated region
        $region60: #{critic_forward.6} parent=46 // pred_check
          %p1724 = pneg %p97
        $region61: #{critic_forward.6} parent=46 // pred_check_branch
          %1726 = sbr.rel (%p1724) target = $region63
        $region62: #{critic_forward.6} parent=46 // pred_region
          %s1727 = smul.u32 32, %s17
        $region63: #{critic_forward.6} parent=46 // pred_fallthru
          _
      $region47: #{critic_forward.6} parent=5 // pred_fallthru
        _
      %p1728 = scmp.le.s32.totalorder 2, %s8
      // Predicated region
      $region64: #{critic_forward.6} parent=5 // pred_check
        %p1729 = pneg %p1728
      $region65: #{critic_forward.6} parent=5 // pred_check_branch
        %1731 = sbr.rel (%p1729) target = $region67
      $region66: #{critic_forward.6} parent=5 // pred_region
        %s1732 = ssub.s32 %s8, 2
        // Predicated region
        $region68: #{critic_forward.6} parent=66 // pred_check
          %p1733 = pneg %p103
        $region69: #{critic_forward.6} parent=66 // pred_check_branch
          %1735 = sbr.rel (%p1733) target = $region71
        $region70: #{critic_forward.6} parent=66 // pred_region
          %s1736 = smul.u32 32, %s19
          %p1737 = scmp.lt.s32.totalorder %s1736, 63
          %s1738 = scalar_select %p1737, %s1736, 63
          %s1739 = smul.addr %s1738, 4
          %s1740 = scalar_lea.vmem %s2, %s1739
        $region71: #{critic_forward.6} parent=66 // pred_fallthru
          _
      $region67: #{critic_forward.6} parent=5 // pred_fallthru
        _
    $region6: #{critic_forward.6} parent=1 // loop_footer
      %s12 = sadd.s32 1, %s8
    $region7: #{critic_forward.6} parent=1 // loop_footer_branch
      %7 = sbr.rel target = $region3
    $region8: #{critic_forward.6} parent=1 // loop_exit
      _

// kernel: critic_forward.7
$region0: #{critic_forward.7}
  #allocation0 [shape = 'u32[]', space=smem, size = 0x4, offset = 0x4, fixed_abs, tag = 'smem constant byte address 0x4 - core index']
  #allocation1 [shape = 'u32[144,128]{1,0:T(1,128)}', space=vmem, size = 0x12000, scoped, tag = 'internal scratch']
  #allocation2 [shape = 'f32[128,256]{1,0:T(8,128)}', space=vmem, size = 0x20000, scoped, tag = 'scratch operand']
  %s0 = inlined_call_operand.vmem [shape: bf16[128,2048], index: 0, kind: input, shape index: {}]
  %s1 = inlined_call_operand.vmem [shape: bf16[2048,256], index: 1, kind: input, shape index: {}]
  %s2 = inlined_call_operand.vmem [shape: bf16[128,256], index: 2, kind: output, shape index: {}]
  %s3 = sld [smem:[#allocation0]]
  $region72: #{critic_forward.7} parent=0
    _
  %s5 = ssub.s32 1, %s3
  %s6 = scalar_select 0, %s5, %s3
  $region1: #{critic_forward.7} parent=0
    #allocation3 [shape = 'u8[262144]{0}', space=vmem, size = 0x40000, scoped, tag = 'input window, operand 0']
    loop: start=0, step=1, limit=6
    $region2: #{critic_forward.7} parent=1 // loop_pre_header
      _
    $region3: #{critic_forward.7} parent=1 // loop_header
      %s8 = sphi 0, %s12
      %p9 = scmp.ge.s32.totalorder %s8, 6
      %s15 = sphi 0, %s27
      %s16 = sphi 0, %s23
      %s17 = sphi 0, %s15
      %s18 = sphi 0, %s16
      %s19 = sphi 0, %s17
      %s20 = sphi 0, %s18
      %s32 = sphi 0, %s34
      %s35 = sphi 0, %s32
      %s36 = sphi 0, %s35
      %s52 = sphi 0, %s36
      %s58 = sphi 0, %s60
      %s61 = sphi 0, %s58
      %s62 = sphi 0, %s61
      %s78 = sphi 0, %s62
      %s84 = sphi 0, %s86
      %s87 = sphi 0, %s84
      %s88 = sphi 0, %s87
      %s104 = sphi 0, %s88
    $region4: #{critic_forward.7} parent=1 // loop_header_branch
      %11 = sbr.rel (%p9) target = $region8
    $region5: #{critic_forward.7} parent=1 // loop_body
      %s13 = ssub.s32 %s8, 1
      %s14 = ssub.s32 %s8, 2
      %s21 = sadd.s32 1, %s16
      %p22 = scmp.ge.s32.totalorder %s21, 4
      %s23 = scalar_select %p22, 0, %s21
      %s24 = sadd.s32 1, %s15
      %s25 = scalar_select %p22, %s24, %s15
      %p26 = scmp.ge.s32.totalorder %s25, 1
      %s27 = scalar_select %p26, 0, %s25
      %s28 = ssub.s32 %s15, %s27
      %s29 = ssub.s32 %s16, %s23
      %s30 = sor.u32 %s28, %s29
      %p31 = scmp.eq.s32.totalorder %s30, 0
      %s33 = sadd.s32 %s32, 1
      %s34 = scalar_select %p31, %s32, %s33
      %p37 = pneg %p31
      %p38 = scmp.eq.s32.totalorder %s8, 3
      %p39 = por %p37, %p38
      %p40 = scmp.ne.s32.totalorder %s32, %s35
      %p41 = scmp.eq.s32.totalorder %s8, 0
      %p42 = por %p40, %p41
      %p43 = scmp.ne.s32.totalorder %s32, %s35
      %p44 = scmp.eq.s32.totalorder %s13, 3
      %p45 = por %p43, %p44
      %p46 = scmp.ne.s32.totalorder %s35, %s36
      %p47 = scmp.eq.s32.totalorder %s13, 0
      %p48 = por %p46, %p47
      %p49 = scmp.ne.s32.totalorder %s35, %s36
      %p50 = scmp.eq.s32.totalorder %s14, 3
      %p51 = por %p49, %p50
      %p53 = scmp.ne.s32.totalorder %s36, %s52
      %p54 = scmp.eq.s32.totalorder %s14, 0
      %p55 = por %p53, %p54
      %s56 = ssub.s32 %s16, %s23
      %p57 = scmp.eq.s32.totalorder %s56, 0
      %s59 = sadd.s32 %s58, 1
      %s60 = scalar_select %p57, %s58, %s59
      %p63 = pneg %p57
      %p64 = scmp.eq.s32.totalorder %s8, 3
      %p65 = por %p63, %p64
      %p66 = scmp.ne.s32.totalorder %s58, %s61
      %p67 = scmp.eq.s32.totalorder %s8, 0
      %p68 = por %p66, %p67
      %p69 = scmp.ne.s32.totalorder %s58, %s61
      %p70 = scmp.eq.s32.totalorder %s13, 3
      %p71 = por %p69, %p70
      %p72 = scmp.ne.s32.totalorder %s61, %s62
      %p73 = scmp.eq.s32.totalorder %s13, 0
      %p74 = por %p72, %p73
      %p75 = scmp.ne.s32.totalorder %s61, %s62
      %p76 = scmp.eq.s32.totalorder %s14, 3
      %p77 = por %p75, %p76
      %p79 = scmp.ne.s32.totalorder %s62, %s78
      %p80 = scmp.eq.s32.totalorder %s14, 0
      %p81 = por %p79, %p80
      %s82 = ssub.s32 %s15, %s27
      %p83 = scmp.eq.s32.totalorder %s82, 0
      %s85 = sadd.s32 %s84, 1
      %s86 = scalar_select %p83, %s84, %s85
      %p89 = pneg %p83
      %p90 = scmp.eq.s32.totalorder %s8, 3
      %p91 = por %p89, %p90
      %p92 = scmp.ne.s32.totalorder %s84, %s87
      %p93 = scmp.eq.s32.totalorder %s8, 0
      %p94 = por %p92, %p93
      %p95 = scmp.ne.s32.totalorder %s84, %s87
      %p96 = scmp.eq.s32.totalorder %s13, 3
      %p97 = por %p95, %p96
      %p98 = scmp.ne.s32.totalorder %s87, %s88
      %p99 = scmp.eq.s32.totalorder %s13, 0
      %p100 = por %p98, %p99
      %p101 = scmp.ne.s32.totalorder %s87, %s88
      %p102 = scmp.eq.s32.totalorder %s14, 3
      %p103 = por %p101, %p102
      %p105 = scmp.ne.s32.totalorder %s88, %s104
      %p106 = scmp.eq.s32.totalorder %s14, 0
      %p107 = por %p105, %p106
      %p108 = scmp.le.s32.totalorder 1, %s8
      %p109 = scmp.lt.s32.totalorder %s8, 5
      %p110 = pnand %p108, %p109
      %p111 = pneg %p110
      // Predicated region
      $region9: #{critic_forward.7} parent=5 // pred_check
        _
      $region10: #{critic_forward.7} parent=5 // pred_check_branch
        %113 = sbr.rel (%p110) target = $region12
      $region11: #{critic_forward.7} parent=5 // pred_region
        %s114 = ssub.s32 %s8, 1
      $region12: #{critic_forward.7} parent=5 // pred_fallthru
        _
      %p115 = scmp.lt.s32.totalorder %s8, 4
      // Predicated region
      $region13: #{critic_forward.7} parent=5 // pred_check
        %p116 = pneg %p115
      $region14: #{critic_forward.7} parent=5 // pred_check_branch
        %118 = sbr.rel (%p116) target = $region16
      $region15: #{critic_forward.7} parent=5 // pred_region
        // Predicated region
        $region17: #{critic_forward.7} parent=15 // pred_check
          %p119 = pneg %p42
        $region18: #{critic_forward.7} parent=15 // pred_check_branch
          %121 = sbr.rel (%p119) target = $region20
        $region19: #{critic_forward.7} parent=15 // pred_region
          %s122 = sand.u32 %s32, 1
          %s123 = sand.u32 %s32, 1
          %s124 = smul.addr %s123, 256
          %s125 = scalar_lea.vmem [#allocation3], %s124
          %s126 = smul.u32 16, %s15
          %s127 = smul.u32 4, %s16
          %s128 = smul.addr %s126, 16
          %s129 = sadd.s32 %s127, %s128
          %s130 = smul.addr %s129, 4
          %s131 = scalar_lea.vmem %s0, %s130
          // Predicated region
          $region21: #{critic_forward.7} parent=19 // pred_check
            _
          $region22: #{critic_forward.7} parent=19 // pred_check_branch
            %133 = sbr.rel (0) target = $region24
          $region23: #{critic_forward.7} parent=19 // pred_region
            // Predicated region
            $region25: #{critic_forward.7} parent=23 // pred_check
              _
            $region26: #{critic_forward.7} parent=23 // pred_check_branch
              %135 = sbr.rel (0) target = $region28
            $region27: #{critic_forward.7} parent=23 // pred_region
              loop: start=0, step=1, limit=1
              $region29: #{critic_forward.7} parent=27 // loop_pre_header
                _
              $region30: #{critic_forward.7} parent=27 // loop_header
                %s137 = sphi 0, %s141
                %p138 = scmp.ge.s32.totalorder %s137, 1
                %s142 = sphi %s131, %s131
                %s143 = sphi %s125, %s125
              $region31: #{critic_forward.7} parent=27 // loop_header_branch
                %140 = sbr.rel (%p138) target = $region35
              $region32: #{critic_forward.7} parent=27 // loop_body
                %v144 = vld [vmem:[%s142] sm:$0xff]
                %145 = vst [vmem:[%s143] sm:$0xff] %v144
                %v146 = vld [vmem:[%s142 + $0x8] sm:$0xff]
                %147 = vst [vmem:[%s143 + $0x8] sm:$0xff] %v146
                %v148 = vld [vmem:[%s142 + $0x40] sm:$0xff]
                %149 = vst [vmem:[%s143 + $0x10] sm:$0xff] %v148
                %v150 = vld [vmem:[%s142 + $0x48] sm:$0xff]
                %151 = vst [vmem:[%s143 + $0x18] sm:$0xff] %v150
                %v152 = vld [vmem:[%s142 + $0x80] sm:$0xff]
                %153 = vst [vmem:[%s143 + $0x20] sm:$0xff] %v152
                %v154 = vld [vmem:[%s142 + $0x88] sm:$0xff]
                %155 = vst [vmem:[%s143 + $0x28] sm:$0xff] %v154
                %v156 = vld [vmem:[%s142 + $0xc0] sm:$0xff]
                %157 = vst [vmem:[%s143 + $0x30] sm:$0xff] %v156
                %v158 = vld [vmem:[%s142 + $0xc8] sm:$0xff]
                %159 = vst [vmem:[%s143 + $0x38] sm:$0xff] %v158
                %v160 = vld [vmem:[%s142 + $0x100] sm:$0xff]
                %161 = vst [vmem:[%s143 + $0x40] sm:$0xff] %v160
                %v162 = vld [vmem:[%s142 + $0x108] sm:$0xff]
                %163 = vst [vmem:[%s143 + $0x48] sm:$0xff] %v162
                %v164 = vld [vmem:[%s142 + $0x140] sm:$0xff]
                %165 = vst [vmem:[%s143 + $0x50] sm:$0xff] %v164
                %v166 = vld [vmem:[%s142 + $0x148] sm:$0xff]
                %167 = vst [vmem:[%s143 + $0x58] sm:$0xff] %v166
                %v168 = vld [vmem:[%s142 + $0x180] sm:$0xff]
                %169 = vst [vmem:[%s143 + $0x60] sm:$0xff] %v168
                %v170 = vld [vmem:[%s142 + $0x188] sm:$0xff]
                %171 = vst [vmem:[%s143 + $0x68] sm:$0xff] %v170
                %v172 = vld [vmem:[%s142 + $0x1c0] sm:$0xff]
                %173 = vst [vmem:[%s143 + $0x70] sm:$0xff] %v172
                %v174 = vld [vmem:[%s142 + $0x1c8] sm:$0xff]
                %175 = vst [vmem:[%s143 + $0x78] sm:$0xff] %v174
                %v176 = vld [vmem:[%s142 + $0x200] sm:$0xff]
                %177 = vst [vmem:[%s143 + $0x80] sm:$0xff] %v176
                %v178 = vld [vmem:[%s142 + $0x208] sm:$0xff]
                %179 = vst [vmem:[%s143 + $0x88] sm:$0xff] %v178
                %v180 = vld [vmem:[%s142 + $0x240] sm:$0xff]
                %181 = vst [vmem:[%s143 + $0x90] sm:$0xff] %v180
                %v182 = vld [vmem:[%s142 + $0x248] sm:$0xff]
                %183 = vst [vmem:[%s143 + $0x98] sm:$0xff] %v182
                %v184 = vld [vmem:[%s142 + $0x280] sm:$0xff]
                %185 = vst [vmem:[%s143 + $0xa0] sm:$0xff] %v184
                %v186 = vld [vmem:[%s142 + $0x288] sm:$0xff]
                %187 = vst [vmem:[%s143 + $0xa8] sm:$0xff] %v186
                %v188 = vld [vmem:[%s142 + $0x2c0] sm:$0xff]
                %189 = vst [vmem:[%s143 + $0xb0] sm:$0xff] %v188
                %v190 = vld [vmem:[%s142 + $0x2c8] sm:$0xff]
                %191 = vst [vmem:[%s143 + $0xb8] sm:$0xff] %v190
                %v192 = vld [vmem:[%s142 + $0x300] sm:$0xff]
                %193 = vst [vmem:[%s143 + $0xc0] sm:$0xff] %v192
                %v194 = vld [vmem:[%s142 + $0x308] sm:$0xff]
                %195 = vst [vmem:[%s143 + $0xc8] sm:$0xff] %v194
                %v196 = vld [vmem:[%s142 + $0x340] sm:$0xff]
                %197 = vst [vmem:[%s143 + $0xd0] sm:$0xff] %v196
                %v198 = vld [vmem:[%s142 + $0x348] sm:$0xff]
                %199 = vst [vmem:[%s143 + $0xd8] sm:$0xff] %v198
                %v200 = vld [vmem:[%s142 + $0x380] sm:$0xff]
                %201 = vst [vmem:[%s143 + $0xe0] sm:$0xff] %v200
                %v202 = vld [vmem:[%s142 + $0x388] sm:$0xff]
                %203 = vst [vmem:[%s143 + $0xe8] sm:$0xff] %v202
                %v204 = vld [vmem:[%s142 + $0x3c0] sm:$0xff]
                %205 = vst [vmem:[%s143 + $0xf0] sm:$0xff] %v204
                %v206 = vld [vmem:[%s142 + $0x3c8] sm:$0xff]
                %207 = vst [vmem:[%s143 + $0xf8] sm:$0xff] %v206
              $region33: #{critic_forward.7} parent=27 // loop_footer
                %s141 = sadd.s32 1, %s137
              $region34: #{critic_forward.7} parent=27 // loop_footer_branch
                %136 = sbr.rel target = $region30
              $region35: #{critic_forward.7} parent=27 // loop_exit
                _
            $region28: #{critic_forward.7} parent=23 // pred_fallthru
              _
            // Predicated region
            $region36: #{critic_forward.7} parent=23 // pred_check
              _
            $region37: #{critic_forward.7} parent=23 // pred_check_branch
              %209 = sbr.rel target = $region39
            $region38: #{critic_forward.7} parent=23 // pred_region
              _
            $region39: #{critic_forward.7} parent=23 // pred_fallthru
              _
          $region24: #{critic_forward.7} parent=19 // pred_fallthru
            _
          %210 = vnop
        $region20: #{critic_forward.7} parent=15 // pred_fallthru
          _
        // Predicated region
        $region40: #{critic_forward.7} parent=15 // pred_check
          %p211 = pneg %p68
        $region41: #{critic_forward.7} parent=15 // pred_check_branch
          %213 = sbr.rel (%p211) target = $region43
        $region42: #{critic_forward.7} parent=15 // pred_region
          %s214 = smul.u32 64, %s16
          %p215 = scmp.lt.s32.totalorder %s214, 255
          %s216 = scalar_select %p215, %s214, 255
          %s217 = smul.addr %s216, 2
          %s218 = smul.addr %s217, 4
          %s219 = scalar_lea.vmem %s1, %s218
          %s220 = smul.u32 64, %s16
        $region43: #{critic_forward.7} parent=15 // pred_fallthru
          _
      $region16: #{critic_forward.7} parent=5 // pred_fallthru
        _
      %p221 = scmp.le.s32.totalorder 1, %s8
      %p222 = scmp.lt.s32.totalorder %s8, 5
      %p223 = pnand %p221, %p222
      %p224 = pneg %p223
      // Predicated region
      $region44: #{critic_forward.7} parent=5 // pred_check
        _
      $region45: #{critic_forward.7} parent=5 // pred_check_branch
        %226 = sbr.rel (%p223) target = $region47
      $region46: #{critic_forward.7} parent=5 // pred_region
        %s227 = ssub.s32 %s8, 1
        %s228 = sand.u32 %s35, 1
        %s229 = sand.u32 %s35, 1
        %s230 = smul.addr %s229, 256
        %s231 = scalar_lea.vmem [#allocation3], %s230
        // Predicated region
        $region48: #{critic_forward.7} parent=46 // pred_check
          %p232 = pneg %p48
        $region49: #{critic_forward.7} parent=46 // pred_check_branch
          %234 = sbr.rel (%p232) target = $region51
        $region50: #{critic_forward.7} parent=46 // pred_region
          _
        $region51: #{critic_forward.7} parent=46 // pred_fallthru
          _
        %s235 = sand.u32 %s35, 1
        %s236 = sand.u32 %s35, 1
        %s237 = smul.addr %s236, 256
        %s238 = scalar_lea.vmem [#allocation3], %s237
        %p239 = pneg %p48
        %p240 = pneg %p45
        %s241 = smul.u32 64, %s18
        %p242 = scmp.lt.s32.totalorder %s241, 255
        %s243 = scalar_select %p242, %s241, 255
        %s244 = smul.addr %s243, 2
        %s245 = smul.addr %s244, 4
        %s246 = scalar_lea.vmem %s1, %s245
        %p247 = pneg %p74
        %p248 = pneg %p71
        %p249 = pneg %p100
        %p250 = pneg %p97
        %s251 = smul.u32 16, %s17
        %p252 = scmp.lt.s32.totalorder %s251, 15
        %s253 = scalar_select %p252, %s251, 15
        %s254 = smul.addr %s253, 2
        %s255 = smul.addr %s254, 4
        %s256 = scalar_lea.vmem %s2, %s255
        %s257 = smul.u32 16, %s17
        %s258 = smul.u32 4, %s18
        %s259 = smul.u32 64, %s18
        %p260 = scmp.lt.s32.totalorder %s259, 255
        %s261 = scalar_select %p260, %s259, 255
        %s262 = smul.addr %s261, 2
        %s263 = smul.addr %s262, 4
        %s264 = scalar_lea.vmem %s1, %s263
        %s265 = smul.u32 64, %s18
        %s266 = smul.u32 16, %s17
        %p267 = scmp.lt.s32.totalorder %s266, 15
        %s268 = scalar_select %p267, %s266, 15
        %s269 = smul.addr %s268, 2
        %s270 = smul.addr %s269, 4
        %s271 = scalar_lea.vmem %s2, %s270
        %s272 = smul.u32 16, %s17
        %p273 = scmp.eq.s32.totalorder %s18, 0
        // Predicated region
        $region52: #{critic_forward.7} parent=46 // pred_check
          %p274 = pneg %p273
        $region53: #{critic_forward.7} parent=46 // pred_check_branch
          %276 = sbr.rel (%p274) target = $region55
        $region54: #{critic_forward.7} parent=46 // pred_region
          %277 = vst [vmem:[#allocation2] sm:$0xff] 0.0
          %278 = vst [vmem:[#allocation2 + $0x8] sm:$0xff] 0.0
          %279 = vst [vmem:[#allocation2 + $0x10] sm:$0xff] 0.0
          %280 = vst [vmem:[#allocation2 + $0x18] sm:$0xff] 0.0
          %281 = vst [vmem:[#allocation2 + $0x20] sm:$0xff] 0.0
          %282 = vst [vmem:[#allocation2 + $0x28] sm:$0xff] 0.0
          %283 = vst [vmem:[#allocation2 + $0x30] sm:$0xff] 0.0
          %284 = vst [vmem:[#allocation2 + $0x38] sm:$0xff] 0.0
          %285 = vst [vmem:[#allocation2 + $0x40] sm:$0xff] 0.0
          %286 = vst [vmem:[#allocation2 + $0x48] sm:$0xff] 0.0
          %287 = vst [vmem:[#allocation2 + $0x50] sm:$0xff] 0.0
          %288 = vst [vmem:[#allocation2 + $0x58] sm:$0xff] 0.0
          %289 = vst [vmem:[#allocation2 + $0x60] sm:$0xff] 0.0
          %290 = vst [vmem:[#allocation2 + $0x68] sm:$0xff] 0.0
          %291 = vst [vmem:[#allocation2 + $0x70] sm:$0xff] 0.0
          %292 = vst [vmem:[#allocation2 + $0x78] sm:$0xff] 0.0
          %293 = vst [vmem:[#allocation2 + $0x80] sm:$0xff] 0.0
          %294 = vst [vmem:[#allocation2 + $0x88] sm:$0xff] 0.0
          %295 = vst [vmem:[#allocation2 + $0x90] sm:$0xff] 0.0
          %296 = vst [vmem:[#allocation2 + $0x98] sm:$0xff] 0.0
          %297 = vst [vmem:[#allocation2 + $0xa0] sm:$0xff] 0.0
          %298 = vst [vmem:[#allocation2 + $0xa8] sm:$0xff] 0.0
          %299 = vst [vmem:[#allocation2 + $0xb0] sm:$0xff] 0.0
          %300 = vst [vmem:[#allocation2 + $0xb8] sm:$0xff] 0.0
          %301 = vst [vmem:[#allocation2 + $0xc0] sm:$0xff] 0.0
          %302 = vst [vmem:[#allocation2 + $0xc8] sm:$0xff] 0.0
          %303 = vst [vmem:[#allocation2 + $0xd0] sm:$0xff] 0.0
          %304 = vst [vmem:[#allocation2 + $0xd8] sm:$0xff] 0.0
          %305 = vst [vmem:[#allocation2 + $0xe0] sm:$0xff] 0.0
          %306 = vst [vmem:[#allocation2 + $0xe8] sm:$0xff] 0.0
          %307 = vst [vmem:[#allocation2 + $0xf0] sm:$0xff] 0.0
          %308 = vst [vmem:[#allocation2 + $0xf8] sm:$0xff] 0.0
        $region55: #{critic_forward.7} parent=46 // pred_fallthru
          _
        %v309 = vld [vmem:[#allocation2] sm:$0xff]
        %v310 = vld [vmem:[#allocation2 + $0x8] sm:$0xff]
        %v311 = vld [vmem:[#allocation2 + $0x10] sm:$0xff]
        %v312 = vld [vmem:[#allocation2 + $0x18] sm:$0xff]
        %v313 = vld [vmem:[#allocation2 + $0x20] sm:$0xff]
        %v314 = vld [vmem:[#allocation2 + $0x28] sm:$0xff]
        %v315 = vld [vmem:[#allocation2 + $0x30] sm:$0xff]
        %v316 = vld [vmem:[#allocation2 + $0x38] sm:$0xff]
        %v317 = vld [vmem:[#allocation2 + $0x40] sm:$0xff]
        %v318 = vld [vmem:[#allocation2 + $0x48] sm:$0xff]
        %v319 = vld [vmem:[#allocation2 + $0x50] sm:$0xff]
        %v320 = vld [vmem:[#allocation2 + $0x58] sm:$0xff]
        %v321 = vld [vmem:[#allocation2 + $0x60] sm:$0xff]
        %v322 = vld [vmem:[#allocation2 + $0x68] sm:$0xff]
        %v323 = vld [vmem:[#allocation2 + $0x70] sm:$0xff]
        %v324 = vld [vmem:[#allocation2 + $0x78] sm:$0xff]
        %v325 = vld [vmem:[#allocation2 + $0x80] sm:$0xff]
        %v326 = vld [vmem:[#allocation2 + $0x88] sm:$0xff]
        %v327 = vld [vmem:[#allocation2 + $0x90] sm:$0xff]
        %v328 = vld [vmem:[#allocation2 + $0x98] sm:$0xff]
        %v329 = vld [vmem:[#allocation2 + $0xa0] sm:$0xff]
        %v330 = vld [vmem:[#allocation2 + $0xa8] sm:$0xff]
        %v331 = vld [vmem:[#allocation2 + $0xb0] sm:$0xff]
        %v332 = vld [vmem:[#allocation2 + $0xb8] sm:$0xff]
        %v333 = vld [vmem:[#allocation2 + $0xc0] sm:$0xff]
        %v334 = vld [vmem:[#allocation2 + $0xc8] sm:$0xff]
        %v335 = vld [vmem:[#allocation2 + $0xd0] sm:$0xff]
        %v336 = vld [vmem:[#allocation2 + $0xd8] sm:$0xff]
        %v337 = vld [vmem:[#allocation2 + $0xe0] sm:$0xff]
        %v338 = vld [vmem:[#allocation2 + $0xe8] sm:$0xff]
        %v339 = vld [vmem:[#allocation2 + $0xf0] sm:$0xff]
        %v340 = vld [vmem:[#allocation2 + $0xf8] sm:$0xff]
        %v341 = vld [vmem:[%s231] sm:$0xff]
        %v342 = vld [vmem:[%s231 + $0x8] sm:$0xff]
        %v343 = vld [vmem:[%s231 + $0x10] sm:$0xff]
        %v344 = vld [vmem:[%s231 + $0x18] sm:$0xff]
        %v345 = vld [vmem:[%s231 + $0x20] sm:$0xff]
        %v346 = vld [vmem:[%s231 + $0x28] sm:$0xff]
        %v347 = vld [vmem:[%s231 + $0x30] sm:$0xff]
        %v348 = vld [vmem:[%s231 + $0x38] sm:$0xff]
        %v349 = vld [vmem:[%s231 + $0x40] sm:$0xff]
        %v350 = vld [vmem:[%s231 + $0x48] sm:$0xff]
        %v351 = vld [vmem:[%s231 + $0x50] sm:$0xff]
        %v352 = vld [vmem:[%s231 + $0x58] sm:$0xff]
        %v353 = vld [vmem:[%s231 + $0x60] sm:$0xff]
        %v354 = vld [vmem:[%s231 + $0x68] sm:$0xff]
        %v355 = vld [vmem:[%s231 + $0x70] sm:$0xff]
        %v356 = vld [vmem:[%s231 + $0x78] sm:$0xff]
        %v357 = vld [vmem:[%s231 + $0x80] sm:$0xff]
        %v358 = vld [vmem:[%s231 + $0x88] sm:$0xff]
        %v359 = vld [vmem:[%s231 + $0x90] sm:$0xff]
        %v360 = vld [vmem:[%s231 + $0x98] sm:$0xff]
        %v361 = vld [vmem:[%s231 + $0xa0] sm:$0xff]
        %v362 = vld [vmem:[%s231 + $0xa8] sm:$0xff]
        %v363 = vld [vmem:[%s231 + $0xb0] sm:$0xff]
        %v364 = vld [vmem:[%s231 + $0xb8] sm:$0xff]
        %v365 = vld [vmem:[%s231 + $0xc0] sm:$0xff]
        %v366 = vld [vmem:[%s231 + $0xc8] sm:$0xff]
        %v367 = vld [vmem:[%s231 + $0xd0] sm:$0xff]
        %v368 = vld [vmem:[%s231 + $0xd8] sm:$0xff]
        %v369 = vld [vmem:[%s231 + $0xe0] sm:$0xff]
        %v370 = vld [vmem:[%s231 + $0xe8] sm:$0xff]
        %v371 = vld [vmem:[%s231 + $0xf0] sm:$0xff]
        %v372 = vld [vmem:[%s231 + $0xf8] sm:$0xff]
        %v373 = vld [vmem:[%s264] sm:$0xff]
        %v374 = vld [vmem:[%s264 + $0x8] sm:$0xff]
        %v375 = vld [vmem:[%s264 + $0x10] sm:$0xff]
        %v376 = vld [vmem:[%s264 + $0x18] sm:$0xff]
        %v377 = vld [vmem:[%s264 + $0x20] sm:$0xff]
        %v378 = vld [vmem:[%s264 + $0x28] sm:$0xff]
        %v379 = vld [vmem:[%s264 + $0x30] sm:$0xff]
        %v380 = vld [vmem:[%s264 + $0x38] sm:$0xff]
        %v381 = vld [vmem:[%s264 + $0x40] sm:$0xff]
        %v382 = vld [vmem:[%s264 + $0x48] sm:$0xff]
        %v383 = vld [vmem:[%s264 + $0x50] sm:$0xff]
        %v384 = vld [vmem:[%s264 + $0x58] sm:$0xff]
        %v385 = vld [vmem:[%s264 + $0x60] sm:$0xff]
        %v386 = vld [vmem:[%s264 + $0x68] sm:$0xff]
        %v387 = vld [vmem:[%s264 + $0x70] sm:$0xff]
        %v388 = vld [vmem:[%s264 + $0x78] sm:$0xff]
        %v389 = vld [vmem:[%s264 + $0x80] sm:$0xff]
        %v390 = vld [vmem:[%s264 + $0x88] sm:$0xff]
        %v391 = vld [vmem:[%s264 + $0x90] sm:$0xff]
        %v392 = vld [vmem:[%s264 + $0x98] sm:$0xff]
        %v393 = vld [vmem:[%s264 + $0xa0] sm:$0xff]
        %v394 = vld [vmem:[%s264 + $0xa8] sm:$0xff]
        %v395 = vld [vmem:[%s264 + $0xb0] sm:$0xff]
        %v396 = vld [vmem:[%s264 + $0xb8] sm:$0xff]
        %v397 = vld [vmem:[%s264 + $0xc0] sm:$0xff]
        %v398 = vld [vmem:[%s264 + $0xc8] sm:$0xff]
        %v399 = vld [vmem:[%s264 + $0xd0] sm:$0xff]
        %v400 = vld [vmem:[%s264 + $0xd8] sm:$0xff]
        %v401 = vld [vmem:[%s264 + $0xe0] sm:$0xff]
        %v402 = vld [vmem:[%s264 + $0xe8] sm:$0xff]
        %v403 = vld [vmem:[%s264 + $0xf0] sm:$0xff]
        %v404 = vld [vmem:[%s264 + $0xf8] sm:$0xff]
        %v405 = vld [vmem:[%s264 + $0x100] sm:$0xff]
        %v406 = vld [vmem:[%s264 + $0x108] sm:$0xff]
        %v407 = vld [vmem:[%s264 + $0x110] sm:$0xff]
        %v408 = vld [vmem:[%s264 + $0x118] sm:$0xff]
        %v409 = vld [vmem:[%s264 + $0x120] sm:$0xff]
        %v410 = vld [vmem:[%s264 + $0x128] sm:$0xff]
        %v411 = vld [vmem:[%s264 + $0x130] sm:$0xff]
        %v412 = vld [vmem:[%s264 + $0x138] sm:$0xff]
        %v413 = vld [vmem:[%s264 + $0x140] sm:$0xff]
        %v414 = vld [vmem:[%s264 + $0x148] sm:$0xff]
        %v415 = vld [vmem:[%s264 + $0x150] sm:$0xff]
        %v416 = vld [vmem:[%s264 + $0x158] sm:$0xff]
        %v417 = vld [vmem:[%s264 + $0x160] sm:$0xff]
        %v418 = vld [vmem:[%s264 + $0x168] sm:$0xff]
        %v419 = vld [vmem:[%s264 + $0x170] sm:$0xff]
        %v420 = vld [vmem:[%s264 + $0x178] sm:$0xff]
        %v421 = vld [vmem:[%s264 + $0x180] sm:$0xff]
        %v422 = vld [vmem:[%s264 + $0x188] sm:$0xff]
        %v423 = vld [vmem:[%s264 + $0x190] sm:$0xff]
        %v424 = vld [vmem:[%s264 + $0x198] sm:$0xff]
        %v425 = vld [vmem:[%s264 + $0x1a0] sm:$0xff]
        %v426 = vld [vmem:[%s264 + $0x1a8] sm:$0xff]
        %v427 = vld [vmem:[%s264 + $0x1b0] sm:$0xff]
        %v428 = vld [vmem:[%s264 + $0x1b8] sm:$0xff]
        %v429 = vld [vmem:[%s264 + $0x1c0] sm:$0xff]
        %v430 = vld [vmem:[%s264 + $0x1c8] sm:$0xff]
        %v431 = vld [vmem:[%s264 + $0x1d0] sm:$0xff]
        %v432 = vld [vmem:[%s264 + $0x1d8] sm:$0xff]
        %v433 = vld [vmem:[%s264 + $0x1e0] sm:$0xff]
        %v434 = vld [vmem:[%s264 + $0x1e8] sm:$0xff]
        %v435 = vld [vmem:[%s264 + $0x1f0] sm:$0xff]
        %v436 = vld [vmem:[%s264 + $0x1f8] sm:$0xff]
        %v469 = vunpack.c.l.b16 %v341
        %v470 = vunpack.c.h.b16 %v341
        %v471 = vunpack.c.l.b16 %v342
        %v472 = vunpack.c.h.b16 %v342
        %v473 = vunpack.c.l.b16 %v343
        %v474 = vunpack.c.h.b16 %v343
        %v475 = vunpack.c.l.b16 %v344
        %v476 = vunpack.c.h.b16 %v344
        %v477 = vunpack.c.l.b16 %v345
        %v478 = vunpack.c.h.b16 %v345
        %v479 = vunpack.c.l.b16 %v346
        %v480 = vunpack.c.h.b16 %v346
        %v481 = vunpack.c.l.b16 %v347
        %v482 = vunpack.c.h.b16 %v347
        %v483 = vunpack.c.l.b16 %v348
        %v484 = vunpack.c.h.b16 %v348
        %v485 = vunpack.c.l.b16 %v349
        %v486 = vunpack.c.h.b16 %v349
        %v487 = vunpack.c.l.b16 %v350
        %v488 = vunpack.c.h.b16 %v350
        %v489 = vunpack.c.l.b16 %v351
        %v490 = vunpack.c.h.b16 %v351
        %v491 = vunpack.c.l.b16 %v352
        %v492 = vunpack.c.h.b16 %v352
        %v493 = vunpack.c.l.b16 %v353
        %v494 = vunpack.c.h.b16 %v353
        %v495 = vunpack.c.l.b16 %v354
        %v496 = vunpack.c.h.b16 %v354
        %v497 = vunpack.c.l.b16 %v355
        %v498 = vunpack.c.h.b16 %v355
        %v499 = vunpack.c.l.b16 %v356
        %v500 = vunpack.c.h.b16 %v356
        %v501 = vunpack.c.l.b16 %v357
        %v502 = vunpack.c.h.b16 %v357
        %v503 = vunpack.c.l.b16 %v358
        %v504 = vunpack.c.h.b16 %v358
        %v505 = vunpack.c.l.b16 %v359
        %v506 = vunpack.c.h.b16 %v359
        %v507 = vunpack.c.l.b16 %v360
        %v508 = vunpack.c.h.b16 %v360
        %v509 = vunpack.c.l.b16 %v361
        %v510 = vunpack.c.h.b16 %v361
        %v511 = vunpack.c.l.b16 %v362
        %v512 = vunpack.c.h.b16 %v362
        %v513 = vunpack.c.l.b16 %v363
        %v514 = vunpack.c.h.b16 %v363
        %v515 = vunpack.c.l.b16 %v364
        %v516 = vunpack.c.h.b16 %v364
        %v517 = vunpack.c.l.b16 %v365
        %v518 = vunpack.c.h.b16 %v365
        %v519 = vunpack.c.l.b16 %v366
        %v520 = vunpack.c.h.b16 %v366
        %v521 = vunpack.c.l.b16 %v367
        %v522 = vunpack.c.h.b16 %v367
        %v523 = vunpack.c.l.b16 %v368
        %v524 = vunpack.c.h.b16 %v368
        %v525 = vunpack.c.l.b16 %v369
        %v526 = vunpack.c.h.b16 %v369
        %v527 = vunpack.c.l.b16 %v370
        %v528 = vunpack.c.h.b16 %v370
        %v529 = vunpack.c.l.b16 %v371
        %v530 = vunpack.c.h.b16 %v371
        %v531 = vunpack.c.l.b16 %v372
        %v532 = vunpack.c.h.b16 %v372
        %v533 = vpack.c.b16 %v473, %v469
        %v534 = vpack.c.b16 %v474, %v470
        %v535 = vpack.c.b16 %v475, %v471
        %v536 = vpack.c.b16 %v476, %v472
        %v537 = vpack.c.b16 %v481, %v477
        %v538 = vpack.c.b16 %v482, %v478
        %v539 = vpack.c.b16 %v483, %v479
        %v540 = vpack.c.b16 %v484, %v480
        %v541 = vpack.c.b16 %v489, %v485
        %v542 = vpack.c.b16 %v490, %v486
        %v543 = vpack.c.b16 %v491, %v487
        %v544 = vpack.c.b16 %v492, %v488
        %v545 = vpack.c.b16 %v497, %v493
        %v546 = vpack.c.b16 %v498, %v494
        %v547 = vpack.c.b16 %v499, %v495
        %v548 = vpack.c.b16 %v500, %v496
        %v549 = vpack.c.b16 %v505, %v501
        %v550 = vpack.c.b16 %v506, %v502
        %v551 = vpack.c.b16 %v507, %v503
        %v552 = vpack.c.b16 %v508, %v504
        %v553 = vpack.c.b16 %v513, %v509
        %v554 = vpack.c.b16 %v514, %v510
        %v555 = vpack.c.b16 %v515, %v511
        %v556 = vpack.c.b16 %v516, %v512
        %v557 = vpack.c.b16 %v521, %v517
        %v558 = vpack.c.b16 %v522, %v518
        %v559 = vpack.c.b16 %v523, %v519
        %v560 = vpack.c.b16 %v524, %v520
        %v561 = vpack.c.b16 %v529, %v525
        %v562 = vpack.c.b16 %v530, %v526
        %v563 = vpack.c.b16 %v531, %v527
        %v564 = vpack.c.b16 %v532, %v528
        %v661 = vunpack.c.l.b16 %v373
        %v662 = vunpack.c.h.b16 %v373
        %v663 = vunpack.c.l.b16 %v374
        %v664 = vunpack.c.h.b16 %v374
        %v665 = vunpack.c.l.b16 %v375
        %v666 = vunpack.c.h.b16 %v375
        %v667 = vunpack.c.l.b16 %v376
        %v668 = vunpack.c.h.b16 %v376
        %v669 = vunpack.c.l.b16 %v377
        %v670 = vunpack.c.h.b16 %v377
        %v671 = vunpack.c.l.b16 %v378
        %v672 = vunpack.c.h.b16 %v378
        %v673 = vunpack.c.l.b16 %v379
        %v674 = vunpack.c.h.b16 %v379
        %v675 = vunpack.c.l.b16 %v380
        %v676 = vunpack.c.h.b16 %v380
        %v677 = vunpack.c.l.b16 %v381
        %v678 = vunpack.c.h.b16 %v381
        %v679 = vunpack.c.l.b16 %v382
        %v680 = vunpack.c.h.b16 %v382
        %v681 = vunpack.c.l.b16 %v383
        %v682 = vunpack.c.h.b16 %v383
        %v683 = vunpack.c.l.b16 %v384
        %v684 = vunpack.c.h.b16 %v384
        %v685 = vunpack.c.l.b16 %v385
        %v686 = vunpack.c.h.b16 %v385
        %v687 = vunpack.c.l.b16 %v386
        %v688 = vunpack.c.h.b16 %v386
        %v689 = vunpack.c.l.b16 %v387
        %v690 = vunpack.c.h.b16 %v387
        %v691 = vunpack.c.l.b16 %v388
        %v692 = vunpack.c.h.b16 %v388
        %v693 = vunpack.c.l.b16 %v389
        %v694 = vunpack.c.h.b16 %v389
        %v695 = vunpack.c.l.b16 %v390
        %v696 = vunpack.c.h.b16 %v390
        %v697 = vunpack.c.l.b16 %v391
        %v698 = vunpack.c.h.b16 %v391
        %v699 = vunpack.c.l.b16 %v392
        %v700 = vunpack.c.h.b16 %v392
        %v701 = vunpack.c.l.b16 %v393
        %v702 = vunpack.c.h.b16 %v393
        %v703 = vunpack.c.l.b16 %v394
        %v704 = vunpack.c.h.b16 %v394
        %v705 = vunpack.c.l.b16 %v395
        %v706 = vunpack.c.h.b16 %v395
        %v707 = vunpack.c.l.b16 %v396
        %v708 = vunpack.c.h.b16 %v396
        %v709 = vunpack.c.l.b16 %v397
        %v710 = vunpack.c.h.b16 %v397
        %v711 = vunpack.c.l.b16 %v398
        %v712 = vunpack.c.h.b16 %v398
        %v713 = vunpack.c.l.b16 %v399
        %v714 = vunpack.c.h.b16 %v399
        %v715 = vunpack.c.l.b16 %v400
        %v716 = vunpack.c.h.b16 %v400
        %v717 = vunpack.c.l.b16 %v401
        %v718 = vunpack.c.h.b16 %v401
        %v719 = vunpack.c.l.b16 %v402
        %v720 = vunpack.c.h.b16 %v402
        %v721 = vunpack.c.l.b16 %v403
        %v722 = vunpack.c.h.b16 %v403
        %v723 = vunpack.c.l.b16 %v404
        %v724 = vunpack.c.h.b16 %v404
        %v725 = vunpack.c.l.b16 %v405
        %v726 = vunpack.c.h.b16 %v405
        %v727 = vunpack.c.l.b16 %v406
        %v728 = vunpack.c.h.b16 %v406
        %v729 = vunpack.c.l.b16 %v407
        %v730 = vunpack.c.h.b16 %v407
        %v731 = vunpack.c.l.b16 %v408
        %v732 = vunpack.c.h.b16 %v408
        %v733 = vunpack.c.l.b16 %v409
        %v734 = vunpack.c.h.b16 %v409
        %v735 = vunpack.c.l.b16 %v410
        %v736 = vunpack.c.h.b16 %v410
        %v737 = vunpack.c.l.b16 %v411
        %v738 = vunpack.c.h.b16 %v411
        %v739 = vunpack.c.l.b16 %v412
        %v740 = vunpack.c.h.b16 %v412
        %v741 = vunpack.c.l.b16 %v413
        %v742 = vunpack.c.h.b16 %v413
        %v743 = vunpack.c.l.b16 %v414
        %v744 = vunpack.c.h.b16 %v414
        %v745 = vunpack.c.l.b16 %v415
        %v746 = vunpack.c.h.b16 %v415
        %v747 = vunpack.c.l.b16 %v416
        %v748 = vunpack.c.h.b16 %v416
        %v749 = vunpack.c.l.b16 %v417
        %v750 = vunpack.c.h.b16 %v417
        %v751 = vunpack.c.l.b16 %v418
        %v752 = vunpack.c.h.b16 %v418
        %v753 = vunpack.c.l.b16 %v419
        %v754 = vunpack.c.h.b16 %v419
        %v755 = vunpack.c.l.b16 %v420
        %v756 = vunpack.c.h.b16 %v420
        %v757 = vunpack.c.l.b16 %v421
        %v758 = vunpack.c.h.b16 %v421
        %v759 = vunpack.c.l.b16 %v422
        %v760 = vunpack.c.h.b16 %v422
        %v761 = vunpack.c.l.b16 %v423
        %v762 = vunpack.c.h.b16 %v423
        %v763 = vunpack.c.l.b16 %v424
        %v764 = vunpack.c.h.b16 %v424
        %v765 = vunpack.c.l.b16 %v425
        %v766 = vunpack.c.h.b16 %v425
        %v767 = vunpack.c.l.b16 %v426
        %v768 = vunpack.c.h.b16 %v426
        %v769 = vunpack.c.l.b16 %v427
        %v770 = vunpack.c.h.b16 %v427
        %v771 = vunpack.c.l.b16 %v428
        %v772 = vunpack.c.h.b16 %v428
        %v773 = vunpack.c.l.b16 %v429
        %v774 = vunpack.c.h.b16 %v429
        %v775 = vunpack.c.l.b16 %v430
        %v776 = vunpack.c.h.b16 %v430
        %v777 = vunpack.c.l.b16 %v431
        %v778 = vunpack.c.h.b16 %v431
        %v779 = vunpack.c.l.b16 %v432
        %v780 = vunpack.c.h.b16 %v432
        %v781 = vunpack.c.l.b16 %v433
        %v782 = vunpack.c.h.b16 %v433
        %v783 = vunpack.c.l.b16 %v434
        %v784 = vunpack.c.h.b16 %v434
        %v785 = vunpack.c.l.b16 %v435
        %v786 = vunpack.c.h.b16 %v435
        %v787 = vunpack.c.l.b16 %v436
        %v788 = vunpack.c.h.b16 %v436
        %v789 = vpack.c.b16 %v663, %v661
        %v790 = vpack.c.b16 %v664, %v662
        %v791 = vpack.c.b16 %v667, %v665
        %v792 = vpack.c.b16 %v668, %v666
        %v793 = vpack.c.b16 %v671, %v669
        %v794 = vpack.c.b16 %v672, %v670
        %v795 = vpack.c.b16 %v675, %v673
        %v796 = vpack.c.b16 %v676, %v674
        %v797 = vpack.c.b16 %v679, %v677
        %v798 = vpack.c.b16 %v680, %v678
        %v799 = vpack.c.b16 %v683, %v681
        %v800 = vpack.c.b16 %v684, %v682
        %v801 = vpack.c.b16 %v687, %v685
        %v802 = vpack.c.b16 %v688, %v686
        %v803 = vpack.c.b16 %v691, %v689
        %v804 = vpack.c.b16 %v692, %v690
        %v805 = vpack.c.b16 %v695, %v693
        %v806 = vpack.c.b16 %v696, %v694
        %v807 = vpack.c.b16 %v699, %v697
        %v808 = vpack.c.b16 %v700, %v698
        %v809 = vpack.c.b16 %v703, %v701
        %v810 = vpack.c.b16 %v704, %v702
        %v811 = vpack.c.b16 %v707, %v705
        %v812 = vpack.c.b16 %v708, %v706
        %v813 = vpack.c.b16 %v711, %v709
        %v814 = vpack.c.b16 %v712, %v710
        %v815 = vpack.c.b16 %v715, %v713
        %v816 = vpack.c.b16 %v716, %v714
        %v817 = vpack.c.b16 %v719, %v717
        %v818 = vpack.c.b16 %v720, %v718
        %v819 = vpack.c.b16 %v723, %v721
        %v820 = vpack.c.b16 %v724, %v722
        %v821 = vpack.c.b16 %v727, %v725
        %v822 = vpack.c.b16 %v728, %v726
        %v823 = vpack.c.b16 %v731, %v729
        %v824 = vpack.c.b16 %v732, %v730
        %v825 = vpack.c.b16 %v735, %v733
        %v826 = vpack.c.b16 %v736, %v734
        %v827 = vpack.c.b16 %v739, %v737
        %v828 = vpack.c.b16 %v740, %v738
        %v829 = vpack.c.b16 %v743, %v741
        %v830 = vpack.c.b16 %v744, %v742
        %v831 = vpack.c.b16 %v747, %v745
        %v832 = vpack.c.b16 %v748, %v746
        %v833 = vpack.c.b16 %v751, %v749
        %v834 = vpack.c.b16 %v752, %v750
        %v835 = vpack.c.b16 %v755, %v753
        %v836 = vpack.c.b16 %v756, %v754
        %v837 = vpack.c.b16 %v759, %v757
        %v838 = vpack.c.b16 %v760, %v758
        %v839 = vpack.c.b16 %v763, %v761
        %v840 = vpack.c.b16 %v764, %v762
        %v841 = vpack.c.b16 %v767, %v765
        %v842 = vpack.c.b16 %v768, %v766
        %v843 = vpack.c.b16 %v771, %v769
        %v844 = vpack.c.b16 %v772, %v770
        %v845 = vpack.c.b16 %v775, %v773
        %v846 = vpack.c.b16 %v776, %v774
        %v847 = vpack.c.b16 %v779, %v777
        %v848 = vpack.c.b16 %v780, %v778
        %v849 = vpack.c.b16 %v783, %v781
        %v850 = vpack.c.b16 %v784, %v782
        %v851 = vpack.c.b16 %v787, %v785
        %v852 = vpack.c.b16 %v788, %v786
        %917 = vmatprep.subr.bf16.mxu0 %v790
        %918 = vmatpush1.bf16.msra.mxu0 %v789
        %919 = vmatprep.subr.bf16.mxu0 %v792
        %920 = vmatpush1.bf16.msra.mxu0 %v791
        %921 = vmatprep.subr.bf16.mxu0 %v794
        %922 = vmatpush1.bf16.msra.mxu0 %v793
        %923 = vmatprep.subr.bf16.mxu0 %v796
        %924 = vmatpush1.bf16.msra.mxu0 %v795
        %925 = vmatprep.subr.bf16.mxu0 %v798
        %926 = vmatpush1.bf16.msra.mxu0 %v797
        %927 = vmatprep.subr.bf16.mxu0 %v800
        %928 = vmatpush1.bf16.msra.mxu0 %v799
        %929 = vmatprep.subr.bf16.mxu0 %v802
        %930 = vmatpush1.bf16.msra.mxu0 %v801
        %931 = vmatprep.subr.bf16.mxu0 %v804
        %932 = vmatpush1.bf16.msra.mxu0 %v803
        %933 = vmatprep.subr.bf16.mxu0 %v806
        %934 = vmatpush1.bf16.msra.mxu0 %v805
        %935 = vmatprep.subr.bf16.mxu0 %v808
        %936 = vmatpush1.bf16.msra.mxu0 %v807
        %937 = vmatprep.subr.bf16.mxu0 %v810
        %938 = vmatpush1.bf16.msra.mxu0 %v809
        %939 = vmatprep.subr.bf16.mxu0 %v812
        %940 = vmatpush1.bf16.msra.mxu0 %v811
        %941 = vmatprep.subr.bf16.mxu0 %v814
        %942 = vmatpush1.bf16.msra.mxu0 %v813
        %943 = vmatprep.subr.bf16.mxu0 %v816
        %944 = vmatpush1.bf16.msra.mxu0 %v815
        %945 = vmatprep.subr.bf16.mxu0 %v818
        %946 = vmatpush1.bf16.msra.mxu0 %v817
        %947 = vmatprep.subr.bf16.mxu0 %v820
        %948 = vmatpush1.bf16.msra.mxu0 %v819
        %949 = vmatprep.mubr.bf16.mxu0 %v534
        %950 = vmatmul.mubr.bf16.gmra.mrb[0].mxu0 %v533
        %v951 = vpop.f32.mrb[0].mxu0
        %v952 = vadd.f32 0.0, %v951
        %v953 = vpop.f32.mrb[0].mxu0
        %v954 = vadd.f32 0.0, %v953
        %v955 = vpop.f32.mrb[0].mxu0
        %v956 = vadd.f32 0.0, %v955
        %v957 = vpop.f32.mrb[0].mxu0
        %v958 = vadd.f32 0.0, %v957
        %959 = vmatprep.mubr.bf16.mxu0 %v538
        %960 = vmatmul.mubr.bf16.gmra.mrb[0].mxu0 %v537
        %v961 = vpop.f32.mrb[0].mxu0
        %v962 = vadd.f32 0.0, %v961
        %v963 = vpop.f32.mrb[0].mxu0
        %v964 = vadd.f32 0.0, %v963
        %v965 = vpop.f32.mrb[0].mxu0
        %v966 = vadd.f32 0.0, %v965
        %v967 = vpop.f32.mrb[0].mxu0
        %v968 = vadd.f32 0.0, %v967
        %969 = vmatprep.mubr.bf16.mxu0 %v542
        %970 = vmatmul.mubr.bf16.gmra.mrb[0].mxu0 %v541
        %v971 = vpop.f32.mrb[0].mxu0
        %v972 = vadd.f32 0.0, %v971
        %v973 = vpop.f32.mrb[0].mxu0
        %v974 = vadd.f32 0.0, %v973
        %v975 = vpop.f32.mrb[0].mxu0
        %v976 = vadd.f32 0.0, %v975
        %v977 = vpop.f32.mrb[0].mxu0
        %v978 = vadd.f32 0.0, %v977
        %979 = vmatprep.mubr.bf16.mxu0 %v546
        %980 = vmatmul.mubr.bf16.gmra.mrb[0].mxu0 %v545
        %v981 = vpop.f32.mrb[0].mxu0
        %v982 = vadd.f32 0.0, %v981
        %v983 = vpop.f32.mrb[0].mxu0
        %v984 = vadd.f32 0.0, %v983
        %v985 = vpop.f32.mrb[0].mxu0
        %v986 = vadd.f32 0.0, %v985
        %v987 = vpop.f32.mrb[0].mxu0
        %v988 = vadd.f32 0.0, %v987
        %989 = vmatprep.mubr.bf16.mxu0 %v550
        %990 = vmatmul.mubr.bf16.gmra.mrb[0].mxu0 %v549
        %v991 = vpop.f32.mrb[0].mxu0
        %v992 = vadd.f32 0.0, %v991
        %v993 = vpop.f32.mrb[0].mxu0
        %v994 = vadd.f32 0.0, %v993
        %v995 = vpop.f32.mrb[0].mxu0
        %v996 = vadd.f32 0.0, %v995
        %v997 = vpop.f32.mrb[0].mxu0
        %v998 = vadd.f32 0.0, %v997
        %999 = vmatprep.mubr.bf16.mxu0 %v554
        %1000 = vmatmul.mubr.bf16.gmra.mrb[0].mxu0 %v553
        %v1001 = vpop.f32.mrb[0].mxu0
        %v1002 = vadd.f32 0.0, %v1001
        %v1003 = vpop.f32.mrb[0].mxu0
        %v1004 = vadd.f32 0.0, %v1003
        %v1005 = vpop.f32.mrb[0].mxu0
        %v1006 = vadd.f32 0.0, %v1005
        %v1007 = vpop.f32.mrb[0].mxu0
        %v1008 = vadd.f32 0.0, %v1007
        %1009 = vmatprep.mubr.bf16.mxu0 %v558
        %1010 = vmatmul.mubr.bf16.gmra.mrb[0].mxu0 %v557
        %v1011 = vpop.f32.mrb[0].mxu0
        %v1012 = vadd.f32 0.0, %v1011
        %v1013 = vpop.f32.mrb[0].mxu0
        %v1014 = vadd.f32 0.0, %v1013
        %v1015 = vpop.f32.mrb[0].mxu0
        %v1016 = vadd.f32 0.0, %v1015
        %v1017 = vpop.f32.mrb[0].mxu0
        %v1018 = vadd.f32 0.0, %v1017
        %1019 = vmatprep.mubr.bf16.mxu0 %v562
        %1020 = vmatmul.mubr.bf16.gmra.mrb[0].mxu0 %v561
        %v1021 = vpop.f32.mrb[0].mxu0
        %v1022 = vadd.f32 0.0, %v1021
        %v1023 = vpop.f32.mrb[0].mxu0
        %v1024 = vadd.f32 0.0, %v1023
        %v1025 = vpop.f32.mrb[0].mxu0
        %v1026 = vadd.f32 0.0, %v1025
        %v1027 = vpop.f32.mrb[0].mxu0
        %v1028 = vadd.f32 0.0, %v1027
        %1029 = vdwg.mxu0
        %1030 = vmatprep.subr.bf16.mxu0 %v822
        %1031 = vmatpush1.bf16.msra.mxu0 %v821
        %1032 = vmatprep.subr.bf16.mxu0 %v824
        %1033 = vmatpush1.bf16.msra.mxu0 %v823
        %1034 = vmatprep.subr.bf16.mxu0 %v826
        %1035 = vmatpush1.bf16.msra.mxu0 %v825
        %1036 = vmatprep.subr.bf16.mxu0 %v828
        %1037 = vmatpush1.bf16.msra.mxu0 %v827
        %1038 = vmatprep.subr.bf16.mxu0 %v830
        %1039 = vmatpush1.bf16.msra.mxu0 %v829
        %1040 = vmatprep.subr.bf16.mxu0 %v832
        %1041 = vmatpush1.bf16.msra.mxu0 %v831
        %1042 = vmatprep.subr.bf16.mxu0 %v834
        %1043 = vmatpush1.bf16.msra.mxu0 %v833
        %1044 = vmatprep.subr.bf16.mxu0 %v836
        %1045 = vmatpush1.bf16.msra.mxu0 %v835
        %1046 = vmatprep.subr.bf16.mxu0 %v838
        %1047 = vmatpush1.bf16.msra.mxu0 %v837
        %1048 = vmatprep.subr.bf16.mxu0 %v840
        %1049 = vmatpush1.bf16.msra.mxu0 %v839
        %1050 = vmatprep.subr.bf16.mxu0 %v842
        %1051 = vmatpush1.bf16.msra.mxu0 %v841
        %1052 = vmatprep.subr.bf16.mxu0 %v844
        %1053 = vmatpush1.bf16.msra.mxu0 %v843
        %1054 = vmatprep.subr.bf16.mxu0 %v846
        %1055 = vmatpush1.bf16.msra.mxu0 %v845
        %1056 = vmatprep.subr.bf16.mxu0 %v848
        %1057 = vmatpush1.bf16.msra.mxu0 %v847
        %1058 = vmatprep.subr.bf16.mxu0 %v850
        %1059 = vmatpush1.bf16.msra.mxu0 %v849
        %1060 = vmatprep.subr.bf16.mxu0 %v852
        %1061 = vmatpush1.bf16.msra.mxu0 %v851
        %1062 = vmatprep.mubr.bf16.mxu0 %v536
        %1063 = vmatmul.mubr.bf16.gmra.mrb[0].mxu0 %v535
        %v1064 = vpop.f32.mrb[0].mxu0
        %v1065 = vadd.f32 %v952, %v1064
        %v1066 = vpop.f32.mrb[0].mxu0
        %v1067 = vadd.f32 %v954, %v1066
        %v1068 = vpop.f32.mrb[0].mxu0
        %v1069 = vadd.f32 %v956, %v1068
        %v1070 = vpop.f32.mrb[0].mxu0
        %v1071 = vadd.f32 %v958, %v1070
        %1072 = vmatprep.mubr.bf16.mxu0 %v540
        %1073 = vmatmul.mubr.bf16.gmra.mrb[0].mxu0 %v539
        %v1074 = vpop.f32.mrb[0].mxu0
        %v1075 = vadd.f32 %v962, %v1074
        %v1076 = vpop.f32.mrb[0].mxu0
        %v1077 = vadd.f32 %v964, %v1076
        %v1078 = vpop.f32.mrb[0].mxu0
        %v1079 = vadd.f32 %v966, %v1078
        %v1080 = vpop.f32.mrb[0].mxu0
        %v1081 = vadd.f32 %v968, %v1080
        %1082 = vmatprep.mubr.bf16.mxu0 %v544
        %1083 = vmatmul.mubr.bf16.gmra.mrb[0].mxu0 %v543
        %v1084 = vpop.f32.mrb[0].mxu0
        %v1085 = vadd.f32 %v972, %v1084
        %v1086 = vpop.f32.mrb[0].mxu0
        %v1087 = vadd.f32 %v974, %v1086
        %v1088 = vpop.f32.mrb[0].mxu0
        %v1089 = vadd.f32 %v976, %v1088
        %v1090 = vpop.f32.mrb[0].mxu0
        %v1091 = vadd.f32 %v978, %v1090
        %1092 = vmatprep.mubr.bf16.mxu0 %v548
        %1093 = vmatmul.mubr.bf16.gmra.mrb[0].mxu0 %v547
        %v1094 = vpop.f32.mrb[0].mxu0
        %v1095 = vadd.f32 %v982, %v1094
        %v1096 = vpop.f32.mrb[0].mxu0
        %v1097 = vadd.f32 %v984, %v1096
        %v1098 = vpop.f32.mrb[0].mxu0
        %v1099 = vadd.f32 %v986, %v1098
        %v1100 = vpop.f32.mrb[0].mxu0
        %v1101 = vadd.f32 %v988, %v1100
        %1102 = vmatprep.mubr.bf16.mxu0 %v552
        %1103 = vmatmul.mubr.bf16.gmra.mrb[0].mxu0 %v551
        %v1104 = vpop.f32.mrb[0].mxu0
        %v1105 = vadd.f32 %v992, %v1104
        %v1106 = vpop.f32.mrb[0].mxu0
        %v1107 = vadd.f32 %v994, %v1106
        %v1108 = vpop.f32.mrb[0].mxu0
        %v1109 = vadd.f32 %v996, %v1108
        %v1110 = vpop.f32.mrb[0].mxu0
        %v1111 = vadd.f32 %v998, %v1110
        %1112 = vmatprep.mubr.bf16.mxu0 %v556
        %1113 = vmatmul.mubr.bf16.gmra.mrb[0].mxu0 %v555
        %v1114 = vpop.f32.mrb[0].mxu0
        %v1115 = vadd.f32 %v1002, %v1114
        %v1116 = vpop.f32.mrb[0].mxu0
        %v1117 = vadd.f32 %v1004, %v1116
        %v1118 = vpop.f32.mrb[0].mxu0
        %v1119 = vadd.f32 %v1006, %v1118
        %v1120 = vpop.f32.mrb[0].mxu0
        %v1121 = vadd.f32 %v1008, %v1120
        %1122 = vmatprep.mubr.bf16.mxu0 %v560
        %1123 = vmatmul.mubr.bf16.gmra.mrb[0].mxu0 %v559
        %v1124 = vpop.f32.mrb[0].mxu0
        %v1125 = vadd.f32 %v1012, %v1124
        %v1126 = vpop.f32.mrb[0].mxu0
        %v1127 = vadd.f32 %v1014, %v1126
        %v1128 = vpop.f32.mrb[0].mxu0
        %v1129 = vadd.f32 %v1016, %v1128
        %v1130 = vpop.f32.mrb[0].mxu0
        %v1131 = vadd.f32 %v1018, %v1130
        %1132 = vmatprep.mubr.bf16.mxu0 %v564
        %1133 = vmatmul.mubr.bf16.gmra.mrb[0].mxu0 %v563
        %v1134 = vpop.f32.mrb[0].mxu0
        %v1135 = vadd.f32 %v1022, %v1134
        %v1136 = vpop.f32.mrb[0].mxu0
        %v1137 = vadd.f32 %v1024, %v1136
        %v1138 = vpop.f32.mrb[0].mxu0
        %v1139 = vadd.f32 %v1026, %v1138
        %v1140 = vpop.f32.mrb[0].mxu0
        %v1141 = vadd.f32 %v1028, %v1140
        %1142 = vdwg.mxu0
        %v1143 = vadd.f32 %v309, %v1065
        %v1144 = vadd.f32 %v310, %v1067
        %v1145 = vadd.f32 %v311, %v1069
        %v1146 = vadd.f32 %v312, %v1071
        %v1147 = vadd.f32 %v313, %v1075
        %v1148 = vadd.f32 %v314, %v1077
        %v1149 = vadd.f32 %v315, %v1079
        %v1150 = vadd.f32 %v316, %v1081
        %v1151 = vadd.f32 %v317, %v1085
        %v1152 = vadd.f32 %v318, %v1087
        %v1153 = vadd.f32 %v319, %v1089
        %v1154 = vadd.f32 %v320, %v1091
        %v1155 = vadd.f32 %v321, %v1095
        %v1156 = vadd.f32 %v322, %v1097
        %v1157 = vadd.f32 %v323, %v1099
        %v1158 = vadd.f32 %v324, %v1101
        %v1159 = vadd.f32 %v325, %v1105
        %v1160 = vadd.f32 %v326, %v1107
        %v1161 = vadd.f32 %v327, %v1109
        %v1162 = vadd.f32 %v328, %v1111
        %v1163 = vadd.f32 %v329, %v1115
        %v1164 = vadd.f32 %v330, %v1117
        %v1165 = vadd.f32 %v331, %v1119
        %v1166 = vadd.f32 %v332, %v1121
        %v1167 = vadd.f32 %v333, %v1125
        %v1168 = vadd.f32 %v334, %v1127
        %v1169 = vadd.f32 %v335, %v1129
        %v1170 = vadd.f32 %v336, %v1131
        %v1171 = vadd.f32 %v337, %v1135
        %v1172 = vadd.f32 %v338, %v1137
        %v1173 = vadd.f32 %v339, %v1139
        %v1174 = vadd.f32 %v340, %v1141
        %1175 = vst [vmem:[#allocation2] sm:$0xff] %v1143
        %1176 = vst [vmem:[#allocation2 + $0x8] sm:$0xff] %v1144
        %1177 = vst [vmem:[#allocation2 + $0x10] sm:$0xff] %v1145
        %1178 = vst [vmem:[#allocation2 + $0x18] sm:$0xff] %v1146
        %1179 = vst [vmem:[#allocation2 + $0x20] sm:$0xff] %v1147
        %1180 = vst [vmem:[#allocation2 + $0x28] sm:$0xff] %v1148
        %1181 = vst [vmem:[#allocation2 + $0x30] sm:$0xff] %v1149
        %1182 = vst [vmem:[#allocation2 + $0x38] sm:$0xff] %v1150
        %1183 = vst [vmem:[#allocation2 + $0x40] sm:$0xff] %v1151
        %1184 = vst [vmem:[#allocation2 + $0x48] sm:$0xff] %v1152
        %1185 = vst [vmem:[#allocation2 + $0x50] sm:$0xff] %v1153
        %1186 = vst [vmem:[#allocation2 + $0x58] sm:$0xff] %v1154
        %1187 = vst [vmem:[#allocation2 + $0x60] sm:$0xff] %v1155
        %1188 = vst [vmem:[#allocation2 + $0x68] sm:$0xff] %v1156
        %1189 = vst [vmem:[#allocation2 + $0x70] sm:$0xff] %v1157
        %1190 = vst [vmem:[#allocation2 + $0x78] sm:$0xff] %v1158
        %1191 = vst [vmem:[#allocation2 + $0x80] sm:$0xff] %v1159
        %1192 = vst [vmem:[#allocation2 + $0x88] sm:$0xff] %v1160
        %1193 = vst [vmem:[#allocation2 + $0x90] sm:$0xff] %v1161
        %1194 = vst [vmem:[#allocation2 + $0x98] sm:$0xff] %v1162
        %1195 = vst [vmem:[#allocation2 + $0xa0] sm:$0xff] %v1163
        %1196 = vst [vmem:[#allocation2 + $0xa8] sm:$0xff] %v1164
        %1197 = vst [vmem:[#allocation2 + $0xb0] sm:$0xff] %v1165
        %1198 = vst [vmem:[#allocation2 + $0xb8] sm:$0xff] %v1166
        %1199 = vst [vmem:[#allocation2 + $0xc0] sm:$0xff] %v1167
        %1200 = vst [vmem:[#allocation2 + $0xc8] sm:$0xff] %v1168
        %1201 = vst [vmem:[#allocation2 + $0xd0] sm:$0xff] %v1169
        %1202 = vst [vmem:[#allocation2 + $0xd8] sm:$0xff] %v1170
        %1203 = vst [vmem:[#allocation2 + $0xe0] sm:$0xff] %v1171
        %1204 = vst [vmem:[#allocation2 + $0xe8] sm:$0xff] %v1172
        %1205 = vst [vmem:[#allocation2 + $0xf0] sm:$0xff] %v1173
        %1206 = vst [vmem:[#allocation2 + $0xf8] sm:$0xff] %v1174
        %p1207 = scmp.eq.s32.totalorder %s18, 3
        // Predicated region
        $region56: #{critic_forward.7} parent=46 // pred_check
          %p1208 = pneg %p1207
        $region57: #{critic_forward.7} parent=46 // pred_check_branch
          %1210 = sbr.rel (%p1208) target = $region59
        $region58: #{critic_forward.7} parent=46 // pred_region
          %v1211 = vld [vmem:[#allocation2] sm:$0xff]
          %v1212 = vld [vmem:[#allocation2 + $0x8] sm:$0xff]
          %v1213 = vld [vmem:[#allocation2 + $0x10] sm:$0xff]
          %v1214 = vld [vmem:[#allocation2 + $0x18] sm:$0xff]
          %v1215 = vld [vmem:[#allocation2 + $0x20] sm:$0xff]
          %v1216 = vld [vmem:[#allocation2 + $0x28] sm:$0xff]
          %v1217 = vld [vmem:[#allocation2 + $0x30] sm:$0xff]
          %v1218 = vld [vmem:[#allocation2 + $0x38] sm:$0xff]
          %v1219 = vld [vmem:[#allocation2 + $0x40] sm:$0xff]
          %v1220 = vld [vmem:[#allocation2 + $0x48] sm:$0xff]
          %v1221 = vld [vmem:[#allocation2 + $0x50] sm:$0xff]
          %v1222 = vld [vmem:[#allocation2 + $0x58] sm:$0xff]
          %v1223 = vld [vmem:[#allocation2 + $0x60] sm:$0xff]
          %v1224 = vld [vmem:[#allocation2 + $0x68] sm:$0xff]
          %v1225 = vld [vmem:[#allocation2 + $0x70] sm:$0xff]
          %v1226 = vld [vmem:[#allocation2 + $0x78] sm:$0xff]
          %v1227 = vld [vmem:[#allocation2 + $0x80] sm:$0xff]
          %v1228 = vld [vmem:[#allocation2 + $0x88] sm:$0xff]
          %v1229 = vld [vmem:[#allocation2 + $0x90] sm:$0xff]
          %v1230 = vld [vmem:[#allocation2 + $0x98] sm:$0xff]
          %v1231 = vld [vmem:[#allocation2 + $0xa0] sm:$0xff]
          %v1232 = vld [vmem:[#allocation2 + $0xa8] sm:$0xff]
          %v1233 = vld [vmem:[#allocation2 + $0xb0] sm:$0xff]
          %v1234 = vld [vmem:[#allocation2 + $0xb8] sm:$0xff]
          %v1235 = vld [vmem:[#allocation2 + $0xc0] sm:$0xff]
          %v1236 = vld [vmem:[#allocation2 + $0xc8] sm:$0xff]
          %v1237 = vld [vmem:[#allocation2 + $0xd0] sm:$0xff]
          %v1238 = vld [vmem:[#allocation2 + $0xd8] sm:$0xff]
          %v1239 = vld [vmem:[#allocation2 + $0xe0] sm:$0xff]
          %v1240 = vld [vmem:[#allocation2 + $0xe8] sm:$0xff]
          %v1241 = vld [vmem:[#allocation2 + $0xf0] sm:$0xff]
          %v1242 = vld [vmem:[#allocation2 + $0xf8] sm:$0xff]
          %vm1243 = vcmp.ge.f32.partialorder %v1211, 0.0
          %vm1244 = vcmp.ge.f32.partialorder %v1212, 0.0
          %vm1245 = vcmp.ge.f32.partialorder %v1213, 0.0
          %vm1246 = vcmp.ge.f32.partialorder %v1214, 0.0
          %vm1247 = vcmp.ge.f32.partialorder %v1215, 0.0
          %vm1248 = vcmp.ge.f32.partialorder %v1216, 0.0
          %vm1249 = vcmp.ge.f32.partialorder %v1217, 0.0
          %vm1250 = vcmp.ge.f32.partialorder %v1218, 0.0
          %vm1251 = vcmp.ge.f32.partialorder %v1219, 0.0
          %vm1252 = vcmp.ge.f32.partialorder %v1220, 0.0
          %vm1253 = vcmp.ge.f32.partialorder %v1221, 0.0
          %vm1254 = vcmp.ge.f32.partialorder %v1222, 0.0
          %vm1255 = vcmp.ge.f32.partialorder %v1223, 0.0
          %vm1256 = vcmp.ge.f32.partialorder %v1224, 0.0
          %vm1257 = vcmp.ge.f32.partialorder %v1225, 0.0
          %vm1258 = vcmp.ge.f32.partialorder %v1226, 0.0
          %vm1259 = vcmp.ge.f32.partialorder %v1227, 0.0
          %vm1260 = vcmp.ge.f32.partialorder %v1228, 0.0
          %vm1261 = vcmp.ge.f32.partialorder %v1229, 0.0
          %vm1262 = vcmp.ge.f32.partialorder %v1230, 0.0
          %vm1263 = vcmp.ge.f32.partialorder %v1231, 0.0
          %vm1264 = vcmp.ge.f32.partialorder %v1232, 0.0
          %vm1265 = vcmp.ge.f32.partialorder %v1233, 0.0
          %vm1266 = vcmp.ge.f32.partialorder %v1234, 0.0
          %vm1267 = vcmp.ge.f32.partialorder %v1235, 0.0
          %vm1268 = vcmp.ge.f32.partialorder %v1236, 0.0
          %vm1269 = vcmp.ge.f32.partialorder %v1237, 0.0
          %vm1270 = vcmp.ge.f32.partialorder %v1238, 0.0
          %vm1271 = vcmp.ge.f32.partialorder %v1239, 0.0
          %vm1272 = vcmp.ge.f32.partialorder %v1240, 0.0
          %vm1273 = vcmp.ge.f32.partialorder %v1241, 0.0
          %vm1274 = vcmp.ge.f32.partialorder %v1242, 0.0
          %v1275 = vmul.f32 %v1211, 0.2
          %v1276 = vmul.f32 %v1212, 0.2
          %v1277 = vmul.f32 %v1213, 0.2
          %v1278 = vmul.f32 %v1214, 0.2
          %v1279 = vmul.f32 %v1215, 0.2
          %v1280 = vmul.f32 %v1216, 0.2
          %v1281 = vmul.f32 %v1217, 0.2
          %v1282 = vmul.f32 %v1218, 0.2
          %v1283 = vmul.f32 %v1219, 0.2
          %v1284 = vmul.f32 %v1220, 0.2
          %v1285 = vmul.f32 %v1221, 0.2
          %v1286 = vmul.f32 %v1222, 0.2
          %v1287 = vmul.f32 %v1223, 0.2
          %v1288 = vmul.f32 %v1224, 0.2
          %v1289 = vmul.f32 %v1225, 0.2
          %v1290 = vmul.f32 %v1226, 0.2
          %v1291 = vmul.f32 %v1227, 0.2
          %v1292 = vmul.f32 %v1228, 0.2
          %v1293 = vmul.f32 %v1229, 0.2
          %v1294 = vmul.f32 %v1230, 0.2
          %v1295 = vmul.f32 %v1231, 0.2
          %v1296 = vmul.f32 %v1232, 0.2
          %v1297 = vmul.f32 %v1233, 0.2
          %v1298 = vmul.f32 %v1234, 0.2
          %v1299 = vmul.f32 %v1235, 0.2
          %v1300 = vmul.f32 %v1236, 0.2
          %v1301 = vmul.f32 %v1237, 0.2
          %v1302 = vmul.f32 %v1238, 0.2
          %v1303 = vmul.f32 %v1239, 0.2
          %v1304 = vmul.f32 %v1240, 0.2
          %v1305 = vmul.f32 %v1241, 0.2
          %v1306 = vmul.f32 %v1242, 0.2
          %v1307 = vsel %vm1243, %v1211, %v1275
          %v1308 = vsel %vm1244, %v1212, %v1276
          %v1309 = vsel %vm1245, %v1213, %v1277
          %v1310 = vsel %vm1246, %v1214, %v1278
          %v1311 = vsel %vm1247, %v1215, %v1279
          %v1312 = vsel %vm1248, %v1216, %v1280
          %v1313 = vsel %vm1249, %v1217, %v1281
          %v1314 = vsel %vm1250, %v1218, %v1282
          %v1315 = vsel %vm1251, %v1219, %v1283
          %v1316 = vsel %vm1252, %v1220, %v1284
          %v1317 = vsel %vm1253, %v1221, %v1285
          %v1318 = vsel %vm1254, %v1222, %v1286
          %v1319 = vsel %vm1255, %v1223, %v1287
          %v1320 = vsel %vm1256, %v1224, %v1288
          %v1321 = vsel %vm1257, %v1225, %v1289
          %v1322 = vsel %vm1258, %v1226, %v1290
          %v1323 = vsel %vm1259, %v1227, %v1291
          %v1324 = vsel %vm1260, %v1228, %v1292
          %v1325 = vsel %vm1261, %v1229, %v1293
          %v1326 = vsel %vm1262, %v1230, %v1294
          %v1327 = vsel %vm1263, %v1231, %v1295
          %v1328 = vsel %vm1264, %v1232, %v1296
          %v1329 = vsel %vm1265, %v1233, %v1297
          %v1330 = vsel %vm1266, %v1234, %v1298
          %v1331 = vsel %vm1267, %v1235, %v1299
          %v1332 = vsel %vm1268, %v1236, %v1300
          %v1333 = vsel %vm1269, %v1237, %v1301
          %v1334 = vsel %vm1270, %v1238, %v1302
          %v1335 = vsel %vm1271, %v1239, %v1303
          %v1336 = vsel %vm1272, %v1240, %v1304
          %v1337 = vsel %vm1273, %v1241, %v1305
          %v1338 = vsel %vm1274, %v1242, %v1306
          %v1339 = vpack.c.bf16 %v1309, %v1307
          %v1340 = vpack.c.bf16 %v1310, %v1308
          %v1341 = vpack.c.bf16 %v1313, %v1311
          %v1342 = vpack.c.bf16 %v1314, %v1312
          %v1343 = vpack.c.bf16 %v1317, %v1315
          %v1344 = vpack.c.bf16 %v1318, %v1316
          %v1345 = vpack.c.bf16 %v1321, %v1319
          %v1346 = vpack.c.bf16 %v1322, %v1320
          %v1347 = vpack.c.bf16 %v1325, %v1323
          %v1348 = vpack.c.bf16 %v1326, %v1324
          %v1349 = vpack.c.bf16 %v1329, %v1327
          %v1350 = vpack.c.bf16 %v1330, %v1328
          %v1351 = vpack.c.bf16 %v1333, %v1331
          %v1352 = vpack.c.bf16 %v1334, %v1332
          %v1353 = vpack.c.bf16 %v1337, %v1335
          %v1354 = vpack.c.bf16 %v1338, %v1336
          %v1371 = vunpack.c.l.b16 %v1339
          %v1372 = vunpack.c.l.b16 %v1340
          %v1373 = vunpack.c.h.b16 %v1339
          %v1374 = vunpack.c.h.b16 %v1340
          %v1375 = vunpack.c.l.b16 %v1341
          %v1376 = vunpack.c.l.b16 %v1342
          %v1377 = vunpack.c.h.b16 %v1341
          %v1378 = vunpack.c.h.b16 %v1342
          %v1379 = vunpack.c.l.b16 %v1343
          %v1380 = vunpack.c.l.b16 %v1344
          %v1381 = vunpack.c.h.b16 %v1343
          %v1382 = vunpack.c.h.b16 %v1344
          %v1383 = vunpack.c.l.b16 %v1345
          %v1384 = vunpack.c.l.b16 %v1346
          %v1385 = vunpack.c.h.b16 %v1345
          %v1386 = vunpack.c.h.b16 %v1346
          %v1387 = vunpack.c.l.b16 %v1347
          %v1388 = vunpack.c.l.b16 %v1348
          %v1389 = vunpack.c.h.b16 %v1347
          %v1390 = vunpack.c.h.b16 %v1348
          %v1391 = vunpack.c.l.b16 %v1349
          %v1392 = vunpack.c.l.b16 %v1350
          %v1393 = vunpack.c.h.b16 %v1349
          %v1394 = vunpack.c.h.b16 %v1350
          %v1395 = vunpack.c.l.b16 %v1351
          %v1396 = vunpack.c.l.b16 %v1352
          %v1397 = vunpack.c.h.b16 %v1351
          %v1398 = vunpack.c.h.b16 %v1352
          %v1399 = vunpack.c.l.b16 %v1353
          %v1400 = vunpack.c.l.b16 %v1354
          %v1401 = vunpack.c.h.b16 %v1353
          %v1402 = vunpack.c.h.b16 %v1354
          %v1403 = vpack.c.b16 %v1372, %v1371
          %v1404 = vpack.c.b16 %v1374, %v1373
          %v1405 = vpack.c.b16 %v1376, %v1375
          %v1406 = vpack.c.b16 %v1378, %v1377
          %v1407 = vpack.c.b16 %v1380, %v1379
          %v1408 = vpack.c.b16 %v1382, %v1381
          %v1409 = vpack.c.b16 %v1384, %v1383
          %v1410 = vpack.c.b16 %v1386, %v1385
          %v1411 = vpack.c.b16 %v1388, %v1387
          %v1412 = vpack.c.b16 %v1390, %v1389
          %v1413 = vpack.c.b16 %v1392, %v1391
          %v1414 = vpack.c.b16 %v1394, %v1393
          %v1415 = vpack.c.b16 %v1396, %v1395
          %v1416 = vpack.c.b16 %v1398, %v1397
          %v1417 = vpack.c.b16 %v1400, %v1399
          %v1418 = vpack.c.b16 %v1402, %v1401
          %1435 = vst [vmem:[%s271] sm:$0xff] %v1403
          %1436 = vst [vmem:[%s271 + $0x8] sm:$0xff] %v1404
          %1437 = vst [vmem:[%s271 + $0x10] sm:$0xff] %v1405
          %1438 = vst [vmem:[%s271 + $0x18] sm:$0xff] %v1406
          %1439 = vst [vmem:[%s271 + $0x20] sm:$0xff] %v1407
          %1440 = vst [vmem:[%s271 + $0x28] sm:$0xff] %v1408
          %1441 = vst [vmem:[%s271 + $0x30] sm:$0xff] %v1409
          %1442 = vst [vmem:[%s271 + $0x38] sm:$0xff] %v1410
          %1443 = vst [vmem:[%s271 + $0x40] sm:$0xff] %v1411
          %1444 = vst [vmem:[%s271 + $0x48] sm:$0xff] %v1412
          %1445 = vst [vmem:[%s271 + $0x50] sm:$0xff] %v1413
          %1446 = vst [vmem:[%s271 + $0x58] sm:$0xff] %v1414
          %1447 = vst [vmem:[%s271 + $0x60] sm:$0xff] %v1415
          %1448 = vst [vmem:[%s271 + $0x68] sm:$0xff] %v1416
          %1449 = vst [vmem:[%s271 + $0x70] sm:$0xff] %v1417
          %1450 = vst [vmem:[%s271 + $0x78] sm:$0xff] %v1418
        $region59: #{critic_forward.7} parent=46 // pred_fallthru
          _
        %s1451 = smul.u32 16, %s17
        %p1452 = scmp.lt.s32.totalorder %s1451, 15
        %s1453 = scalar_select %p1452, %s1451, 15
        %s1454 = smul.addr %s1453, 2
        %s1455 = smul.addr %s1454, 4
        %s1456 = scalar_lea.vmem %s2, %s1455
        // Predicated region
        $region60: #{critic_forward.7} parent=46 // pred_check
          %p1457 = pneg %p97
        $region61: #{critic_forward.7} parent=46 // pred_check_branch
          %1459 = sbr.rel (%p1457) target = $region63
        $region62: #{critic_forward.7} parent=46 // pred_region
          %s1460 = smul.u32 16, %s17
        $region63: #{critic_forward.7} parent=46 // pred_fallthru
          _
        // Predicated region
        $region64: #{critic_forward.7} parent=46 // pred_check
          %p1461 = pneg %p97
        $region65: #{critic_forward.7} parent=46 // pred_check_branch
          %1463 = sbr.rel (%p1461) target = $region67
        $region66: #{critic_forward.7} parent=46 // pred_region
          %s1464 = smul.u32 16, %s17
          %p1465 = scmp.lt.s32.totalorder %s1464, 15
          %s1466 = scalar_select %p1465, %s1464, 15
          %s1467 = smul.addr %s1466, 2
          %s1468 = smul.addr %s1467, 4
          %s1469 = scalar_lea.vmem %s2, %s1468
        $region67: #{critic_forward.7} parent=46 // pred_fallthru
          _
      $region47: #{critic_forward.7} parent=5 // pred_fallthru
        _
      %p1470 = scmp.le.s32.totalorder 2, %s8
      // Predicated region
      $region68: #{critic_forward.7} parent=5 // pred_check
        %p1471 = pneg %p1470
      $region69: #{critic_forward.7} parent=5 // pred_check_branch
        %1473 = sbr.rel (%p1471) target = $region71
      $region70: #{critic_forward.7} parent=5 // pred_region
        %s1474 = ssub.s32 %s8, 2
      $region71: #{critic_forward.7} parent=5 // pred_fallthru
        _
    $region6: #{critic_forward.7} parent=1 // loop_footer
      %s12 = sadd.s32 1, %s8
    $region7: #{critic_forward.7} parent=1 // loop_footer_branch
      %7 = sbr.rel target = $region3
    $region8: #{critic_forward.7} parent=1 // loop_exit
      _

// kernel: critic_forward.8
$region0: #{critic_forward.8}
  #allocation0 [shape = 'u32[]', space=smem, size = 0x4, offset = 0x4, fixed_abs, tag = 'smem constant byte address 0x4 - core index']
  #allocation1 [shape = 'u32[144,128]{1,0:T(1,128)}', space=vmem, size = 0x12000, scoped, tag = 'internal scratch']
  #allocation2 [shape = 'f32[32,512]{1,0:T(8,128)}', space=vmem, size = 0x10000, scoped, tag = 'scratch operand']
  %s0 = inlined_call_operand.vmem [shape: bf16[32,4096], index: 0, kind: input, shape index: {}]
  %s1 = inlined_call_operand.vmem [shape: bf16[4096,512], index: 1, kind: input, shape index: {}]
  %s2 = inlined_call_operand.vmem [shape: bf16[32,512], index: 2, kind: output, shape index: {}]
  %s3 = sld [smem:[#allocation0]]
  $region72: #{critic_forward.8} parent=0
    _
  %s5 = ssub.s32 1, %s3
  %s6 = scalar_select 0, %s5, %s3
  $region1: #{critic_forward.8} parent=0
    #allocation3 [shape = 'u8[65536]{0}', space=vmem, size = 0x10000, scoped, tag = 'input window, operand 0']
    loop: start=0, step=1, limit=10
    $region2: #{critic_forward.8} parent=1 // loop_pre_header
      _
    $region3: #{critic_forward.8} parent=1 // loop_header
      %s8 = sphi 0, %s12
      %p9 = scmp.ge.s32.totalorder %s8, 10
      %s15 = sphi 0, %s27
      %s16 = sphi 0, %s23
      %s17 = sphi 0, %s15
      %s18 = sphi 0, %s16
      %s19 = sphi 0, %s17
      %s20 = sphi 0, %s18
      %s32 = sphi 0, %s34
      %s35 = sphi 0, %s32
      %s36 = sphi 0, %s35
      %s52 = sphi 0, %s36
      %s58 = sphi 0, %s60
      %s61 = sphi 0, %s58
      %s62 = sphi 0, %s61
      %s78 = sphi 0, %s62
      %s84 = sphi 0, %s86
      %s87 = sphi 0, %s84
      %s88 = sphi 0, %s87
      %s104 = sphi 0, %s88
    $region4: #{critic_forward.8} parent=1 // loop_header_branch
      %11 = sbr.rel (%p9) target = $region8
    $region5: #{critic_forward.8} parent=1 // loop_body
      %s13 = ssub.s32 %s8, 1
      %s14 = ssub.s32 %s8, 2
      %s21 = sadd.s32 1, %s16
      %p22 = scmp.ge.s32.totalorder %s21, 8
      %s23 = scalar_select %p22, 0, %s21
      %s24 = sadd.s32 1, %s15
      %s25 = scalar_select %p22, %s24, %s15
      %p26 = scmp.ge.s32.totalorder %s25, 1
      %s27 = scalar_select %p26, 0, %s25
      %s28 = ssub.s32 %s15, %s27
      %s29 = ssub.s32 %s16, %s23
      %s30 = sor.u32 %s28, %s29
      %p31 = scmp.eq.s32.totalorder %s30, 0
      %s33 = sadd.s32 %s32, 1
      %s34 = scalar_select %p31, %s32, %s33
      %p37 = pneg %p31
      %p38 = scmp.eq.s32.totalorder %s8, 7
      %p39 = por %p37, %p38
      %p40 = scmp.ne.s32.totalorder %s32, %s35
      %p41 = scmp.eq.s32.totalorder %s8, 0
      %p42 = por %p40, %p41
      %p43 = scmp.ne.s32.totalorder %s32, %s35
      %p44 = scmp.eq.s32.totalorder %s13, 7
      %p45 = por %p43, %p44
      %p46 = scmp.ne.s32.totalorder %s35, %s36
      %p47 = scmp.eq.s32.totalorder %s13, 0
      %p48 = por %p46, %p47
      %p49 = scmp.ne.s32.totalorder %s35, %s36
      %p50 = scmp.eq.s32.totalorder %s14, 7
      %p51 = por %p49, %p50
      %p53 = scmp.ne.s32.totalorder %s36, %s52
      %p54 = scmp.eq.s32.totalorder %s14, 0
      %p55 = por %p53, %p54
      %s56 = ssub.s32 %s16, %s23
      %p57 = scmp.eq.s32.totalorder %s56, 0
      %s59 = sadd.s32 %s58, 1
      %s60 = scalar_select %p57, %s58, %s59
      %p63 = pneg %p57
      %p64 = scmp.eq.s32.totalorder %s8, 7
      %p65 = por %p63, %p64
      %p66 = scmp.ne.s32.totalorder %s58, %s61
      %p67 = scmp.eq.s32.totalorder %s8, 0
      %p68 = por %p66, %p67
      %p69 = scmp.ne.s32.totalorder %s58, %s61
      %p70 = scmp.eq.s32.totalorder %s13, 7
      %p71 = por %p69, %p70
      %p72 = scmp.ne.s32.totalorder %s61, %s62
      %p73 = scmp.eq.s32.totalorder %s13, 0
      %p74 = por %p72, %p73
      %p75 = scmp.ne.s32.totalorder %s61, %s62
      %p76 = scmp.eq.s32.totalorder %s14, 7
      %p77 = por %p75, %p76
      %p79 = scmp.ne.s32.totalorder %s62, %s78
      %p80 = scmp.eq.s32.totalorder %s14, 0
      %p81 = por %p79, %p80
      %s82 = ssub.s32 %s15, %s27
      %p83 = scmp.eq.s32.totalorder %s82, 0
      %s85 = sadd.s32 %s84, 1
      %s86 = scalar_select %p83, %s84, %s85
      %p89 = pneg %p83
      %p90 = scmp.eq.s32.totalorder %s8, 7
      %p91 = por %p89, %p90
      %p92 = scmp.ne.s32.totalorder %s84, %s87
      %p93 = scmp.eq.s32.totalorder %s8, 0
      %p94 = por %p92, %p93
      %p95 = scmp.ne.s32.totalorder %s84, %s87
      %p96 = scmp.eq.s32.totalorder %s13, 7
      %p97 = por %p95, %p96
      %p98 = scmp.ne.s32.totalorder %s87, %s88
      %p99 = scmp.eq.s32.totalorder %s13, 0
      %p100 = por %p98, %p99
      %p101 = scmp.ne.s32.totalorder %s87, %s88
      %p102 = scmp.eq.s32.totalorder %s14, 7
      %p103 = por %p101, %p102
      %p105 = scmp.ne.s32.totalorder %s88, %s104
      %p106 = scmp.eq.s32.totalorder %s14, 0
      %p107 = por %p105, %p106
      %p108 = scmp.le.s32.totalorder 1, %s8
      %p109 = scmp.lt.s32.totalorder %s8, 9
      %p110 = pnand %p108, %p109
      %p111 = pneg %p110
      // Predicated region
      $region9: #{critic_forward.8} parent=5 // pred_check
        _
      $region10: #{critic_forward.8} parent=5 // pred_check_branch
        %113 = sbr.rel (%p110) target = $region12
      $region11: #{critic_forward.8} parent=5 // pred_region
        %s114 = ssub.s32 %s8, 1
      $region12: #{critic_forward.8} parent=5 // pred_fallthru
        _
      %p115 = scmp.lt.s32.totalorder %s8, 8
      // Predicated region
      $region13: #{critic_forward.8} parent=5 // pred_check
        %p116 = pneg %p115
      $region14: #{critic_forward.8} parent=5 // pred_check_branch
        %118 = sbr.rel (%p116) target = $region16
      $region15: #{critic_forward.8} parent=5 // pred_region
        // Predicated region
        $region17: #{critic_forward.8} parent=15 // pred_check
          %p119 = pneg %p42
        $region18: #{critic_forward.8} parent=15 // pred_check_branch
          %121 = sbr.rel (%p119) target = $region20
        $region19: #{critic_forward.8} parent=15 // pred_region
          %s122 = sand.u32 %s32, 1
          %s123 = sand.u32 %s32, 1
          %s124 = smul.addr %s123, 64
          %s125 = scalar_lea.vmem [#allocation3], %s124
          %s126 = smul.u32 4, %s15
          %s127 = smul.u32 4, %s16
          %s128 = smul.addr %s126, 32
          %s129 = sadd.s32 %s127, %s128
          %s130 = smul.addr %s129, 4
          %s131 = scalar_lea.vmem %s0, %s130
          // Predicated region
          $region21: #{critic_forward.8} parent=19 // pred_check
            _
          $region22: #{critic_forward.8} parent=19 // pred_check_branch
            %133 = sbr.rel (0) target = $region24
          $region23: #{critic_forward.8} parent=19 // pred_region
            // Predicated region
            $region25: #{critic_forward.8} parent=23 // pred_check
              _
            $region26: #{critic_forward.8} parent=23 // pred_check_branch
              %135 = sbr.rel (0) target = $region28
            $region27: #{critic_forward.8} parent=23 // pred_region
              loop: start=0, step=1, limit=1
              $region29: #{critic_forward.8} parent=27 // loop_pre_header
                _
              $region30: #{critic_forward.8} parent=27 // loop_header
                %s137 = sphi 0, %s141
                %p138 = scmp.ge.s32.totalorder %s137, 1
                %s142 = sphi %s131, %s131
                %s143 = sphi %s125, %s125
              $region31: #{critic_forward.8} parent=27 // loop_header_branch
                %140 = sbr.rel (%p138) target = $region35
              $region32: #{critic_forward.8} parent=27 // loop_body
                %v144 = vld [vmem:[%s142] sm:$0xff]
                %145 = vst [vmem:[%s143] sm:$0xff] %v144
                %v146 = vld [vmem:[%s142 + $0x8] sm:$0xff]
                %147 = vst [vmem:[%s143 + $0x8] sm:$0xff] %v146
                %v148 = vld [vmem:[%s142 + $0x80] sm:$0xff]
                %149 = vst [vmem:[%s143 + $0x10] sm:$0xff] %v148
                %v150 = vld [vmem:[%s142 + $0x88] sm:$0xff]
                %151 = vst [vmem:[%s143 + $0x18] sm:$0xff] %v150
                %v152 = vld [vmem:[%s142 + $0x100] sm:$0xff]
                %153 = vst [vmem:[%s143 + $0x20] sm:$0xff] %v152
                %v154 = vld [vmem:[%s142 + $0x108] sm:$0xff]
                %155 = vst [vmem:[%s143 + $0x28] sm:$0xff] %v154
                %v156 = vld [vmem:[%s142 + $0x180] sm:$0xff]
                %157 = vst [vmem:[%s143 + $0x30] sm:$0xff] %v156
                %v158 = vld [vmem:[%s142 + $0x188] sm:$0xff]
                %159 = vst [vmem:[%s143 + $0x38] sm:$0xff] %v158
              $region33: #{critic_forward.8} parent=27 // loop_footer
                %s141 = sadd.s32 1, %s137
              $region34: #{critic_forward.8} parent=27 // loop_footer_branch
                %136 = sbr.rel target = $region30
              $region35: #{critic_forward.8} parent=27 // loop_exit
                _
            $region28: #{critic_forward.8} parent=23 // pred_fallthru
              _
            // Predicated region
            $region36: #{critic_forward.8} parent=23 // pred_check
              _
            $region37: #{critic_forward.8} parent=23 // pred_check_branch
              %161 = sbr.rel target = $region39
            $region38: #{critic_forward.8} parent=23 // pred_region
              _
            $region39: #{critic_forward.8} parent=23 // pred_fallthru
              _
          $region24: #{critic_forward.8} parent=19 // pred_fallthru
            _
          %162 = vnop
        $region20: #{critic_forward.8} parent=15 // pred_fallthru
          _
        // Predicated region
        $region40: #{critic_forward.8} parent=15 // pred_check
          %p163 = pneg %p68
        $region41: #{critic_forward.8} parent=15 // pred_check_branch
          %165 = sbr.rel (%p163) target = $region43
        $region42: #{critic_forward.8} parent=15 // pred_region
          %s166 = smul.u32 64, %s16
          %p167 = scmp.lt.s32.totalorder %s166, 511
          %s168 = scalar_select %p167, %s166, 511
          %s169 = smul.addr %s168, 4
          %s170 = smul.addr %s169, 4
          %s171 = scalar_lea.vmem %s1, %s170
          %s172 = smul.u32 64, %s16
        $region43: #{critic_forward.8} parent=15 // pred_fallthru
          _
      $region16: #{critic_forward.8} parent=5 // pred_fallthru
        _
      %p173 = scmp.le.s32.totalorder 1, %s8
      %p174 = scmp.lt.s32.totalorder %s8, 9
      %p175 = pnand %p173, %p174
      %p176 = pneg %p175
      // Predicated region
      $region44: #{critic_forward.8} parent=5 // pred_check
        _
      $region45: #{critic_forward.8} parent=5 // pred_check_branch
        %178 = sbr.rel (%p175) target = $region47
      $region46: #{critic_forward.8} parent=5 // pred_region
        %s179 = ssub.s32 %s8, 1
        %s180 = sand.u32 %s35, 1
        %s181 = sand.u32 %s35, 1
        %s182 = smul.addr %s181, 64
        %s183 = scalar_lea.vmem [#allocation3], %s182
        // Predicated region
        $region48: #{critic_forward.8} parent=46 // pred_check
          %p184 = pneg %p48
        $region49: #{critic_forward.8} parent=46 // pred_check_branch
          %186 = sbr.rel (%p184) target = $region51
        $region50: #{critic_forward.8} parent=46 // pred_region
          _
        $region51: #{critic_forward.8} parent=46 // pred_fallthru
          _
        %s187 = sand.u32 %s35, 1
        %s188 = sand.u32 %s35, 1
        %s189 = smul.addr %s188, 64
        %s190 = scalar_lea.vmem [#allocation3], %s189
        %p191 = pneg %p48
        %p192 = pneg %p45
        %s193 = smul.u32 64, %s18
        %p194 = scmp.lt.s32.totalorder %s193, 511
        %s195 = scalar_select %p194, %s193, 511
        %s196 = smul.addr %s195, 4
        %s197 = smul.addr %s196, 4
        %s198 = scalar_lea.vmem %s1, %s197
        %p199 = pneg %p74
        %p200 = pneg %p71
        %p201 = pneg %p100
        %p202 = pneg %p97
        %s203 = smul.u32 4, %s17
        %p204 = scmp.lt.s32.totalorder %s203, 3
        %s205 = scalar_select %p204, %s203, 3
        %s206 = smul.addr %s205, 4
        %s207 = smul.addr %s206, 4
        %s208 = scalar_lea.vmem %s2, %s207
        %s209 = smul.u32 4, %s17
        %s210 = smul.u32 4, %s18
        %s211 = smul.u32 64, %s18
        %p212 = scmp.lt.s32.totalorder %s211, 511
        %s213 = scalar_select %p212, %s211, 511
        %s214 = smul.addr %s213, 4
        %s215 = smul.addr %s214, 4
        %s216 = scalar_lea.vmem %s1, %s215
        %s217 = smul.u32 64, %s18
        %s218 = smul.u32 4, %s17
        %p219 = scmp.lt.s32.totalorder %s218, 3
        %s220 = scalar_select %p219, %s218, 3
        %s221 = smul.addr %s220, 4
        %s222 = smul.addr %s221, 4
        %s223 = scalar_lea.vmem %s2, %s222
        %s224 = smul.u32 4, %s17
        %p225 = scmp.eq.s32.totalorder %s18, 0
        // Predicated region
        $region52: #{critic_forward.8} parent=46 // pred_check
          %p226 = pneg %p225
        $region53: #{critic_forward.8} parent=46 // pred_check_branch
          %228 = sbr.rel (%p226) target = $region55
        $region54: #{critic_forward.8} parent=46 // pred_region
          %229 = vst [vmem:[#allocation2] sm:$0xff] 0.0
          %230 = vst [vmem:[#allocation2 + $0x8] sm:$0xff] 0.0
          %231 = vst [vmem:[#allocation2 + $0x10] sm:$0xff] 0.0
          %232 = vst [vmem:[#allocation2 + $0x18] sm:$0xff] 0.0
          %233 = vst [vmem:[#allocation2 + $0x20] sm:$0xff] 0.0
          %234 = vst [vmem:[#allocation2 + $0x28] sm:$0xff] 0.0
          %235 = vst [vmem:[#allocation2 + $0x30] sm:$0xff] 0.0
          %236 = vst [vmem:[#allocation2 + $0x38] sm:$0xff] 0.0
          %237 = vst [vmem:[#allocation2 + $0x40] sm:$0xff] 0.0
          %238 = vst [vmem:[#allocation2 + $0x48] sm:$0xff] 0.0
          %239 = vst [vmem:[#allocation2 + $0x50] sm:$0xff] 0.0
          %240 = vst [vmem:[#allocation2 + $0x58] sm:$0xff] 0.0
          %241 = vst [vmem:[#allocation2 + $0x60] sm:$0xff] 0.0
          %242 = vst [vmem:[#allocation2 + $0x68] sm:$0xff] 0.0
          %243 = vst [vmem:[#allocation2 + $0x70] sm:$0xff] 0.0
          %244 = vst [vmem:[#allocation2 + $0x78] sm:$0xff] 0.0
        $region55: #{critic_forward.8} parent=46 // pred_fallthru
          _
        %v245 = vld [vmem:[#allocation2] sm:$0xff]
        %v246 = vld [vmem:[#allocation2 + $0x8] sm:$0xff]
        %v247 = vld [vmem:[#allocation2 + $0x10] sm:$0xff]
        %v248 = vld [vmem:[#allocation2 + $0x18] sm:$0xff]
        %v249 = vld [vmem:[#allocation2 + $0x20] sm:$0xff]
        %v250 = vld [vmem:[#allocation2 + $0x28] sm:$0xff]
        %v251 = vld [vmem:[#allocation2 + $0x30] sm:$0xff]
        %v252 = vld [vmem:[#allocation2 + $0x38] sm:$0xff]
        %v253 = vld [vmem:[#allocation2 + $0x40] sm:$0xff]
        %v254 = vld [vmem:[#allocation2 + $0x48] sm:$0xff]
        %v255 = vld [vmem:[#allocation2 + $0x50] sm:$0xff]
        %v256 = vld [vmem:[#allocation2 + $0x58] sm:$0xff]
        %v257 = vld [vmem:[#allocation2 + $0x60] sm:$0xff]
        %v258 = vld [vmem:[#allocation2 + $0x68] sm:$0xff]
        %v259 = vld [vmem:[#allocation2 + $0x70] sm:$0xff]
        %v260 = vld [vmem:[#allocation2 + $0x78] sm:$0xff]
        %v261 = vld [vmem:[%s183] sm:$0xff]
        %v262 = vld [vmem:[%s183 + $0x8] sm:$0xff]
        %v263 = vld [vmem:[%s183 + $0x10] sm:$0xff]
        %v264 = vld [vmem:[%s183 + $0x18] sm:$0xff]
        %v265 = vld [vmem:[%s183 + $0x20] sm:$0xff]
        %v266 = vld [vmem:[%s183 + $0x28] sm:$0xff]
        %v267 = vld [vmem:[%s183 + $0x30] sm:$0xff]
        %v268 = vld [vmem:[%s183 + $0x38] sm:$0xff]
        %v269 = vld [vmem:[%s216] sm:$0xff]
        %v270 = vld [vmem:[%s216 + $0x8] sm:$0xff]
        %v271 = vld [vmem:[%s216 + $0x10] sm:$0xff]
        %v272 = vld [vmem:[%s216 + $0x18] sm:$0xff]
        %v273 = vld [vmem:[%s216 + $0x20] sm:$0xff]
        %v274 = vld [vmem:[%s216 + $0x28] sm:$0xff]
        %v275 = vld [vmem:[%s216 + $0x30] sm:$0xff]
        %v276 = vld [vmem:[%s216 + $0x38] sm:$0xff]
        %v277 = vld [vmem:[%s216 + $0x40] sm:$0xff]
        %v278 = vld [vmem:[%s216 + $0x48] sm:$0xff]
        %v279 = vld [vmem:[%s216 + $0x50] sm:$0xff]
        %v280 = vld [vmem:[%s216 + $0x58] sm:$0xff]
        %v281 = vld [vmem:[%s216 + $0x60] sm:$0xff]
        %v282 = vld [vmem:[%s216 + $0x68] sm:$0xff]
        %v283 = vld [vmem:[%s216 + $0x70] sm:$0xff]
        %v284 = vld [vmem:[%s216 + $0x78] sm:$0xff]
        %v285 = vld [vmem:[%s216 + $0x80] sm:$0xff]
        %v286 = vld [vmem:[%s216 + $0x88] sm:$0xff]
        %v287 = vld [vmem:[%s216 + $0x90] sm:$0xff]
        %v288 = vld [vmem:[%s216 + $0x98] sm:$0xff]
        %v289 = vld [vmem:[%s216 + $0xa0] sm:$0xff]
        %v290 = vld [vmem:[%s216 + $0xa8] sm:$0xff]
        %v291 = vld [vmem:[%s216 + $0xb0] sm:$0xff]
        %v292 = vld [vmem:[%s216 + $0xb8] sm:$0xff]
        %v293 = vld [vmem:[%s216 + $0xc0] sm:$0xff]
        %v294 = vld [vmem:[%s216 + $0xc8] sm:$0xff]
        %v295 = vld [vmem:[%s216 + $0xd0] sm:$0xff]
        %v296 = vld [vmem:[%s216 + $0xd8] sm:$0xff]
        %v297 = vld [vmem:[%s216 + $0xe0] sm:$0xff]
        %v298 = vld [vmem:[%s216 + $0xe8] sm:$0xff]
        %v299 = vld [vmem:[%s216 + $0xf0] sm:$0xff]
        %v300 = vld [vmem:[%s216 + $0xf8] sm:$0xff]
        %v301 = vld [vmem:[%s216 + $0x100] sm:$0xff]
        %v302 = vld [vmem:[%s216 + $0x108] sm:$0xff]
        %v303 = vld [vmem:[%s216 + $0x110] sm:$0xff]
        %v304 = vld [vmem:[%s216 + $0x118] sm:$0xff]
        %v305 = vld [vmem:[%s216 + $0x120] sm:$0xff]
        %v306 = vld [vmem:[%s216 + $0x128] sm:$0xff]
        %v307 = vld [vmem:[%s216 + $0x130] sm:$0xff]
        %v308 = vld [vmem:[%s216 + $0x138] sm:$0xff]
        %v309 = vld [vmem:[%s216 + $0x140] sm:$0xff]
        %v310 = vld [vmem:[%s216 + $0x148] sm:$0xff]
        %v311 = vld [vmem:[%s216 + $0x150] sm:$0xff]
        %v312 = vld [vmem:[%s216 + $0x158] sm:$0xff]
        %v313 = vld [vmem:[%s216 + $0x160] sm:$0xff]
        %v314 = vld [vmem:[%s216 + $0x168] sm:$0xff]
        %v315 = vld [vmem:[%s216 + $0x170] sm:$0xff]
        %v316 = vld [vmem:[%s216 + $0x178] sm:$0xff]
        %v317 = vld [vmem:[%s216 + $0x180] sm:$0xff]
        %v318 = vld [vmem:[%s216 + $0x188] sm:$0xff]
        %v319 = vld [vmem:[%s216 + $0x190] sm:$0xff]
        %v320 = vld [vmem:[%s216 + $0x198] sm:$0xff]
        %v321 = vld [vmem:[%s216 + $0x1a0] sm:$0xff]
        %v322 = vld [vmem:[%s216 + $0x1a8] sm:$0xff]
        %v323 = vld [vmem:[%s216 + $0x1b0] sm:$0xff]
        %v324 = vld [vmem:[%s216 + $0x1b8] sm:$0xff]
        %v325 = vld [vmem:[%s216 + $0x1c0] sm:$0xff]
        %v326 = vld [vmem:[%s216 + $0x1c8] sm:$0xff]
        %v327 = vld [vmem:[%s216 + $0x1d0] sm:$0xff]
        %v328 = vld [vmem:[%s216 + $0x1d8] sm:$0xff]
        %v329 = vld [vmem:[%s216 + $0x1e0] sm:$0xff]
        %v330 = vld [vmem:[%s216 + $0x1e8] sm:$0xff]
        %v331 = vld [vmem:[%s216 + $0x1f0] sm:$0xff]
        %v332 = vld [vmem:[%s216 + $0x1f8] sm:$0xff]
        %v333 = vld [vmem:[%s216 + $0x200] sm:$0xff]
        %v334 = vld [vmem:[%s216 + $0x208] sm:$0xff]
        %v335 = vld [vmem:[%s216 + $0x210] sm:$0xff]
        %v336 = vld [vmem:[%s216 + $0x218] sm:$0xff]
        %v337 = vld [vmem:[%s216 + $0x220] sm:$0xff]
        %v338 = vld [vmem:[%s216 + $0x228] sm:$0xff]
        %v339 = vld [vmem:[%s216 + $0x230] sm:$0xff]
        %v340 = vld [vmem:[%s216 + $0x238] sm:$0xff]
        %v341 = vld [vmem:[%s216 + $0x240] sm:$0xff]
        %v342 = vld [vmem:[%s216 + $0x248] sm:$0xff]
        %v343 = vld [vmem:[%s216 + $0x250] sm:$0xff]
        %v344 = vld [vmem:[%s216 + $0x258] sm:$0xff]
        %v345 = vld [vmem:[%s216 + $0x260] sm:$0xff]
        %v346 = vld [vmem:[%s216 + $0x268] sm:$0xff]
        %v347 = vld [vmem:[%s216 + $0x270] sm:$0xff]
        %v348 = vld [vmem:[%s216 + $0x278] sm:$0xff]
        %v349 = vld [vmem:[%s216 + $0x280] sm:$0xff]
        %v350 = vld [vmem:[%s216 + $0x288] sm:$0xff]
        %v351 = vld [vmem:[%s216 + $0x290] sm:$0xff]
        %v352 = vld [vmem:[%s216 + $0x298] sm:$0xff]
        %v353 = vld [vmem:[%s216 + $0x2a0] sm:$0xff]
        %v354 = vld [vmem:[%s216 + $0x2a8] sm:$0xff]
        %v355 = vld [vmem:[%s216 + $0x2b0] sm:$0xff]
        %v356 = vld [vmem:[%s216 + $0x2b8] sm:$0xff]
        %v357 = vld [vmem:[%s216 + $0x2c0] sm:$0xff]
        %v358 = vld [vmem:[%s216 + $0x2c8] sm:$0xff]
        %v359 = vld [vmem:[%s216 + $0x2d0] sm:$0xff]
        %v360 = vld [vmem:[%s216 + $0x2d8] sm:$0xff]
        %v361 = vld [vmem:[%s216 + $0x2e0] sm:$0xff]
        %v362 = vld [vmem:[%s216 + $0x2e8] sm:$0xff]
        %v363 = vld [vmem:[%s216 + $0x2f0] sm:$0xff]
        %v364 = vld [vmem:[%s216 + $0x2f8] sm:$0xff]
        %v365 = vld [vmem:[%s216 + $0x300] sm:$0xff]
        %v366 = vld [vmem:[%s216 + $0x308] sm:$0xff]
        %v367 = vld [vmem:[%s216 + $0x310] sm:$0xff]
        %v368 = vld [vmem:[%s216 + $0x318] sm:$0xff]
        %v369 = vld [vmem:[%s216 + $0x320] sm:$0xff]
        %v370 = vld [vmem:[%s216 + $0x328] sm:$0xff]
        %v371 = vld [vmem:[%s216 + $0x330] sm:$0xff]
        %v372 = vld [vmem:[%s216 + $0x338] sm:$0xff]
        %v373 = vld [vmem:[%s216 + $0x340] sm:$0xff]
        %v374 = vld [vmem:[%s216 + $0x348] sm:$0xff]
        %v375 = vld [vmem:[%s216 + $0x350] sm:$0xff]
        %v376 = vld [vmem:[%s216 + $0x358] sm:$0xff]
        %v377 = vld [vmem:[%s216 + $0x360] sm:$0xff]
        %v378 = vld [vmem:[%s216 + $0x368] sm:$0xff]
        %v379 = vld [vmem:[%s216 + $0x370] sm:$0xff]
        %v380 = vld [vmem:[%s216 + $0x378] sm:$0xff]
        %v381 = vld [vmem:[%s216 + $0x380] sm:$0xff]
        %v382 = vld [vmem:[%s216 + $0x388] sm:$0xff]
        %v383 = vld [vmem:[%s216 + $0x390] sm:$0xff]
        %v384 = vld [vmem:[%s216 + $0x398] sm:$0xff]
        %v385 = vld [vmem:[%s216 + $0x3a0] sm:$0xff]
        %v386 = vld [vmem:[%s216 + $0x3a8] sm:$0xff]
        %v387 = vld [vmem:[%s216 + $0x3b0] sm:$0xff]
        %v388 = vld [vmem:[%s216 + $0x3b8] sm:$0xff]
        %v389 = vld [vmem:[%s216 + $0x3c0] sm:$0xff]
        %v390 = vld [vmem:[%s216 + $0x3c8] sm:$0xff]
        %v391 = vld [vmem:[%s216 + $0x3d0] sm:$0xff]
        %v392 = vld [vmem:[%s216 + $0x3d8] sm:$0xff]
        %v393 = vld [vmem:[%s216 + $0x3e0] sm:$0xff]
        %v394 = vld [vmem:[%s216 + $0x3e8] sm:$0xff]
        %v395 = vld [vmem:[%s216 + $0x3f0] sm:$0xff]
        %v396 = vld [vmem:[%s216 + $0x3f8] sm:$0xff]
        %v405 = vunpack.c.l.b16 %v261
        %v406 = vunpack.c.h.b16 %v261
        %v407 = vunpack.c.l.b16 %v262
        %v408 = vunpack.c.h.b16 %v262
        %v409 = vunpack.c.l.b16 %v263
        %v410 = vunpack.c.h.b16 %v263
        %v411 = vunpack.c.l.b16 %v264
        %v412 = vunpack.c.h.b16 %v264
        %v413 = vunpack.c.l.b16 %v265
        %v414 = vunpack.c.h.b16 %v265
        %v415 = vunpack.c.l.b16 %v266
        %v416 = vunpack.c.h.b16 %v266
        %v417 = vunpack.c.l.b16 %v267
        %v418 = vunpack.c.h.b16 %v267
        %v419 = vunpack.c.l.b16 %v268
        %v420 = vunpack.c.h.b16 %v268
        %v421 = vpack.c.b16 %v409, %v405
        %v422 = vpack.c.b16 %v410, %v406
        %v423 = vpack.c.b16 %v411, %v407
        %v424 = vpack.c.b16 %v412, %v408
        %v425 = vpack.c.b16 %v417, %v413
        %v426 = vpack.c.b16 %v418, %v414
        %v427 = vpack.c.b16 %v419, %v415
        %v428 = vpack.c.b16 %v420, %v416
        %v565 = vunpack.c.l.b16 %v269
        %v566 = vunpack.c.h.b16 %v269
        %v567 = vunpack.c.l.b16 %v270
        %v568 = vunpack.c.h.b16 %v270
        %v569 = vunpack.c.l.b16 %v271
        %v570 = vunpack.c.h.b16 %v271
        %v571 = vunpack.c.l.b16 %v272
        %v572 = vunpack.c.h.b16 %v272
        %v573 = vunpack.c.l.b16 %v273
        %v574 = vunpack.c.h.b16 %v273
        %v575 = vunpack.c.l.b16 %v274
        %v576 = vunpack.c.h.b16 %v274
        %v577 = vunpack.c.l.b16 %v275
        %v578 = vunpack.c.h.b16 %v275
        %v579 = vunpack.c.l.b16 %v276
        %v580 = vunpack.c.h.b16 %v276
        %v581 = vunpack.c.l.b16 %v277
        %v582 = vunpack.c.h.b16 %v277
        %v583 = vunpack.c.l.b16 %v278
        %v584 = vunpack.c.h.b16 %v278
        %v585 = vunpack.c.l.b16 %v279
        %v586 = vunpack.c.h.b16 %v279
        %v587 = vunpack.c.l.b16 %v280
        %v588 = vunpack.c.h.b16 %v280
        %v589 = vunpack.c.l.b16 %v281
        %v590 = vunpack.c.h.b16 %v281
        %v591 = vunpack.c.l.b16 %v282
        %v592 = vunpack.c.h.b16 %v282
        %v593 = vunpack.c.l.b16 %v283
        %v594 = vunpack.c.h.b16 %v283
        %v595 = vunpack.c.l.b16 %v284
        %v596 = vunpack.c.h.b16 %v284
        %v597 = vunpack.c.l.b16 %v285
        %v598 = vunpack.c.h.b16 %v285
        %v599 = vunpack.c.l.b16 %v286
        %v600 = vunpack.c.h.b16 %v286
        %v601 = vunpack.c.l.b16 %v287
        %v602 = vunpack.c.h.b16 %v287
        %v603 = vunpack.c.l.b16 %v288
        %v604 = vunpack.c.h.b16 %v288
        %v605 = vunpack.c.l.b16 %v289
        %v606 = vunpack.c.h.b16 %v289
        %v607 = vunpack.c.l.b16 %v290
        %v608 = vunpack.c.h.b16 %v290
        %v609 = vunpack.c.l.b16 %v291
        %v610 = vunpack.c.h.b16 %v291
        %v611 = vunpack.c.l.b16 %v292
        %v612 = vunpack.c.h.b16 %v292
        %v613 = vunpack.c.l.b16 %v293
        %v614 = vunpack.c.h.b16 %v293
        %v615 = vunpack.c.l.b16 %v294
        %v616 = vunpack.c.h.b16 %v294
        %v617 = vunpack.c.l.b16 %v295
        %v618 = vunpack.c.h.b16 %v295
        %v619 = vunpack.c.l.b16 %v296
        %v620 = vunpack.c.h.b16 %v296
        %v621 = vunpack.c.l.b16 %v297
        %v622 = vunpack.c.h.b16 %v297
        %v623 = vunpack.c.l.b16 %v298
        %v624 = vunpack.c.h.b16 %v298
        %v625 = vunpack.c.l.b16 %v299
        %v626 = vunpack.c.h.b16 %v299
        %v627 = vunpack.c.l.b16 %v300
        %v628 = vunpack.c.h.b16 %v300
        %v629 = vunpack.c.l.b16 %v301
        %v630 = vunpack.c.h.b16 %v301
        %v631 = vunpack.c.l.b16 %v302
        %v632 = vunpack.c.h.b16 %v302
        %v633 = vunpack.c.l.b16 %v303
        %v634 = vunpack.c.h.b16 %v303
        %v635 = vunpack.c.l.b16 %v304
        %v636 = vunpack.c.h.b16 %v304
        %v637 = vunpack.c.l.b16 %v305
        %v638 = vunpack.c.h.b16 %v305
        %v639 = vunpack.c.l.b16 %v306
        %v640 = vunpack.c.h.b16 %v306
        %v641 = vunpack.c.l.b16 %v307
        %v642 = vunpack.c.h.b16 %v307
        %v643 = vunpack.c.l.b16 %v308
        %v644 = vunpack.c.h.b16 %v308
        %v645 = vunpack.c.l.b16 %v309
        %v646 = vunpack.c.h.b16 %v309
        %v647 = vunpack.c.l.b16 %v310
        %v648 = vunpack.c.h.b16 %v310
        %v649 = vunpack.c.l.b16 %v311
        %v650 = vunpack.c.h.b16 %v311
        %v651 = vunpack.c.l.b16 %v312
        %v652 = vunpack.c.h.b16 %v312
        %v653 = vunpack.c.l.b16 %v313
        %v654 = vunpack.c.h.b16 %v313
        %v655 = vunpack.c.l.b16 %v314
        %v656 = vunpack.c.h.b16 %v314
        %v657 = vunpack.c.l.b16 %v315
        %v658 = vunpack.c.h.b16 %v315
        %v659 = vunpack.c.l.b16 %v316
        %v660 = vunpack.c.h.b16 %v316
        %v661 = vunpack.c.l.b16 %v317
        %v662 = vunpack.c.h.b16 %v317
        %v663 = vunpack.c.l.b16 %v318
        %v664 = vunpack.c.h.b16 %v318
        %v665 = vunpack.c.l.b16 %v319
        %v666 = vunpack.c.h.b16 %v319
        %v667 = vunpack.c.l.b16 %v320
        %v668 = vunpack.c.h.b16 %v320
        %v669 = vunpack.c.l.b16 %v321
        %v670 = vunpack.c.h.b16 %v321
        %v671 = vunpack.c.l.b16 %v322
        %v672 = vunpack.c.h.b16 %v322
        %v673 = vunpack.c.l.b16 %v323
        %v674 = vunpack.c.h.b16 %v323
        %v675 = vunpack.c.l.b16 %v324
        %v676 = vunpack.c.h.b16 %v324
        %v677 = vunpack.c.l.b16 %v325
        %v678 = vunpack.c.h.b16 %v325
        %v679 = vunpack.c.l.b16 %v326
        %v680 = vunpack.c.h.b16 %v326
        %v681 = vunpack.c.l.b16 %v327
        %v682 = vunpack.c.h.b16 %v327
        %v683 = vunpack.c.l.b16 %v328
        %v684 = vunpack.c.h.b16 %v328
        %v685 = vunpack.c.l.b16 %v329
        %v686 = vunpack.c.h.b16 %v329
        %v687 = vunpack.c.l.b16 %v330
        %v688 = vunpack.c.h.b16 %v330
        %v689 = vunpack.c.l.b16 %v331
        %v690 = vunpack.c.h.b16 %v331
        %v691 = vunpack.c.l.b16 %v332
        %v692 = vunpack.c.h.b16 %v332
        %v693 = vunpack.c.l.b16 %v333
        %v694 = vunpack.c.h.b16 %v333
        %v695 = vunpack.c.l.b16 %v334
        %v696 = vunpack.c.h.b16 %v334
        %v697 = vunpack.c.l.b16 %v335
        %v698 = vunpack.c.h.b16 %v335
        %v699 = vunpack.c.l.b16 %v336
        %v700 = vunpack.c.h.b16 %v336
        %v701 = vunpack.c.l.b16 %v337
        %v702 = vunpack.c.h.b16 %v337
        %v703 = vunpack.c.l.b16 %v338
        %v704 = vunpack.c.h.b16 %v338
        %v705 = vunpack.c.l.b16 %v339
        %v706 = vunpack.c.h.b16 %v339
        %v707 = vunpack.c.l.b16 %v340
        %v708 = vunpack.c.h.b16 %v340
        %v709 = vunpack.c.l.b16 %v341
        %v710 = vunpack.c.h.b16 %v341
        %v711 = vunpack.c.l.b16 %v342
        %v712 = vunpack.c.h.b16 %v342
        %v713 = vunpack.c.l.b16 %v343
        %v714 = vunpack.c.h.b16 %v343
        %v715 = vunpack.c.l.b16 %v344
        %v716 = vunpack.c.h.b16 %v344
        %v717 = vunpack.c.l.b16 %v345
        %v718 = vunpack.c.h.b16 %v345
        %v719 = vunpack.c.l.b16 %v346
        %v720 = vunpack.c.h.b16 %v346
        %v721 = vunpack.c.l.b16 %v347
        %v722 = vunpack.c.h.b16 %v347
        %v723 = vunpack.c.l.b16 %v348
        %v724 = vunpack.c.h.b16 %v348
        %v725 = vunpack.c.l.b16 %v349
        %v726 = vunpack.c.h.b16 %v349
        %v727 = vunpack.c.l.b16 %v350
        %v728 = vunpack.c.h.b16 %v350
        %v729 = vunpack.c.l.b16 %v351
        %v730 = vunpack.c.h.b16 %v351
        %v731 = vunpack.c.l.b16 %v352
        %v732 = vunpack.c.h.b16 %v352
        %v733 = vunpack.c.l.b16 %v353
        %v734 = vunpack.c.h.b16 %v353
        %v735 = vunpack.c.l.b16 %v354
        %v736 = vunpack.c.h.b16 %v354
        %v737 = vunpack.c.l.b16 %v355
        %v738 = vunpack.c.h.b16 %v355
        %v739 = vunpack.c.l.b16 %v356
        %v740 = vunpack.c.h.b16 %v356
        %v741 = vunpack.c.l.b16 %v357
        %v742 = vunpack.c.h.b16 %v357
        %v743 = vunpack.c.l.b16 %v358
        %v744 = vunpack.c.h.b16 %v358
        %v745 = vunpack.c.l.b16 %v359
        %v746 = vunpack.c.h.b16 %v359
        %v747 = vunpack.c.l.b16 %v360
        %v748 = vunpack.c.h.b16 %v360
        %v749 = vunpack.c.l.b16 %v361
        %v750 = vunpack.c.h.b16 %v361
        %v751 = vunpack.c.l.b16 %v362
        %v752 = vunpack.c.h.b16 %v362
        %v753 = vunpack.c.l.b16 %v363
        %v754 = vunpack.c.h.b16 %v363
        %v755 = vunpack.c.l.b16 %v364
        %v756 = vunpack.c.h.b16 %v364
        %v757 = vunpack.c.l.b16 %v365
        %v758 = vunpack.c.h.b16 %v365
        %v759 = vunpack.c.l.b16 %v366
        %v760 = vunpack.c.h.b16 %v366
        %v761 = vunpack.c.l.b16 %v367
        %v762 = vunpack.c.h.b16 %v367
        %v763 = vunpack.c.l.b16 %v368
        %v764 = vunpack.c.h.b16 %v368
        %v765 = vunpack.c.l.b16 %v369
        %v766 = vunpack.c.h.b16 %v369
        %v767 = vunpack.c.l.b16 %v370
        %v768 = vunpack.c.h.b16 %v370
        %v769 = vunpack.c.l.b16 %v371
        %v770 = vunpack.c.h.b16 %v371
        %v771 = vunpack.c.l.b16 %v372
        %v772 = vunpack.c.h.b16 %v372
        %v773 = vunpack.c.l.b16 %v373
        %v774 = vunpack.c.h.b16 %v373
        %v775 = vunpack.c.l.b16 %v374
        %v776 = vunpack.c.h.b16 %v374
        %v777 = vunpack.c.l.b16 %v375
        %v778 = vunpack.c.h.b16 %v375
        %v779 = vunpack.c.l.b16 %v376
        %v780 = vunpack.c.h.b16 %v376
        %v781 = vunpack.c.l.b16 %v377
        %v782 = vunpack.c.h.b16 %v377
        %v783 = vunpack.c.l.b16 %v378
        %v784 = vunpack.c.h.b16 %v378
        %v785 = vunpack.c.l.b16 %v379
        %v786 = vunpack.c.h.b16 %v379
        %v787 = vunpack.c.l.b16 %v380
        %v788 = vunpack.c.h.b16 %v380
        %v789 = vunpack.c.l.b16 %v381
        %v790 = vunpack.c.h.b16 %v381
        %v791 = vunpack.c.l.b16 %v382
        %v792 = vunpack.c.h.b16 %v382
        %v793 = vunpack.c.l.b16 %v383
        %v794 = vunpack.c.h.b16 %v383
        %v795 = vunpack.c.l.b16 %v384
        %v796 = vunpack.c.h.b16 %v384
        %v797 = vunpack.c.l.b16 %v385
        %v798 = vunpack.c.h.b16 %v385
        %v799 = vunpack.c.l.b16 %v386
        %v800 = vunpack.c.h.b16 %v386
        %v801 = vunpack.c.l.b16 %v387
        %v802 = vunpack.c.h.b16 %v387
        %v803 = vunpack.c.l.b16 %v388
        %v804 = vunpack.c.h.b16 %v388
        %v805 = vunpack.c.l.b16 %v389
        %v806 = vunpack.c.h.b16 %v389
        %v807 = vunpack.c.l.b16 %v390
        %v808 = vunpack.c.h.b16 %v390
        %v809 = vunpack.c.l.b16 %v391
        %v810 = vunpack.c.h.b16 %v391
        %v811 = vunpack.c.l.b16 %v392
        %v812 = vunpack.c.h.b16 %v392
        %v813 = vunpack.c.l.b16 %v393
        %v814 = vunpack.c.h.b16 %v393
        %v815 = vunpack.c.l.b16 %v394
        %v816 = vunpack.c.h.b16 %v394
        %v817 = vunpack.c.l.b16 %v395
        %v818 = vunpack.c.h.b16 %v395
        %v819 = vunpack.c.l.b16 %v396
        %v820 = vunpack.c.h.b16 %v396
        %v821 = vpack.c.b16 %v569, %v565
        %v822 = vpack.c.b16 %v570, %v566
        %v823 = vpack.c.b16 %v571, %v567
        %v824 = vpack.c.b16 %v572, %v568
        %v825 = vpack.c.b16 %v577, %v573
        %v826 = vpack.c.b16 %v578, %v574
        %v827 = vpack.c.b16 %v579, %v575
        %v828 = vpack.c.b16 %v580, %v576
        %v829 = vpack.c.b16 %v585, %v581
        %v830 = vpack.c.b16 %v586, %v582
        %v831 = vpack.c.b16 %v587, %v583
        %v832 = vpack.c.b16 %v588, %v584
        %v833 = vpack.c.b16 %v593, %v589
        %v834 = vpack.c.b16 %v594, %v590
        %v835 = vpack.c.b16 %v595, %v591
        %v836 = vpack.c.b16 %v596, %v592
        %v837 = vpack.c.b16 %v601, %v597
        %v838 = vpack.c.b16 %v602, %v598
        %v839 = vpack.c.b16 %v603, %v599
        %v840 = vpack.c.b16 %v604, %v600
        %v841 = vpack.c.b16 %v609, %v605
        %v842 = vpack.c.b16 %v610, %v606
        %v843 = vpack.c.b16 %v611, %v607
        %v844 = vpack.c.b16 %v612, %v608
        %v845 = vpack.c.b16 %v617, %v613
        %v846 = vpack.c.b16 %v618, %v614
        %v847 = vpack.c.b16 %v619, %v615
        %v848 = vpack.c.b16 %v620, %v616
        %v849 = vpack.c.b16 %v625, %v621
        %v850 = vpack.c.b16 %v626, %v622
        %v851 = vpack.c.b16 %v627, %v623
        %v852 = vpack.c.b16 %v628, %v624
        %v853 = vpack.c.b16 %v633, %v629
        %v854 = vpack.c.b16 %v634, %v630
        %v855 = vpack.c.b16 %v635, %v631
        %v856 = vpack.c.b16 %v636, %v632
        %v857 = vpack.c.b16 %v641, %v637
        %v858 = vpack.c.b16 %v642, %v638
        %v859 = vpack.c.b16 %v643, %v639
        %v860 = vpack.c.b16 %v644, %v640
        %v861 = vpack.c.b16 %v649, %v645
        %v862 = vpack.c.b16 %v650, %v646
        %v863 = vpack.c.b16 %v651, %v647
        %v864 = vpack.c.b16 %v652, %v648
        %v865 = vpack.c.b16 %v657, %v653
        %v866 = vpack.c.b16 %v658, %v654
        %v867 = vpack.c.b16 %v659, %v655
        %v868 = vpack.c.b16 %v660, %v656
        %v869 = vpack.c.b16 %v665, %v661
        %v870 = vpack.c.b16 %v666, %v662
        %v871 = vpack.c.b16 %v667, %v663
        %v872 = vpack.c.b16 %v668, %v664
        %v873 = vpack.c.b16 %v673, %v669
        %v874 = vpack.c.b16 %v674, %v670
        %v875 = vpack.c.b16 %v675, %v671
        %v876 = vpack.c.b16 %v676, %v672
        %v877 = vpack.c.b16 %v681, %v677
        %v878 = vpack.c.b16 %v682, %v678
        %v879 = vpack.c.b16 %v683, %v679
        %v880 = vpack.c.b16 %v684, %v680
        %v881 = vpack.c.b16 %v689, %v685
        %v882 = vpack.c.b16 %v690, %v686
        %v883 = vpack.c.b16 %v691, %v687
        %v884 = vpack.c.b16 %v692, %v688
        %v885 = vpack.c.b16 %v697, %v693
        %v886 = vpack.c.b16 %v698, %v694
        %v887 = vpack.c.b16 %v699, %v695
        %v888 = vpack.c.b16 %v700, %v696
        %v889 = vpack.c.b16 %v705, %v701
        %v890 = vpack.c.b16 %v706, %v702
        %v891 = vpack.c.b16 %v707, %v703
        %v892 = vpack.c.b16 %v708, %v704
        %v893 = vpack.c.b16 %v713, %v709
        %v894 = vpack.c.b16 %v714, %v710
        %v895 = vpack.c.b16 %v715, %v711
        %v896 = vpack.c.b16 %v716, %v712
        %v897 = vpack.c.b16 %v721, %v717
        %v898 = vpack.c.b16 %v722, %v718
        %v899 = vpack.c.b16 %v723, %v719
        %v900 = vpack.c.b16 %v724, %v720
        %v901 = vpack.c.b16 %v729, %v725
        %v902 = vpack.c.b16 %v730, %v726
        %v903 = vpack.c.b16 %v731, %v727
        %v904 = vpack.c.b16 %v732, %v728
        %v905 = vpack.c.b16 %v737, %v733
        %v906 = vpack.c.b16 %v738, %v734
        %v907 = vpack.c.b16 %v739, %v735
        %v908 = vpack.c.b16 %v740, %v736
        %v909 = vpack.c.b16 %v745, %v741
        %v910 = vpack.c.b16 %v746, %v742
        %v911 = vpack.c.b16 %v747, %v743
        %v912 = vpack.c.b16 %v748, %v744
        %v913 = vpack.c.b16 %v753, %v749
        %v914 = vpack.c.b16 %v754, %v750
        %v915 = vpack.c.b16 %v755, %v751
        %v916 = vpack.c.b16 %v756, %v752
        %v917 = vpack.c.b16 %v761, %v757
        %v918 = vpack.c.b16 %v762, %v758
        %v919 = vpack.c.b16 %v763, %v759
        %v920 = vpack.c.b16 %v764, %v760
        %v921 = vpack.c.b16 %v769, %v765
        %v922 = vpack.c.b16 %v770, %v766
        %v923 = vpack.c.b16 %v771, %v767
        %v924 = vpack.c.b16 %v772, %v768
        %v925 = vpack.c.b16 %v777, %v773
        %v926 = vpack.c.b16 %v778, %v774
        %v927 = vpack.c.b16 %v779, %v775
        %v928 = vpack.c.b16 %v780, %v776
        %v929 = vpack.c.b16 %v785, %v781
        %v930 = vpack.c.b16 %v786, %v782
        %v931 = vpack.c.b16 %v787, %v783
        %v932 = vpack.c.b16 %v788, %v784
        %v933 = vpack.c.b16 %v793, %v789
        %v934 = vpack.c.b16 %v794, %v790
        %v935 = vpack.c.b16 %v795, %v791
        %v936 = vpack.c.b16 %v796, %v792
        %v937 = vpack.c.b16 %v801, %v797
        %v938 = vpack.c.b16 %v802, %v798
        %v939 = vpack.c.b16 %v803, %v799
        %v940 = vpack.c.b16 %v804, %v800
        %v941 = vpack.c.b16 %v809, %v805
        %v942 = vpack.c.b16 %v810, %v806
        %v943 = vpack.c.b16 %v811, %v807
        %v944 = vpack.c.b16 %v812, %v808
        %v945 = vpack.c.b16 %v817, %v813
        %v946 = vpack.c.b16 %v818, %v814
        %v947 = vpack.c.b16 %v819, %v815
        %v948 = vpack.c.b16 %v820, %v816
        %1077 = vmatprep.subr.bf16.mxu0 %v822
        %1078 = vmatpush1.bf16.msra.mxu0 %v821
        %1079 = vmatprep.subr.bf16.mxu0 %v826
        %1080 = vmatpush1.bf16.msra.mxu0 %v825
        %1081 = vmatprep.subr.bf16.mxu0 %v830
        %1082 = vmatpush1.bf16.msra.mxu0 %v829
        %1083 = vmatprep.subr.bf16.mxu0 %v834
        %1084 = vmatpush1.bf16.msra.mxu0 %v833
        %1085 = vmatprep.subr.bf16.mxu0 %v838
        %1086 = vmatpush1.bf16.msra.mxu0 %v837
        %1087 = vmatprep.subr.bf16.mxu0 %v842
        %1088 = vmatpush1.bf16.msra.mxu0 %v841
        %1089 = vmatprep.subr.bf16.mxu0 %v846
        %1090 = vmatpush1.bf16.msra.mxu0 %v845
        %1091 = vmatprep.subr.bf16.mxu0 %v850
        %1092 = vmatpush1.bf16.msra.mxu0 %v849
        %1093 = vmatprep.subr.bf16.mxu0 %v854
        %1094 = vmatpush1.bf16.msra.mxu0 %v853
        %1095 = vmatprep.subr.bf16.mxu0 %v858
        %1096 = vmatpush1.bf16.msra.mxu0 %v857
        %1097 = vmatprep.subr.bf16.mxu0 %v862
        %1098 = vmatpush1.bf16.msra.mxu0 %v861
        %1099 = vmatprep.subr.bf16.mxu0 %v866
        %1100 = vmatpush1.bf16.msra.mxu0 %v865
        %1101 = vmatprep.subr.bf16.mxu0 %v870
        %1102 = vmatpush1.bf16.msra.mxu0 %v869
        %1103 = vmatprep.subr.bf16.mxu0 %v874
        %1104 = vmatpush1.bf16.msra.mxu0 %v873
        %1105 = vmatprep.subr.bf16.mxu0 %v878
        %1106 = vmatpush1.bf16.msra.mxu0 %v877
        %1107 = vmatprep.subr.bf16.mxu0 %v882
        %1108 = vmatpush1.bf16.msra.mxu0 %v881
        %1109 = vmatprep.mubr.bf16.mxu0 %v422
        %1110 = vmatmul.mubr.bf16.gmra.mrb[0].mxu0 %v421
        %v1111 = vpop.f32.mrb[0].mxu0
        %v1112 = vadd.f32 0.0, %v1111
        %v1113 = vpop.f32.mrb[0].mxu0
        %v1114 = vadd.f32 0.0, %v1113
        %v1115 = vpop.f32.mrb[0].mxu0
        %v1116 = vadd.f32 0.0, %v1115
        %v1117 = vpop.f32.mrb[0].mxu0
        %v1118 = vadd.f32 0.0, %v1117
        %1119 = vmatprep.mubr.bf16.mxu0 %v426
        %1120 = vmatmul.mubr.bf16.gmra.mrb[0].mxu0 %v425
        %v1121 = vpop.f32.mrb[0].mxu0
        %v1122 = vadd.f32 0.0, %v1121
        %v1123 = vpop.f32.mrb[0].mxu0
        %v1124 = vadd.f32 0.0, %v1123
        %v1125 = vpop.f32.mrb[0].mxu0
        %v1126 = vadd.f32 0.0, %v1125
        %v1127 = vpop.f32.mrb[0].mxu0
        %v1128 = vadd.f32 0.0, %v1127
        %1129 = vdwg.mxu0
        %1130 = vmatprep.subr.bf16.mxu0 %v886
        %1131 = vmatpush1.bf16.msra.mxu0 %v885
        %1132 = vmatprep.subr.bf16.mxu0 %v890
        %1133 = vmatpush1.bf16.msra.mxu0 %v889
        %1134 = vmatprep.subr.bf16.mxu0 %v894
        %1135 = vmatpush1.bf16.msra.mxu0 %v893
        %1136 = vmatprep.subr.bf16.mxu0 %v898
        %1137 = vmatpush1.bf16.msra.mxu0 %v897
        %1138 = vmatprep.subr.bf16.mxu0 %v902
        %1139 = vmatpush1.bf16.msra.mxu0 %v901
        %1140 = vmatprep.subr.bf16.mxu0 %v906
        %1141 = vmatpush1.bf16.msra.mxu0 %v905
        %1142 = vmatprep.subr.bf16.mxu0 %v910
        %1143 = vmatpush1.bf16.msra.mxu0 %v909
        %1144 = vmatprep.subr.bf16.mxu0 %v914
        %1145 = vmatpush1.bf16.msra.mxu0 %v913
        %1146 = vmatprep.subr.bf16.mxu0 %v918
        %1147 = vmatpush1.bf16.msra.mxu0 %v917
        %1148 = vmatprep.subr.bf16.mxu0 %v922
        %1149 = vmatpush1.bf16.msra.mxu0 %v921
        %1150 = vmatprep.subr.bf16.mxu0 %v926
        %1151 = vmatpush1.bf16.msra.mxu0 %v925
        %1152 = vmatprep.subr.bf16.mxu0 %v930
        %1153 = vmatpush1.bf16.msra.mxu0 %v929
        %1154 = vmatprep.subr.bf16.mxu0 %v934
        %1155 = vmatpush1.bf16.msra.mxu0 %v933
        %1156 = vmatprep.subr.bf16.mxu0 %v938
        %1157 = vmatpush1.bf16.msra.mxu0 %v937
        %1158 = vmatprep.subr.bf16.mxu0 %v942
        %1159 = vmatpush1.bf16.msra.mxu0 %v941
        %1160 = vmatprep.subr.bf16.mxu0 %v946
        %1161 = vmatpush1.bf16.msra.mxu0 %v945
        %1162 = vmatprep.mubr.bf16.mxu0 %v424
        %1163 = vmatmul.mubr.bf16.gmra.mrb[0].mxu0 %v423
        %v1164 = vpop.f32.mrb[0].mxu0
        %v1165 = vadd.f32 %v1112, %v1164
        %v1166 = vpop.f32.mrb[0].mxu0
        %v1167 = vadd.f32 %v1114, %v1166
        %v1168 = vpop.f32.mrb[0].mxu0
        %v1169 = vadd.f32 %v1116, %v1168
        %v1170 = vpop.f32.mrb[0].mxu0
        %v1171 = vadd.f32 %v1118, %v1170
        %1172 = vmatprep.mubr.bf16.mxu0 %v428
        %1173 = vmatmul.mubr.bf16.gmra.mrb[0].mxu0 %v427
        %v1174 = vpop.f32.mrb[0].mxu0
        %v1175 = vadd.f32 %v1122, %v1174
        %v1176 = vpop.f32.mrb[0].mxu0
        %v1177 = vadd.f32 %v1124, %v1176
        %v1178 = vpop.f32.mrb[0].mxu0
        %v1179 = vadd.f32 %v1126, %v1178
        %v1180 = vpop.f32.mrb[0].mxu0
        %v1181 = vadd.f32 %v1128, %v1180
        %1182 = vdwg.mxu0
        %1183 = vmatprep.subr.bf16.mxu0 %v824
        %1184 = vmatpush1.bf16.msra.mxu0 %v823
        %1185 = vmatprep.subr.bf16.mxu0 %v828
        %1186 = vmatpush1.bf16.msra.mxu0 %v827
        %1187 = vmatprep.subr.bf16.mxu0 %v832
        %1188 = vmatpush1.bf16.msra.mxu0 %v831
        %1189 = vmatprep.subr.bf16.mxu0 %v836
        %1190 = vmatpush1.bf16.msra.mxu0 %v835
        %1191 = vmatprep.subr.bf16.mxu0 %v840
        %1192 = vmatpush1.bf16.msra.mxu0 %v839
        %1193 = vmatprep.subr.bf16.mxu0 %v844
        %1194 = vmatpush1.bf16.msra.mxu0 %v843
        %1195 = vmatprep.subr.bf16.mxu0 %v848
        %1196 = vmatpush1.bf16.msra.mxu0 %v847
        %1197 = vmatprep.subr.bf16.mxu0 %v852
        %1198 = vmatpush1.bf16.msra.mxu0 %v851
        %1199 = vmatprep.subr.bf16.mxu0 %v856
        %1200 = vmatpush1.bf16.msra.mxu0 %v855
        %1201 = vmatprep.subr.bf16.mxu0 %v860
        %1202 = vmatpush1.bf16.msra.mxu0 %v859
        %1203 = vmatprep.subr.bf16.mxu0 %v864
        %1204 = vmatpush1.bf16.msra.mxu0 %v863
        %1205 = vmatprep.subr.bf16.mxu0 %v868
        %1206 = vmatpush1.bf16.msra.mxu0 %v867
        %1207 = vmatprep.subr.bf16.mxu0 %v872
        %1208 = vmatpush1.bf16.msra.mxu0 %v871
        %1209 = vmatprep.subr.bf16.mxu0 %v876
        %1210 = vmatpush1.bf16.msra.mxu0 %v875
        %1211 = vmatprep.subr.bf16.mxu0 %v880
        %1212 = vmatpush1.bf16.msra.mxu0 %v879
        %1213 = vmatprep.subr.bf16.mxu0 %v884
        %1214 = vmatpush1.bf16.msra.mxu0 %v883
        %1215 = vmatprep.mubr.bf16.mxu0 %v422
        %1216 = vmatmul.mubr.bf16.gmra.mrb[0].mxu0 %v421
        %v1217 = vpop.f32.mrb[0].mxu0
        %v1218 = vadd.f32 0.0, %v1217
        %v1219 = vpop.f32.mrb[0].mxu0
        %v1220 = vadd.f32 0.0, %v1219
        %v1221 = vpop.f32.mrb[0].mxu0
        %v1222 = vadd.f32 0.0, %v1221
        %v1223 = vpop.f32.mrb[0].mxu0
        %v1224 = vadd.f32 0.0, %v1223
        %1225 = vmatprep.mubr.bf16.mxu0 %v426
        %1226 = vmatmul.mubr.bf16.gmra.mrb[0].mxu0 %v425
        %v1227 = vpop.f32.mrb[0].mxu0
        %v1228 = vadd.f32 0.0, %v1227
        %v1229 = vpop.f32.mrb[0].mxu0
        %v1230 = vadd.f32 0.0, %v1229
        %v1231 = vpop.f32.mrb[0].mxu0
        %v1232 = vadd.f32 0.0, %v1231
        %v1233 = vpop.f32.mrb[0].mxu0
        %v1234 = vadd.f32 0.0, %v1233
        %1235 = vdwg.mxu0
        %1236 = vmatprep.subr.bf16.mxu0 %v888
        %1237 = vmatpush1.bf16.msra.mxu0 %v887
        %1238 = vmatprep.subr.bf16.mxu0 %v892
        %1239 = vmatpush1.bf16.msra.mxu0 %v891
        %1240 = vmatprep.subr.bf16.mxu0 %v896
        %1241 = vmatpush1.bf16.msra.mxu0 %v895
        %1242 = vmatprep.subr.bf16.mxu0 %v900
        %1243 = vmatpush1.bf16.msra.mxu0 %v899
        %1244 = vmatprep.subr.bf16.mxu0 %v904
        %1245 = vmatpush1.bf16.msra.mxu0 %v903
        %1246 = vmatprep.subr.bf16.mxu0 %v908
        %1247 = vmatpush1.bf16.msra.mxu0 %v907
        %1248 = vmatprep.subr.bf16.mxu0 %v912
        %1249 = vmatpush1.bf16.msra.mxu0 %v911
        %1250 = vmatprep.subr.bf16.mxu0 %v916
        %1251 = vmatpush1.bf16.msra.mxu0 %v915
        %1252 = vmatprep.subr.bf16.mxu0 %v920
        %1253 = vmatpush1.bf16.msra.mxu0 %v919
        %1254 = vmatprep.subr.bf16.mxu0 %v924
        %1255 = vmatpush1.bf16.msra.mxu0 %v923
        %1256 = vmatprep.subr.bf16.mxu0 %v928
        %1257 = vmatpush1.bf16.msra.mxu0 %v927
        %1258 = vmatprep.subr.bf16.mxu0 %v932
        %1259 = vmatpush1.bf16.msra.mxu0 %v931
        %1260 = vmatprep.subr.bf16.mxu0 %v936
        %1261 = vmatpush1.bf16.msra.mxu0 %v935
        %1262 = vmatprep.subr.bf16.mxu0 %v940
        %1263 = vmatpush1.bf16.msra.mxu0 %v939
        %1264 = vmatprep.subr.bf16.mxu0 %v944
        %1265 = vmatpush1.bf16.msra.mxu0 %v943
        %1266 = vmatprep.subr.bf16.mxu0 %v948
        %1267 = vmatpush1.bf16.msra.mxu0 %v947
        %1268 = vmatprep.mubr.bf16.mxu0 %v424
        %1269 = vmatmul.mubr.bf16.gmra.mrb[0].mxu0 %v423
        %v1270 = vpop.f32.mrb[0].mxu0
        %v1271 = vadd.f32 %v1218, %v1270
        %v1272 = vpop.f32.mrb[0].mxu0
        %v1273 = vadd.f32 %v1220, %v1272
        %v1274 = vpop.f32.mrb[0].mxu0
        %v1275 = vadd.f32 %v1222, %v1274
        %v1276 = vpop.f32.mrb[0].mxu0
        %v1277 = vadd.f32 %v1224, %v1276
        %1278 = vmatprep.mubr.bf16.mxu0 %v428
        %1279 = vmatmul.mubr.bf16.gmra.mrb[0].mxu0 %v427
        %v1280 = vpop.f32.mrb[0].mxu0
        %v1281 = vadd.f32 %v1228, %v1280
        %v1282 = vpop.f32.mrb[0].mxu0
        %v1283 = vadd.f32 %v1230, %v1282
        %v1284 = vpop.f32.mrb[0].mxu0
        %v1285 = vadd.f32 %v1232, %v1284
        %v1286 = vpop.f32.mrb[0].mxu0
        %v1287 = vadd.f32 %v1234, %v1286
        %1288 = vdwg.mxu0
        %v1289 = vadd.f32 %v245, %v1165
        %v1290 = vadd.f32 %v246, %v1167
        %v1291 = vadd.f32 %v247, %v1271
        %v1292 = vadd.f32 %v248, %v1273
        %v1293 = vadd.f32 %v249, %v1169
        %v1294 = vadd.f32 %v250, %v1171
        %v1295 = vadd.f32 %v251, %v1275
        %v1296 = vadd.f32 %v252, %v1277
        %v1297 = vadd.f32 %v253, %v1175
        %v1298 = vadd.f32 %v254, %v1177
        %v1299 = vadd.f32 %v255, %v1281
        %v1300 = vadd.f32 %v256, %v1283
        %v1301 = vadd.f32 %v257, %v1179
        %v1302 = vadd.f32 %v258, %v1181
        %v1303 = vadd.f32 %v259, %v1285
        %v1304 = vadd.f32 %v260, %v1287
        %1305 = vst [vmem:[#allocation2] sm:$0xff] %v1289
        %1306 = vst [vmem:[#allocation2 + $0x8] sm:$0xff] %v1290
        %1307 = vst [vmem:[#allocation2 + $0x10] sm:$0xff] %v1291
        %1308 = vst [vmem:[#allocation2 + $0x18] sm:$0xff] %v1292
        %1309 = vst [vmem:[#allocation2 + $0x20] sm:$0xff] %v1293
        %1310 = vst [vmem:[#allocation2 + $0x28] sm:$0xff] %v1294
        %1311 = vst [vmem:[#allocation2 + $0x30] sm:$0xff] %v1295
        %1312 = vst [vmem:[#allocation2 + $0x38] sm:$0xff] %v1296
        %1313 = vst [vmem:[#allocation2 + $0x40] sm:$0xff] %v1297
        %1314 = vst [vmem:[#allocation2 + $0x48] sm:$0xff] %v1298
        %1315 = vst [vmem:[#allocation2 + $0x50] sm:$0xff] %v1299
        %1316 = vst [vmem:[#allocation2 + $0x58] sm:$0xff] %v1300
        %1317 = vst [vmem:[#allocation2 + $0x60] sm:$0xff] %v1301
        %1318 = vst [vmem:[#allocation2 + $0x68] sm:$0xff] %v1302
        %1319 = vst [vmem:[#allocation2 + $0x70] sm:$0xff] %v1303
        %1320 = vst [vmem:[#allocation2 + $0x78] sm:$0xff] %v1304
        %p1321 = scmp.eq.s32.totalorder %s18, 7
        // Predicated region
        $region56: #{critic_forward.8} parent=46 // pred_check
          %p1322 = pneg %p1321
        $region57: #{critic_forward.8} parent=46 // pred_check_branch
          %1324 = sbr.rel (%p1322) target = $region59
        $region58: #{critic_forward.8} parent=46 // pred_region
          %v1325 = vld [vmem:[#allocation2] sm:$0xff]
          %v1326 = vld [vmem:[#allocation2 + $0x8] sm:$0xff]
          %v1327 = vld [vmem:[#allocation2 + $0x10] sm:$0xff]
          %v1328 = vld [vmem:[#allocation2 + $0x18] sm:$0xff]
          %v1329 = vld [vmem:[#allocation2 + $0x20] sm:$0xff]
          %v1330 = vld [vmem:[#allocation2 + $0x28] sm:$0xff]
          %v1331 = vld [vmem:[#allocation2 + $0x30] sm:$0xff]
          %v1332 = vld [vmem:[#allocation2 + $0x38] sm:$0xff]
          %v1333 = vld [vmem:[#allocation2 + $0x40] sm:$0xff]
          %v1334 = vld [vmem:[#allocation2 + $0x48] sm:$0xff]
          %v1335 = vld [vmem:[#allocation2 + $0x50] sm:$0xff]
          %v1336 = vld [vmem:[#allocation2 + $0x58] sm:$0xff]
          %v1337 = vld [vmem:[#allocation2 + $0x60] sm:$0xff]
          %v1338 = vld [vmem:[#allocation2 + $0x68] sm:$0xff]
          %v1339 = vld [vmem:[#allocation2 + $0x70] sm:$0xff]
          %v1340 = vld [vmem:[#allocation2 + $0x78] sm:$0xff]
          %vm1341 = vcmp.ge.f32.partialorder %v1325, 0.0
          %vm1342 = vcmp.ge.f32.partialorder %v1326, 0.0
          %vm1343 = vcmp.ge.f32.partialorder %v1327, 0.0
          %vm1344 = vcmp.ge.f32.partialorder %v1328, 0.0
          %vm1345 = vcmp.ge.f32.partialorder %v1329, 0.0
          %vm1346 = vcmp.ge.f32.partialorder %v1330, 0.0
          %vm1347 = vcmp.ge.f32.partialorder %v1331, 0.0
          %vm1348 = vcmp.ge.f32.partialorder %v1332, 0.0
          %vm1349 = vcmp.ge.f32.partialorder %v1333, 0.0
          %vm1350 = vcmp.ge.f32.partialorder %v1334, 0.0
          %vm1351 = vcmp.ge.f32.partialorder %v1335, 0.0
          %vm1352 = vcmp.ge.f32.partialorder %v1336, 0.0
          %vm1353 = vcmp.ge.f32.partialorder %v1337, 0.0
          %vm1354 = vcmp.ge.f32.partialorder %v1338, 0.0
          %vm1355 = vcmp.ge.f32.partialorder %v1339, 0.0
          %vm1356 = vcmp.ge.f32.partialorder %v1340, 0.0
          %v1357 = vmul.f32 %v1325, 0.2
          %v1358 = vmul.f32 %v1326, 0.2
          %v1359 = vmul.f32 %v1327, 0.2
          %v1360 = vmul.f32 %v1328, 0.2
          %v1361 = vmul.f32 %v1329, 0.2
          %v1362 = vmul.f32 %v1330, 0.2
          %v1363 = vmul.f32 %v1331, 0.2
          %v1364 = vmul.f32 %v1332, 0.2
          %v1365 = vmul.f32 %v1333, 0.2
          %v1366 = vmul.f32 %v1334, 0.2
          %v1367 = vmul.f32 %v1335, 0.2
          %v1368 = vmul.f32 %v1336, 0.2
          %v1369 = vmul.f32 %v1337, 0.2
          %v1370 = vmul.f32 %v1338, 0.2
          %v1371 = vmul.f32 %v1339, 0.2
          %v1372 = vmul.f32 %v1340, 0.2
          %v1373 = vsel %vm1341, %v1325, %v1357
          %v1374 = vsel %vm1342, %v1326, %v1358
          %v1375 = vsel %vm1343, %v1327, %v1359
          %v1376 = vsel %vm1344, %v1328, %v1360
          %v1377 = vsel %vm1345, %v1329, %v1361
          %v1378 = vsel %vm1346, %v1330, %v1362
          %v1379 = vsel %vm1347, %v1331, %v1363
          %v1380 = vsel %vm1348, %v1332, %v1364
          %v1381 = vsel %vm1349, %v1333, %v1365
          %v1382 = vsel %vm1350, %v1334, %v1366
          %v1383 = vsel %vm1351, %v1335, %v1367
          %v1384 = vsel %vm1352, %v1336, %v1368
          %v1385 = vsel %vm1353, %v1337, %v1369
          %v1386 = vsel %vm1354, %v1338, %v1370
          %v1387 = vsel %vm1355, %v1339, %v1371
          %v1388 = vsel %vm1356, %v1340, %v1372
          %v1389 = vpack.c.bf16 %v1377, %v1373
          %v1390 = vpack.c.bf16 %v1378, %v1374
          %v1391 = vpack.c.bf16 %v1379, %v1375
          %v1392 = vpack.c.bf16 %v1380, %v1376
          %v1393 = vpack.c.bf16 %v1385, %v1381
          %v1394 = vpack.c.bf16 %v1386, %v1382
          %v1395 = vpack.c.bf16 %v1387, %v1383
          %v1396 = vpack.c.bf16 %v1388, %v1384
          %v1405 = vunpack.c.l.b16 %v1389
          %v1406 = vunpack.c.l.b16 %v1390
          %v1407 = vunpack.c.l.b16 %v1391
          %v1408 = vunpack.c.l.b16 %v1392
          %v1409 = vunpack.c.h.b16 %v1389
          %v1410 = vunpack.c.h.b16 %v1390
          %v1411 = vunpack.c.h.b16 %v1391
          %v1412 = vunpack.c.h.b16 %v1392
          %v1413 = vunpack.c.l.b16 %v1393
          %v1414 = vunpack.c.l.b16 %v1394
          %v1415 = vunpack.c.l.b16 %v1395
          %v1416 = vunpack.c.l.b16 %v1396
          %v1417 = vunpack.c.h.b16 %v1393
          %v1418 = vunpack.c.h.b16 %v1394
          %v1419 = vunpack.c.h.b16 %v1395
          %v1420 = vunpack.c.h.b16 %v1396
          %v1421 = vpack.c.b16 %v1406, %v1405
          %v1422 = vpack.c.b16 %v1408, %v1407
          %v1423 = vpack.c.b16 %v1410, %v1409
          %v1424 = vpack.c.b16 %v1412, %v1411
          %v1425 = vpack.c.b16 %v1414, %v1413
          %v1426 = vpack.c.b16 %v1416, %v1415
          %v1427 = vpack.c.b16 %v1418, %v1417
          %v1428 = vpack.c.b16 %v1420, %v1419
          %1437 = vst [vmem:[%s223] sm:$0xff] %v1421
          %1438 = vst [vmem:[%s223 + $0x8] sm:$0xff] %v1422
          %1439 = vst [vmem:[%s223 + $0x10] sm:$0xff] %v1423
          %1440 = vst [vmem:[%s223 + $0x18] sm:$0xff] %v1424
          %1441 = vst [vmem:[%s223 + $0x20] sm:$0xff] %v1425
          %1442 = vst [vmem:[%s223 + $0x28] sm:$0xff] %v1426
          %1443 = vst [vmem:[%s223 + $0x30] sm:$0xff] %v1427
          %1444 = vst [vmem:[%s223 + $0x38] sm:$0xff] %v1428
        $region59: #{critic_forward.8} parent=46 // pred_fallthru
          _
        %s1445 = smul.u32 4, %s17
        %p1446 = scmp.lt.s32.totalorder %s1445, 3
        %s1447 = scalar_select %p1446, %s1445, 3
        %s1448 = smul.addr %s1447, 4
        %s1449 = smul.addr %s1448, 4
        %s1450 = scalar_lea.vmem %s2, %s1449
        // Predicated region
        $region60: #{critic_forward.8} parent=46 // pred_check
          %p1451 = pneg %p97
        $region61: #{critic_forward.8} parent=46 // pred_check_branch
          %1453 = sbr.rel (%p1451) target = $region63
        $region62: #{critic_forward.8} parent=46 // pred_region
          %s1454 = smul.u32 4, %s17
        $region63: #{critic_forward.8} parent=46 // pred_fallthru
          _
        // Predicated region
        $region64: #{critic_forward.8} parent=46 // pred_check
          %p1455 = pneg %p97
        $region65: #{critic_forward.8} parent=46 // pred_check_branch
          %1457 = sbr.rel (%p1455) target = $region67
        $region66: #{critic_forward.8} parent=46 // pred_region
          %s1458 = smul.u32 4, %s17
          %p1459 = scmp.lt.s32.totalorder %s1458, 3
          %s1460 = scalar_select %p1459, %s1458, 3
          %s1461 = smul.addr %s1460, 4
          %s1462 = smul.addr %s1461, 4
          %s1463 = scalar_lea.vmem %s2, %s1462
        $region67: #{critic_forward.8} parent=46 // pred_fallthru
          _
      $region47: #{critic_forward.8} parent=5 // pred_fallthru
        _
      %p1464 = scmp.le.s32.totalorder 2, %s8
      // Predicated region
      $region68: #{critic_forward.8} parent=5 // pred_check
        %p1465 = pneg %p1464
      $region69: #{critic_forward.8} parent=5 // pred_check_branch
        %1467 = sbr.rel (%p1465) target = $region71
      $region70: #{critic_forward.8} parent=5 // pred_region
        %s1468 = ssub.s32 %s8, 2
      $region71: #{critic_forward.8} parent=5 // pred_fallthru
        _
    $region6: #{critic_forward.8} parent=1 // loop_footer
      %s12 = sadd.s32 1, %s8
    $region7: #{critic_forward.8} parent=1 // loop_footer_branch
      %7 = sbr.rel target = $region3
    $region8: #{critic_forward.8} parent=1 // loop_exit
      _

// kernel: critic_forward.9
$region0: #{critic_forward.9}
  #allocation0 [shape = 'u32[]', space=smem, size = 0x4, offset = 0x4, fixed_abs, tag = 'smem constant byte address 0x4 - core index']
  #allocation1 [shape = 'u32[144,128]{1,0:T(1,128)}', space=vmem, size = 0x12000, scoped, tag = 'internal scratch']
  %s0 = inlined_call_operand.vmem [shape: bf16[2,8192], index: 0, kind: input, shape index: {}]
  %s1 = inlined_call_operand.vmem [shape: bf16[1,8192], index: 1, kind: input, shape index: {}]
  %s2 = inlined_call_operand.vmem [shape: f32[2,1], index: 2, kind: output, shape index: {}]
  %s3 = sld [smem:[#allocation0]]
  $region18: #{critic_forward.9} parent=0
    _
  %s5 = ssub.s32 1, %s3
  %s6 = scalar_select 0, %s5, %s3
  // Predicated region
  $region2: #{critic_forward.9} parent=0 // pred_check
    _
  $region3: #{critic_forward.9} parent=0 // pred_check_branch
    %8 = sbr.rel (0) target = $region5
  $region4: #{critic_forward.9} parent=0 // pred_region
    _
  $region5: #{critic_forward.9} parent=0 // pred_fallthru
    _
  // Predicated region
  $region6: #{critic_forward.9} parent=0 // pred_check
    _
  $region7: #{critic_forward.9} parent=0 // pred_check_branch
    %10 = sbr.rel (0) target = $region9
  $region8: #{critic_forward.9} parent=0 // pred_region
    _
  $region9: #{critic_forward.9} parent=0 // pred_fallthru
    _
  %v11 = vld [vmem:[%s0] sm:$0xff]
  %v12 = vld [vmem:[%s0 + $0x8] sm:$0xff]
  %v13 = vld [vmem:[%s0 + $0x10] sm:$0xff]
  %v14 = vld [vmem:[%s0 + $0x18] sm:$0xff]
  %v15 = vld [vmem:[%s0 + $0x20] sm:$0xff]
  %v16 = vld [vmem:[%s0 + $0x28] sm:$0xff]
  %v17 = vld [vmem:[%s0 + $0x30] sm:$0xff]
  %v18 = vld [vmem:[%s0 + $0x38] sm:$0xff]
  %v19 = vunpack.c.l.bf16 %v11
  %v20 = vunpack.c.h.bf16 %v11
  %v21 = vunpack.c.l.bf16 %v12
  %v22 = vunpack.c.h.bf16 %v12
  %v23 = vunpack.c.l.bf16 %v13
  %v24 = vunpack.c.h.bf16 %v13
  %v25 = vunpack.c.l.bf16 %v14
  %v26 = vunpack.c.h.bf16 %v14
  %v27 = vunpack.c.l.bf16 %v15
  %v28 = vunpack.c.h.bf16 %v15
  %v29 = vunpack.c.l.bf16 %v16
  %v30 = vunpack.c.h.bf16 %v16
  %v31 = vunpack.c.l.bf16 %v17
  %v32 = vunpack.c.h.bf16 %v17
  %v33 = vunpack.c.l.bf16 %v18
  %v34 = vunpack.c.h.bf16 %v18
  %v35 = vld [vmem:[%s1] sm:$0xff]
  %v36 = vld [vmem:[%s1 + $0x8] sm:$0xff]
  %v37 = vld [vmem:[%s1 + $0x10] sm:$0xff]
  %v38 = vld [vmem:[%s1 + $0x18] sm:$0xff]
  %v39 = vld [vmem:[%s1 + $0x20] sm:$0xff]
  %v40 = vld [vmem:[%s1 + $0x28] sm:$0xff]
  %v41 = vld [vmem:[%s1 + $0x30] sm:$0xff]
  %v42 = vld [vmem:[%s1 + $0x38] sm:$0xff]
  %v43 = vunpack.c.l.bf16 %v35
  %v44 = vunpack.c.h.bf16 %v35
  %v45 = vunpack.c.l.bf16 %v36
  %v46 = vunpack.c.h.bf16 %v36
  %v47 = vunpack.c.l.bf16 %v37
  %v48 = vunpack.c.h.bf16 %v37
  %v49 = vunpack.c.l.bf16 %v38
  %v50 = vunpack.c.h.bf16 %v38
  %v51 = vunpack.c.l.bf16 %v39
  %v52 = vunpack.c.h.bf16 %v39
  %v53 = vunpack.c.l.bf16 %v40
  %v54 = vunpack.c.h.bf16 %v40
  %v55 = vunpack.c.l.bf16 %v41
  %v56 = vunpack.c.h.bf16 %v41
  %v57 = vunpack.c.l.bf16 %v42
  %v58 = vunpack.c.h.bf16 %v42
  %v75 = vlaneseq
  %v76 = vshrl.u32 %v75, 7
  %v77 = vsub.s32 0, %v76
  %v78 = vrot.slane %v43, %v77
  %v79 = vlaneseq
  %v80 = vshrl.u32 %v79, 7
  %v81 = vsub.s32 2, %v80
  %v82 = vrot.slane %v43, %v81
  %v83 = vlaneseq
  %v84 = vshrl.u32 %v83, 7
  %v85 = vsub.s32 4, %v84
  %v86 = vrot.slane %v43, %v85
  %v87 = vlaneseq
  %v88 = vshrl.u32 %v87, 7
  %v89 = vsub.s32 6, %v88
  %v90 = vrot.slane %v43, %v89
  %v91 = vlaneseq
  %v92 = vshrl.u32 %v91, 7
  %v93 = vsub.s32 0, %v92
  %v94 = vrot.slane %v44, %v93
  %v95 = vlaneseq
  %v96 = vshrl.u32 %v95, 7
  %v97 = vsub.s32 2, %v96
  %v98 = vrot.slane %v44, %v97
  %v99 = vlaneseq
  %v100 = vshrl.u32 %v99, 7
  %v101 = vsub.s32 4, %v100
  %v102 = vrot.slane %v44, %v101
  %v103 = vlaneseq
  %v104 = vshrl.u32 %v103, 7
  %v105 = vsub.s32 6, %v104
  %v106 = vrot.slane %v44, %v105
  %v107 = vlaneseq
  %v108 = vshrl.u32 %v107, 7
  %v109 = vsub.s32 0, %v108
  %v110 = vrot.slane %v45, %v109
  %v111 = vlaneseq
  %v112 = vshrl.u32 %v111, 7
  %v113 = vsub.s32 2, %v112
  %v114 = vrot.slane %v45, %v113
  %v115 = vlaneseq
  %v116 = vshrl.u32 %v115, 7
  %v117 = vsub.s32 4, %v116
  %v118 = vrot.slane %v45, %v117
  %v119 = vlaneseq
  %v120 = vshrl.u32 %v119, 7
  %v121 = vsub.s32 6, %v120
  %v122 = vrot.slane %v45, %v121
  %v123 = vlaneseq
  %v124 = vshrl.u32 %v123, 7
  %v125 = vsub.s32 0, %v124
  %v126 = vrot.slane %v46, %v125
  %v127 = vlaneseq
  %v128 = vshrl.u32 %v127, 7
  %v129 = vsub.s32 2, %v128
  %v130 = vrot.slane %v46, %v129
  %v131 = vlaneseq
  %v132 = vshrl.u32 %v131, 7
  %v133 = vsub.s32 4, %v132
  %v134 = vrot.slane %v46, %v133
  %v135 = vlaneseq
  %v136 = vshrl.u32 %v135, 7
  %v137 = vsub.s32 6, %v136
  %v138 = vrot.slane %v46, %v137
  %v139 = vlaneseq
  %v140 = vshrl.u32 %v139, 7
  %v141 = vsub.s32 0, %v140
  %v142 = vrot.slane %v47, %v141
  %v143 = vlaneseq
  %v144 = vshrl.u32 %v143, 7
  %v145 = vsub.s32 2, %v144
  %v146 = vrot.slane %v47, %v145
  %v147 = vlaneseq
  %v148 = vshrl.u32 %v147, 7
  %v149 = vsub.s32 4, %v148
  %v150 = vrot.slane %v47, %v149
  %v151 = vlaneseq
  %v152 = vshrl.u32 %v151, 7
  %v153 = vsub.s32 6, %v152
  %v154 = vrot.slane %v47, %v153
  %v155 = vlaneseq
  %v156 = vshrl.u32 %v155, 7
  %v157 = vsub.s32 0, %v156
  %v158 = vrot.slane %v48, %v157
  %v159 = vlaneseq
  %v160 = vshrl.u32 %v159, 7
  %v161 = vsub.s32 2, %v160
  %v162 = vrot.slane %v48, %v161
  %v163 = vlaneseq
  %v164 = vshrl.u32 %v163, 7
  %v165 = vsub.s32 4, %v164
  %v166 = vrot.slane %v48, %v165
  %v167 = vlaneseq
  %v168 = vshrl.u32 %v167, 7
  %v169 = vsub.s32 6, %v168
  %v170 = vrot.slane %v48, %v169
  %v171 = vlaneseq
  %v172 = vshrl.u32 %v171, 7
  %v173 = vsub.s32 0, %v172
  %v174 = vrot.slane %v49, %v173
  %v175 = vlaneseq
  %v176 = vshrl.u32 %v175, 7
  %v177 = vsub.s32 2, %v176
  %v178 = vrot.slane %v49, %v177
  %v179 = vlaneseq
  %v180 = vshrl.u32 %v179, 7
  %v181 = vsub.s32 4, %v180
  %v182 = vrot.slane %v49, %v181
  %v183 = vlaneseq
  %v184 = vshrl.u32 %v183, 7
  %v185 = vsub.s32 6, %v184
  %v186 = vrot.slane %v49, %v185
  %v187 = vlaneseq
  %v188 = vshrl.u32 %v187, 7
  %v189 = vsub.s32 0, %v188
  %v190 = vrot.slane %v50, %v189
  %v191 = vlaneseq
  %v192 = vshrl.u32 %v191, 7
  %v193 = vsub.s32 2, %v192
  %v194 = vrot.slane %v50, %v193
  %v195 = vlaneseq
  %v196 = vshrl.u32 %v195, 7
  %v197 = vsub.s32 4, %v196
  %v198 = vrot.slane %v50, %v197
  %v199 = vlaneseq
  %v200 = vshrl.u32 %v199, 7
  %v201 = vsub.s32 6, %v200
  %v202 = vrot.slane %v50, %v201
  %v203 = vlaneseq
  %v204 = vshrl.u32 %v203, 7
  %v205 = vsub.s32 0, %v204
  %v206 = vrot.slane %v51, %v205
  %v207 = vlaneseq
  %v208 = vshrl.u32 %v207, 7
  %v209 = vsub.s32 2, %v208
  %v210 = vrot.slane %v51, %v209
  %v211 = vlaneseq
  %v212 = vshrl.u32 %v211, 7
  %v213 = vsub.s32 4, %v212
  %v214 = vrot.slane %v51, %v213
  %v215 = vlaneseq
  %v216 = vshrl.u32 %v215, 7
  %v217 = vsub.s32 6, %v216
  %v218 = vrot.slane %v51, %v217
  %v219 = vlaneseq
  %v220 = vshrl.u32 %v219, 7
  %v221 = vsub.s32 0, %v220
  %v222 = vrot.slane %v52, %v221
  %v223 = vlaneseq
  %v224 = vshrl.u32 %v223, 7
  %v225 = vsub.s32 2, %v224
  %v226 = vrot.slane %v52, %v225
  %v227 = vlaneseq
  %v228 = vshrl.u32 %v227, 7
  %v229 = vsub.s32 4, %v228
  %v230 = vrot.slane %v52, %v229
  %v231 = vlaneseq
  %v232 = vshrl.u32 %v231, 7
  %v233 = vsub.s32 6, %v232
  %v234 = vrot.slane %v52, %v233
  %v235 = vlaneseq
  %v236 = vshrl.u32 %v235, 7
  %v237 = vsub.s32 0, %v236
  %v238 = vrot.slane %v53, %v237
  %v239 = vlaneseq
  %v240 = vshrl.u32 %v239, 7
  %v241 = vsub.s32 2, %v240
  %v242 = vrot.slane %v53, %v241
  %v243 = vlaneseq
  %v244 = vshrl.u32 %v243, 7
  %v245 = vsub.s32 4, %v244
  %v246 = vrot.slane %v53, %v245
  %v247 = vlaneseq
  %v248 = vshrl.u32 %v247, 7
  %v249 = vsub.s32 6, %v248
  %v250 = vrot.slane %v53, %v249
  %v251 = vlaneseq
  %v252 = vshrl.u32 %v251, 7
  %v253 = vsub.s32 0, %v252
  %v254 = vrot.slane %v54, %v253
  %v255 = vlaneseq
  %v256 = vshrl.u32 %v255, 7
  %v257 = vsub.s32 2, %v256
  %v258 = vrot.slane %v54, %v257
  %v259 = vlaneseq
  %v260 = vshrl.u32 %v259, 7
  %v261 = vsub.s32 4, %v260
  %v262 = vrot.slane %v54, %v261
  %v263 = vlaneseq
  %v264 = vshrl.u32 %v263, 7
  %v265 = vsub.s32 6, %v264
  %v266 = vrot.slane %v54, %v265
  %v267 = vlaneseq
  %v268 = vshrl.u32 %v267, 7
  %v269 = vsub.s32 0, %v268
  %v270 = vrot.slane %v55, %v269
  %v271 = vlaneseq
  %v272 = vshrl.u32 %v271, 7
  %v273 = vsub.s32 2, %v272
  %v274 = vrot.slane %v55, %v273
  %v275 = vlaneseq
  %v276 = vshrl.u32 %v275, 7
  %v277 = vsub.s32 4, %v276
  %v278 = vrot.slane %v55, %v277
  %v279 = vlaneseq
  %v280 = vshrl.u32 %v279, 7
  %v281 = vsub.s32 6, %v280
  %v282 = vrot.slane %v55, %v281
  %v283 = vlaneseq
  %v284 = vshrl.u32 %v283, 7
  %v285 = vsub.s32 0, %v284
  %v286 = vrot.slane %v56, %v285
  %v287 = vlaneseq
  %v288 = vshrl.u32 %v287, 7
  %v289 = vsub.s32 2, %v288
  %v290 = vrot.slane %v56, %v289
  %v291 = vlaneseq
  %v292 = vshrl.u32 %v291, 7
  %v293 = vsub.s32 4, %v292
  %v294 = vrot.slane %v56, %v293
  %v295 = vlaneseq
  %v296 = vshrl.u32 %v295, 7
  %v297 = vsub.s32 6, %v296
  %v298 = vrot.slane %v56, %v297
  %v299 = vlaneseq
  %v300 = vshrl.u32 %v299, 7
  %v301 = vsub.s32 0, %v300
  %v302 = vrot.slane %v57, %v301
  %v303 = vlaneseq
  %v304 = vshrl.u32 %v303, 7
  %v305 = vsub.s32 2, %v304
  %v306 = vrot.slane %v57, %v305
  %v307 = vlaneseq
  %v308 = vshrl.u32 %v307, 7
  %v309 = vsub.s32 4, %v308
  %v310 = vrot.slane %v57, %v309
  %v311 = vlaneseq
  %v312 = vshrl.u32 %v311, 7
  %v313 = vsub.s32 6, %v312
  %v314 = vrot.slane %v57, %v313
  %v315 = vlaneseq
  %v316 = vshrl.u32 %v315, 7
  %v317 = vsub.s32 0, %v316
  %v318 = vrot.slane %v58, %v317
  %v319 = vlaneseq
  %v320 = vshrl.u32 %v319, 7
  %v321 = vsub.s32 2, %v320
  %v322 = vrot.slane %v58, %v321
  %v323 = vlaneseq
  %v324 = vshrl.u32 %v323, 7
  %v325 = vsub.s32 4, %v324
  %v326 = vrot.slane %v58, %v325
  %v327 = vlaneseq
  %v328 = vshrl.u32 %v327, 7
  %v329 = vsub.s32 6, %v328
  %v330 = vrot.slane %v58, %v329
  %v395 = vlaneseq
  %v396 = vshrl.u32 %v395, 7
  %v397 = vsub.s32 0, %v396
  %v398 = vrot.slane %v78, %v397
  %v399 = vlaneseq
  %v400 = vshrl.u32 %v399, 7
  %v401 = vsub.s32 0, %v400
  %v402 = vrot.slane %v82, %v401
  %v403 = vlaneseq
  %v404 = vshrl.u32 %v403, 7
  %v405 = vsub.s32 0, %v404
  %v406 = vrot.slane %v86, %v405
  %v407 = vlaneseq
  %v408 = vshrl.u32 %v407, 7
  %v409 = vsub.s32 0, %v408
  %v410 = vrot.slane %v90, %v409
  %v411 = vlaneseq
  %v412 = vshrl.u32 %v411, 7
  %v413 = vsub.s32 0, %v412
  %v414 = vrot.slane %v94, %v413
  %v415 = vlaneseq
  %v416 = vshrl.u32 %v415, 7
  %v417 = vsub.s32 0, %v416
  %v418 = vrot.slane %v98, %v417
  %v419 = vlaneseq
  %v420 = vshrl.u32 %v419, 7
  %v421 = vsub.s32 0, %v420
  %v422 = vrot.slane %v102, %v421
  %v423 = vlaneseq
  %v424 = vshrl.u32 %v423, 7
  %v425 = vsub.s32 0, %v424
  %v426 = vrot.slane %v106, %v425
  %v427 = vlaneseq
  %v428 = vshrl.u32 %v427, 7
  %v429 = vsub.s32 0, %v428
  %v430 = vrot.slane %v110, %v429
  %v431 = vlaneseq
  %v432 = vshrl.u32 %v431, 7
  %v433 = vsub.s32 0, %v432
  %v434 = vrot.slane %v114, %v433
  %v435 = vlaneseq
  %v436 = vshrl.u32 %v435, 7
  %v437 = vsub.s32 0, %v436
  %v438 = vrot.slane %v118, %v437
  %v439 = vlaneseq
  %v440 = vshrl.u32 %v439, 7
  %v441 = vsub.s32 0, %v440
  %v442 = vrot.slane %v122, %v441
  %v443 = vlaneseq
  %v444 = vshrl.u32 %v443, 7
  %v445 = vsub.s32 0, %v444
  %v446 = vrot.slane %v126, %v445
  %v447 = vlaneseq
  %v448 = vshrl.u32 %v447, 7
  %v449 = vsub.s32 0, %v448
  %v450 = vrot.slane %v130, %v449
  %v451 = vlaneseq
  %v452 = vshrl.u32 %v451, 7
  %v453 = vsub.s32 0, %v452
  %v454 = vrot.slane %v134, %v453
  %v455 = vlaneseq
  %v456 = vshrl.u32 %v455, 7
  %v457 = vsub.s32 0, %v456
  %v458 = vrot.slane %v138, %v457
  %v459 = vlaneseq
  %v460 = vshrl.u32 %v459, 7
  %v461 = vsub.s32 0, %v460
  %v462 = vrot.slane %v142, %v461
  %v463 = vlaneseq
  %v464 = vshrl.u32 %v463, 7
  %v465 = vsub.s32 0, %v464
  %v466 = vrot.slane %v146, %v465
  %v467 = vlaneseq
  %v468 = vshrl.u32 %v467, 7
  %v469 = vsub.s32 0, %v468
  %v470 = vrot.slane %v150, %v469
  %v471 = vlaneseq
  %v472 = vshrl.u32 %v471, 7
  %v473 = vsub.s32 0, %v472
  %v474 = vrot.slane %v154, %v473
  %v475 = vlaneseq
  %v476 = vshrl.u32 %v475, 7
  %v477 = vsub.s32 0, %v476
  %v478 = vrot.slane %v158, %v477
  %v479 = vlaneseq
  %v480 = vshrl.u32 %v479, 7
  %v481 = vsub.s32 0, %v480
  %v482 = vrot.slane %v162, %v481
  %v483 = vlaneseq
  %v484 = vshrl.u32 %v483, 7
  %v485 = vsub.s32 0, %v484
  %v486 = vrot.slane %v166, %v485
  %v487 = vlaneseq
  %v488 = vshrl.u32 %v487, 7
  %v489 = vsub.s32 0, %v488
  %v490 = vrot.slane %v170, %v489
  %v491 = vlaneseq
  %v492 = vshrl.u32 %v491, 7
  %v493 = vsub.s32 0, %v492
  %v494 = vrot.slane %v174, %v493
  %v495 = vlaneseq
  %v496 = vshrl.u32 %v495, 7
  %v497 = vsub.s32 0, %v496
  %v498 = vrot.slane %v178, %v497
  %v499 = vlaneseq
  %v500 = vshrl.u32 %v499, 7
  %v501 = vsub.s32 0, %v500
  %v502 = vrot.slane %v182, %v501
  %v503 = vlaneseq
  %v504 = vshrl.u32 %v503, 7
  %v505 = vsub.s32 0, %v504
  %v506 = vrot.slane %v186, %v505
  %v507 = vlaneseq
  %v508 = vshrl.u32 %v507, 7
  %v509 = vsub.s32 0, %v508
  %v510 = vrot.slane %v190, %v509
  %v511 = vlaneseq
  %v512 = vshrl.u32 %v511, 7
  %v513 = vsub.s32 0, %v512
  %v514 = vrot.slane %v194, %v513
  %v515 = vlaneseq
  %v516 = vshrl.u32 %v515, 7
  %v517 = vsub.s32 0, %v516
  %v518 = vrot.slane %v198, %v517
  %v519 = vlaneseq
  %v520 = vshrl.u32 %v519, 7
  %v521 = vsub.s32 0, %v520
  %v522 = vrot.slane %v202, %v521
  %v523 = vlaneseq
  %v524 = vshrl.u32 %v523, 7
  %v525 = vsub.s32 0, %v524
  %v526 = vrot.slane %v206, %v525
  %v527 = vlaneseq
  %v528 = vshrl.u32 %v527, 7
  %v529 = vsub.s32 0, %v528
  %v530 = vrot.slane %v210, %v529
  %v531 = vlaneseq
  %v532 = vshrl.u32 %v531, 7
  %v533 = vsub.s32 0, %v532
  %v534 = vrot.slane %v214, %v533
  %v535 = vlaneseq
  %v536 = vshrl.u32 %v535, 7
  %v537 = vsub.s32 0, %v536
  %v538 = vrot.slane %v218, %v537
  %v539 = vlaneseq
  %v540 = vshrl.u32 %v539, 7
  %v541 = vsub.s32 0, %v540
  %v542 = vrot.slane %v222, %v541
  %v543 = vlaneseq
  %v544 = vshrl.u32 %v543, 7
  %v545 = vsub.s32 0, %v544
  %v546 = vrot.slane %v226, %v545
  %v547 = vlaneseq
  %v548 = vshrl.u32 %v547, 7
  %v549 = vsub.s32 0, %v548
  %v550 = vrot.slane %v230, %v549
  %v551 = vlaneseq
  %v552 = vshrl.u32 %v551, 7
  %v553 = vsub.s32 0, %v552
  %v554 = vrot.slane %v234, %v553
  %v555 = vlaneseq
  %v556 = vshrl.u32 %v555, 7
  %v557 = vsub.s32 0, %v556
  %v558 = vrot.slane %v238, %v557
  %v559 = vlaneseq
  %v560 = vshrl.u32 %v559, 7
  %v561 = vsub.s32 0, %v560
  %v562 = vrot.slane %v242, %v561
  %v563 = vlaneseq
  %v564 = vshrl.u32 %v563, 7
  %v565 = vsub.s32 0, %v564
  %v566 = vrot.slane %v246, %v565
  %v567 = vlaneseq
  %v568 = vshrl.u32 %v567, 7
  %v569 = vsub.s32 0, %v568
  %v570 = vrot.slane %v250, %v569
  %v571 = vlaneseq
  %v572 = vshrl.u32 %v571, 7
  %v573 = vsub.s32 0, %v572
  %v574 = vrot.slane %v254, %v573
  %v575 = vlaneseq
  %v576 = vshrl.u32 %v575, 7
  %v577 = vsub.s32 0, %v576
  %v578 = vrot.slane %v258, %v577
  %v579 = vlaneseq
  %v580 = vshrl.u32 %v579, 7
  %v581 = vsub.s32 0, %v580
  %v582 = vrot.slane %v262, %v581
  %v583 = vlaneseq
  %v584 = vshrl.u32 %v583, 7
  %v585 = vsub.s32 0, %v584
  %v586 = vrot.slane %v266, %v585
  %v587 = vlaneseq
  %v588 = vshrl.u32 %v587, 7
  %v589 = vsub.s32 0, %v588
  %v590 = vrot.slane %v270, %v589
  %v591 = vlaneseq
  %v592 = vshrl.u32 %v591, 7
  %v593 = vsub.s32 0, %v592
  %v594 = vrot.slane %v274, %v593
  %v595 = vlaneseq
  %v596 = vshrl.u32 %v595, 7
  %v597 = vsub.s32 0, %v596
  %v598 = vrot.slane %v278, %v597
  %v599 = vlaneseq
  %v600 = vshrl.u32 %v599, 7
  %v601 = vsub.s32 0, %v600
  %v602 = vrot.slane %v282, %v601
  %v603 = vlaneseq
  %v604 = vshrl.u32 %v603, 7
  %v605 = vsub.s32 0, %v604
  %v606 = vrot.slane %v286, %v605
  %v607 = vlaneseq
  %v608 = vshrl.u32 %v607, 7
  %v609 = vsub.s32 0, %v608
  %v610 = vrot.slane %v290, %v609
  %v611 = vlaneseq
  %v612 = vshrl.u32 %v611, 7
  %v613 = vsub.s32 0, %v612
  %v614 = vrot.slane %v294, %v613
  %v615 = vlaneseq
  %v616 = vshrl.u32 %v615, 7
  %v617 = vsub.s32 0, %v616
  %v618 = vrot.slane %v298, %v617
  %v619 = vlaneseq
  %v620 = vshrl.u32 %v619, 7
  %v621 = vsub.s32 0, %v620
  %v622 = vrot.slane %v302, %v621
  %v623 = vlaneseq
  %v624 = vshrl.u32 %v623, 7
  %v625 = vsub.s32 0, %v624
  %v626 = vrot.slane %v306, %v625
  %v627 = vlaneseq
  %v628 = vshrl.u32 %v627, 7
  %v629 = vsub.s32 0, %v628
  %v630 = vrot.slane %v310, %v629
  %v631 = vlaneseq
  %v632 = vshrl.u32 %v631, 7
  %v633 = vsub.s32 0, %v632
  %v634 = vrot.slane %v314, %v633
  %v635 = vlaneseq
  %v636 = vshrl.u32 %v635, 7
  %v637 = vsub.s32 0, %v636
  %v638 = vrot.slane %v318, %v637
  %v639 = vlaneseq
  %v640 = vshrl.u32 %v639, 7
  %v641 = vsub.s32 0, %v640
  %v642 = vrot.slane %v322, %v641
  %v643 = vlaneseq
  %v644 = vshrl.u32 %v643, 7
  %v645 = vsub.s32 0, %v644
  %v646 = vrot.slane %v326, %v645
  %v647 = vlaneseq
  %v648 = vshrl.u32 %v647, 7
  %v649 = vsub.s32 0, %v648
  %v650 = vrot.slane %v330, %v649
  %v715 = vcombine.low %v398, %v402
  %v716 = vcombine.low %v406, %v410
  %v718 = vunpack.c.l.s4 1983009808
  %v719 = vunpack.c.0.s8 %v718
  %v720 = vlaneseq
  %v721 = vshrl.u32 %v720, 7
  %v722 = vsub.s32 %v719, %v721
  %v723 = vrot.slane %v715, %v722
  %v725 = vunpack.c.l.s4 1983009808
  %v726 = vunpack.c.0.s8 %v725
  %v727 = vlaneseq
  %v728 = vshrl.u32 %v727, 7
  %v729 = vsub.s32 %v726, %v728
  %v730 = vrot.slane %v716, %v729
  %v731 = vcombine.low %v723, %v730
  %v732 = vcombine.low %v414, %v418
  %v733 = vcombine.low %v422, %v426
  %v735 = vunpack.c.l.s4 1983009808
  %v736 = vunpack.c.0.s8 %v735
  %v737 = vlaneseq
  %v738 = vshrl.u32 %v737, 7
  %v739 = vsub.s32 %v736, %v738
  %v740 = vrot.slane %v732, %v739
  %v742 = vunpack.c.l.s4 1983009808
  %v743 = vunpack.c.0.s8 %v742
  %v744 = vlaneseq
  %v745 = vshrl.u32 %v744, 7
  %v746 = vsub.s32 %v743, %v745
  %v747 = vrot.slane %v733, %v746
  %v748 = vcombine.low %v740, %v747
  %v749 = vcombine.low %v430, %v434
  %v750 = vcombine.low %v438, %v442
  %v752 = vunpack.c.l.s4 1983009808
  %v753 = vunpack.c.0.s8 %v752
  %v754 = vlaneseq
  %v755 = vshrl.u32 %v754, 7
  %v756 = vsub.s32 %v753, %v755
  %v757 = vrot.slane %v749, %v756
  %v759 = vunpack.c.l.s4 1983009808
  %v760 = vunpack.c.0.s8 %v759
  %v761 = vlaneseq
  %v762 = vshrl.u32 %v761, 7
  %v763 = vsub.s32 %v760, %v762
  %v764 = vrot.slane %v750, %v763
  %v765 = vcombine.low %v757, %v764
  %v766 = vcombine.low %v446, %v450
  %v767 = vcombine.low %v454, %v458
  %v769 = vunpack.c.l.s4 1983009808
  %v770 = vunpack.c.0.s8 %v769
  %v771 = vlaneseq
  %v772 = vshrl.u32 %v771, 7
  %v773 = vsub.s32 %v770, %v772
  %v774 = vrot.slane %v766, %v773
  %v776 = vunpack.c.l.s4 1983009808
  %v777 = vunpack.c.0.s8 %v776
  %v778 = vlaneseq
  %v779 = vshrl.u32 %v778, 7
  %v780 = vsub.s32 %v777, %v779
  %v781 = vrot.slane %v767, %v780
  %v782 = vcombine.low %v774, %v781
  %v783 = vcombine.low %v462, %v466
  %v784 = vcombine.low %v470, %v474
  %v786 = vunpack.c.l.s4 1983009808
  %v787 = vunpack.c.0.s8 %v786
  %v788 = vlaneseq
  %v789 = vshrl.u32 %v788, 7
  %v790 = vsub.s32 %v787, %v789
  %v791 = vrot.slane %v783, %v790
  %v793 = vunpack.c.l.s4 1983009808
  %v794 = vunpack.c.0.s8 %v793
  %v795 = vlaneseq
  %v796 = vshrl.u32 %v795, 7
  %v797 = vsub.s32 %v794, %v796
  %v798 = vrot.slane %v784, %v797
  %v799 = vcombine.low %v791, %v798
  %v800 = vcombine.low %v478, %v482
  %v801 = vcombine.low %v486, %v490
  %v803 = vunpack.c.l.s4 1983009808
  %v804 = vunpack.c.0.s8 %v803
  %v805 = vlaneseq
  %v806 = vshrl.u32 %v805, 7
  %v807 = vsub.s32 %v804, %v806
  %v808 = vrot.slane %v800, %v807
  %v810 = vunpack.c.l.s4 1983009808
  %v811 = vunpack.c.0.s8 %v810
  %v812 = vlaneseq
  %v813 = vshrl.u32 %v812, 7
  %v814 = vsub.s32 %v811, %v813
  %v815 = vrot.slane %v801, %v814
  %v816 = vcombine.low %v808, %v815
  %v817 = vcombine.low %v494, %v498
  %v818 = vcombine.low %v502, %v506
  %v820 = vunpack.c.l.s4 1983009808
  %v821 = vunpack.c.0.s8 %v820
  %v822 = vlaneseq
  %v823 = vshrl.u32 %v822, 7
  %v824 = vsub.s32 %v821, %v823
  %v825 = vrot.slane %v817, %v824
  %v827 = vunpack.c.l.s4 1983009808
  %v828 = vunpack.c.0.s8 %v827
  %v829 = vlaneseq
  %v830 = vshrl.u32 %v829, 7
  %v831 = vsub.s32 %v828, %v830
  %v832 = vrot.slane %v818, %v831
  %v833 = vcombine.low %v825, %v832
  %v834 = vcombine.low %v510, %v514
  %v835 = vcombine.low %v518, %v522
  %v837 = vunpack.c.l.s4 1983009808
  %v838 = vunpack.c.0.s8 %v837
  %v839 = vlaneseq
  %v840 = vshrl.u32 %v839, 7
  %v841 = vsub.s32 %v838, %v840
  %v842 = vrot.slane %v834, %v841
  %v844 = vunpack.c.l.s4 1983009808
  %v845 = vunpack.c.0.s8 %v844
  %v846 = vlaneseq
  %v847 = vshrl.u32 %v846, 7
  %v848 = vsub.s32 %v845, %v847
  %v849 = vrot.slane %v835, %v848
  %v850 = vcombine.low %v842, %v849
  %v851 = vcombine.low %v526, %v530
  %v852 = vcombine.low %v534, %v538
  %v854 = vunpack.c.l.s4 1983009808
  %v855 = vunpack.c.0.s8 %v854
  %v856 = vlaneseq
  %v857 = vshrl.u32 %v856, 7
  %v858 = vsub.s32 %v855, %v857
  %v859 = vrot.slane %v851, %v858
  %v861 = vunpack.c.l.s4 1983009808
  %v862 = vunpack.c.0.s8 %v861
  %v863 = vlaneseq
  %v864 = vshrl.u32 %v863, 7
  %v865 = vsub.s32 %v862, %v864
  %v866 = vrot.slane %v852, %v865
  %v867 = vcombine.low %v859, %v866
  %v868 = vcombine.low %v542, %v546
  %v869 = vcombine.low %v550, %v554
  %v871 = vunpack.c.l.s4 1983009808
  %v872 = vunpack.c.0.s8 %v871
  %v873 = vlaneseq
  %v874 = vshrl.u32 %v873, 7
  %v875 = vsub.s32 %v872, %v874
  %v876 = vrot.slane %v868, %v875
  %v878 = vunpack.c.l.s4 1983009808
  %v879 = vunpack.c.0.s8 %v878
  %v880 = vlaneseq
  %v881 = vshrl.u32 %v880, 7
  %v882 = vsub.s32 %v879, %v881
  %v883 = vrot.slane %v869, %v882
  %v884 = vcombine.low %v876, %v883
  %v885 = vcombine.low %v558, %v562
  %v886 = vcombine.low %v566, %v570
  %v888 = vunpack.c.l.s4 1983009808
  %v889 = vunpack.c.0.s8 %v888
  %v890 = vlaneseq
  %v891 = vshrl.u32 %v890, 7
  %v892 = vsub.s32 %v889, %v891
  %v893 = vrot.slane %v885, %v892
  %v895 = vunpack.c.l.s4 1983009808
  %v896 = vunpack.c.0.s8 %v895
  %v897 = vlaneseq
  %v898 = vshrl.u32 %v897, 7
  %v899 = vsub.s32 %v896, %v898
  %v900 = vrot.slane %v886, %v899
  %v901 = vcombine.low %v893, %v900
  %v902 = vcombine.low %v574, %v578
  %v903 = vcombine.low %v582, %v586
  %v905 = vunpack.c.l.s4 1983009808
  %v906 = vunpack.c.0.s8 %v905
  %v907 = vlaneseq
  %v908 = vshrl.u32 %v907, 7
  %v909 = vsub.s32 %v906, %v908
  %v910 = vrot.slane %v902, %v909
  %v912 = vunpack.c.l.s4 1983009808
  %v913 = vunpack.c.0.s8 %v912
  %v914 = vlaneseq
  %v915 = vshrl.u32 %v914, 7
  %v916 = vsub.s32 %v913, %v915
  %v917 = vrot.slane %v903, %v916
  %v918 = vcombine.low %v910, %v917
  %v919 = vcombine.low %v590, %v594
  %v920 = vcombine.low %v598, %v602
  %v922 = vunpack.c.l.s4 1983009808
  %v923 = vunpack.c.0.s8 %v922
  %v924 = vlaneseq
  %v925 = vshrl.u32 %v924, 7
  %v926 = vsub.s32 %v923, %v925
  %v927 = vrot.slane %v919, %v926
  %v929 = vunpack.c.l.s4 1983009808
  %v930 = vunpack.c.0.s8 %v929
  %v931 = vlaneseq
  %v932 = vshrl.u32 %v931, 7
  %v933 = vsub.s32 %v930, %v932
  %v934 = vrot.slane %v920, %v933
  %v935 = vcombine.low %v927, %v934
  %v936 = vcombine.low %v606, %v610
  %v937 = vcombine.low %v614, %v618
  %v939 = vunpack.c.l.s4 1983009808
  %v940 = vunpack.c.0.s8 %v939
  %v941 = vlaneseq
  %v942 = vshrl.u32 %v941, 7
  %v943 = vsub.s32 %v940, %v942
  %v944 = vrot.slane %v936, %v943
  %v946 = vunpack.c.l.s4 1983009808
  %v947 = vunpack.c.0.s8 %v946
  %v948 = vlaneseq
  %v949 = vshrl.u32 %v948, 7
  %v950 = vsub.s32 %v947, %v949
  %v951 = vrot.slane %v937, %v950
  %v952 = vcombine.low %v944, %v951
  %v953 = vcombine.low %v622, %v626
  %v954 = vcombine.low %v630, %v634
  %v956 = vunpack.c.l.s4 1983009808
  %v957 = vunpack.c.0.s8 %v956
  %v958 = vlaneseq
  %v959 = vshrl.u32 %v958, 7
  %v960 = vsub.s32 %v957, %v959
  %v961 = vrot.slane %v953, %v960
  %v963 = vunpack.c.l.s4 1983009808
  %v964 = vunpack.c.0.s8 %v963
  %v965 = vlaneseq
  %v966 = vshrl.u32 %v965, 7
  %v967 = vsub.s32 %v964, %v966
  %v968 = vrot.slane %v954, %v967
  %v969 = vcombine.low %v961, %v968
  %v970 = vcombine.low %v638, %v642
  %v971 = vcombine.low %v646, %v650
  %v973 = vunpack.c.l.s4 1983009808
  %v974 = vunpack.c.0.s8 %v973
  %v975 = vlaneseq
  %v976 = vshrl.u32 %v975, 7
  %v977 = vsub.s32 %v974, %v976
  %v978 = vrot.slane %v970, %v977
  %v980 = vunpack.c.l.s4 1983009808
  %v981 = vunpack.c.0.s8 %v980
  %v982 = vlaneseq
  %v983 = vshrl.u32 %v982, 7
  %v984 = vsub.s32 %v981, %v983
  %v985 = vrot.slane %v971, %v984
  %v986 = vcombine.low %v978, %v985
  %v1003 = vmul.f32 %v19, %v731
  %v1004 = vmul.f32 %v20, %v748
  %v1005 = vmul.f32 %v21, %v765
  %v1006 = vmul.f32 %v22, %v782
  %v1007 = vmul.f32 %v23, %v799
  %v1008 = vmul.f32 %v24, %v816
  %v1009 = vmul.f32 %v25, %v833
  %v1010 = vmul.f32 %v26, %v850
  %v1011 = vmul.f32 %v27, %v867
  %v1012 = vmul.f32 %v28, %v884
  %v1013 = vmul.f32 %v29, %v901
  %v1014 = vmul.f32 %v30, %v918
  %v1015 = vmul.f32 %v31, %v935
  %v1016 = vmul.f32 %v32, %v952
  %v1017 = vmul.f32 %v33, %v969
  %v1018 = vmul.f32 %v34, %v986
  %v1035 = vcombine.high %v1003, %v1003
  %v1037 = vunpack.c.l.s4 1983009808
  %v1038 = vunpack.c.0.s8 %v1037
  %v1039 = vlaneseq
  %v1040 = vshrl.u32 %v1039, 7
  %v1041 = vsub.s32 %v1038, %v1040
  %v1042 = vrot.slane %v1003, %v1041
  %v1044 = vunpack.c.l.s4 1983009808
  %v1045 = vunpack.c.0.s8 %v1044
  %v1046 = vlaneseq
  %v1047 = vshrl.u32 %v1046, 7
  %v1048 = vsub.s32 %v1045, %v1047
  %v1049 = vrot.slane %v1035, %v1048
  %v1050 = vcombine.high %v1042, %v1042
  %v1051 = vcombine.high %v1049, %v1049
  %v1052 = vcombine.high %v1004, %v1004
  %v1054 = vunpack.c.l.s4 1983009808
  %v1055 = vunpack.c.0.s8 %v1054
  %v1056 = vlaneseq
  %v1057 = vshrl.u32 %v1056, 7
  %v1058 = vsub.s32 %v1055, %v1057
  %v1059 = vrot.slane %v1004, %v1058
  %v1061 = vunpack.c.l.s4 1983009808
  %v1062 = vunpack.c.0.s8 %v1061
  %v1063 = vlaneseq
  %v1064 = vshrl.u32 %v1063, 7
  %v1065 = vsub.s32 %v1062, %v1064
  %v1066 = vrot.slane %v1052, %v1065
  %v1067 = vcombine.high %v1059, %v1059
  %v1068 = vcombine.high %v1066, %v1066
  %v1069 = vcombine.high %v1005, %v1005
  %v1071 = vunpack.c.l.s4 1983009808
  %v1072 = vunpack.c.0.s8 %v1071
  %v1073 = vlaneseq
  %v1074 = vshrl.u32 %v1073, 7
  %v1075 = vsub.s32 %v1072, %v1074
  %v1076 = vrot.slane %v1005, %v1075
  %v1078 = vunpack.c.l.s4 1983009808
  %v1079 = vunpack.c.0.s8 %v1078
  %v1080 = vlaneseq
  %v1081 = vshrl.u32 %v1080, 7
  %v1082 = vsub.s32 %v1079, %v1081
  %v1083 = vrot.slane %v1069, %v1082
  %v1084 = vcombine.high %v1076, %v1076
  %v1085 = vcombine.high %v1083, %v1083
  %v1086 = vcombine.high %v1006, %v1006
  %v1088 = vunpack.c.l.s4 1983009808
  %v1089 = vunpack.c.0.s8 %v1088
  %v1090 = vlaneseq
  %v1091 = vshrl.u32 %v1090, 7
  %v1092 = vsub.s32 %v1089, %v1091
  %v1093 = vrot.slane %v1006, %v1092
  %v1095 = vunpack.c.l.s4 1983009808
  %v1096 = vunpack.c.0.s8 %v1095
  %v1097 = vlaneseq
  %v1098 = vshrl.u32 %v1097, 7
  %v1099 = vsub.s32 %v1096, %v1098
  %v1100 = vrot.slane %v1086, %v1099
  %v1101 = vcombine.high %v1093, %v1093
  %v1102 = vcombine.high %v1100, %v1100
  %v1103 = vcombine.high %v1007, %v1007
  %v1105 = vunpack.c.l.s4 1983009808
  %v1106 = vunpack.c.0.s8 %v1105
  %v1107 = vlaneseq
  %v1108 = vshrl.u32 %v1107, 7
  %v1109 = vsub.s32 %v1106, %v1108
  %v1110 = vrot.slane %v1007, %v1109
  %v1112 = vunpack.c.l.s4 1983009808
  %v1113 = vunpack.c.0.s8 %v1112
  %v1114 = vlaneseq
  %v1115 = vshrl.u32 %v1114, 7
  %v1116 = vsub.s32 %v1113, %v1115
  %v1117 = vrot.slane %v1103, %v1116
  %v1118 = vcombine.high %v1110, %v1110
  %v1119 = vcombine.high %v1117, %v1117
  %v1120 = vcombine.high %v1008, %v1008
  %v1122 = vunpack.c.l.s4 1983009808
  %v1123 = vunpack.c.0.s8 %v1122
  %v1124 = vlaneseq
  %v1125 = vshrl.u32 %v1124, 7
  %v1126 = vsub.s32 %v1123, %v1125
  %v1127 = vrot.slane %v1008, %v1126
  %v1129 = vunpack.c.l.s4 1983009808
  %v1130 = vunpack.c.0.s8 %v1129
  %v1131 = vlaneseq
  %v1132 = vshrl.u32 %v1131, 7
  %v1133 = vsub.s32 %v1130, %v1132
  %v1134 = vrot.slane %v1120, %v1133
  %v1135 = vcombine.high %v1127, %v1127
  %v1136 = vcombine.high %v1134, %v1134
  %v1137 = vcombine.high %v1009, %v1009
  %v1139 = vunpack.c.l.s4 1983009808
  %v1140 = vunpack.c.0.s8 %v1139
  %v1141 = vlaneseq
  %v1142 = vshrl.u32 %v1141, 7
  %v1143 = vsub.s32 %v1140, %v1142
  %v1144 = vrot.slane %v1009, %v1143
  %v1146 = vunpack.c.l.s4 1983009808
  %v1147 = vunpack.c.0.s8 %v1146
  %v1148 = vlaneseq
  %v1149 = vshrl.u32 %v1148, 7
  %v1150 = vsub.s32 %v1147, %v1149
  %v1151 = vrot.slane %v1137, %v1150
  %v1152 = vcombine.high %v1144, %v1144
  %v1153 = vcombine.high %v1151, %v1151
  %v1154 = vcombine.high %v1010, %v1010
  %v1156 = vunpack.c.l.s4 1983009808
  %v1157 = vunpack.c.0.s8 %v1156
  %v1158 = vlaneseq
  %v1159 = vshrl.u32 %v1158, 7
  %v1160 = vsub.s32 %v1157, %v1159
  %v1161 = vrot.slane %v1010, %v1160
  %v1163 = vunpack.c.l.s4 1983009808
  %v1164 = vunpack.c.0.s8 %v1163
  %v1165 = vlaneseq
  %v1166 = vshrl.u32 %v1165, 7
  %v1167 = vsub.s32 %v1164, %v1166
  %v1168 = vrot.slane %v1154, %v1167
  %v1169 = vcombine.high %v1161, %v1161
  %v1170 = vcombine.high %v1168, %v1168
  %v1171 = vcombine.high %v1011, %v1011
  %v1173 = vunpack.c.l.s4 1983009808
  %v1174 = vunpack.c.0.s8 %v1173
  %v1175 = vlaneseq
  %v1176 = vshrl.u32 %v1175, 7
  %v1177 = vsub.s32 %v1174, %v1176
  %v1178 = vrot.slane %v1011, %v1177
  %v1180 = vunpack.c.l.s4 1983009808
  %v1181 = vunpack.c.0.s8 %v1180
  %v1182 = vlaneseq
  %v1183 = vshrl.u32 %v1182, 7
  %v1184 = vsub.s32 %v1181, %v1183
  %v1185 = vrot.slane %v1171, %v1184
  %v1186 = vcombine.high %v1178, %v1178
  %v1187 = vcombine.high %v1185, %v1185
  %v1188 = vcombine.high %v1012, %v1012
  %v1190 = vunpack.c.l.s4 1983009808
  %v1191 = vunpack.c.0.s8 %v1190
  %v1192 = vlaneseq
  %v1193 = vshrl.u32 %v1192, 7
  %v1194 = vsub.s32 %v1191, %v1193
  %v1195 = vrot.slane %v1012, %v1194
  %v1197 = vunpack.c.l.s4 1983009808
  %v1198 = vunpack.c.0.s8 %v1197
  %v1199 = vlaneseq
  %v1200 = vshrl.u32 %v1199, 7
  %v1201 = vsub.s32 %v1198, %v1200
  %v1202 = vrot.slane %v1188, %v1201
  %v1203 = vcombine.high %v1195, %v1195
  %v1204 = vcombine.high %v1202, %v1202
  %v1205 = vcombine.high %v1013, %v1013
  %v1207 = vunpack.c.l.s4 1983009808
  %v1208 = vunpack.c.0.s8 %v1207
  %v1209 = vlaneseq
  %v1210 = vshrl.u32 %v1209, 7
  %v1211 = vsub.s32 %v1208, %v1210
  %v1212 = vrot.slane %v1013, %v1211
  %v1214 = vunpack.c.l.s4 1983009808
  %v1215 = vunpack.c.0.s8 %v1214
  %v1216 = vlaneseq
  %v1217 = vshrl.u32 %v1216, 7
  %v1218 = vsub.s32 %v1215, %v1217
  %v1219 = vrot.slane %v1205, %v1218
  %v1220 = vcombine.high %v1212, %v1212
  %v1221 = vcombine.high %v1219, %v1219
  %v1222 = vcombine.high %v1014, %v1014
  %v1224 = vunpack.c.l.s4 1983009808
  %v1225 = vunpack.c.0.s8 %v1224
  %v1226 = vlaneseq
  %v1227 = vshrl.u32 %v1226, 7
  %v1228 = vsub.s32 %v1225, %v1227
  %v1229 = vrot.slane %v1014, %v1228
  %v1231 = vunpack.c.l.s4 1983009808
  %v1232 = vunpack.c.0.s8 %v1231
  %v1233 = vlaneseq
  %v1234 = vshrl.u32 %v1233, 7
  %v1235 = vsub.s32 %v1232, %v1234
  %v1236 = vrot.slane %v1222, %v1235
  %v1237 = vcombine.high %v1229, %v1229
  %v1238 = vcombine.high %v1236, %v1236
  %v1239 = vcombine.high %v1015, %v1015
  %v1241 = vunpack.c.l.s4 1983009808
  %v1242 = vunpack.c.0.s8 %v1241
  %v1243 = vlaneseq
  %v1244 = vshrl.u32 %v1243, 7
  %v1245 = vsub.s32 %v1242, %v1244
  %v1246 = vrot.slane %v1015, %v1245
  %v1248 = vunpack.c.l.s4 1983009808
  %v1249 = vunpack.c.0.s8 %v1248
  %v1250 = vlaneseq
  %v1251 = vshrl.u32 %v1250, 7
  %v1252 = vsub.s32 %v1249, %v1251
  %v1253 = vrot.slane %v1239, %v1252
  %v1254 = vcombine.high %v1246, %v1246
  %v1255 = vcombine.high %v1253, %v1253
  %v1256 = vcombine.high %v1016, %v1016
  %v1258 = vunpack.c.l.s4 1983009808
  %v1259 = vunpack.c.0.s8 %v1258
  %v1260 = vlaneseq
  %v1261 = vshrl.u32 %v1260, 7
  %v1262 = vsub.s32 %v1259, %v1261
  %v1263 = vrot.slane %v1016, %v1262
  %v1265 = vunpack.c.l.s4 1983009808
  %v1266 = vunpack.c.0.s8 %v1265
  %v1267 = vlaneseq
  %v1268 = vshrl.u32 %v1267, 7
  %v1269 = vsub.s32 %v1266, %v1268
  %v1270 = vrot.slane %v1256, %v1269
  %v1271 = vcombine.high %v1263, %v1263
  %v1272 = vcombine.high %v1270, %v1270
  %v1273 = vcombine.high %v1017, %v1017
  %v1275 = vunpack.c.l.s4 1983009808
  %v1276 = vunpack.c.0.s8 %v1275
  %v1277 = vlaneseq
  %v1278 = vshrl.u32 %v1277, 7
  %v1279 = vsub.s32 %v1276, %v1278
  %v1280 = vrot.slane %v1017, %v1279
  %v1282 = vunpack.c.l.s4 1983009808
  %v1283 = vunpack.c.0.s8 %v1282
  %v1284 = vlaneseq
  %v1285 = vshrl.u32 %v1284, 7
  %v1286 = vsub.s32 %v1283, %v1285
  %v1287 = vrot.slane %v1273, %v1286
  %v1288 = vcombine.high %v1280, %v1280
  %v1289 = vcombine.high %v1287, %v1287
  %v1290 = vcombine.high %v1018, %v1018
  %v1292 = vunpack.c.l.s4 1983009808
  %v1293 = vunpack.c.0.s8 %v1292
  %v1294 = vlaneseq
  %v1295 = vshrl.u32 %v1294, 7
  %v1296 = vsub.s32 %v1293, %v1295
  %v1297 = vrot.slane %v1018, %v1296
  %v1299 = vunpack.c.l.s4 1983009808
  %v1300 = vunpack.c.0.s8 %v1299
  %v1301 = vlaneseq
  %v1302 = vshrl.u32 %v1301, 7
  %v1303 = vsub.s32 %v1300, %v1302
  %v1304 = vrot.slane %v1290, %v1303
  %v1305 = vcombine.high %v1297, %v1297
  %v1306 = vcombine.high %v1304, %v1304
  %vm1371 = vcmask 1041408
  %v1372 = vsel %vm1371, %v1042, 0.0
  %v1373 = vsel %vm1371, %v1050, 0.0
  %v1374 = vadd.f32 %v1372, %v1373
  %v1375 = vsel %vm1371, %v1049, 0.0
  %v1376 = vadd.f32 %v1374, %v1375
  %v1377 = vsel %vm1371, %v1051, 0.0
  %v1378 = vadd.f32 %v1376, %v1377
  %v1379 = vsel %vm1371, %v1059, 0.0
  %v1380 = vadd.f32 %v1378, %v1379
  %v1381 = vsel %vm1371, %v1067, 0.0
  %v1382 = vadd.f32 %v1380, %v1381
  %v1383 = vsel %vm1371, %v1066, 0.0
  %v1384 = vadd.f32 %v1382, %v1383
  %v1385 = vsel %vm1371, %v1068, 0.0
  %v1386 = vadd.f32 %v1384, %v1385
  %v1387 = vsel %vm1371, %v1076, 0.0
  %v1388 = vadd.f32 %v1386, %v1387
  %v1389 = vsel %vm1371, %v1084, 0.0
  %v1390 = vadd.f32 %v1388, %v1389
  %v1391 = vsel %vm1371, %v1083, 0.0
  %v1392 = vadd.f32 %v1390, %v1391
  %v1393 = vsel %vm1371, %v1085, 0.0
  %v1394 = vadd.f32 %v1392, %v1393
  %v1395 = vsel %vm1371, %v1093, 0.0
  %v1396 = vadd.f32 %v1394, %v1395
  %v1397 = vsel %vm1371, %v1101, 0.0
  %v1398 = vadd.f32 %v1396, %v1397
  %v1399 = vsel %vm1371, %v1100, 0.0
  %v1400 = vadd.f32 %v1398, %v1399
  %v1401 = vsel %vm1371, %v1102, 0.0
  %v1402 = vadd.f32 %v1400, %v1401
  %v1403 = vsel %vm1371, %v1110, 0.0
  %v1404 = vadd.f32 %v1402, %v1403
  %v1405 = vsel %vm1371, %v1118, 0.0
  %v1406 = vadd.f32 %v1404, %v1405
  %v1407 = vsel %vm1371, %v1117, 0.0
  %v1408 = vadd.f32 %v1406, %v1407
  %v1409 = vsel %vm1371, %v1119, 0.0
  %v1410 = vadd.f32 %v1408, %v1409
  %v1411 = vsel %vm1371, %v1127, 0.0
  %v1412 = vadd.f32 %v1410, %v1411
  %v1413 = vsel %vm1371, %v1135, 0.0
  %v1414 = vadd.f32 %v1412, %v1413
  %v1415 = vsel %vm1371, %v1134, 0.0
  %v1416 = vadd.f32 %v1414, %v1415
  %v1417 = vsel %vm1371, %v1136, 0.0
  %v1418 = vadd.f32 %v1416, %v1417
  %v1419 = vsel %vm1371, %v1144, 0.0
  %v1420 = vadd.f32 %v1418, %v1419
  %v1421 = vsel %vm1371, %v1152, 0.0
  %v1422 = vadd.f32 %v1420, %v1421
  %v1423 = vsel %vm1371, %v1151, 0.0
  %v1424 = vadd.f32 %v1422, %v1423
  %v1425 = vsel %vm1371, %v1153, 0.0
  %v1426 = vadd.f32 %v1424, %v1425
  %v1427 = vsel %vm1371, %v1161, 0.0
  %v1428 = vadd.f32 %v1426, %v1427
  %v1429 = vsel %vm1371, %v1169, 0.0
  %v1430 = vadd.f32 %v1428, %v1429
  %v1431 = vsel %vm1371, %v1168, 0.0
  %v1432 = vadd.f32 %v1430, %v1431
  %v1433 = vsel %vm1371, %v1170, 0.0
  %v1434 = vadd.f32 %v1432, %v1433
  %v1435 = vsel %vm1371, %v1178, 0.0
  %v1436 = vadd.f32 %v1434, %v1435
  %v1437 = vsel %vm1371, %v1186, 0.0
  %v1438 = vadd.f32 %v1436, %v1437
  %v1439 = vsel %vm1371, %v1185, 0.0
  %v1440 = vadd.f32 %v1438, %v1439
  %v1441 = vsel %vm1371, %v1187, 0.0
  %v1442 = vadd.f32 %v1440, %v1441
  %v1443 = vsel %vm1371, %v1195, 0.0
  %v1444 = vadd.f32 %v1442, %v1443
  %v1445 = vsel %vm1371, %v1203, 0.0
  %v1446 = vadd.f32 %v1444, %v1445
  %v1447 = vsel %vm1371, %v1202, 0.0
  %v1448 = vadd.f32 %v1446, %v1447
  %v1449 = vsel %vm1371, %v1204, 0.0
  %v1450 = vadd.f32 %v1448, %v1449
  %v1451 = vsel %vm1371, %v1212, 0.0
  %v1452 = vadd.f32 %v1450, %v1451
  %v1453 = vsel %vm1371, %v1220, 0.0
  %v1454 = vadd.f32 %v1452, %v1453
  %v1455 = vsel %vm1371, %v1219, 0.0
  %v1456 = vadd.f32 %v1454, %v1455
  %v1457 = vsel %vm1371, %v1221, 0.0
  %v1458 = vadd.f32 %v1456, %v1457
  %v1459 = vsel %vm1371, %v1229, 0.0
  %v1460 = vadd.f32 %v1458, %v1459
  %v1461 = vsel %vm1371, %v1237, 0.0
  %v1462 = vadd.f32 %v1460, %v1461
  %v1463 = vsel %vm1371, %v1236, 0.0
  %v1464 = vadd.f32 %v1462, %v1463
  %v1465 = vsel %vm1371, %v1238, 0.0
  %v1466 = vadd.f32 %v1464, %v1465
  %v1467 = vsel %vm1371, %v1246, 0.0
  %v1468 = vadd.f32 %v1466, %v1467
  %v1469 = vsel %vm1371, %v1254, 0.0
  %v1470 = vadd.f32 %v1468, %v1469
  %v1471 = vsel %vm1371, %v1253, 0.0
  %v1472 = vadd.f32 %v1470, %v1471
  %v1473 = vsel %vm1371, %v1255, 0.0
  %v1474 = vadd.f32 %v1472, %v1473
  %v1475 = vsel %vm1371, %v1263, 0.0
  %v1476 = vadd.f32 %v1474, %v1475
  %v1477 = vsel %vm1371, %v1271, 0.0
  %v1478 = vadd.f32 %v1476, %v1477
  %v1479 = vsel %vm1371, %v1270, 0.0
  %v1480 = vadd.f32 %v1478, %v1479
  %v1481 = vsel %vm1371, %v1272, 0.0
  %v1482 = vadd.f32 %v1480, %v1481
  %v1483 = vsel %vm1371, %v1280, 0.0
  %v1484 = vadd.f32 %v1482, %v1483
  %v1485 = vsel %vm1371, %v1288, 0.0
  %v1486 = vadd.f32 %v1484, %v1485
  %v1487 = vsel %vm1371, %v1287, 0.0
  %v1488 = vadd.f32 %v1486, %v1487
  %v1489 = vsel %vm1371, %v1289, 0.0
  %v1490 = vadd.f32 %v1488, %v1489
  %v1491 = vsel %vm1371, %v1297, 0.0
  %v1492 = vadd.f32 %v1490, %v1491
  %v1493 = vsel %vm1371, %v1305, 0.0
  %v1494 = vadd.f32 %v1492, %v1493
  %v1495 = vsel %vm1371, %v1304, 0.0
  %v1496 = vadd.f32 %v1494, %v1495
  %v1497 = vsel %vm1371, %v1306, 0.0
  %v1498 = vadd.f32 %v1496, %v1497
  %1499 = vadd.xlane.f32.xlu0 %v1498
  %v1500 = vpop.xlane.xlu0 %1499
  %vm1501 = vcmask 1024
  %1502 = vst.msk [vmem:[%s2] sm:$0x3] %vm1501, %v1500
  // Predicated region
  $region10: #{critic_forward.9} parent=0 // pred_check
    _
  $region11: #{critic_forward.9} parent=0 // pred_check_branch
    %1504 = sbr.rel (0) target = $region13
  $region12: #{critic_forward.9} parent=0 // pred_region
    _
  $region13: #{critic_forward.9} parent=0 // pred_fallthru
    _
  // Predicated region
  $region14: #{critic_forward.9} parent=0 // pred_check
    _
  $region15: #{critic_forward.9} parent=0 // pred_check_branch
    %1506 = sbr.rel (0) target = $region17
  $region16: #{critic_forward.9} parent=0 // pred_region
    _
  $region17: #{critic_forward.9} parent=0 // pred_fallthru
    _

</llo_original>
